<compile_context>
chip_gen: v7x
topology: tpu7x:2x2x1
jax: 0.10.0
libtpu: 0.0.40
codegen_flags: <defaults>
</compile_context>

<pallas_src>
import jax
import jax.numpy as jnp
from jax.experimental import pallas as pl
from jax.experimental.pallas import tpu as pltpu

F_IN = 5000          # true feature width of the PyTorch module (kept un-padded)
H1 = 256
H2 = 64


def _round_up(n, m):
    return ((n + m - 1) // m) * m


def _autoencoder_kernel(x_ref,
                        w1_ref, b1_ref,
                        w2_ref, b2_ref,
                        w3_ref, b3_ref,
                        w4_ref, b4_ref,
                        o_ref):
    # Fused f32 -> bf16 cast of the input tile (no separate XLA pre-pass).
    x = x_ref[...].astype(jnp.bfloat16)

    # encoder: Linear(5000,256) + ReLU   (bf16 operands, f32 accumulation)
    h = jnp.dot(x, w1_ref[...], preferred_element_type=jnp.float32)
    h = jnp.maximum(h + b1_ref[...], 0.0).astype(jnp.bfloat16)
    # encoder: Linear(256,64) + ReLU
    h = jnp.dot(h, w2_ref[...], preferred_element_type=jnp.float32)
    h = jnp.maximum(h + b2_ref[...], 0.0).astype(jnp.bfloat16)
    # decoder: Linear(64,256) + ReLU
    h = jnp.dot(h, w3_ref[...], preferred_element_type=jnp.float32)
    h = jnp.maximum(h + b3_ref[...], 0.0).astype(jnp.bfloat16)
    # decoder: Linear(256,5000) + Sigmoid
    y = jnp.dot(h, w4_ref[...], preferred_element_type=jnp.float32) + b4_ref[...]
    # sigmoid(y) == 0.5 * tanh(0.5 * y) + 0.5  -> single EUP push per vreg
    o_ref[...] = 0.5 * jnp.tanh(0.5 * y) + 0.5


def prepare_params(params):
    """One-time param prep: cast weights to bf16 (f32 biases). No padding.

    Must be called OUTSIDE the per-step forward so the bf16 weight copies are
    not re-materialized in HBM every call.
    """
    w1, b1, w2, b2, w3, b3, w4, b4 = params
    return (w1.astype(jnp.bfloat16), b1.astype(jnp.float32),
            w2.astype(jnp.bfloat16), b2.astype(jnp.float32),
            w3.astype(jnp.bfloat16), b3.astype(jnp.float32),
            w4.astype(jnp.bfloat16), b4.astype(jnp.float32))


@jax.jit
def autoencoder_forward(x, prepared_params):
    """x: [B, 5000] float32.  Returns [B, 5000] float32."""
    B = x.shape[0]
    w1, b1, w2, b2, w3, b3, w4, b4 = prepared_params

    # Batch tile: 128 rows feeds the MXU well and keeps the working set
    # (~26 MiB with default double-buffering) inside every generation's VMEM.
    # Tiny batches round up to 16 rows (bf16 packs 16 rows per vreg group).
    BM = 128 if B >= 128 else _round_up(max(B, 1), 16)
    B_pad = _round_up(B, BM)

    # Only a (cheap) batch-dim zero-pad; the feature dim stays 5000 everywhere.
    x_p = x if B_pad == B else jnp.pad(x, ((0, B_pad - B), (0, 0)))

    def resident(arr):
        # Whole array VMEM-resident; same block every grid step -> no re-DMA.
        return pl.BlockSpec(arr.shape, lambda i: (0, 0))

    out_p = pl.pallas_call(
        _autoencoder_kernel,
        out_shape=jax.ShapeDtypeStruct((B_pad, F_IN), jnp.float32),
        grid=(B_pad // BM,),
        in_specs=[pl.BlockSpec((BM, F_IN), lambda i: (i, 0)),   # x (full-dim 5000 block)
                  resident(w1), resident(b1),
                  resident(w2), resident(b2),
                  resident(w3), resident(b3),
                  resident(w4), resident(b4)],
        out_specs=pl.BlockSpec((BM, F_IN), lambda i: (i, 0)),   # un-padded output
        compiler_params=pltpu.CompilerParams(
            dimension_semantics=("parallel",),
            vmem_limit_bytes=48 * 1024 * 1024),
    )(x_p, w1, b1, w2, b2, w3, b3, w4, b4)

    # Only the (leading-dim, lane-aligned) batch padding is dropped; no
    # feature-dim slice remains.
    return out_p if B_pad == B else out_p[:B]


def init_params(key):
    """Deterministic init mimicking PyTorch Linear default U(-1/sqrt(in), 1/sqrt(in)).

    Weights stored as [in, out] (transposed vs. torch's [out, in]);
    biases as [1, out] for clean broadcasting inside the kernel.
    """
    def linear(key, fan_in, fan_out):
        kw, kb = jax.random.split(key)
        bound = 1.0 / jnp.sqrt(float(fan_in))
        w = jax.random.uniform(kw, (fan_in, fan_out), jnp.float32, -bound, bound)
        b = jax.random.uniform(kb, (1, fan_out), jnp.float32, -bound, bound)
        return w, b

    k1, k2, k3, k4 = jax.random.split(key, 4)
    w1, b1 = linear(k1, F_IN, H1)   # encoder Linear(5000, 256)
    w2, b2 = linear(k2, H1, H2)     # encoder Linear(256, 64)
    w3, b3 = linear(k3, H2, H1)     # decoder Linear(64, 256)
    w4, b4 = linear(k4, H1, F_IN)   # decoder Linear(256, 5000)
    return (w1, b1, w2, b2, w3, b3, w4, b4)


def _reference_forward(x, params):
    w1, b1, w2, b2, w3, b3, w4, b4 = params
    h = jnp.maximum(x @ w1 + b1, 0.0)
    h = jnp.maximum(h @ w2 + b2, 0.0)
    h = jnp.maximum(h @ w3 + b3, 0.0)
    return jax.nn.sigmoid(h @ w4 + b4)


if __name__ == "__main__":
    key = jax.random.PRNGKey(0)
    k_params, k_x = jax.random.split(key)

    params = init_params(k_params)
    prepared = prepare_params(params)   # one-time bf16 weight cast

    # Small batch (B=2): exercises the tiny-batch (16-row tile) path.
    B = 2
    x = jax.random.normal(k_x, (B, F_IN), jnp.float32)
    out = jax.block_until_ready(autoencoder_forward(x, prepared))
    ref = _reference_forward(x, params)
    assert out.shape == (B, F_IN), out.shape
    err = float(jnp.max(jnp.abs(out - ref)))
    assert err < 1e-2, err   # bf16 weights/activations -> ~1e-3 level error

    # Larger batch (B=130): exercises the 128-row grid + batch-padding path
    # (2 grid steps -> both v7x TensorCores get work).
    x2 = jax.random.normal(jax.random.PRNGKey(1), (130, F_IN), jnp.float32)
    out2 = jax.block_until_ready(autoencoder_forward(x2, prepared))
    ref2 = _reference_forward(x2, params)
    assert out2.shape == (130, F_IN), out2.shape
    err2 = float(jnp.max(jnp.abs(out2 - ref2)))
    assert err2 < 1e-2, err2

    print("KERNEL_OK")
</pallas_src>

<mosaic_0001>
module attributes {stable_mosaic.version = 11 : i64} {
  func.func @_autoencoder_kernel(%arg0: i32, %arg1: memref<16x5000xf32, #tpu.memory_space<vmem>>, %arg2: memref<5000x256xbf16, #tpu.memory_space<vmem>>, %arg3: memref<1x256xf32, #tpu.memory_space<vmem>>, %arg4: memref<256x64xbf16, #tpu.memory_space<vmem>>, %arg5: memref<1x64xf32, #tpu.memory_space<vmem>>, %arg6: memref<64x256xbf16, #tpu.memory_space<vmem>>, %arg7: memref<1x256xf32, #tpu.memory_space<vmem>>, %arg8: memref<256x5000xbf16, #tpu.memory_space<vmem>>, %arg9: memref<1x5000xf32, #tpu.memory_space<vmem>>, %arg10: memref<16x5000xf32, #tpu.memory_space<vmem>>) attributes {dimension_semantics = [#tpu.dimension_semantics<parallel>], iteration_bounds = array<i64: 1>, scalar_prefetch = 0 : i64, scratch_operands = 0 : i64, tpu.core_type = #tpu.core_type<tc>, window_params = [{transform_indices = @transform_0, window_bounds = array<i64: 16, 5000>}, {pipeline_mode = #tpu.pipeline_mode<synchronous>, transform_indices = @transform_1, window_bounds = array<i64: 5000, 256>}, {pipeline_mode = #tpu.pipeline_mode<synchronous>, transform_indices = @transform_2, window_bounds = array<i64: 1, 256>}, {pipeline_mode = #tpu.pipeline_mode<synchronous>, transform_indices = @transform_3, window_bounds = array<i64: 256, 64>}, {pipeline_mode = #tpu.pipeline_mode<synchronous>, transform_indices = @transform_4, window_bounds = array<i64: 1, 64>}, {pipeline_mode = #tpu.pipeline_mode<synchronous>, transform_indices = @transform_5, window_bounds = array<i64: 64, 256>}, {pipeline_mode = #tpu.pipeline_mode<synchronous>, transform_indices = @transform_6, window_bounds = array<i64: 1, 256>}, {pipeline_mode = #tpu.pipeline_mode<synchronous>, transform_indices = @transform_7, window_bounds = array<i64: 256, 5000>}, {pipeline_mode = #tpu.pipeline_mode<synchronous>, transform_indices = @transform_8, window_bounds = array<i64: 1, 5000>}, {transform_indices = @transform_9, window_bounds = array<i64: 16, 5000>}]} {
    %c0 = arith.constant 0 : index
    %c0_0 = arith.constant 0 : index
    %0 = vector.load %arg1[%c0, %c0_0] : memref<16x5000xf32, #tpu.memory_space<vmem>>, vector<16x5000xf32>
    %1 = arith.truncf %0 : vector<16x5000xf32> to vector<16x5000xbf16>
    %c0_1 = arith.constant 0 : index
    %c0_2 = arith.constant 0 : index
    %2 = vector.load %arg2[%c0_1, %c0_2] : memref<5000x256xbf16, #tpu.memory_space<vmem>>, vector<5000x256xbf16>
    %cst = arith.constant dense<0.000000e+00> : vector<16x256xf32>
    %3 = tpu.matmul %1, %2, %cst {dimension_numbers = #tpu.dot_dimension_numbers<[1], [0], [0], [1], [0, 0, 1, 1], [], []>} : vector<16x5000xbf16>, vector<5000x256xbf16>, vector<16x256xf32> -> vector<16x256xf32>
    %c0_3 = arith.constant 0 : index
    %c0_4 = arith.constant 0 : index
    %4 = vector.load %arg3[%c0_3, %c0_4] : memref<1x256xf32, #tpu.memory_space<vmem>>, vector<1x256xf32>
    %5 = vector.broadcast %4 : vector<1x256xf32> to vector<16x256xf32>
    %6 = arith.addf %3, %5 : vector<16x256xf32>
    %cst_5 = arith.constant 0.000000e+00 : f32
    %7 = vector.broadcast %cst_5 : f32 to vector<16x256xf32>
    %8 = arith.maximumf %6, %7 : vector<16x256xf32>
    %9 = arith.truncf %8 : vector<16x256xf32> to vector<16x256xbf16>
    %c0_6 = arith.constant 0 : index
    %c0_7 = arith.constant 0 : index
    %10 = vector.load %arg4[%c0_6, %c0_7] : memref<256x64xbf16, #tpu.memory_space<vmem>>, vector<256x64xbf16>
    %cst_8 = arith.constant dense<0.000000e+00> : vector<16x64xf32>
    %11 = tpu.matmul %9, %10, %cst_8 {dimension_numbers = #tpu.dot_dimension_numbers<[1], [0], [0], [1], [0, 0, 1, 1], [], []>} : vector<16x256xbf16>, vector<256x64xbf16>, vector<16x64xf32> -> vector<16x64xf32>
    %c0_9 = arith.constant 0 : index
    %c0_10 = arith.constant 0 : index
    %12 = vector.load %arg5[%c0_9, %c0_10] : memref<1x64xf32, #tpu.memory_space<vmem>>, vector<1x64xf32>
    %13 = vector.broadcast %12 : vector<1x64xf32> to vector<16x64xf32>
    %14 = arith.addf %11, %13 : vector<16x64xf32>
    %cst_11 = arith.constant 0.000000e+00 : f32
    %15 = vector.broadcast %cst_11 : f32 to vector<16x64xf32>
    %16 = arith.maximumf %14, %15 : vector<16x64xf32>
    %17 = arith.truncf %16 : vector<16x64xf32> to vector<16x64xbf16>
    %c0_12 = arith.constant 0 : index
    %c0_13 = arith.constant 0 : index
    %18 = vector.load %arg6[%c0_12, %c0_13] : memref<64x256xbf16, #tpu.memory_space<vmem>>, vector<64x256xbf16>
    %cst_14 = arith.constant dense<0.000000e+00> : vector<16x256xf32>
    %19 = tpu.matmul %17, %18, %cst_14 {dimension_numbers = #tpu.dot_dimension_numbers<[1], [0], [0], [1], [0, 0, 1, 1], [], []>} : vector<16x64xbf16>, vector<64x256xbf16>, vector<16x256xf32> -> vector<16x256xf32>
    %c0_15 = arith.constant 0 : index
    %c0_16 = arith.constant 0 : index
    %20 = vector.load %arg7[%c0_15, %c0_16] : memref<1x256xf32, #tpu.memory_space<vmem>>, vector<1x256xf32>
    %21 = vector.broadcast %20 : vector<1x256xf32> to vector<16x256xf32>
    %22 = arith.addf %19, %21 : vector<16x256xf32>
    %cst_17 = arith.constant 0.000000e+00 : f32
    %23 = vector.broadcast %cst_17 : f32 to vector<16x256xf32>
    %24 = arith.maximumf %22, %23 : vector<16x256xf32>
    %25 = arith.truncf %24 : vector<16x256xf32> to vector<16x256xbf16>
    %c0_18 = arith.constant 0 : index
    %c0_19 = arith.constant 0 : index
    %26 = vector.load %arg8[%c0_18, %c0_19] : memref<256x5000xbf16, #tpu.memory_space<vmem>>, vector<256x5000xbf16>
    %cst_20 = arith.constant dense<0.000000e+00> : vector<16x5000xf32>
    %27 = tpu.matmul %25, %26, %cst_20 {dimension_numbers = #tpu.dot_dimension_numbers<[1], [0], [0], [1], [0, 0, 1, 1], [], []>} : vector<16x256xbf16>, vector<256x5000xbf16>, vector<16x5000xf32> -> vector<16x5000xf32>
    %c0_21 = arith.constant 0 : index
    %c0_22 = arith.constant 0 : index
    %28 = vector.load %arg9[%c0_21, %c0_22] : memref<1x5000xf32, #tpu.memory_space<vmem>>, vector<1x5000xf32>
    %29 = vector.broadcast %28 : vector<1x5000xf32> to vector<16x5000xf32>
    %30 = arith.addf %27, %29 : vector<16x5000xf32>
    %cst_23 = arith.constant 5.000000e-01 : f32
    %31 = vector.broadcast %cst_23 : f32 to vector<16x5000xf32>
    %32 = arith.mulf %31, %30 : vector<16x5000xf32>
    %33 = math.tanh %32 : vector<16x5000xf32>
    %cst_24 = arith.constant 5.000000e-01 : f32
    %34 = vector.broadcast %cst_24 : f32 to vector<16x5000xf32>
    %35 = arith.mulf %34, %33 : vector<16x5000xf32>
    %cst_25 = arith.constant 5.000000e-01 : f32
    %36 = vector.broadcast %cst_25 : f32 to vector<16x5000xf32>
    %37 = arith.addf %35, %36 : vector<16x5000xf32>
    %c0_26 = arith.constant 0 : index
    %c0_27 = arith.constant 0 : index
    %38 = vector.load %arg10[%c0_26, %c0_27] : memref<16x5000xf32, #tpu.memory_space<vmem>>, vector<16x5000xf32>
    tpu.vector_store %arg10[%c0_26, %c0_27], %37 {strides = array<i32>} : memref<16x5000xf32, #tpu.memory_space<vmem>>, vector<16x5000xf32>,
    return
  }
  func.func @transform_0(%arg0: i32) -> (i32, i32) {
    %c0_i32 = arith.constant 0 : i32
    %c0_i32_0 = arith.constant 0 : i32
    return %arg0, %c0_i32 : i32, i32
  }
  func.func @transform_1(%arg0: i32) -> (i32, i32) {
    %c0_i32 = arith.constant 0 : i32
    %c0_i32_0 = arith.constant 0 : i32
    %c0_i32_1 = arith.constant 0 : i32
    return %c0_i32, %c0_i32_0 : i32, i32
  }
  func.func @transform_2(%arg0: i32) -> (i32, i32) {
    %c0_i32 = arith.constant 0 : i32
    %c0_i32_0 = arith.constant 0 : i32
    %c0_i32_1 = arith.constant 0 : i32
    return %c0_i32, %c0_i32_0 : i32, i32
  }
  func.func @transform_3(%arg0: i32) -> (i32, i32) {
    %c0_i32 = arith.constant 0 : i32
    %c0_i32_0 = arith.constant 0 : i32
    %c0_i32_1 = arith.constant 0 : i32
    return %c0_i32, %c0_i32_0 : i32, i32
  }
  func.func @transform_4(%arg0: i32) -> (i32, i32) {
    %c0_i32 = arith.constant 0 : i32
    %c0_i32_0 = arith.constant 0 : i32
    %c0_i32_1 = arith.constant 0 : i32
    return %c0_i32, %c0_i32_0 : i32, i32
  }
  func.func @transform_5(%arg0: i32) -> (i32, i32) {
    %c0_i32 = arith.constant 0 : i32
    %c0_i32_0 = arith.constant 0 : i32
    %c0_i32_1 = arith.constant 0 : i32
    return %c0_i32, %c0_i32_0 : i32, i32
  }
  func.func @transform_6(%arg0: i32) -> (i32, i32) {
    %c0_i32 = arith.constant 0 : i32
    %c0_i32_0 = arith.constant 0 : i32
    %c0_i32_1 = arith.constant 0 : i32
    return %c0_i32, %c0_i32_0 : i32, i32
  }
  func.func @transform_7(%arg0: i32) -> (i32, i32) {
    %c0_i32 = arith.constant 0 : i32
    %c0_i32_0 = arith.constant 0 : i32
    %c0_i32_1 = arith.constant 0 : i32
    return %c0_i32, %c0_i32_0 : i32, i32
  }
  func.func @transform_8(%arg0: i32) -> (i32, i32) {
    %c0_i32 = arith.constant 0 : i32
    %c0_i32_0 = arith.constant 0 : i32
    %c0_i32_1 = arith.constant 0 : i32
    return %c0_i32, %c0_i32_0 : i32, i32
  }
  func.func @transform_9(%arg0: i32) -> (i32, i32) {
    %c0_i32 = arith.constant 0 : i32
    %c0_i32_0 = arith.constant 0 : i32
    return %arg0, %c0_i32 : i32, i32
  }
}

</mosaic_0001>

<llo_original>
// kernel: autoencoder_forward.1
$region0: #{autoencoder_forward.1}
  #allocation0 [shape = 'u32[]', space=smem, size = 0x4, offset = 0x4, fixed_abs, tag = 'smem constant byte address 0x4 - core index']
  #allocation1 [shape = 'u32[144,128]{1,0:T(1,128)}', space=vmem, size = 0x12000, scoped, tag = 'internal scratch']
  %s0 = inlined_call_operand.vmem [shape: f32[16,5000], index: 0, kind: input, shape index: {}]
  %s1 = inlined_call_operand.vmem [shape: bf16[5000,256], index: 1, kind: input, shape index: {}]
  %s2 = inlined_call_operand.vmem [shape: f32[1,256], index: 2, kind: input, shape index: {}]
  %s3 = inlined_call_operand.vmem [shape: bf16[256,64], index: 3, kind: input, shape index: {}]
  %s4 = inlined_call_operand.vmem [shape: f32[1,64], index: 4, kind: input, shape index: {}]
  %s5 = inlined_call_operand.vmem [shape: bf16[64,256], index: 5, kind: input, shape index: {}]
  %s6 = inlined_call_operand.vmem [shape: f32[1,256], index: 6, kind: input, shape index: {}]
  %s7 = inlined_call_operand.vmem [shape: bf16[256,5000], index: 7, kind: input, shape index: {}]
  %s8 = inlined_call_operand.vmem [shape: f32[1,5000], index: 8, kind: input, shape index: {}]
  %s9 = inlined_call_operand.vmem [shape: f32[16,5000], index: 9, kind: output, shape index: {}]
  %s10 = sld [smem:[#allocation0]]
  $region46: #{autoencoder_forward.1} parent=0
    _
  %s12 = ssub.s32 1, %s10
  %s13 = scalar_select 0, %s12, %s10
  // Predicated region
  $region2: #{autoencoder_forward.1} parent=0 // pred_check
    _
  $region3: #{autoencoder_forward.1} parent=0 // pred_check_branch
    %15 = sbr.rel (0) target = $region5
  $region4: #{autoencoder_forward.1} parent=0 // pred_region
    _
  $region5: #{autoencoder_forward.1} parent=0 // pred_fallthru
    _
  // Predicated region
  $region6: #{autoencoder_forward.1} parent=0 // pred_check
    _
  $region7: #{autoencoder_forward.1} parent=0 // pred_check_branch
    %17 = sbr.rel (0) target = $region9
  $region8: #{autoencoder_forward.1} parent=0 // pred_region
    _
  $region9: #{autoencoder_forward.1} parent=0 // pred_fallthru
    _
  // Predicated region
  $region10: #{autoencoder_forward.1} parent=0 // pred_check
    _
  $region11: #{autoencoder_forward.1} parent=0 // pred_check_branch
    %19 = sbr.rel (0) target = $region13
  $region12: #{autoencoder_forward.1} parent=0 // pred_region
    _
  $region13: #{autoencoder_forward.1} parent=0 // pred_fallthru
    _
  // Predicated region
  $region14: #{autoencoder_forward.1} parent=0 // pred_check
    _
  $region15: #{autoencoder_forward.1} parent=0 // pred_check_branch
    %21 = sbr.rel (0) target = $region17
  $region16: #{autoencoder_forward.1} parent=0 // pred_region
    _
  $region17: #{autoencoder_forward.1} parent=0 // pred_fallthru
    _
  // Predicated region
  $region18: #{autoencoder_forward.1} parent=0 // pred_check
    _
  $region19: #{autoencoder_forward.1} parent=0 // pred_check_branch
    %23 = sbr.rel (0) target = $region21
  $region20: #{autoencoder_forward.1} parent=0 // pred_region
    _
  $region21: #{autoencoder_forward.1} parent=0 // pred_fallthru
    _
  // Predicated region
  $region22: #{autoencoder_forward.1} parent=0 // pred_check
    _
  $region23: #{autoencoder_forward.1} parent=0 // pred_check_branch
    %25 = sbr.rel (0) target = $region25
  $region24: #{autoencoder_forward.1} parent=0 // pred_region
    _
  $region25: #{autoencoder_forward.1} parent=0 // pred_fallthru
    _
  // Predicated region
  $region26: #{autoencoder_forward.1} parent=0 // pred_check
    _
  $region27: #{autoencoder_forward.1} parent=0 // pred_check_branch
    %27 = sbr.rel (0) target = $region29
  $region28: #{autoencoder_forward.1} parent=0 // pred_region
    _
  $region29: #{autoencoder_forward.1} parent=0 // pred_fallthru
    _
  // Predicated region
  $region30: #{autoencoder_forward.1} parent=0 // pred_check
    _
  $region31: #{autoencoder_forward.1} parent=0 // pred_check_branch
    %29 = sbr.rel (0) target = $region33
  $region32: #{autoencoder_forward.1} parent=0 // pred_region
    _
  $region33: #{autoencoder_forward.1} parent=0 // pred_fallthru
    _
  // Predicated region
  $region34: #{autoencoder_forward.1} parent=0 // pred_check
    _
  $region35: #{autoencoder_forward.1} parent=0 // pred_check_branch
    %31 = sbr.rel (0) target = $region37
  $region36: #{autoencoder_forward.1} parent=0 // pred_region
    _
  $region37: #{autoencoder_forward.1} parent=0 // pred_fallthru
    _
  %v33 = vld [vmem:[%s0] sm:$0xff]
  %v34 = vld [vmem:[%s0 + $0x8] sm:$0xff]
  %v35 = vld [vmem:[%s0 + $0x10] sm:$0xff]
  %v36 = vld [vmem:[%s0 + $0x18] sm:$0xff]
  %v37 = vld [vmem:[%s0 + $0x20] sm:$0xff]
  %v38 = vld [vmem:[%s0 + $0x28] sm:$0xff]
  %v39 = vld [vmem:[%s0 + $0x30] sm:$0xff]
  %v40 = vld [vmem:[%s0 + $0x38] sm:$0xff]
  %v41 = vld [vmem:[%s0 + $0x40] sm:$0xff]
  %v42 = vld [vmem:[%s0 + $0x48] sm:$0xff]
  %v43 = vld [vmem:[%s0 + $0x50] sm:$0xff]
  %v44 = vld [vmem:[%s0 + $0x58] sm:$0xff]
  %v45 = vld [vmem:[%s0 + $0x60] sm:$0xff]
  %v46 = vld [vmem:[%s0 + $0x68] sm:$0xff]
  %v47 = vld [vmem:[%s0 + $0x70] sm:$0xff]
  %v48 = vld [vmem:[%s0 + $0x78] sm:$0xff]
  %v49 = vld [vmem:[%s0 + $0x80] sm:$0xff]
  %v50 = vld [vmem:[%s0 + $0x88] sm:$0xff]
  %v51 = vld [vmem:[%s0 + $0x90] sm:$0xff]
  %v52 = vld [vmem:[%s0 + $0x98] sm:$0xff]
  %v53 = vld [vmem:[%s0 + $0xa0] sm:$0xff]
  %v54 = vld [vmem:[%s0 + $0xa8] sm:$0xff]
  %v55 = vld [vmem:[%s0 + $0xb0] sm:$0xff]
  %v56 = vld [vmem:[%s0 + $0xb8] sm:$0xff]
  %v57 = vld [vmem:[%s0 + $0xc0] sm:$0xff]
  %v58 = vld [vmem:[%s0 + $0xc8] sm:$0xff]
  %v59 = vld [vmem:[%s0 + $0xd0] sm:$0xff]
  %v60 = vld [vmem:[%s0 + $0xd8] sm:$0xff]
  %v61 = vld [vmem:[%s0 + $0xe0] sm:$0xff]
  %v62 = vld [vmem:[%s0 + $0xe8] sm:$0xff]
  %v63 = vld [vmem:[%s0 + $0xf0] sm:$0xff]
  %v64 = vld [vmem:[%s0 + $0xf8] sm:$0xff]
  %v65 = vld [vmem:[%s0 + $0x100] sm:$0xff]
  %v66 = vld [vmem:[%s0 + $0x108] sm:$0xff]
  %v67 = vld [vmem:[%s0 + $0x110] sm:$0xff]
  %v68 = vld [vmem:[%s0 + $0x118] sm:$0xff]
  %v69 = vld [vmem:[%s0 + $0x120] sm:$0xff]
  %v70 = vld [vmem:[%s0 + $0x128] sm:$0xff]
  %v71 = vld [vmem:[%s0 + $0x130] sm:$0xff]
  %v72 = vld [vmem:[%s0 + $0x138] sm:$0xff]
  %v73 = vld [vmem:[%s0 + $0x140] sm:$0xff]
  %v74 = vld [vmem:[%s0 + $0x148] sm:$0xff]
  %v75 = vld [vmem:[%s0 + $0x150] sm:$0xff]
  %v76 = vld [vmem:[%s0 + $0x158] sm:$0xff]
  %v77 = vld [vmem:[%s0 + $0x160] sm:$0xff]
  %v78 = vld [vmem:[%s0 + $0x168] sm:$0xff]
  %v79 = vld [vmem:[%s0 + $0x170] sm:$0xff]
  %v80 = vld [vmem:[%s0 + $0x178] sm:$0xff]
  %v81 = vld [vmem:[%s0 + $0x180] sm:$0xff]
  %v82 = vld [vmem:[%s0 + $0x188] sm:$0xff]
  %v83 = vld [vmem:[%s0 + $0x190] sm:$0xff]
  %v84 = vld [vmem:[%s0 + $0x198] sm:$0xff]
  %v85 = vld [vmem:[%s0 + $0x1a0] sm:$0xff]
  %v86 = vld [vmem:[%s0 + $0x1a8] sm:$0xff]
  %v87 = vld [vmem:[%s0 + $0x1b0] sm:$0xff]
  %v88 = vld [vmem:[%s0 + $0x1b8] sm:$0xff]
  %v89 = vld [vmem:[%s0 + $0x1c0] sm:$0xff]
  %v90 = vld [vmem:[%s0 + $0x1c8] sm:$0xff]
  %v91 = vld [vmem:[%s0 + $0x1d0] sm:$0xff]
  %v92 = vld [vmem:[%s0 + $0x1d8] sm:$0xff]
  %v93 = vld [vmem:[%s0 + $0x1e0] sm:$0xff]
  %v94 = vld [vmem:[%s0 + $0x1e8] sm:$0xff]
  %v95 = vld [vmem:[%s0 + $0x1f0] sm:$0xff]
  %v96 = vld [vmem:[%s0 + $0x1f8] sm:$0xff]
  %v97 = vld [vmem:[%s0 + $0x200] sm:$0xff]
  %v98 = vld [vmem:[%s0 + $0x208] sm:$0xff]
  %v99 = vld [vmem:[%s0 + $0x210] sm:$0xff]
  %v100 = vld [vmem:[%s0 + $0x218] sm:$0xff]
  %v101 = vld [vmem:[%s0 + $0x220] sm:$0xff]
  %v102 = vld [vmem:[%s0 + $0x228] sm:$0xff]
  %v103 = vld [vmem:[%s0 + $0x230] sm:$0xff]
  %v104 = vld [vmem:[%s0 + $0x238] sm:$0xff]
  %v105 = vld [vmem:[%s0 + $0x240] sm:$0xff]
  %v106 = vld [vmem:[%s0 + $0x248] sm:$0xff]
  %v107 = vld [vmem:[%s0 + $0x250] sm:$0xff]
  %v108 = vld [vmem:[%s0 + $0x258] sm:$0xff]
  %v109 = vld [vmem:[%s0 + $0x260] sm:$0xff]
  %v110 = vld [vmem:[%s0 + $0x268] sm:$0xff]
  %v111 = vld [vmem:[%s0 + $0x270] sm:$0xff]
  %v112 = vld [vmem:[%s0 + $0x278] sm:$0xff]
  %v113 = vpack.c.bf16 %v73, %v33
  %v114 = vpack.c.bf16 %v74, %v34
  %v115 = vpack.c.bf16 %v75, %v35
  %v116 = vpack.c.bf16 %v76, %v36
  %v117 = vpack.c.bf16 %v77, %v37
  %v118 = vpack.c.bf16 %v78, %v38
  %v119 = vpack.c.bf16 %v79, %v39
  %v120 = vpack.c.bf16 %v80, %v40
  %v121 = vpack.c.bf16 %v81, %v41
  %v122 = vpack.c.bf16 %v82, %v42
  %v123 = vpack.c.bf16 %v83, %v43
  %v124 = vpack.c.bf16 %v84, %v44
  %v125 = vpack.c.bf16 %v85, %v45
  %v126 = vpack.c.bf16 %v86, %v46
  %v127 = vpack.c.bf16 %v87, %v47
  %v128 = vpack.c.bf16 %v88, %v48
  %v129 = vpack.c.bf16 %v89, %v49
  %v130 = vpack.c.bf16 %v90, %v50
  %v131 = vpack.c.bf16 %v91, %v51
  %v132 = vpack.c.bf16 %v92, %v52
  %v133 = vpack.c.bf16 %v93, %v53
  %v134 = vpack.c.bf16 %v94, %v54
  %v135 = vpack.c.bf16 %v95, %v55
  %v136 = vpack.c.bf16 %v96, %v56
  %v137 = vpack.c.bf16 %v97, %v57
  %v138 = vpack.c.bf16 %v98, %v58
  %v139 = vpack.c.bf16 %v99, %v59
  %v140 = vpack.c.bf16 %v100, %v60
  %v141 = vpack.c.bf16 %v101, %v61
  %v142 = vpack.c.bf16 %v102, %v62
  %v143 = vpack.c.bf16 %v103, %v63
  %v144 = vpack.c.bf16 %v104, %v64
  %v145 = vpack.c.bf16 %v105, %v65
  %v146 = vpack.c.bf16 %v106, %v66
  %v147 = vpack.c.bf16 %v107, %v67
  %v148 = vpack.c.bf16 %v108, %v68
  %v149 = vpack.c.bf16 %v109, %v69
  %v150 = vpack.c.bf16 %v110, %v70
  %v151 = vpack.c.bf16 %v111, %v71
  %v152 = vpack.c.bf16 %v112, %v72
  %v153 = vld [vmem:[%s1] sm:$0xff]
  %v154 = vld [vmem:[%s1 + $0x8] sm:$0xff]
  %v155 = vld [vmem:[%s1 + $0x10] sm:$0xff]
  %v156 = vld [vmem:[%s1 + $0x18] sm:$0xff]
  %v157 = vld [vmem:[%s1 + $0x20] sm:$0xff]
  %v158 = vld [vmem:[%s1 + $0x28] sm:$0xff]
  %v159 = vld [vmem:[%s1 + $0x30] sm:$0xff]
  %v160 = vld [vmem:[%s1 + $0x38] sm:$0xff]
  %v161 = vld [vmem:[%s1 + $0x40] sm:$0xff]
  %v162 = vld [vmem:[%s1 + $0x48] sm:$0xff]
  %v163 = vld [vmem:[%s1 + $0x50] sm:$0xff]
  %v164 = vld [vmem:[%s1 + $0x58] sm:$0xff]
  %v165 = vld [vmem:[%s1 + $0x60] sm:$0xff]
  %v166 = vld [vmem:[%s1 + $0x68] sm:$0xff]
  %v167 = vld [vmem:[%s1 + $0x70] sm:$0xff]
  %v168 = vld [vmem:[%s1 + $0x78] sm:$0xff]
  %v169 = vld [vmem:[%s1 + $0x80] sm:$0xff]
  %v170 = vld [vmem:[%s1 + $0x88] sm:$0xff]
  %v171 = vld [vmem:[%s1 + $0x90] sm:$0xff]
  %v172 = vld [vmem:[%s1 + $0x98] sm:$0xff]
  %v173 = vld [vmem:[%s1 + $0xa0] sm:$0xff]
  %v174 = vld [vmem:[%s1 + $0xa8] sm:$0xff]
  %v175 = vld [vmem:[%s1 + $0xb0] sm:$0xff]
  %v176 = vld [vmem:[%s1 + $0xb8] sm:$0xff]
  %v177 = vld [vmem:[%s1 + $0xc0] sm:$0xff]
  %v178 = vld [vmem:[%s1 + $0xc8] sm:$0xff]
  %v179 = vld [vmem:[%s1 + $0xd0] sm:$0xff]
  %v180 = vld [vmem:[%s1 + $0xd8] sm:$0xff]
  %v181 = vld [vmem:[%s1 + $0xe0] sm:$0xff]
  %v182 = vld [vmem:[%s1 + $0xe8] sm:$0xff]
  %v183 = vld [vmem:[%s1 + $0xf0] sm:$0xff]
  %v184 = vld [vmem:[%s1 + $0xf8] sm:$0xff]
  %v185 = vld [vmem:[%s1 + $0x100] sm:$0xff]
  %v186 = vld [vmem:[%s1 + $0x108] sm:$0xff]
  %v187 = vld [vmem:[%s1 + $0x110] sm:$0xff]
  %v188 = vld [vmem:[%s1 + $0x118] sm:$0xff]
  %v189 = vld [vmem:[%s1 + $0x120] sm:$0xff]
  %v190 = vld [vmem:[%s1 + $0x128] sm:$0xff]
  %v191 = vld [vmem:[%s1 + $0x130] sm:$0xff]
  %v192 = vld [vmem:[%s1 + $0x138] sm:$0xff]
  %v193 = vld [vmem:[%s1 + $0x140] sm:$0xff]
  %v194 = vld [vmem:[%s1 + $0x148] sm:$0xff]
  %v195 = vld [vmem:[%s1 + $0x150] sm:$0xff]
  %v196 = vld [vmem:[%s1 + $0x158] sm:$0xff]
  %v197 = vld [vmem:[%s1 + $0x160] sm:$0xff]
  %v198 = vld [vmem:[%s1 + $0x168] sm:$0xff]
  %v199 = vld [vmem:[%s1 + $0x170] sm:$0xff]
  %v200 = vld [vmem:[%s1 + $0x178] sm:$0xff]
  %v201 = vld [vmem:[%s1 + $0x180] sm:$0xff]
  %v202 = vld [vmem:[%s1 + $0x188] sm:$0xff]
  %v203 = vld [vmem:[%s1 + $0x190] sm:$0xff]
  %v204 = vld [vmem:[%s1 + $0x198] sm:$0xff]
  %v205 = vld [vmem:[%s1 + $0x1a0] sm:$0xff]
  %v206 = vld [vmem:[%s1 + $0x1a8] sm:$0xff]
  %v207 = vld [vmem:[%s1 + $0x1b0] sm:$0xff]
  %v208 = vld [vmem:[%s1 + $0x1b8] sm:$0xff]
  %v209 = vld [vmem:[%s1 + $0x1c0] sm:$0xff]
  %v210 = vld [vmem:[%s1 + $0x1c8] sm:$0xff]
  %v211 = vld [vmem:[%s1 + $0x1d0] sm:$0xff]
  %v212 = vld [vmem:[%s1 + $0x1d8] sm:$0xff]
  %v213 = vld [vmem:[%s1 + $0x1e0] sm:$0xff]
  %v214 = vld [vmem:[%s1 + $0x1e8] sm:$0xff]
  %v215 = vld [vmem:[%s1 + $0x1f0] sm:$0xff]
  %v216 = vld [vmem:[%s1 + $0x1f8] sm:$0xff]
  %v217 = vld [vmem:[%s1 + $0x200] sm:$0xff]
  %v218 = vld [vmem:[%s1 + $0x208] sm:$0xff]
  %v219 = vld [vmem:[%s1 + $0x210] sm:$0xff]
  %v220 = vld [vmem:[%s1 + $0x218] sm:$0xff]
  %v221 = vld [vmem:[%s1 + $0x220] sm:$0xff]
  %v222 = vld [vmem:[%s1 + $0x228] sm:$0xff]
  %v223 = vld [vmem:[%s1 + $0x230] sm:$0xff]
  %v224 = vld [vmem:[%s1 + $0x238] sm:$0xff]
  %v225 = vld [vmem:[%s1 + $0x240] sm:$0xff]
  %v226 = vld [vmem:[%s1 + $0x248] sm:$0xff]
  %v227 = vld [vmem:[%s1 + $0x250] sm:$0xff]
  %v228 = vld [vmem:[%s1 + $0x258] sm:$0xff]
  %v229 = vld [vmem:[%s1 + $0x260] sm:$0xff]
  %v230 = vld [vmem:[%s1 + $0x268] sm:$0xff]
  %v231 = vld [vmem:[%s1 + $0x270] sm:$0xff]
  %v232 = vld [vmem:[%s1 + $0x278] sm:$0xff]
  %v233 = vld [vmem:[%s1 + $0x280] sm:$0xff]
  %v234 = vld [vmem:[%s1 + $0x288] sm:$0xff]
  %v235 = vld [vmem:[%s1 + $0x290] sm:$0xff]
  %v236 = vld [vmem:[%s1 + $0x298] sm:$0xff]
  %v237 = vld [vmem:[%s1 + $0x2a0] sm:$0xff]
  %v238 = vld [vmem:[%s1 + $0x2a8] sm:$0xff]
  %v239 = vld [vmem:[%s1 + $0x2b0] sm:$0xff]
  %v240 = vld [vmem:[%s1 + $0x2b8] sm:$0xff]
  %v241 = vld [vmem:[%s1 + $0x2c0] sm:$0xff]
  %v242 = vld [vmem:[%s1 + $0x2c8] sm:$0xff]
  %v243 = vld [vmem:[%s1 + $0x2d0] sm:$0xff]
  %v244 = vld [vmem:[%s1 + $0x2d8] sm:$0xff]
  %v245 = vld [vmem:[%s1 + $0x2e0] sm:$0xff]
  %v246 = vld [vmem:[%s1 + $0x2e8] sm:$0xff]
  %v247 = vld [vmem:[%s1 + $0x2f0] sm:$0xff]
  %v248 = vld [vmem:[%s1 + $0x2f8] sm:$0xff]
  %v249 = vld [vmem:[%s1 + $0x300] sm:$0xff]
  %v250 = vld [vmem:[%s1 + $0x308] sm:$0xff]
  %v251 = vld [vmem:[%s1 + $0x310] sm:$0xff]
  %v252 = vld [vmem:[%s1 + $0x318] sm:$0xff]
  %v253 = vld [vmem:[%s1 + $0x320] sm:$0xff]
  %v254 = vld [vmem:[%s1 + $0x328] sm:$0xff]
  %v255 = vld [vmem:[%s1 + $0x330] sm:$0xff]
  %v256 = vld [vmem:[%s1 + $0x338] sm:$0xff]
  %v257 = vld [vmem:[%s1 + $0x340] sm:$0xff]
  %v258 = vld [vmem:[%s1 + $0x348] sm:$0xff]
  %v259 = vld [vmem:[%s1 + $0x350] sm:$0xff]
  %v260 = vld [vmem:[%s1 + $0x358] sm:$0xff]
  %v261 = vld [vmem:[%s1 + $0x360] sm:$0xff]
  %v262 = vld [vmem:[%s1 + $0x368] sm:$0xff]
  %v263 = vld [vmem:[%s1 + $0x370] sm:$0xff]
  %v264 = vld [vmem:[%s1 + $0x378] sm:$0xff]
  %v265 = vld [vmem:[%s1 + $0x380] sm:$0xff]
  %v266 = vld [vmem:[%s1 + $0x388] sm:$0xff]
  %v267 = vld [vmem:[%s1 + $0x390] sm:$0xff]
  %v268 = vld [vmem:[%s1 + $0x398] sm:$0xff]
  %v269 = vld [vmem:[%s1 + $0x3a0] sm:$0xff]
  %v270 = vld [vmem:[%s1 + $0x3a8] sm:$0xff]
  %v271 = vld [vmem:[%s1 + $0x3b0] sm:$0xff]
  %v272 = vld [vmem:[%s1 + $0x3b8] sm:$0xff]
  %v273 = vld [vmem:[%s1 + $0x3c0] sm:$0xff]
  %v274 = vld [vmem:[%s1 + $0x3c8] sm:$0xff]
  %v275 = vld [vmem:[%s1 + $0x3d0] sm:$0xff]
  %v276 = vld [vmem:[%s1 + $0x3d8] sm:$0xff]
  %v277 = vld [vmem:[%s1 + $0x3e0] sm:$0xff]
  %v278 = vld [vmem:[%s1 + $0x3e8] sm:$0xff]
  %v279 = vld [vmem:[%s1 + $0x3f0] sm:$0xff]
  %v280 = vld [vmem:[%s1 + $0x3f8] sm:$0xff]
  %v281 = vld [vmem:[%s1 + $0x400] sm:$0xff]
  %v282 = vld [vmem:[%s1 + $0x408] sm:$0xff]
  %v283 = vld [vmem:[%s1 + $0x410] sm:$0xff]
  %v284 = vld [vmem:[%s1 + $0x418] sm:$0xff]
  %v285 = vld [vmem:[%s1 + $0x420] sm:$0xff]
  %v286 = vld [vmem:[%s1 + $0x428] sm:$0xff]
  %v287 = vld [vmem:[%s1 + $0x430] sm:$0xff]
  %v288 = vld [vmem:[%s1 + $0x438] sm:$0xff]
  %v289 = vld [vmem:[%s1 + $0x440] sm:$0xff]
  %v290 = vld [vmem:[%s1 + $0x448] sm:$0xff]
  %v291 = vld [vmem:[%s1 + $0x450] sm:$0xff]
  %v292 = vld [vmem:[%s1 + $0x458] sm:$0xff]
  %v293 = vld [vmem:[%s1 + $0x460] sm:$0xff]
  %v294 = vld [vmem:[%s1 + $0x468] sm:$0xff]
  %v295 = vld [vmem:[%s1 + $0x470] sm:$0xff]
  %v296 = vld [vmem:[%s1 + $0x478] sm:$0xff]
  %v297 = vld [vmem:[%s1 + $0x480] sm:$0xff]
  %v298 = vld [vmem:[%s1 + $0x488] sm:$0xff]
  %v299 = vld [vmem:[%s1 + $0x490] sm:$0xff]
  %v300 = vld [vmem:[%s1 + $0x498] sm:$0xff]
  %v301 = vld [vmem:[%s1 + $0x4a0] sm:$0xff]
  %v302 = vld [vmem:[%s1 + $0x4a8] sm:$0xff]
  %v303 = vld [vmem:[%s1 + $0x4b0] sm:$0xff]
  %v304 = vld [vmem:[%s1 + $0x4b8] sm:$0xff]
  %v305 = vld [vmem:[%s1 + $0x4c0] sm:$0xff]
  %v306 = vld [vmem:[%s1 + $0x4c8] sm:$0xff]
  %v307 = vld [vmem:[%s1 + $0x4d0] sm:$0xff]
  %v308 = vld [vmem:[%s1 + $0x4d8] sm:$0xff]
  %v309 = vld [vmem:[%s1 + $0x4e0] sm:$0xff]
  %v310 = vld [vmem:[%s1 + $0x4e8] sm:$0xff]
  %v311 = vld [vmem:[%s1 + $0x4f0] sm:$0xff]
  %v312 = vld [vmem:[%s1 + $0x4f8] sm:$0xff]
  %v313 = vld [vmem:[%s1 + $0x500] sm:$0xff]
  %v314 = vld [vmem:[%s1 + $0x508] sm:$0xff]
  %v315 = vld [vmem:[%s1 + $0x510] sm:$0xff]
  %v316 = vld [vmem:[%s1 + $0x518] sm:$0xff]
  %v317 = vld [vmem:[%s1 + $0x520] sm:$0xff]
  %v318 = vld [vmem:[%s1 + $0x528] sm:$0xff]
  %v319 = vld [vmem:[%s1 + $0x530] sm:$0xff]
  %v320 = vld [vmem:[%s1 + $0x538] sm:$0xff]
  %v321 = vld [vmem:[%s1 + $0x540] sm:$0xff]
  %v322 = vld [vmem:[%s1 + $0x548] sm:$0xff]
  %v323 = vld [vmem:[%s1 + $0x550] sm:$0xff]
  %v324 = vld [vmem:[%s1 + $0x558] sm:$0xff]
  %v325 = vld [vmem:[%s1 + $0x560] sm:$0xff]
  %v326 = vld [vmem:[%s1 + $0x568] sm:$0xff]
  %v327 = vld [vmem:[%s1 + $0x570] sm:$0xff]
  %v328 = vld [vmem:[%s1 + $0x578] sm:$0xff]
  %v329 = vld [vmem:[%s1 + $0x580] sm:$0xff]
  %v330 = vld [vmem:[%s1 + $0x588] sm:$0xff]
  %v331 = vld [vmem:[%s1 + $0x590] sm:$0xff]
  %v332 = vld [vmem:[%s1 + $0x598] sm:$0xff]
  %v333 = vld [vmem:[%s1 + $0x5a0] sm:$0xff]
  %v334 = vld [vmem:[%s1 + $0x5a8] sm:$0xff]
  %v335 = vld [vmem:[%s1 + $0x5b0] sm:$0xff]
  %v336 = vld [vmem:[%s1 + $0x5b8] sm:$0xff]
  %v337 = vld [vmem:[%s1 + $0x5c0] sm:$0xff]
  %v338 = vld [vmem:[%s1 + $0x5c8] sm:$0xff]
  %v339 = vld [vmem:[%s1 + $0x5d0] sm:$0xff]
  %v340 = vld [vmem:[%s1 + $0x5d8] sm:$0xff]
  %v341 = vld [vmem:[%s1 + $0x5e0] sm:$0xff]
  %v342 = vld [vmem:[%s1 + $0x5e8] sm:$0xff]
  %v343 = vld [vmem:[%s1 + $0x5f0] sm:$0xff]
  %v344 = vld [vmem:[%s1 + $0x5f8] sm:$0xff]
  %v345 = vld [vmem:[%s1 + $0x600] sm:$0xff]
  %v346 = vld [vmem:[%s1 + $0x608] sm:$0xff]
  %v347 = vld [vmem:[%s1 + $0x610] sm:$0xff]
  %v348 = vld [vmem:[%s1 + $0x618] sm:$0xff]
  %v349 = vld [vmem:[%s1 + $0x620] sm:$0xff]
  %v350 = vld [vmem:[%s1 + $0x628] sm:$0xff]
  %v351 = vld [vmem:[%s1 + $0x630] sm:$0xff]
  %v352 = vld [vmem:[%s1 + $0x638] sm:$0xff]
  %v353 = vld [vmem:[%s1 + $0x640] sm:$0xff]
  %v354 = vld [vmem:[%s1 + $0x648] sm:$0xff]
  %v355 = vld [vmem:[%s1 + $0x650] sm:$0xff]
  %v356 = vld [vmem:[%s1 + $0x658] sm:$0xff]
  %v357 = vld [vmem:[%s1 + $0x660] sm:$0xff]
  %v358 = vld [vmem:[%s1 + $0x668] sm:$0xff]
  %v359 = vld [vmem:[%s1 + $0x670] sm:$0xff]
  %v360 = vld [vmem:[%s1 + $0x678] sm:$0xff]
  %v361 = vld [vmem:[%s1 + $0x680] sm:$0xff]
  %v362 = vld [vmem:[%s1 + $0x688] sm:$0xff]
  %v363 = vld [vmem:[%s1 + $0x690] sm:$0xff]
  %v364 = vld [vmem:[%s1 + $0x698] sm:$0xff]
  %v365 = vld [vmem:[%s1 + $0x6a0] sm:$0xff]
  %v366 = vld [vmem:[%s1 + $0x6a8] sm:$0xff]
  %v367 = vld [vmem:[%s1 + $0x6b0] sm:$0xff]
  %v368 = vld [vmem:[%s1 + $0x6b8] sm:$0xff]
  %v369 = vld [vmem:[%s1 + $0x6c0] sm:$0xff]
  %v370 = vld [vmem:[%s1 + $0x6c8] sm:$0xff]
  %v371 = vld [vmem:[%s1 + $0x6d0] sm:$0xff]
  %v372 = vld [vmem:[%s1 + $0x6d8] sm:$0xff]
  %v373 = vld [vmem:[%s1 + $0x6e0] sm:$0xff]
  %v374 = vld [vmem:[%s1 + $0x6e8] sm:$0xff]
  %v375 = vld [vmem:[%s1 + $0x6f0] sm:$0xff]
  %v376 = vld [vmem:[%s1 + $0x6f8] sm:$0xff]
  %v377 = vld [vmem:[%s1 + $0x700] sm:$0xff]
  %v378 = vld [vmem:[%s1 + $0x708] sm:$0xff]
  %v379 = vld [vmem:[%s1 + $0x710] sm:$0xff]
  %v380 = vld [vmem:[%s1 + $0x718] sm:$0xff]
  %v381 = vld [vmem:[%s1 + $0x720] sm:$0xff]
  %v382 = vld [vmem:[%s1 + $0x728] sm:$0xff]
  %v383 = vld [vmem:[%s1 + $0x730] sm:$0xff]
  %v384 = vld [vmem:[%s1 + $0x738] sm:$0xff]
  %v385 = vld [vmem:[%s1 + $0x740] sm:$0xff]
  %v386 = vld [vmem:[%s1 + $0x748] sm:$0xff]
  %v387 = vld [vmem:[%s1 + $0x750] sm:$0xff]
  %v388 = vld [vmem:[%s1 + $0x758] sm:$0xff]
  %v389 = vld [vmem:[%s1 + $0x760] sm:$0xff]
  %v390 = vld [vmem:[%s1 + $0x768] sm:$0xff]
  %v391 = vld [vmem:[%s1 + $0x770] sm:$0xff]
  %v392 = vld [vmem:[%s1 + $0x778] sm:$0xff]
  %v393 = vld [vmem:[%s1 + $0x780] sm:$0xff]
  %v394 = vld [vmem:[%s1 + $0x788] sm:$0xff]
  %v395 = vld [vmem:[%s1 + $0x790] sm:$0xff]
  %v396 = vld [vmem:[%s1 + $0x798] sm:$0xff]
  %v397 = vld [vmem:[%s1 + $0x7a0] sm:$0xff]
  %v398 = vld [vmem:[%s1 + $0x7a8] sm:$0xff]
  %v399 = vld [vmem:[%s1 + $0x7b0] sm:$0xff]
  %v400 = vld [vmem:[%s1 + $0x7b8] sm:$0xff]
  %v401 = vld [vmem:[%s1 + $0x7c0] sm:$0xff]
  %v402 = vld [vmem:[%s1 + $0x7c8] sm:$0xff]
  %v403 = vld [vmem:[%s1 + $0x7d0] sm:$0xff]
  %v404 = vld [vmem:[%s1 + $0x7d8] sm:$0xff]
  %v405 = vld [vmem:[%s1 + $0x7e0] sm:$0xff]
  %v406 = vld [vmem:[%s1 + $0x7e8] sm:$0xff]
  %v407 = vld [vmem:[%s1 + $0x7f0] sm:$0xff]
  %v408 = vld [vmem:[%s1 + $0x7f8] sm:$0xff]
  %v409 = vld [vmem:[%s1 + $0x800] sm:$0xff]
  %v410 = vld [vmem:[%s1 + $0x808] sm:$0xff]
  %v411 = vld [vmem:[%s1 + $0x810] sm:$0xff]
  %v412 = vld [vmem:[%s1 + $0x818] sm:$0xff]
  %v413 = vld [vmem:[%s1 + $0x820] sm:$0xff]
  %v414 = vld [vmem:[%s1 + $0x828] sm:$0xff]
  %v415 = vld [vmem:[%s1 + $0x830] sm:$0xff]
  %v416 = vld [vmem:[%s1 + $0x838] sm:$0xff]
  %v417 = vld [vmem:[%s1 + $0x840] sm:$0xff]
  %v418 = vld [vmem:[%s1 + $0x848] sm:$0xff]
  %v419 = vld [vmem:[%s1 + $0x850] sm:$0xff]
  %v420 = vld [vmem:[%s1 + $0x858] sm:$0xff]
  %v421 = vld [vmem:[%s1 + $0x860] sm:$0xff]
  %v422 = vld [vmem:[%s1 + $0x868] sm:$0xff]
  %v423 = vld [vmem:[%s1 + $0x870] sm:$0xff]
  %v424 = vld [vmem:[%s1 + $0x878] sm:$0xff]
  %v425 = vld [vmem:[%s1 + $0x880] sm:$0xff]
  %v426 = vld [vmem:[%s1 + $0x888] sm:$0xff]
  %v427 = vld [vmem:[%s1 + $0x890] sm:$0xff]
  %v428 = vld [vmem:[%s1 + $0x898] sm:$0xff]
  %v429 = vld [vmem:[%s1 + $0x8a0] sm:$0xff]
  %v430 = vld [vmem:[%s1 + $0x8a8] sm:$0xff]
  %v431 = vld [vmem:[%s1 + $0x8b0] sm:$0xff]
  %v432 = vld [vmem:[%s1 + $0x8b8] sm:$0xff]
  %v433 = vld [vmem:[%s1 + $0x8c0] sm:$0xff]
  %v434 = vld [vmem:[%s1 + $0x8c8] sm:$0xff]
  %v435 = vld [vmem:[%s1 + $0x8d0] sm:$0xff]
  %v436 = vld [vmem:[%s1 + $0x8d8] sm:$0xff]
  %v437 = vld [vmem:[%s1 + $0x8e0] sm:$0xff]
  %v438 = vld [vmem:[%s1 + $0x8e8] sm:$0xff]
  %v439 = vld [vmem:[%s1 + $0x8f0] sm:$0xff]
  %v440 = vld [vmem:[%s1 + $0x8f8] sm:$0xff]
  %v441 = vld [vmem:[%s1 + $0x900] sm:$0xff]
  %v442 = vld [vmem:[%s1 + $0x908] sm:$0xff]
  %v443 = vld [vmem:[%s1 + $0x910] sm:$0xff]
  %v444 = vld [vmem:[%s1 + $0x918] sm:$0xff]
  %v445 = vld [vmem:[%s1 + $0x920] sm:$0xff]
  %v446 = vld [vmem:[%s1 + $0x928] sm:$0xff]
  %v447 = vld [vmem:[%s1 + $0x930] sm:$0xff]
  %v448 = vld [vmem:[%s1 + $0x938] sm:$0xff]
  %v449 = vld [vmem:[%s1 + $0x940] sm:$0xff]
  %v450 = vld [vmem:[%s1 + $0x948] sm:$0xff]
  %v451 = vld [vmem:[%s1 + $0x950] sm:$0xff]
  %v452 = vld [vmem:[%s1 + $0x958] sm:$0xff]
  %v453 = vld [vmem:[%s1 + $0x960] sm:$0xff]
  %v454 = vld [vmem:[%s1 + $0x968] sm:$0xff]
  %v455 = vld [vmem:[%s1 + $0x970] sm:$0xff]
  %v456 = vld [vmem:[%s1 + $0x978] sm:$0xff]
  %v457 = vld [vmem:[%s1 + $0x980] sm:$0xff]
  %v458 = vld [vmem:[%s1 + $0x988] sm:$0xff]
  %v459 = vld [vmem:[%s1 + $0x990] sm:$0xff]
  %v460 = vld [vmem:[%s1 + $0x998] sm:$0xff]
  %v461 = vld [vmem:[%s1 + $0x9a0] sm:$0xff]
  %v462 = vld [vmem:[%s1 + $0x9a8] sm:$0xff]
  %v463 = vld [vmem:[%s1 + $0x9b0] sm:$0xff]
  %v464 = vld [vmem:[%s1 + $0x9b8] sm:$0xff]
  %v465 = vld [vmem:[%s1 + $0x9c0] sm:$0xff]
  %v466 = vld [vmem:[%s1 + $0x9c8] sm:$0xff]
  %v467 = vld [vmem:[%s1 + $0x9d0] sm:$0xff]
  %v468 = vld [vmem:[%s1 + $0x9d8] sm:$0xff]
  %v469 = vld [vmem:[%s1 + $0x9e0] sm:$0xff]
  %v470 = vld [vmem:[%s1 + $0x9e8] sm:$0xff]
  %v471 = vld [vmem:[%s1 + $0x9f0] sm:$0xff]
  %v472 = vld [vmem:[%s1 + $0x9f8] sm:$0xff]
  %v473 = vld [vmem:[%s1 + $0xa00] sm:$0xff]
  %v474 = vld [vmem:[%s1 + $0xa08] sm:$0xff]
  %v475 = vld [vmem:[%s1 + $0xa10] sm:$0xff]
  %v476 = vld [vmem:[%s1 + $0xa18] sm:$0xff]
  %v477 = vld [vmem:[%s1 + $0xa20] sm:$0xff]
  %v478 = vld [vmem:[%s1 + $0xa28] sm:$0xff]
  %v479 = vld [vmem:[%s1 + $0xa30] sm:$0xff]
  %v480 = vld [vmem:[%s1 + $0xa38] sm:$0xff]
  %v481 = vld [vmem:[%s1 + $0xa40] sm:$0xff]
  %v482 = vld [vmem:[%s1 + $0xa48] sm:$0xff]
  %v483 = vld [vmem:[%s1 + $0xa50] sm:$0xff]
  %v484 = vld [vmem:[%s1 + $0xa58] sm:$0xff]
  %v485 = vld [vmem:[%s1 + $0xa60] sm:$0xff]
  %v486 = vld [vmem:[%s1 + $0xa68] sm:$0xff]
  %v487 = vld [vmem:[%s1 + $0xa70] sm:$0xff]
  %v488 = vld [vmem:[%s1 + $0xa78] sm:$0xff]
  %v489 = vld [vmem:[%s1 + $0xa80] sm:$0xff]
  %v490 = vld [vmem:[%s1 + $0xa88] sm:$0xff]
  %v491 = vld [vmem:[%s1 + $0xa90] sm:$0xff]
  %v492 = vld [vmem:[%s1 + $0xa98] sm:$0xff]
  %v493 = vld [vmem:[%s1 + $0xaa0] sm:$0xff]
  %v494 = vld [vmem:[%s1 + $0xaa8] sm:$0xff]
  %v495 = vld [vmem:[%s1 + $0xab0] sm:$0xff]
  %v496 = vld [vmem:[%s1 + $0xab8] sm:$0xff]
  %v497 = vld [vmem:[%s1 + $0xac0] sm:$0xff]
  %v498 = vld [vmem:[%s1 + $0xac8] sm:$0xff]
  %v499 = vld [vmem:[%s1 + $0xad0] sm:$0xff]
  %v500 = vld [vmem:[%s1 + $0xad8] sm:$0xff]
  %v501 = vld [vmem:[%s1 + $0xae0] sm:$0xff]
  %v502 = vld [vmem:[%s1 + $0xae8] sm:$0xff]
  %v503 = vld [vmem:[%s1 + $0xaf0] sm:$0xff]
  %v504 = vld [vmem:[%s1 + $0xaf8] sm:$0xff]
  %v505 = vld [vmem:[%s1 + $0xb00] sm:$0xff]
  %v506 = vld [vmem:[%s1 + $0xb08] sm:$0xff]
  %v507 = vld [vmem:[%s1 + $0xb10] sm:$0xff]
  %v508 = vld [vmem:[%s1 + $0xb18] sm:$0xff]
  %v509 = vld [vmem:[%s1 + $0xb20] sm:$0xff]
  %v510 = vld [vmem:[%s1 + $0xb28] sm:$0xff]
  %v511 = vld [vmem:[%s1 + $0xb30] sm:$0xff]
  %v512 = vld [vmem:[%s1 + $0xb38] sm:$0xff]
  %v513 = vld [vmem:[%s1 + $0xb40] sm:$0xff]
  %v514 = vld [vmem:[%s1 + $0xb48] sm:$0xff]
  %v515 = vld [vmem:[%s1 + $0xb50] sm:$0xff]
  %v516 = vld [vmem:[%s1 + $0xb58] sm:$0xff]
  %v517 = vld [vmem:[%s1 + $0xb60] sm:$0xff]
  %v518 = vld [vmem:[%s1 + $0xb68] sm:$0xff]
  %v519 = vld [vmem:[%s1 + $0xb70] sm:$0xff]
  %v520 = vld [vmem:[%s1 + $0xb78] sm:$0xff]
  %v521 = vld [vmem:[%s1 + $0xb80] sm:$0xff]
  %v522 = vld [vmem:[%s1 + $0xb88] sm:$0xff]
  %v523 = vld [vmem:[%s1 + $0xb90] sm:$0xff]
  %v524 = vld [vmem:[%s1 + $0xb98] sm:$0xff]
  %v525 = vld [vmem:[%s1 + $0xba0] sm:$0xff]
  %v526 = vld [vmem:[%s1 + $0xba8] sm:$0xff]
  %v527 = vld [vmem:[%s1 + $0xbb0] sm:$0xff]
  %v528 = vld [vmem:[%s1 + $0xbb8] sm:$0xff]
  %v529 = vld [vmem:[%s1 + $0xbc0] sm:$0xff]
  %v530 = vld [vmem:[%s1 + $0xbc8] sm:$0xff]
  %v531 = vld [vmem:[%s1 + $0xbd0] sm:$0xff]
  %v532 = vld [vmem:[%s1 + $0xbd8] sm:$0xff]
  %v533 = vld [vmem:[%s1 + $0xbe0] sm:$0xff]
  %v534 = vld [vmem:[%s1 + $0xbe8] sm:$0xff]
  %v535 = vld [vmem:[%s1 + $0xbf0] sm:$0xff]
  %v536 = vld [vmem:[%s1 + $0xbf8] sm:$0xff]
  %v537 = vld [vmem:[%s1 + $0xc00] sm:$0xff]
  %v538 = vld [vmem:[%s1 + $0xc08] sm:$0xff]
  %v539 = vld [vmem:[%s1 + $0xc10] sm:$0xff]
  %v540 = vld [vmem:[%s1 + $0xc18] sm:$0xff]
  %v541 = vld [vmem:[%s1 + $0xc20] sm:$0xff]
  %v542 = vld [vmem:[%s1 + $0xc28] sm:$0xff]
  %v543 = vld [vmem:[%s1 + $0xc30] sm:$0xff]
  %v544 = vld [vmem:[%s1 + $0xc38] sm:$0xff]
  %v545 = vld [vmem:[%s1 + $0xc40] sm:$0xff]
  %v546 = vld [vmem:[%s1 + $0xc48] sm:$0xff]
  %v547 = vld [vmem:[%s1 + $0xc50] sm:$0xff]
  %v548 = vld [vmem:[%s1 + $0xc58] sm:$0xff]
  %v549 = vld [vmem:[%s1 + $0xc60] sm:$0xff]
  %v550 = vld [vmem:[%s1 + $0xc68] sm:$0xff]
  %v551 = vld [vmem:[%s1 + $0xc70] sm:$0xff]
  %v552 = vld [vmem:[%s1 + $0xc78] sm:$0xff]
  %v553 = vld [vmem:[%s1 + $0xc80] sm:$0xff]
  %v554 = vld [vmem:[%s1 + $0xc88] sm:$0xff]
  %v555 = vld [vmem:[%s1 + $0xc90] sm:$0xff]
  %v556 = vld [vmem:[%s1 + $0xc98] sm:$0xff]
  %v557 = vld [vmem:[%s1 + $0xca0] sm:$0xff]
  %v558 = vld [vmem:[%s1 + $0xca8] sm:$0xff]
  %v559 = vld [vmem:[%s1 + $0xcb0] sm:$0xff]
  %v560 = vld [vmem:[%s1 + $0xcb8] sm:$0xff]
  %v561 = vld [vmem:[%s1 + $0xcc0] sm:$0xff]
  %v562 = vld [vmem:[%s1 + $0xcc8] sm:$0xff]
  %v563 = vld [vmem:[%s1 + $0xcd0] sm:$0xff]
  %v564 = vld [vmem:[%s1 + $0xcd8] sm:$0xff]
  %v565 = vld [vmem:[%s1 + $0xce0] sm:$0xff]
  %v566 = vld [vmem:[%s1 + $0xce8] sm:$0xff]
  %v567 = vld [vmem:[%s1 + $0xcf0] sm:$0xff]
  %v568 = vld [vmem:[%s1 + $0xcf8] sm:$0xff]
  %v569 = vld [vmem:[%s1 + $0xd00] sm:$0xff]
  %v570 = vld [vmem:[%s1 + $0xd08] sm:$0xff]
  %v571 = vld [vmem:[%s1 + $0xd10] sm:$0xff]
  %v572 = vld [vmem:[%s1 + $0xd18] sm:$0xff]
  %v573 = vld [vmem:[%s1 + $0xd20] sm:$0xff]
  %v574 = vld [vmem:[%s1 + $0xd28] sm:$0xff]
  %v575 = vld [vmem:[%s1 + $0xd30] sm:$0xff]
  %v576 = vld [vmem:[%s1 + $0xd38] sm:$0xff]
  %v577 = vld [vmem:[%s1 + $0xd40] sm:$0xff]
  %v578 = vld [vmem:[%s1 + $0xd48] sm:$0xff]
  %v579 = vld [vmem:[%s1 + $0xd50] sm:$0xff]
  %v580 = vld [vmem:[%s1 + $0xd58] sm:$0xff]
  %v581 = vld [vmem:[%s1 + $0xd60] sm:$0xff]
  %v582 = vld [vmem:[%s1 + $0xd68] sm:$0xff]
  %v583 = vld [vmem:[%s1 + $0xd70] sm:$0xff]
  %v584 = vld [vmem:[%s1 + $0xd78] sm:$0xff]
  %v585 = vld [vmem:[%s1 + $0xd80] sm:$0xff]
  %v586 = vld [vmem:[%s1 + $0xd88] sm:$0xff]
  %v587 = vld [vmem:[%s1 + $0xd90] sm:$0xff]
  %v588 = vld [vmem:[%s1 + $0xd98] sm:$0xff]
  %v589 = vld [vmem:[%s1 + $0xda0] sm:$0xff]
  %v590 = vld [vmem:[%s1 + $0xda8] sm:$0xff]
  %v591 = vld [vmem:[%s1 + $0xdb0] sm:$0xff]
  %v592 = vld [vmem:[%s1 + $0xdb8] sm:$0xff]
  %v593 = vld [vmem:[%s1 + $0xdc0] sm:$0xff]
  %v594 = vld [vmem:[%s1 + $0xdc8] sm:$0xff]
  %v595 = vld [vmem:[%s1 + $0xdd0] sm:$0xff]
  %v596 = vld [vmem:[%s1 + $0xdd8] sm:$0xff]
  %v597 = vld [vmem:[%s1 + $0xde0] sm:$0xff]
  %v598 = vld [vmem:[%s1 + $0xde8] sm:$0xff]
  %v599 = vld [vmem:[%s1 + $0xdf0] sm:$0xff]
  %v600 = vld [vmem:[%s1 + $0xdf8] sm:$0xff]
  %v601 = vld [vmem:[%s1 + $0xe00] sm:$0xff]
  %v602 = vld [vmem:[%s1 + $0xe08] sm:$0xff]
  %v603 = vld [vmem:[%s1 + $0xe10] sm:$0xff]
  %v604 = vld [vmem:[%s1 + $0xe18] sm:$0xff]
  %v605 = vld [vmem:[%s1 + $0xe20] sm:$0xff]
  %v606 = vld [vmem:[%s1 + $0xe28] sm:$0xff]
  %v607 = vld [vmem:[%s1 + $0xe30] sm:$0xff]
  %v608 = vld [vmem:[%s1 + $0xe38] sm:$0xff]
  %v609 = vld [vmem:[%s1 + $0xe40] sm:$0xff]
  %v610 = vld [vmem:[%s1 + $0xe48] sm:$0xff]
  %v611 = vld [vmem:[%s1 + $0xe50] sm:$0xff]
  %v612 = vld [vmem:[%s1 + $0xe58] sm:$0xff]
  %v613 = vld [vmem:[%s1 + $0xe60] sm:$0xff]
  %v614 = vld [vmem:[%s1 + $0xe68] sm:$0xff]
  %v615 = vld [vmem:[%s1 + $0xe70] sm:$0xff]
  %v616 = vld [vmem:[%s1 + $0xe78] sm:$0xff]
  %v617 = vld [vmem:[%s1 + $0xe80] sm:$0xff]
  %v618 = vld [vmem:[%s1 + $0xe88] sm:$0xff]
  %v619 = vld [vmem:[%s1 + $0xe90] sm:$0xff]
  %v620 = vld [vmem:[%s1 + $0xe98] sm:$0xff]
  %v621 = vld [vmem:[%s1 + $0xea0] sm:$0xff]
  %v622 = vld [vmem:[%s1 + $0xea8] sm:$0xff]
  %v623 = vld [vmem:[%s1 + $0xeb0] sm:$0xff]
  %v624 = vld [vmem:[%s1 + $0xeb8] sm:$0xff]
  %v625 = vld [vmem:[%s1 + $0xec0] sm:$0xff]
  %v626 = vld [vmem:[%s1 + $0xec8] sm:$0xff]
  %v627 = vld [vmem:[%s1 + $0xed0] sm:$0xff]
  %v628 = vld [vmem:[%s1 + $0xed8] sm:$0xff]
  %v629 = vld [vmem:[%s1 + $0xee0] sm:$0xff]
  %v630 = vld [vmem:[%s1 + $0xee8] sm:$0xff]
  %v631 = vld [vmem:[%s1 + $0xef0] sm:$0xff]
  %v632 = vld [vmem:[%s1 + $0xef8] sm:$0xff]
  %v633 = vld [vmem:[%s1 + $0xf00] sm:$0xff]
  %v634 = vld [vmem:[%s1 + $0xf08] sm:$0xff]
  %v635 = vld [vmem:[%s1 + $0xf10] sm:$0xff]
  %v636 = vld [vmem:[%s1 + $0xf18] sm:$0xff]
  %v637 = vld [vmem:[%s1 + $0xf20] sm:$0xff]
  %v638 = vld [vmem:[%s1 + $0xf28] sm:$0xff]
  %v639 = vld [vmem:[%s1 + $0xf30] sm:$0xff]
  %v640 = vld [vmem:[%s1 + $0xf38] sm:$0xff]
  %v641 = vld [vmem:[%s1 + $0xf40] sm:$0xff]
  %v642 = vld [vmem:[%s1 + $0xf48] sm:$0xff]
  %v643 = vld [vmem:[%s1 + $0xf50] sm:$0xff]
  %v644 = vld [vmem:[%s1 + $0xf58] sm:$0xff]
  %v645 = vld [vmem:[%s1 + $0xf60] sm:$0xff]
  %v646 = vld [vmem:[%s1 + $0xf68] sm:$0xff]
  %v647 = vld [vmem:[%s1 + $0xf70] sm:$0xff]
  %v648 = vld [vmem:[%s1 + $0xf78] sm:$0xff]
  %v649 = vld [vmem:[%s1 + $0xf80] sm:$0xff]
  %v650 = vld [vmem:[%s1 + $0xf88] sm:$0xff]
  %v651 = vld [vmem:[%s1 + $0xf90] sm:$0xff]
  %v652 = vld [vmem:[%s1 + $0xf98] sm:$0xff]
  %v653 = vld [vmem:[%s1 + $0xfa0] sm:$0xff]
  %v654 = vld [vmem:[%s1 + $0xfa8] sm:$0xff]
  %v655 = vld [vmem:[%s1 + $0xfb0] sm:$0xff]
  %v656 = vld [vmem:[%s1 + $0xfb8] sm:$0xff]
  %v657 = vld [vmem:[%s1 + $0xfc0] sm:$0xff]
  %v658 = vld [vmem:[%s1 + $0xfc8] sm:$0xff]
  %v659 = vld [vmem:[%s1 + $0xfd0] sm:$0xff]
  %v660 = vld [vmem:[%s1 + $0xfd8] sm:$0xff]
  %v661 = vld [vmem:[%s1 + $0xfe0] sm:$0xff]
  %v662 = vld [vmem:[%s1 + $0xfe8] sm:$0xff]
  %v663 = vld [vmem:[%s1 + $0xff0] sm:$0xff]
  %v664 = vld [vmem:[%s1 + $0xff8] sm:$0xff]
  %v665 = vld [vmem:[%s1 + $0x1000] sm:$0xff]
  %v666 = vld [vmem:[%s1 + $0x1008] sm:$0xff]
  %v667 = vld [vmem:[%s1 + $0x1010] sm:$0xff]
  %v668 = vld [vmem:[%s1 + $0x1018] sm:$0xff]
  %v669 = vld [vmem:[%s1 + $0x1020] sm:$0xff]
  %v670 = vld [vmem:[%s1 + $0x1028] sm:$0xff]
  %v671 = vld [vmem:[%s1 + $0x1030] sm:$0xff]
  %v672 = vld [vmem:[%s1 + $0x1038] sm:$0xff]
  %v673 = vld [vmem:[%s1 + $0x1040] sm:$0xff]
  %v674 = vld [vmem:[%s1 + $0x1048] sm:$0xff]
  %v675 = vld [vmem:[%s1 + $0x1050] sm:$0xff]
  %v676 = vld [vmem:[%s1 + $0x1058] sm:$0xff]
  %v677 = vld [vmem:[%s1 + $0x1060] sm:$0xff]
  %v678 = vld [vmem:[%s1 + $0x1068] sm:$0xff]
  %v679 = vld [vmem:[%s1 + $0x1070] sm:$0xff]
  %v680 = vld [vmem:[%s1 + $0x1078] sm:$0xff]
  %v681 = vld [vmem:[%s1 + $0x1080] sm:$0xff]
  %v682 = vld [vmem:[%s1 + $0x1088] sm:$0xff]
  %v683 = vld [vmem:[%s1 + $0x1090] sm:$0xff]
  %v684 = vld [vmem:[%s1 + $0x1098] sm:$0xff]
  %v685 = vld [vmem:[%s1 + $0x10a0] sm:$0xff]
  %v686 = vld [vmem:[%s1 + $0x10a8] sm:$0xff]
  %v687 = vld [vmem:[%s1 + $0x10b0] sm:$0xff]
  %v688 = vld [vmem:[%s1 + $0x10b8] sm:$0xff]
  %v689 = vld [vmem:[%s1 + $0x10c0] sm:$0xff]
  %v690 = vld [vmem:[%s1 + $0x10c8] sm:$0xff]
  %v691 = vld [vmem:[%s1 + $0x10d0] sm:$0xff]
  %v692 = vld [vmem:[%s1 + $0x10d8] sm:$0xff]
  %v693 = vld [vmem:[%s1 + $0x10e0] sm:$0xff]
  %v694 = vld [vmem:[%s1 + $0x10e8] sm:$0xff]
  %v695 = vld [vmem:[%s1 + $0x10f0] sm:$0xff]
  %v696 = vld [vmem:[%s1 + $0x10f8] sm:$0xff]
  %v697 = vld [vmem:[%s1 + $0x1100] sm:$0xff]
  %v698 = vld [vmem:[%s1 + $0x1108] sm:$0xff]
  %v699 = vld [vmem:[%s1 + $0x1110] sm:$0xff]
  %v700 = vld [vmem:[%s1 + $0x1118] sm:$0xff]
  %v701 = vld [vmem:[%s1 + $0x1120] sm:$0xff]
  %v702 = vld [vmem:[%s1 + $0x1128] sm:$0xff]
  %v703 = vld [vmem:[%s1 + $0x1130] sm:$0xff]
  %v704 = vld [vmem:[%s1 + $0x1138] sm:$0xff]
  %v705 = vld [vmem:[%s1 + $0x1140] sm:$0xff]
  %v706 = vld [vmem:[%s1 + $0x1148] sm:$0xff]
  %v707 = vld [vmem:[%s1 + $0x1150] sm:$0xff]
  %v708 = vld [vmem:[%s1 + $0x1158] sm:$0xff]
  %v709 = vld [vmem:[%s1 + $0x1160] sm:$0xff]
  %v710 = vld [vmem:[%s1 + $0x1168] sm:$0xff]
  %v711 = vld [vmem:[%s1 + $0x1170] sm:$0xff]
  %v712 = vld [vmem:[%s1 + $0x1178] sm:$0xff]
  %v713 = vld [vmem:[%s1 + $0x1180] sm:$0xff]
  %v714 = vld [vmem:[%s1 + $0x1188] sm:$0xff]
  %v715 = vld [vmem:[%s1 + $0x1190] sm:$0xff]
  %v716 = vld [vmem:[%s1 + $0x1198] sm:$0xff]
  %v717 = vld [vmem:[%s1 + $0x11a0] sm:$0xff]
  %v718 = vld [vmem:[%s1 + $0x11a8] sm:$0xff]
  %v719 = vld [vmem:[%s1 + $0x11b0] sm:$0xff]
  %v720 = vld [vmem:[%s1 + $0x11b8] sm:$0xff]
  %v721 = vld [vmem:[%s1 + $0x11c0] sm:$0xff]
  %v722 = vld [vmem:[%s1 + $0x11c8] sm:$0xff]
  %v723 = vld [vmem:[%s1 + $0x11d0] sm:$0xff]
  %v724 = vld [vmem:[%s1 + $0x11d8] sm:$0xff]
  %v725 = vld [vmem:[%s1 + $0x11e0] sm:$0xff]
  %v726 = vld [vmem:[%s1 + $0x11e8] sm:$0xff]
  %v727 = vld [vmem:[%s1 + $0x11f0] sm:$0xff]
  %v728 = vld [vmem:[%s1 + $0x11f8] sm:$0xff]
  %v729 = vld [vmem:[%s1 + $0x1200] sm:$0xff]
  %v730 = vld [vmem:[%s1 + $0x1208] sm:$0xff]
  %v731 = vld [vmem:[%s1 + $0x1210] sm:$0xff]
  %v732 = vld [vmem:[%s1 + $0x1218] sm:$0xff]
  %v733 = vld [vmem:[%s1 + $0x1220] sm:$0xff]
  %v734 = vld [vmem:[%s1 + $0x1228] sm:$0xff]
  %v735 = vld [vmem:[%s1 + $0x1230] sm:$0xff]
  %v736 = vld [vmem:[%s1 + $0x1238] sm:$0xff]
  %v737 = vld [vmem:[%s1 + $0x1240] sm:$0xff]
  %v738 = vld [vmem:[%s1 + $0x1248] sm:$0xff]
  %v739 = vld [vmem:[%s1 + $0x1250] sm:$0xff]
  %v740 = vld [vmem:[%s1 + $0x1258] sm:$0xff]
  %v741 = vld [vmem:[%s1 + $0x1260] sm:$0xff]
  %v742 = vld [vmem:[%s1 + $0x1268] sm:$0xff]
  %v743 = vld [vmem:[%s1 + $0x1270] sm:$0xff]
  %v744 = vld [vmem:[%s1 + $0x1278] sm:$0xff]
  %v745 = vld [vmem:[%s1 + $0x1280] sm:$0xff]
  %v746 = vld [vmem:[%s1 + $0x1288] sm:$0xff]
  %v747 = vld [vmem:[%s1 + $0x1290] sm:$0xff]
  %v748 = vld [vmem:[%s1 + $0x1298] sm:$0xff]
  %v749 = vld [vmem:[%s1 + $0x12a0] sm:$0xff]
  %v750 = vld [vmem:[%s1 + $0x12a8] sm:$0xff]
  %v751 = vld [vmem:[%s1 + $0x12b0] sm:$0xff]
  %v752 = vld [vmem:[%s1 + $0x12b8] sm:$0xff]
  %v753 = vld [vmem:[%s1 + $0x12c0] sm:$0xff]
  %v754 = vld [vmem:[%s1 + $0x12c8] sm:$0xff]
  %v755 = vld [vmem:[%s1 + $0x12d0] sm:$0xff]
  %v756 = vld [vmem:[%s1 + $0x12d8] sm:$0xff]
  %v757 = vld [vmem:[%s1 + $0x12e0] sm:$0xff]
  %v758 = vld [vmem:[%s1 + $0x12e8] sm:$0xff]
  %v759 = vld [vmem:[%s1 + $0x12f0] sm:$0xff]
  %v760 = vld [vmem:[%s1 + $0x12f8] sm:$0xff]
  %v761 = vld [vmem:[%s1 + $0x1300] sm:$0xff]
  %v762 = vld [vmem:[%s1 + $0x1308] sm:$0xff]
  %v763 = vld [vmem:[%s1 + $0x1310] sm:$0xff]
  %v764 = vld [vmem:[%s1 + $0x1318] sm:$0xff]
  %v765 = vld [vmem:[%s1 + $0x1320] sm:$0xff]
  %v766 = vld [vmem:[%s1 + $0x1328] sm:$0xff]
  %v767 = vld [vmem:[%s1 + $0x1330] sm:$0xff]
  %v768 = vld [vmem:[%s1 + $0x1338] sm:$0xff]
  %v769 = vld [vmem:[%s1 + $0x1340] sm:$0xff]
  %v770 = vld [vmem:[%s1 + $0x1348] sm:$0xff]
  %v771 = vld [vmem:[%s1 + $0x1350] sm:$0xff]
  %v772 = vld [vmem:[%s1 + $0x1358] sm:$0xff]
  %v773 = vld [vmem:[%s1 + $0x1360] sm:$0xff]
  %v774 = vld [vmem:[%s1 + $0x1368] sm:$0xff]
  %v775 = vld [vmem:[%s1 + $0x1370] sm:$0xff]
  %v776 = vld [vmem:[%s1 + $0x1378] sm:$0xff]
  %v777 = vld [vmem:[%s1 + $0x1380] sm:$0xff]
  %v778 = vld [vmem:[%s2] sm:$0x3]
  %v780 = vlaneseq
  %v781 = vshrl.u32 %v780, 7
  %v782 = vsub.s32 0, %v781
  %v783 = vrot.slane %v778, %v782
  %v784 = vlaneseq
  %v785 = vshrl.u32 %v784, 7
  %v786 = vsub.s32 1, %v785
  %v787 = vrot.slane %v778, %v786
  %v1415 = vunpack.c.l.b16 %v153
  %v1416 = vunpack.c.h.b16 %v153
  %v1417 = vunpack.c.l.b16 %v154
  %v1418 = vunpack.c.h.b16 %v154
  %v1419 = vunpack.c.l.b16 %v155
  %v1420 = vunpack.c.h.b16 %v155
  %v1421 = vunpack.c.l.b16 %v156
  %v1422 = vunpack.c.h.b16 %v156
  %v1423 = vunpack.c.l.b16 %v157
  %v1424 = vunpack.c.h.b16 %v157
  %v1425 = vunpack.c.l.b16 %v158
  %v1426 = vunpack.c.h.b16 %v158
  %v1427 = vunpack.c.l.b16 %v159
  %v1428 = vunpack.c.h.b16 %v159
  %v1429 = vunpack.c.l.b16 %v160
  %v1430 = vunpack.c.h.b16 %v160
  %v1431 = vunpack.c.l.b16 %v161
  %v1432 = vunpack.c.h.b16 %v161
  %v1433 = vunpack.c.l.b16 %v162
  %v1434 = vunpack.c.h.b16 %v162
  %v1435 = vunpack.c.l.b16 %v163
  %v1436 = vunpack.c.h.b16 %v163
  %v1437 = vunpack.c.l.b16 %v164
  %v1438 = vunpack.c.h.b16 %v164
  %v1439 = vunpack.c.l.b16 %v165
  %v1440 = vunpack.c.h.b16 %v165
  %v1441 = vunpack.c.l.b16 %v166
  %v1442 = vunpack.c.h.b16 %v166
  %v1443 = vunpack.c.l.b16 %v167
  %v1444 = vunpack.c.h.b16 %v167
  %v1445 = vunpack.c.l.b16 %v168
  %v1446 = vunpack.c.h.b16 %v168
  %v1447 = vunpack.c.l.b16 %v169
  %v1448 = vunpack.c.h.b16 %v169
  %v1449 = vunpack.c.l.b16 %v170
  %v1450 = vunpack.c.h.b16 %v170
  %v1451 = vunpack.c.l.b16 %v171
  %v1452 = vunpack.c.h.b16 %v171
  %v1453 = vunpack.c.l.b16 %v172
  %v1454 = vunpack.c.h.b16 %v172
  %v1455 = vunpack.c.l.b16 %v173
  %v1456 = vunpack.c.h.b16 %v173
  %v1457 = vunpack.c.l.b16 %v174
  %v1458 = vunpack.c.h.b16 %v174
  %v1459 = vunpack.c.l.b16 %v175
  %v1460 = vunpack.c.h.b16 %v175
  %v1461 = vunpack.c.l.b16 %v176
  %v1462 = vunpack.c.h.b16 %v176
  %v1463 = vunpack.c.l.b16 %v177
  %v1464 = vunpack.c.h.b16 %v177
  %v1465 = vunpack.c.l.b16 %v178
  %v1466 = vunpack.c.h.b16 %v178
  %v1467 = vunpack.c.l.b16 %v179
  %v1468 = vunpack.c.h.b16 %v179
  %v1469 = vunpack.c.l.b16 %v180
  %v1470 = vunpack.c.h.b16 %v180
  %v1471 = vunpack.c.l.b16 %v181
  %v1472 = vunpack.c.h.b16 %v181
  %v1473 = vunpack.c.l.b16 %v182
  %v1474 = vunpack.c.h.b16 %v182
  %v1475 = vunpack.c.l.b16 %v183
  %v1476 = vunpack.c.h.b16 %v183
  %v1477 = vunpack.c.l.b16 %v184
  %v1478 = vunpack.c.h.b16 %v184
  %v1479 = vunpack.c.l.b16 %v185
  %v1480 = vunpack.c.h.b16 %v185
  %v1481 = vunpack.c.l.b16 %v186
  %v1482 = vunpack.c.h.b16 %v186
  %v1483 = vunpack.c.l.b16 %v187
  %v1484 = vunpack.c.h.b16 %v187
  %v1485 = vunpack.c.l.b16 %v188
  %v1486 = vunpack.c.h.b16 %v188
  %v1487 = vunpack.c.l.b16 %v189
  %v1488 = vunpack.c.h.b16 %v189
  %v1489 = vunpack.c.l.b16 %v190
  %v1490 = vunpack.c.h.b16 %v190
  %v1491 = vunpack.c.l.b16 %v191
  %v1492 = vunpack.c.h.b16 %v191
  %v1493 = vunpack.c.l.b16 %v192
  %v1494 = vunpack.c.h.b16 %v192
  %v1495 = vunpack.c.l.b16 %v193
  %v1496 = vunpack.c.h.b16 %v193
  %v1497 = vunpack.c.l.b16 %v194
  %v1498 = vunpack.c.h.b16 %v194
  %v1499 = vunpack.c.l.b16 %v195
  %v1500 = vunpack.c.h.b16 %v195
  %v1501 = vunpack.c.l.b16 %v196
  %v1502 = vunpack.c.h.b16 %v196
  %v1503 = vunpack.c.l.b16 %v197
  %v1504 = vunpack.c.h.b16 %v197
  %v1505 = vunpack.c.l.b16 %v198
  %v1506 = vunpack.c.h.b16 %v198
  %v1507 = vunpack.c.l.b16 %v199
  %v1508 = vunpack.c.h.b16 %v199
  %v1509 = vunpack.c.l.b16 %v200
  %v1510 = vunpack.c.h.b16 %v200
  %v1511 = vunpack.c.l.b16 %v201
  %v1512 = vunpack.c.h.b16 %v201
  %v1513 = vunpack.c.l.b16 %v202
  %v1514 = vunpack.c.h.b16 %v202
  %v1515 = vunpack.c.l.b16 %v203
  %v1516 = vunpack.c.h.b16 %v203
  %v1517 = vunpack.c.l.b16 %v204
  %v1518 = vunpack.c.h.b16 %v204
  %v1519 = vunpack.c.l.b16 %v205
  %v1520 = vunpack.c.h.b16 %v205
  %v1521 = vunpack.c.l.b16 %v206
  %v1522 = vunpack.c.h.b16 %v206
  %v1523 = vunpack.c.l.b16 %v207
  %v1524 = vunpack.c.h.b16 %v207
  %v1525 = vunpack.c.l.b16 %v208
  %v1526 = vunpack.c.h.b16 %v208
  %v1527 = vunpack.c.l.b16 %v209
  %v1528 = vunpack.c.h.b16 %v209
  %v1529 = vunpack.c.l.b16 %v210
  %v1530 = vunpack.c.h.b16 %v210
  %v1531 = vunpack.c.l.b16 %v211
  %v1532 = vunpack.c.h.b16 %v211
  %v1533 = vunpack.c.l.b16 %v212
  %v1534 = vunpack.c.h.b16 %v212
  %v1535 = vunpack.c.l.b16 %v213
  %v1536 = vunpack.c.h.b16 %v213
  %v1537 = vunpack.c.l.b16 %v214
  %v1538 = vunpack.c.h.b16 %v214
  %v1539 = vunpack.c.l.b16 %v215
  %v1540 = vunpack.c.h.b16 %v215
  %v1541 = vunpack.c.l.b16 %v216
  %v1542 = vunpack.c.h.b16 %v216
  %v1543 = vunpack.c.l.b16 %v217
  %v1544 = vunpack.c.h.b16 %v217
  %v1545 = vunpack.c.l.b16 %v218
  %v1546 = vunpack.c.h.b16 %v218
  %v1547 = vunpack.c.l.b16 %v219
  %v1548 = vunpack.c.h.b16 %v219
  %v1549 = vunpack.c.l.b16 %v220
  %v1550 = vunpack.c.h.b16 %v220
  %v1551 = vunpack.c.l.b16 %v221
  %v1552 = vunpack.c.h.b16 %v221
  %v1553 = vunpack.c.l.b16 %v222
  %v1554 = vunpack.c.h.b16 %v222
  %v1555 = vunpack.c.l.b16 %v223
  %v1556 = vunpack.c.h.b16 %v223
  %v1557 = vunpack.c.l.b16 %v224
  %v1558 = vunpack.c.h.b16 %v224
  %v1559 = vunpack.c.l.b16 %v225
  %v1560 = vunpack.c.h.b16 %v225
  %v1561 = vunpack.c.l.b16 %v226
  %v1562 = vunpack.c.h.b16 %v226
  %v1563 = vunpack.c.l.b16 %v227
  %v1564 = vunpack.c.h.b16 %v227
  %v1565 = vunpack.c.l.b16 %v228
  %v1566 = vunpack.c.h.b16 %v228
  %v1567 = vunpack.c.l.b16 %v229
  %v1568 = vunpack.c.h.b16 %v229
  %v1569 = vunpack.c.l.b16 %v230
  %v1570 = vunpack.c.h.b16 %v230
  %v1571 = vunpack.c.l.b16 %v231
  %v1572 = vunpack.c.h.b16 %v231
  %v1573 = vunpack.c.l.b16 %v232
  %v1574 = vunpack.c.h.b16 %v232
  %v1575 = vunpack.c.l.b16 %v233
  %v1576 = vunpack.c.h.b16 %v233
  %v1577 = vunpack.c.l.b16 %v234
  %v1578 = vunpack.c.h.b16 %v234
  %v1579 = vunpack.c.l.b16 %v235
  %v1580 = vunpack.c.h.b16 %v235
  %v1581 = vunpack.c.l.b16 %v236
  %v1582 = vunpack.c.h.b16 %v236
  %v1583 = vunpack.c.l.b16 %v237
  %v1584 = vunpack.c.h.b16 %v237
  %v1585 = vunpack.c.l.b16 %v238
  %v1586 = vunpack.c.h.b16 %v238
  %v1587 = vunpack.c.l.b16 %v239
  %v1588 = vunpack.c.h.b16 %v239
  %v1589 = vunpack.c.l.b16 %v240
  %v1590 = vunpack.c.h.b16 %v240
  %v1591 = vunpack.c.l.b16 %v241
  %v1592 = vunpack.c.h.b16 %v241
  %v1593 = vunpack.c.l.b16 %v242
  %v1594 = vunpack.c.h.b16 %v242
  %v1595 = vunpack.c.l.b16 %v243
  %v1596 = vunpack.c.h.b16 %v243
  %v1597 = vunpack.c.l.b16 %v244
  %v1598 = vunpack.c.h.b16 %v244
  %v1599 = vunpack.c.l.b16 %v245
  %v1600 = vunpack.c.h.b16 %v245
  %v1601 = vunpack.c.l.b16 %v246
  %v1602 = vunpack.c.h.b16 %v246
  %v1603 = vunpack.c.l.b16 %v247
  %v1604 = vunpack.c.h.b16 %v247
  %v1605 = vunpack.c.l.b16 %v248
  %v1606 = vunpack.c.h.b16 %v248
  %v1607 = vunpack.c.l.b16 %v249
  %v1608 = vunpack.c.h.b16 %v249
  %v1609 = vunpack.c.l.b16 %v250
  %v1610 = vunpack.c.h.b16 %v250
  %v1611 = vunpack.c.l.b16 %v251
  %v1612 = vunpack.c.h.b16 %v251
  %v1613 = vunpack.c.l.b16 %v252
  %v1614 = vunpack.c.h.b16 %v252
  %v1615 = vunpack.c.l.b16 %v253
  %v1616 = vunpack.c.h.b16 %v253
  %v1617 = vunpack.c.l.b16 %v254
  %v1618 = vunpack.c.h.b16 %v254
  %v1619 = vunpack.c.l.b16 %v255
  %v1620 = vunpack.c.h.b16 %v255
  %v1621 = vunpack.c.l.b16 %v256
  %v1622 = vunpack.c.h.b16 %v256
  %v1623 = vunpack.c.l.b16 %v257
  %v1624 = vunpack.c.h.b16 %v257
  %v1625 = vunpack.c.l.b16 %v258
  %v1626 = vunpack.c.h.b16 %v258
  %v1627 = vunpack.c.l.b16 %v259
  %v1628 = vunpack.c.h.b16 %v259
  %v1629 = vunpack.c.l.b16 %v260
  %v1630 = vunpack.c.h.b16 %v260
  %v1631 = vunpack.c.l.b16 %v261
  %v1632 = vunpack.c.h.b16 %v261
  %v1633 = vunpack.c.l.b16 %v262
  %v1634 = vunpack.c.h.b16 %v262
  %v1635 = vunpack.c.l.b16 %v263
  %v1636 = vunpack.c.h.b16 %v263
  %v1637 = vunpack.c.l.b16 %v264
  %v1638 = vunpack.c.h.b16 %v264
  %v1639 = vunpack.c.l.b16 %v265
  %v1640 = vunpack.c.h.b16 %v265
  %v1641 = vunpack.c.l.b16 %v266
  %v1642 = vunpack.c.h.b16 %v266
  %v1643 = vunpack.c.l.b16 %v267
  %v1644 = vunpack.c.h.b16 %v267
  %v1645 = vunpack.c.l.b16 %v268
  %v1646 = vunpack.c.h.b16 %v268
  %v1647 = vunpack.c.l.b16 %v269
  %v1648 = vunpack.c.h.b16 %v269
  %v1649 = vunpack.c.l.b16 %v270
  %v1650 = vunpack.c.h.b16 %v270
  %v1651 = vunpack.c.l.b16 %v271
  %v1652 = vunpack.c.h.b16 %v271
  %v1653 = vunpack.c.l.b16 %v272
  %v1654 = vunpack.c.h.b16 %v272
  %v1655 = vunpack.c.l.b16 %v273
  %v1656 = vunpack.c.h.b16 %v273
  %v1657 = vunpack.c.l.b16 %v274
  %v1658 = vunpack.c.h.b16 %v274
  %v1659 = vunpack.c.l.b16 %v275
  %v1660 = vunpack.c.h.b16 %v275
  %v1661 = vunpack.c.l.b16 %v276
  %v1662 = vunpack.c.h.b16 %v276
  %v1663 = vunpack.c.l.b16 %v277
  %v1664 = vunpack.c.h.b16 %v277
  %v1665 = vunpack.c.l.b16 %v278
  %v1666 = vunpack.c.h.b16 %v278
  %v1667 = vunpack.c.l.b16 %v279
  %v1668 = vunpack.c.h.b16 %v279
  %v1669 = vunpack.c.l.b16 %v280
  %v1670 = vunpack.c.h.b16 %v280
  %v1671 = vunpack.c.l.b16 %v281
  %v1672 = vunpack.c.h.b16 %v281
  %v1673 = vunpack.c.l.b16 %v282
  %v1674 = vunpack.c.h.b16 %v282
  %v1675 = vunpack.c.l.b16 %v283
  %v1676 = vunpack.c.h.b16 %v283
  %v1677 = vunpack.c.l.b16 %v284
  %v1678 = vunpack.c.h.b16 %v284
  %v1679 = vunpack.c.l.b16 %v285
  %v1680 = vunpack.c.h.b16 %v285
  %v1681 = vunpack.c.l.b16 %v286
  %v1682 = vunpack.c.h.b16 %v286
  %v1683 = vunpack.c.l.b16 %v287
  %v1684 = vunpack.c.h.b16 %v287
  %v1685 = vunpack.c.l.b16 %v288
  %v1686 = vunpack.c.h.b16 %v288
  %v1687 = vunpack.c.l.b16 %v289
  %v1688 = vunpack.c.h.b16 %v289
  %v1689 = vunpack.c.l.b16 %v290
  %v1690 = vunpack.c.h.b16 %v290
  %v1691 = vunpack.c.l.b16 %v291
  %v1692 = vunpack.c.h.b16 %v291
  %v1693 = vunpack.c.l.b16 %v292
  %v1694 = vunpack.c.h.b16 %v292
  %v1695 = vunpack.c.l.b16 %v293
  %v1696 = vunpack.c.h.b16 %v293
  %v1697 = vunpack.c.l.b16 %v294
  %v1698 = vunpack.c.h.b16 %v294
  %v1699 = vunpack.c.l.b16 %v295
  %v1700 = vunpack.c.h.b16 %v295
  %v1701 = vunpack.c.l.b16 %v296
  %v1702 = vunpack.c.h.b16 %v296
  %v1703 = vunpack.c.l.b16 %v297
  %v1704 = vunpack.c.h.b16 %v297
  %v1705 = vunpack.c.l.b16 %v298
  %v1706 = vunpack.c.h.b16 %v298
  %v1707 = vunpack.c.l.b16 %v299
  %v1708 = vunpack.c.h.b16 %v299
  %v1709 = vunpack.c.l.b16 %v300
  %v1710 = vunpack.c.h.b16 %v300
  %v1711 = vunpack.c.l.b16 %v301
  %v1712 = vunpack.c.h.b16 %v301
  %v1713 = vunpack.c.l.b16 %v302
  %v1714 = vunpack.c.h.b16 %v302
  %v1715 = vunpack.c.l.b16 %v303
  %v1716 = vunpack.c.h.b16 %v303
  %v1717 = vunpack.c.l.b16 %v304
  %v1718 = vunpack.c.h.b16 %v304
  %v1719 = vunpack.c.l.b16 %v305
  %v1720 = vunpack.c.h.b16 %v305
  %v1721 = vunpack.c.l.b16 %v306
  %v1722 = vunpack.c.h.b16 %v306
  %v1723 = vunpack.c.l.b16 %v307
  %v1724 = vunpack.c.h.b16 %v307
  %v1725 = vunpack.c.l.b16 %v308
  %v1726 = vunpack.c.h.b16 %v308
  %v1727 = vunpack.c.l.b16 %v309
  %v1728 = vunpack.c.h.b16 %v309
  %v1729 = vunpack.c.l.b16 %v310
  %v1730 = vunpack.c.h.b16 %v310
  %v1731 = vunpack.c.l.b16 %v311
  %v1732 = vunpack.c.h.b16 %v311
  %v1733 = vunpack.c.l.b16 %v312
  %v1734 = vunpack.c.h.b16 %v312
  %v1735 = vunpack.c.l.b16 %v313
  %v1736 = vunpack.c.h.b16 %v313
  %v1737 = vunpack.c.l.b16 %v314
  %v1738 = vunpack.c.h.b16 %v314
  %v1739 = vunpack.c.l.b16 %v315
  %v1740 = vunpack.c.h.b16 %v315
  %v1741 = vunpack.c.l.b16 %v316
  %v1742 = vunpack.c.h.b16 %v316
  %v1743 = vunpack.c.l.b16 %v317
  %v1744 = vunpack.c.h.b16 %v317
  %v1745 = vunpack.c.l.b16 %v318
  %v1746 = vunpack.c.h.b16 %v318
  %v1747 = vunpack.c.l.b16 %v319
  %v1748 = vunpack.c.h.b16 %v319
  %v1749 = vunpack.c.l.b16 %v320
  %v1750 = vunpack.c.h.b16 %v320
  %v1751 = vunpack.c.l.b16 %v321
  %v1752 = vunpack.c.h.b16 %v321
  %v1753 = vunpack.c.l.b16 %v322
  %v1754 = vunpack.c.h.b16 %v322
  %v1755 = vunpack.c.l.b16 %v323
  %v1756 = vunpack.c.h.b16 %v323
  %v1757 = vunpack.c.l.b16 %v324
  %v1758 = vunpack.c.h.b16 %v324
  %v1759 = vunpack.c.l.b16 %v325
  %v1760 = vunpack.c.h.b16 %v325
  %v1761 = vunpack.c.l.b16 %v326
  %v1762 = vunpack.c.h.b16 %v326
  %v1763 = vunpack.c.l.b16 %v327
  %v1764 = vunpack.c.h.b16 %v327
  %v1765 = vunpack.c.l.b16 %v328
  %v1766 = vunpack.c.h.b16 %v328
  %v1767 = vunpack.c.l.b16 %v329
  %v1768 = vunpack.c.h.b16 %v329
  %v1769 = vunpack.c.l.b16 %v330
  %v1770 = vunpack.c.h.b16 %v330
  %v1771 = vunpack.c.l.b16 %v331
  %v1772 = vunpack.c.h.b16 %v331
  %v1773 = vunpack.c.l.b16 %v332
  %v1774 = vunpack.c.h.b16 %v332
  %v1775 = vunpack.c.l.b16 %v333
  %v1776 = vunpack.c.h.b16 %v333
  %v1777 = vunpack.c.l.b16 %v334
  %v1778 = vunpack.c.h.b16 %v334
  %v1779 = vunpack.c.l.b16 %v335
  %v1780 = vunpack.c.h.b16 %v335
  %v1781 = vunpack.c.l.b16 %v336
  %v1782 = vunpack.c.h.b16 %v336
  %v1783 = vunpack.c.l.b16 %v337
  %v1784 = vunpack.c.h.b16 %v337
  %v1785 = vunpack.c.l.b16 %v338
  %v1786 = vunpack.c.h.b16 %v338
  %v1787 = vunpack.c.l.b16 %v339
  %v1788 = vunpack.c.h.b16 %v339
  %v1789 = vunpack.c.l.b16 %v340
  %v1790 = vunpack.c.h.b16 %v340
  %v1791 = vunpack.c.l.b16 %v341
  %v1792 = vunpack.c.h.b16 %v341
  %v1793 = vunpack.c.l.b16 %v342
  %v1794 = vunpack.c.h.b16 %v342
  %v1795 = vunpack.c.l.b16 %v343
  %v1796 = vunpack.c.h.b16 %v343
  %v1797 = vunpack.c.l.b16 %v344
  %v1798 = vunpack.c.h.b16 %v344
  %v1799 = vunpack.c.l.b16 %v345
  %v1800 = vunpack.c.h.b16 %v345
  %v1801 = vunpack.c.l.b16 %v346
  %v1802 = vunpack.c.h.b16 %v346
  %v1803 = vunpack.c.l.b16 %v347
  %v1804 = vunpack.c.h.b16 %v347
  %v1805 = vunpack.c.l.b16 %v348
  %v1806 = vunpack.c.h.b16 %v348
  %v1807 = vunpack.c.l.b16 %v349
  %v1808 = vunpack.c.h.b16 %v349
  %v1809 = vunpack.c.l.b16 %v350
  %v1810 = vunpack.c.h.b16 %v350
  %v1811 = vunpack.c.l.b16 %v351
  %v1812 = vunpack.c.h.b16 %v351
  %v1813 = vunpack.c.l.b16 %v352
  %v1814 = vunpack.c.h.b16 %v352
  %v1815 = vunpack.c.l.b16 %v353
  %v1816 = vunpack.c.h.b16 %v353
  %v1817 = vunpack.c.l.b16 %v354
  %v1818 = vunpack.c.h.b16 %v354
  %v1819 = vunpack.c.l.b16 %v355
  %v1820 = vunpack.c.h.b16 %v355
  %v1821 = vunpack.c.l.b16 %v356
  %v1822 = vunpack.c.h.b16 %v356
  %v1823 = vunpack.c.l.b16 %v357
  %v1824 = vunpack.c.h.b16 %v357
  %v1825 = vunpack.c.l.b16 %v358
  %v1826 = vunpack.c.h.b16 %v358
  %v1827 = vunpack.c.l.b16 %v359
  %v1828 = vunpack.c.h.b16 %v359
  %v1829 = vunpack.c.l.b16 %v360
  %v1830 = vunpack.c.h.b16 %v360
  %v1831 = vunpack.c.l.b16 %v361
  %v1832 = vunpack.c.h.b16 %v361
  %v1833 = vunpack.c.l.b16 %v362
  %v1834 = vunpack.c.h.b16 %v362
  %v1835 = vunpack.c.l.b16 %v363
  %v1836 = vunpack.c.h.b16 %v363
  %v1837 = vunpack.c.l.b16 %v364
  %v1838 = vunpack.c.h.b16 %v364
  %v1839 = vunpack.c.l.b16 %v365
  %v1840 = vunpack.c.h.b16 %v365
  %v1841 = vunpack.c.l.b16 %v366
  %v1842 = vunpack.c.h.b16 %v366
  %v1843 = vunpack.c.l.b16 %v367
  %v1844 = vunpack.c.h.b16 %v367
  %v1845 = vunpack.c.l.b16 %v368
  %v1846 = vunpack.c.h.b16 %v368
  %v1847 = vunpack.c.l.b16 %v369
  %v1848 = vunpack.c.h.b16 %v369
  %v1849 = vunpack.c.l.b16 %v370
  %v1850 = vunpack.c.h.b16 %v370
  %v1851 = vunpack.c.l.b16 %v371
  %v1852 = vunpack.c.h.b16 %v371
  %v1853 = vunpack.c.l.b16 %v372
  %v1854 = vunpack.c.h.b16 %v372
  %v1855 = vunpack.c.l.b16 %v373
  %v1856 = vunpack.c.h.b16 %v373
  %v1857 = vunpack.c.l.b16 %v374
  %v1858 = vunpack.c.h.b16 %v374
  %v1859 = vunpack.c.l.b16 %v375
  %v1860 = vunpack.c.h.b16 %v375
  %v1861 = vunpack.c.l.b16 %v376
  %v1862 = vunpack.c.h.b16 %v376
  %v1863 = vunpack.c.l.b16 %v377
  %v1864 = vunpack.c.h.b16 %v377
  %v1865 = vunpack.c.l.b16 %v378
  %v1866 = vunpack.c.h.b16 %v378
  %v1867 = vunpack.c.l.b16 %v379
  %v1868 = vunpack.c.h.b16 %v379
  %v1869 = vunpack.c.l.b16 %v380
  %v1870 = vunpack.c.h.b16 %v380
  %v1871 = vunpack.c.l.b16 %v381
  %v1872 = vunpack.c.h.b16 %v381
  %v1873 = vunpack.c.l.b16 %v382
  %v1874 = vunpack.c.h.b16 %v382
  %v1875 = vunpack.c.l.b16 %v383
  %v1876 = vunpack.c.h.b16 %v383
  %v1877 = vunpack.c.l.b16 %v384
  %v1878 = vunpack.c.h.b16 %v384
  %v1879 = vunpack.c.l.b16 %v385
  %v1880 = vunpack.c.h.b16 %v385
  %v1881 = vunpack.c.l.b16 %v386
  %v1882 = vunpack.c.h.b16 %v386
  %v1883 = vunpack.c.l.b16 %v387
  %v1884 = vunpack.c.h.b16 %v387
  %v1885 = vunpack.c.l.b16 %v388
  %v1886 = vunpack.c.h.b16 %v388
  %v1887 = vunpack.c.l.b16 %v389
  %v1888 = vunpack.c.h.b16 %v389
  %v1889 = vunpack.c.l.b16 %v390
  %v1890 = vunpack.c.h.b16 %v390
  %v1891 = vunpack.c.l.b16 %v391
  %v1892 = vunpack.c.h.b16 %v391
  %v1893 = vunpack.c.l.b16 %v392
  %v1894 = vunpack.c.h.b16 %v392
  %v1895 = vunpack.c.l.b16 %v393
  %v1896 = vunpack.c.h.b16 %v393
  %v1897 = vunpack.c.l.b16 %v394
  %v1898 = vunpack.c.h.b16 %v394
  %v1899 = vunpack.c.l.b16 %v395
  %v1900 = vunpack.c.h.b16 %v395
  %v1901 = vunpack.c.l.b16 %v396
  %v1902 = vunpack.c.h.b16 %v396
  %v1903 = vunpack.c.l.b16 %v397
  %v1904 = vunpack.c.h.b16 %v397
  %v1905 = vunpack.c.l.b16 %v398
  %v1906 = vunpack.c.h.b16 %v398
  %v1907 = vunpack.c.l.b16 %v399
  %v1908 = vunpack.c.h.b16 %v399
  %v1909 = vunpack.c.l.b16 %v400
  %v1910 = vunpack.c.h.b16 %v400
  %v1911 = vunpack.c.l.b16 %v401
  %v1912 = vunpack.c.h.b16 %v401
  %v1913 = vunpack.c.l.b16 %v402
  %v1914 = vunpack.c.h.b16 %v402
  %v1915 = vunpack.c.l.b16 %v403
  %v1916 = vunpack.c.h.b16 %v403
  %v1917 = vunpack.c.l.b16 %v404
  %v1918 = vunpack.c.h.b16 %v404
  %v1919 = vunpack.c.l.b16 %v405
  %v1920 = vunpack.c.h.b16 %v405
  %v1921 = vunpack.c.l.b16 %v406
  %v1922 = vunpack.c.h.b16 %v406
  %v1923 = vunpack.c.l.b16 %v407
  %v1924 = vunpack.c.h.b16 %v407
  %v1925 = vunpack.c.l.b16 %v408
  %v1926 = vunpack.c.h.b16 %v408
  %v1927 = vunpack.c.l.b16 %v409
  %v1928 = vunpack.c.h.b16 %v409
  %v1929 = vunpack.c.l.b16 %v410
  %v1930 = vunpack.c.h.b16 %v410
  %v1931 = vunpack.c.l.b16 %v411
  %v1932 = vunpack.c.h.b16 %v411
  %v1933 = vunpack.c.l.b16 %v412
  %v1934 = vunpack.c.h.b16 %v412
  %v1935 = vunpack.c.l.b16 %v413
  %v1936 = vunpack.c.h.b16 %v413
  %v1937 = vunpack.c.l.b16 %v414
  %v1938 = vunpack.c.h.b16 %v414
  %v1939 = vunpack.c.l.b16 %v415
  %v1940 = vunpack.c.h.b16 %v415
  %v1941 = vunpack.c.l.b16 %v416
  %v1942 = vunpack.c.h.b16 %v416
  %v1943 = vunpack.c.l.b16 %v417
  %v1944 = vunpack.c.h.b16 %v417
  %v1945 = vunpack.c.l.b16 %v418
  %v1946 = vunpack.c.h.b16 %v418
  %v1947 = vunpack.c.l.b16 %v419
  %v1948 = vunpack.c.h.b16 %v419
  %v1949 = vunpack.c.l.b16 %v420
  %v1950 = vunpack.c.h.b16 %v420
  %v1951 = vunpack.c.l.b16 %v421
  %v1952 = vunpack.c.h.b16 %v421
  %v1953 = vunpack.c.l.b16 %v422
  %v1954 = vunpack.c.h.b16 %v422
  %v1955 = vunpack.c.l.b16 %v423
  %v1956 = vunpack.c.h.b16 %v423
  %v1957 = vunpack.c.l.b16 %v424
  %v1958 = vunpack.c.h.b16 %v424
  %v1959 = vunpack.c.l.b16 %v425
  %v1960 = vunpack.c.h.b16 %v425
  %v1961 = vunpack.c.l.b16 %v426
  %v1962 = vunpack.c.h.b16 %v426
  %v1963 = vunpack.c.l.b16 %v427
  %v1964 = vunpack.c.h.b16 %v427
  %v1965 = vunpack.c.l.b16 %v428
  %v1966 = vunpack.c.h.b16 %v428
  %v1967 = vunpack.c.l.b16 %v429
  %v1968 = vunpack.c.h.b16 %v429
  %v1969 = vunpack.c.l.b16 %v430
  %v1970 = vunpack.c.h.b16 %v430
  %v1971 = vunpack.c.l.b16 %v431
  %v1972 = vunpack.c.h.b16 %v431
  %v1973 = vunpack.c.l.b16 %v432
  %v1974 = vunpack.c.h.b16 %v432
  %v1975 = vunpack.c.l.b16 %v433
  %v1976 = vunpack.c.h.b16 %v433
  %v1977 = vunpack.c.l.b16 %v434
  %v1978 = vunpack.c.h.b16 %v434
  %v1979 = vunpack.c.l.b16 %v435
  %v1980 = vunpack.c.h.b16 %v435
  %v1981 = vunpack.c.l.b16 %v436
  %v1982 = vunpack.c.h.b16 %v436
  %v1983 = vunpack.c.l.b16 %v437
  %v1984 = vunpack.c.h.b16 %v437
  %v1985 = vunpack.c.l.b16 %v438
  %v1986 = vunpack.c.h.b16 %v438
  %v1987 = vunpack.c.l.b16 %v439
  %v1988 = vunpack.c.h.b16 %v439
  %v1989 = vunpack.c.l.b16 %v440
  %v1990 = vunpack.c.h.b16 %v440
  %v1991 = vunpack.c.l.b16 %v441
  %v1992 = vunpack.c.h.b16 %v441
  %v1993 = vunpack.c.l.b16 %v442
  %v1994 = vunpack.c.h.b16 %v442
  %v1995 = vunpack.c.l.b16 %v443
  %v1996 = vunpack.c.h.b16 %v443
  %v1997 = vunpack.c.l.b16 %v444
  %v1998 = vunpack.c.h.b16 %v444
  %v1999 = vunpack.c.l.b16 %v445
  %v2000 = vunpack.c.h.b16 %v445
  %v2001 = vunpack.c.l.b16 %v446
  %v2002 = vunpack.c.h.b16 %v446
  %v2003 = vunpack.c.l.b16 %v447
  %v2004 = vunpack.c.h.b16 %v447
  %v2005 = vunpack.c.l.b16 %v448
  %v2006 = vunpack.c.h.b16 %v448
  %v2007 = vunpack.c.l.b16 %v449
  %v2008 = vunpack.c.h.b16 %v449
  %v2009 = vunpack.c.l.b16 %v450
  %v2010 = vunpack.c.h.b16 %v450
  %v2011 = vunpack.c.l.b16 %v451
  %v2012 = vunpack.c.h.b16 %v451
  %v2013 = vunpack.c.l.b16 %v452
  %v2014 = vunpack.c.h.b16 %v452
  %v2015 = vunpack.c.l.b16 %v453
  %v2016 = vunpack.c.h.b16 %v453
  %v2017 = vunpack.c.l.b16 %v454
  %v2018 = vunpack.c.h.b16 %v454
  %v2019 = vunpack.c.l.b16 %v455
  %v2020 = vunpack.c.h.b16 %v455
  %v2021 = vunpack.c.l.b16 %v456
  %v2022 = vunpack.c.h.b16 %v456
  %v2023 = vunpack.c.l.b16 %v457
  %v2024 = vunpack.c.h.b16 %v457
  %v2025 = vunpack.c.l.b16 %v458
  %v2026 = vunpack.c.h.b16 %v458
  %v2027 = vunpack.c.l.b16 %v459
  %v2028 = vunpack.c.h.b16 %v459
  %v2029 = vunpack.c.l.b16 %v460
  %v2030 = vunpack.c.h.b16 %v460
  %v2031 = vunpack.c.l.b16 %v461
  %v2032 = vunpack.c.h.b16 %v461
  %v2033 = vunpack.c.l.b16 %v462
  %v2034 = vunpack.c.h.b16 %v462
  %v2035 = vunpack.c.l.b16 %v463
  %v2036 = vunpack.c.h.b16 %v463
  %v2037 = vunpack.c.l.b16 %v464
  %v2038 = vunpack.c.h.b16 %v464
  %v2039 = vunpack.c.l.b16 %v465
  %v2040 = vunpack.c.h.b16 %v465
  %v2041 = vunpack.c.l.b16 %v466
  %v2042 = vunpack.c.h.b16 %v466
  %v2043 = vunpack.c.l.b16 %v467
  %v2044 = vunpack.c.h.b16 %v467
  %v2045 = vunpack.c.l.b16 %v468
  %v2046 = vunpack.c.h.b16 %v468
  %v2047 = vunpack.c.l.b16 %v469
  %v2048 = vunpack.c.h.b16 %v469
  %v2049 = vunpack.c.l.b16 %v470
  %v2050 = vunpack.c.h.b16 %v470
  %v2051 = vunpack.c.l.b16 %v471
  %v2052 = vunpack.c.h.b16 %v471
  %v2053 = vunpack.c.l.b16 %v472
  %v2054 = vunpack.c.h.b16 %v472
  %v2055 = vunpack.c.l.b16 %v473
  %v2056 = vunpack.c.h.b16 %v473
  %v2057 = vunpack.c.l.b16 %v474
  %v2058 = vunpack.c.h.b16 %v474
  %v2059 = vunpack.c.l.b16 %v475
  %v2060 = vunpack.c.h.b16 %v475
  %v2061 = vunpack.c.l.b16 %v476
  %v2062 = vunpack.c.h.b16 %v476
  %v2063 = vunpack.c.l.b16 %v477
  %v2064 = vunpack.c.h.b16 %v477
  %v2065 = vunpack.c.l.b16 %v478
  %v2066 = vunpack.c.h.b16 %v478
  %v2067 = vunpack.c.l.b16 %v479
  %v2068 = vunpack.c.h.b16 %v479
  %v2069 = vunpack.c.l.b16 %v480
  %v2070 = vunpack.c.h.b16 %v480
  %v2071 = vunpack.c.l.b16 %v481
  %v2072 = vunpack.c.h.b16 %v481
  %v2073 = vunpack.c.l.b16 %v482
  %v2074 = vunpack.c.h.b16 %v482
  %v2075 = vunpack.c.l.b16 %v483
  %v2076 = vunpack.c.h.b16 %v483
  %v2077 = vunpack.c.l.b16 %v484
  %v2078 = vunpack.c.h.b16 %v484
  %v2079 = vunpack.c.l.b16 %v485
  %v2080 = vunpack.c.h.b16 %v485
  %v2081 = vunpack.c.l.b16 %v486
  %v2082 = vunpack.c.h.b16 %v486
  %v2083 = vunpack.c.l.b16 %v487
  %v2084 = vunpack.c.h.b16 %v487
  %v2085 = vunpack.c.l.b16 %v488
  %v2086 = vunpack.c.h.b16 %v488
  %v2087 = vunpack.c.l.b16 %v489
  %v2088 = vunpack.c.h.b16 %v489
  %v2089 = vunpack.c.l.b16 %v490
  %v2090 = vunpack.c.h.b16 %v490
  %v2091 = vunpack.c.l.b16 %v491
  %v2092 = vunpack.c.h.b16 %v491
  %v2093 = vunpack.c.l.b16 %v492
  %v2094 = vunpack.c.h.b16 %v492
  %v2095 = vunpack.c.l.b16 %v493
  %v2096 = vunpack.c.h.b16 %v493
  %v2097 = vunpack.c.l.b16 %v494
  %v2098 = vunpack.c.h.b16 %v494
  %v2099 = vunpack.c.l.b16 %v495
  %v2100 = vunpack.c.h.b16 %v495
  %v2101 = vunpack.c.l.b16 %v496
  %v2102 = vunpack.c.h.b16 %v496
  %v2103 = vunpack.c.l.b16 %v497
  %v2104 = vunpack.c.h.b16 %v497
  %v2105 = vunpack.c.l.b16 %v498
  %v2106 = vunpack.c.h.b16 %v498
  %v2107 = vunpack.c.l.b16 %v499
  %v2108 = vunpack.c.h.b16 %v499
  %v2109 = vunpack.c.l.b16 %v500
  %v2110 = vunpack.c.h.b16 %v500
  %v2111 = vunpack.c.l.b16 %v501
  %v2112 = vunpack.c.h.b16 %v501
  %v2113 = vunpack.c.l.b16 %v502
  %v2114 = vunpack.c.h.b16 %v502
  %v2115 = vunpack.c.l.b16 %v503
  %v2116 = vunpack.c.h.b16 %v503
  %v2117 = vunpack.c.l.b16 %v504
  %v2118 = vunpack.c.h.b16 %v504
  %v2119 = vunpack.c.l.b16 %v505
  %v2120 = vunpack.c.h.b16 %v505
  %v2121 = vunpack.c.l.b16 %v506
  %v2122 = vunpack.c.h.b16 %v506
  %v2123 = vunpack.c.l.b16 %v507
  %v2124 = vunpack.c.h.b16 %v507
  %v2125 = vunpack.c.l.b16 %v508
  %v2126 = vunpack.c.h.b16 %v508
  %v2127 = vunpack.c.l.b16 %v509
  %v2128 = vunpack.c.h.b16 %v509
  %v2129 = vunpack.c.l.b16 %v510
  %v2130 = vunpack.c.h.b16 %v510
  %v2131 = vunpack.c.l.b16 %v511
  %v2132 = vunpack.c.h.b16 %v511
  %v2133 = vunpack.c.l.b16 %v512
  %v2134 = vunpack.c.h.b16 %v512
  %v2135 = vunpack.c.l.b16 %v513
  %v2136 = vunpack.c.h.b16 %v513
  %v2137 = vunpack.c.l.b16 %v514
  %v2138 = vunpack.c.h.b16 %v514
  %v2139 = vunpack.c.l.b16 %v515
  %v2140 = vunpack.c.h.b16 %v515
  %v2141 = vunpack.c.l.b16 %v516
  %v2142 = vunpack.c.h.b16 %v516
  %v2143 = vunpack.c.l.b16 %v517
  %v2144 = vunpack.c.h.b16 %v517
  %v2145 = vunpack.c.l.b16 %v518
  %v2146 = vunpack.c.h.b16 %v518
  %v2147 = vunpack.c.l.b16 %v519
  %v2148 = vunpack.c.h.b16 %v519
  %v2149 = vunpack.c.l.b16 %v520
  %v2150 = vunpack.c.h.b16 %v520
  %v2151 = vunpack.c.l.b16 %v521
  %v2152 = vunpack.c.h.b16 %v521
  %v2153 = vunpack.c.l.b16 %v522
  %v2154 = vunpack.c.h.b16 %v522
  %v2155 = vunpack.c.l.b16 %v523
  %v2156 = vunpack.c.h.b16 %v523
  %v2157 = vunpack.c.l.b16 %v524
  %v2158 = vunpack.c.h.b16 %v524
  %v2159 = vunpack.c.l.b16 %v525
  %v2160 = vunpack.c.h.b16 %v525
  %v2161 = vunpack.c.l.b16 %v526
  %v2162 = vunpack.c.h.b16 %v526
  %v2163 = vunpack.c.l.b16 %v527
  %v2164 = vunpack.c.h.b16 %v527
  %v2165 = vunpack.c.l.b16 %v528
  %v2166 = vunpack.c.h.b16 %v528
  %v2167 = vunpack.c.l.b16 %v529
  %v2168 = vunpack.c.h.b16 %v529
  %v2169 = vunpack.c.l.b16 %v530
  %v2170 = vunpack.c.h.b16 %v530
  %v2171 = vunpack.c.l.b16 %v531
  %v2172 = vunpack.c.h.b16 %v531
  %v2173 = vunpack.c.l.b16 %v532
  %v2174 = vunpack.c.h.b16 %v532
  %v2175 = vunpack.c.l.b16 %v533
  %v2176 = vunpack.c.h.b16 %v533
  %v2177 = vunpack.c.l.b16 %v534
  %v2178 = vunpack.c.h.b16 %v534
  %v2179 = vunpack.c.l.b16 %v535
  %v2180 = vunpack.c.h.b16 %v535
  %v2181 = vunpack.c.l.b16 %v536
  %v2182 = vunpack.c.h.b16 %v536
  %v2183 = vunpack.c.l.b16 %v537
  %v2184 = vunpack.c.h.b16 %v537
  %v2185 = vunpack.c.l.b16 %v538
  %v2186 = vunpack.c.h.b16 %v538
  %v2187 = vunpack.c.l.b16 %v539
  %v2188 = vunpack.c.h.b16 %v539
  %v2189 = vunpack.c.l.b16 %v540
  %v2190 = vunpack.c.h.b16 %v540
  %v2191 = vunpack.c.l.b16 %v541
  %v2192 = vunpack.c.h.b16 %v541
  %v2193 = vunpack.c.l.b16 %v542
  %v2194 = vunpack.c.h.b16 %v542
  %v2195 = vunpack.c.l.b16 %v543
  %v2196 = vunpack.c.h.b16 %v543
  %v2197 = vunpack.c.l.b16 %v544
  %v2198 = vunpack.c.h.b16 %v544
  %v2199 = vunpack.c.l.b16 %v545
  %v2200 = vunpack.c.h.b16 %v545
  %v2201 = vunpack.c.l.b16 %v546
  %v2202 = vunpack.c.h.b16 %v546
  %v2203 = vunpack.c.l.b16 %v547
  %v2204 = vunpack.c.h.b16 %v547
  %v2205 = vunpack.c.l.b16 %v548
  %v2206 = vunpack.c.h.b16 %v548
  %v2207 = vunpack.c.l.b16 %v549
  %v2208 = vunpack.c.h.b16 %v549
  %v2209 = vunpack.c.l.b16 %v550
  %v2210 = vunpack.c.h.b16 %v550
  %v2211 = vunpack.c.l.b16 %v551
  %v2212 = vunpack.c.h.b16 %v551
  %v2213 = vunpack.c.l.b16 %v552
  %v2214 = vunpack.c.h.b16 %v552
  %v2215 = vunpack.c.l.b16 %v553
  %v2216 = vunpack.c.h.b16 %v553
  %v2217 = vunpack.c.l.b16 %v554
  %v2218 = vunpack.c.h.b16 %v554
  %v2219 = vunpack.c.l.b16 %v555
  %v2220 = vunpack.c.h.b16 %v555
  %v2221 = vunpack.c.l.b16 %v556
  %v2222 = vunpack.c.h.b16 %v556
  %v2223 = vunpack.c.l.b16 %v557
  %v2224 = vunpack.c.h.b16 %v557
  %v2225 = vunpack.c.l.b16 %v558
  %v2226 = vunpack.c.h.b16 %v558
  %v2227 = vunpack.c.l.b16 %v559
  %v2228 = vunpack.c.h.b16 %v559
  %v2229 = vunpack.c.l.b16 %v560
  %v2230 = vunpack.c.h.b16 %v560
  %v2231 = vunpack.c.l.b16 %v561
  %v2232 = vunpack.c.h.b16 %v561
  %v2233 = vunpack.c.l.b16 %v562
  %v2234 = vunpack.c.h.b16 %v562
  %v2235 = vunpack.c.l.b16 %v563
  %v2236 = vunpack.c.h.b16 %v563
  %v2237 = vunpack.c.l.b16 %v564
  %v2238 = vunpack.c.h.b16 %v564
  %v2239 = vunpack.c.l.b16 %v565
  %v2240 = vunpack.c.h.b16 %v565
  %v2241 = vunpack.c.l.b16 %v566
  %v2242 = vunpack.c.h.b16 %v566
  %v2243 = vunpack.c.l.b16 %v567
  %v2244 = vunpack.c.h.b16 %v567
  %v2245 = vunpack.c.l.b16 %v568
  %v2246 = vunpack.c.h.b16 %v568
  %v2247 = vunpack.c.l.b16 %v569
  %v2248 = vunpack.c.h.b16 %v569
  %v2249 = vunpack.c.l.b16 %v570
  %v2250 = vunpack.c.h.b16 %v570
  %v2251 = vunpack.c.l.b16 %v571
  %v2252 = vunpack.c.h.b16 %v571
  %v2253 = vunpack.c.l.b16 %v572
  %v2254 = vunpack.c.h.b16 %v572
  %v2255 = vunpack.c.l.b16 %v573
  %v2256 = vunpack.c.h.b16 %v573
  %v2257 = vunpack.c.l.b16 %v574
  %v2258 = vunpack.c.h.b16 %v574
  %v2259 = vunpack.c.l.b16 %v575
  %v2260 = vunpack.c.h.b16 %v575
  %v2261 = vunpack.c.l.b16 %v576
  %v2262 = vunpack.c.h.b16 %v576
  %v2263 = vunpack.c.l.b16 %v577
  %v2264 = vunpack.c.h.b16 %v577
  %v2265 = vunpack.c.l.b16 %v578
  %v2266 = vunpack.c.h.b16 %v578
  %v2267 = vunpack.c.l.b16 %v579
  %v2268 = vunpack.c.h.b16 %v579
  %v2269 = vunpack.c.l.b16 %v580
  %v2270 = vunpack.c.h.b16 %v580
  %v2271 = vunpack.c.l.b16 %v581
  %v2272 = vunpack.c.h.b16 %v581
  %v2273 = vunpack.c.l.b16 %v582
  %v2274 = vunpack.c.h.b16 %v582
  %v2275 = vunpack.c.l.b16 %v583
  %v2276 = vunpack.c.h.b16 %v583
  %v2277 = vunpack.c.l.b16 %v584
  %v2278 = vunpack.c.h.b16 %v584
  %v2279 = vunpack.c.l.b16 %v585
  %v2280 = vunpack.c.h.b16 %v585
  %v2281 = vunpack.c.l.b16 %v586
  %v2282 = vunpack.c.h.b16 %v586
  %v2283 = vunpack.c.l.b16 %v587
  %v2284 = vunpack.c.h.b16 %v587
  %v2285 = vunpack.c.l.b16 %v588
  %v2286 = vunpack.c.h.b16 %v588
  %v2287 = vunpack.c.l.b16 %v589
  %v2288 = vunpack.c.h.b16 %v589
  %v2289 = vunpack.c.l.b16 %v590
  %v2290 = vunpack.c.h.b16 %v590
  %v2291 = vunpack.c.l.b16 %v591
  %v2292 = vunpack.c.h.b16 %v591
  %v2293 = vunpack.c.l.b16 %v592
  %v2294 = vunpack.c.h.b16 %v592
  %v2295 = vunpack.c.l.b16 %v593
  %v2296 = vunpack.c.h.b16 %v593
  %v2297 = vunpack.c.l.b16 %v594
  %v2298 = vunpack.c.h.b16 %v594
  %v2299 = vunpack.c.l.b16 %v595
  %v2300 = vunpack.c.h.b16 %v595
  %v2301 = vunpack.c.l.b16 %v596
  %v2302 = vunpack.c.h.b16 %v596
  %v2303 = vunpack.c.l.b16 %v597
  %v2304 = vunpack.c.h.b16 %v597
  %v2305 = vunpack.c.l.b16 %v598
  %v2306 = vunpack.c.h.b16 %v598
  %v2307 = vunpack.c.l.b16 %v599
  %v2308 = vunpack.c.h.b16 %v599
  %v2309 = vunpack.c.l.b16 %v600
  %v2310 = vunpack.c.h.b16 %v600
  %v2311 = vunpack.c.l.b16 %v601
  %v2312 = vunpack.c.h.b16 %v601
  %v2313 = vunpack.c.l.b16 %v602
  %v2314 = vunpack.c.h.b16 %v602
  %v2315 = vunpack.c.l.b16 %v603
  %v2316 = vunpack.c.h.b16 %v603
  %v2317 = vunpack.c.l.b16 %v604
  %v2318 = vunpack.c.h.b16 %v604
  %v2319 = vunpack.c.l.b16 %v605
  %v2320 = vunpack.c.h.b16 %v605
  %v2321 = vunpack.c.l.b16 %v606
  %v2322 = vunpack.c.h.b16 %v606
  %v2323 = vunpack.c.l.b16 %v607
  %v2324 = vunpack.c.h.b16 %v607
  %v2325 = vunpack.c.l.b16 %v608
  %v2326 = vunpack.c.h.b16 %v608
  %v2327 = vunpack.c.l.b16 %v609
  %v2328 = vunpack.c.h.b16 %v609
  %v2329 = vunpack.c.l.b16 %v610
  %v2330 = vunpack.c.h.b16 %v610
  %v2331 = vunpack.c.l.b16 %v611
  %v2332 = vunpack.c.h.b16 %v611
  %v2333 = vunpack.c.l.b16 %v612
  %v2334 = vunpack.c.h.b16 %v612
  %v2335 = vunpack.c.l.b16 %v613
  %v2336 = vunpack.c.h.b16 %v613
  %v2337 = vunpack.c.l.b16 %v614
  %v2338 = vunpack.c.h.b16 %v614
  %v2339 = vunpack.c.l.b16 %v615
  %v2340 = vunpack.c.h.b16 %v615
  %v2341 = vunpack.c.l.b16 %v616
  %v2342 = vunpack.c.h.b16 %v616
  %v2343 = vunpack.c.l.b16 %v617
  %v2344 = vunpack.c.h.b16 %v617
  %v2345 = vunpack.c.l.b16 %v618
  %v2346 = vunpack.c.h.b16 %v618
  %v2347 = vunpack.c.l.b16 %v619
  %v2348 = vunpack.c.h.b16 %v619
  %v2349 = vunpack.c.l.b16 %v620
  %v2350 = vunpack.c.h.b16 %v620
  %v2351 = vunpack.c.l.b16 %v621
  %v2352 = vunpack.c.h.b16 %v621
  %v2353 = vunpack.c.l.b16 %v622
  %v2354 = vunpack.c.h.b16 %v622
  %v2355 = vunpack.c.l.b16 %v623
  %v2356 = vunpack.c.h.b16 %v623
  %v2357 = vunpack.c.l.b16 %v624
  %v2358 = vunpack.c.h.b16 %v624
  %v2359 = vunpack.c.l.b16 %v625
  %v2360 = vunpack.c.h.b16 %v625
  %v2361 = vunpack.c.l.b16 %v626
  %v2362 = vunpack.c.h.b16 %v626
  %v2363 = vunpack.c.l.b16 %v627
  %v2364 = vunpack.c.h.b16 %v627
  %v2365 = vunpack.c.l.b16 %v628
  %v2366 = vunpack.c.h.b16 %v628
  %v2367 = vunpack.c.l.b16 %v629
  %v2368 = vunpack.c.h.b16 %v629
  %v2369 = vunpack.c.l.b16 %v630
  %v2370 = vunpack.c.h.b16 %v630
  %v2371 = vunpack.c.l.b16 %v631
  %v2372 = vunpack.c.h.b16 %v631
  %v2373 = vunpack.c.l.b16 %v632
  %v2374 = vunpack.c.h.b16 %v632
  %v2375 = vunpack.c.l.b16 %v633
  %v2376 = vunpack.c.h.b16 %v633
  %v2377 = vunpack.c.l.b16 %v634
  %v2378 = vunpack.c.h.b16 %v634
  %v2379 = vunpack.c.l.b16 %v635
  %v2380 = vunpack.c.h.b16 %v635
  %v2381 = vunpack.c.l.b16 %v636
  %v2382 = vunpack.c.h.b16 %v636
  %v2383 = vunpack.c.l.b16 %v637
  %v2384 = vunpack.c.h.b16 %v637
  %v2385 = vunpack.c.l.b16 %v638
  %v2386 = vunpack.c.h.b16 %v638
  %v2387 = vunpack.c.l.b16 %v639
  %v2388 = vunpack.c.h.b16 %v639
  %v2389 = vunpack.c.l.b16 %v640
  %v2390 = vunpack.c.h.b16 %v640
  %v2391 = vunpack.c.l.b16 %v641
  %v2392 = vunpack.c.h.b16 %v641
  %v2393 = vunpack.c.l.b16 %v642
  %v2394 = vunpack.c.h.b16 %v642
  %v2395 = vunpack.c.l.b16 %v643
  %v2396 = vunpack.c.h.b16 %v643
  %v2397 = vunpack.c.l.b16 %v644
  %v2398 = vunpack.c.h.b16 %v644
  %v2399 = vunpack.c.l.b16 %v645
  %v2400 = vunpack.c.h.b16 %v645
  %v2401 = vunpack.c.l.b16 %v646
  %v2402 = vunpack.c.h.b16 %v646
  %v2403 = vunpack.c.l.b16 %v647
  %v2404 = vunpack.c.h.b16 %v647
  %v2405 = vunpack.c.l.b16 %v648
  %v2406 = vunpack.c.h.b16 %v648
  %v2407 = vunpack.c.l.b16 %v649
  %v2408 = vunpack.c.h.b16 %v649
  %v2409 = vunpack.c.l.b16 %v650
  %v2410 = vunpack.c.h.b16 %v650
  %v2411 = vunpack.c.l.b16 %v651
  %v2412 = vunpack.c.h.b16 %v651
  %v2413 = vunpack.c.l.b16 %v652
  %v2414 = vunpack.c.h.b16 %v652
  %v2415 = vunpack.c.l.b16 %v653
  %v2416 = vunpack.c.h.b16 %v653
  %v2417 = vunpack.c.l.b16 %v654
  %v2418 = vunpack.c.h.b16 %v654
  %v2419 = vunpack.c.l.b16 %v655
  %v2420 = vunpack.c.h.b16 %v655
  %v2421 = vunpack.c.l.b16 %v656
  %v2422 = vunpack.c.h.b16 %v656
  %v2423 = vunpack.c.l.b16 %v657
  %v2424 = vunpack.c.h.b16 %v657
  %v2425 = vunpack.c.l.b16 %v658
  %v2426 = vunpack.c.h.b16 %v658
  %v2427 = vunpack.c.l.b16 %v659
  %v2428 = vunpack.c.h.b16 %v659
  %v2429 = vunpack.c.l.b16 %v660
  %v2430 = vunpack.c.h.b16 %v660
  %v2431 = vunpack.c.l.b16 %v661
  %v2432 = vunpack.c.h.b16 %v661
  %v2433 = vunpack.c.l.b16 %v662
  %v2434 = vunpack.c.h.b16 %v662
  %v2435 = vunpack.c.l.b16 %v663
  %v2436 = vunpack.c.h.b16 %v663
  %v2437 = vunpack.c.l.b16 %v664
  %v2438 = vunpack.c.h.b16 %v664
  %v2439 = vunpack.c.l.b16 %v665
  %v2440 = vunpack.c.h.b16 %v665
  %v2441 = vunpack.c.l.b16 %v666
  %v2442 = vunpack.c.h.b16 %v666
  %v2443 = vunpack.c.l.b16 %v667
  %v2444 = vunpack.c.h.b16 %v667
  %v2445 = vunpack.c.l.b16 %v668
  %v2446 = vunpack.c.h.b16 %v668
  %v2447 = vunpack.c.l.b16 %v669
  %v2448 = vunpack.c.h.b16 %v669
  %v2449 = vunpack.c.l.b16 %v670
  %v2450 = vunpack.c.h.b16 %v670
  %v2451 = vunpack.c.l.b16 %v671
  %v2452 = vunpack.c.h.b16 %v671
  %v2453 = vunpack.c.l.b16 %v672
  %v2454 = vunpack.c.h.b16 %v672
  %v2455 = vunpack.c.l.b16 %v673
  %v2456 = vunpack.c.h.b16 %v673
  %v2457 = vunpack.c.l.b16 %v674
  %v2458 = vunpack.c.h.b16 %v674
  %v2459 = vunpack.c.l.b16 %v675
  %v2460 = vunpack.c.h.b16 %v675
  %v2461 = vunpack.c.l.b16 %v676
  %v2462 = vunpack.c.h.b16 %v676
  %v2463 = vunpack.c.l.b16 %v677
  %v2464 = vunpack.c.h.b16 %v677
  %v2465 = vunpack.c.l.b16 %v678
  %v2466 = vunpack.c.h.b16 %v678
  %v2467 = vunpack.c.l.b16 %v679
  %v2468 = vunpack.c.h.b16 %v679
  %v2469 = vunpack.c.l.b16 %v680
  %v2470 = vunpack.c.h.b16 %v680
  %v2471 = vunpack.c.l.b16 %v681
  %v2472 = vunpack.c.h.b16 %v681
  %v2473 = vunpack.c.l.b16 %v682
  %v2474 = vunpack.c.h.b16 %v682
  %v2475 = vunpack.c.l.b16 %v683
  %v2476 = vunpack.c.h.b16 %v683
  %v2477 = vunpack.c.l.b16 %v684
  %v2478 = vunpack.c.h.b16 %v684
  %v2479 = vunpack.c.l.b16 %v685
  %v2480 = vunpack.c.h.b16 %v685
  %v2481 = vunpack.c.l.b16 %v686
  %v2482 = vunpack.c.h.b16 %v686
  %v2483 = vunpack.c.l.b16 %v687
  %v2484 = vunpack.c.h.b16 %v687
  %v2485 = vunpack.c.l.b16 %v688
  %v2486 = vunpack.c.h.b16 %v688
  %v2487 = vunpack.c.l.b16 %v689
  %v2488 = vunpack.c.h.b16 %v689
  %v2489 = vunpack.c.l.b16 %v690
  %v2490 = vunpack.c.h.b16 %v690
  %v2491 = vunpack.c.l.b16 %v691
  %v2492 = vunpack.c.h.b16 %v691
  %v2493 = vunpack.c.l.b16 %v692
  %v2494 = vunpack.c.h.b16 %v692
  %v2495 = vunpack.c.l.b16 %v693
  %v2496 = vunpack.c.h.b16 %v693
  %v2497 = vunpack.c.l.b16 %v694
  %v2498 = vunpack.c.h.b16 %v694
  %v2499 = vunpack.c.l.b16 %v695
  %v2500 = vunpack.c.h.b16 %v695
  %v2501 = vunpack.c.l.b16 %v696
  %v2502 = vunpack.c.h.b16 %v696
  %v2503 = vunpack.c.l.b16 %v697
  %v2504 = vunpack.c.h.b16 %v697
  %v2505 = vunpack.c.l.b16 %v698
  %v2506 = vunpack.c.h.b16 %v698
  %v2507 = vunpack.c.l.b16 %v699
  %v2508 = vunpack.c.h.b16 %v699
  %v2509 = vunpack.c.l.b16 %v700
  %v2510 = vunpack.c.h.b16 %v700
  %v2511 = vunpack.c.l.b16 %v701
  %v2512 = vunpack.c.h.b16 %v701
  %v2513 = vunpack.c.l.b16 %v702
  %v2514 = vunpack.c.h.b16 %v702
  %v2515 = vunpack.c.l.b16 %v703
  %v2516 = vunpack.c.h.b16 %v703
  %v2517 = vunpack.c.l.b16 %v704
  %v2518 = vunpack.c.h.b16 %v704
  %v2519 = vunpack.c.l.b16 %v705
  %v2520 = vunpack.c.h.b16 %v705
  %v2521 = vunpack.c.l.b16 %v706
  %v2522 = vunpack.c.h.b16 %v706
  %v2523 = vunpack.c.l.b16 %v707
  %v2524 = vunpack.c.h.b16 %v707
  %v2525 = vunpack.c.l.b16 %v708
  %v2526 = vunpack.c.h.b16 %v708
  %v2527 = vunpack.c.l.b16 %v709
  %v2528 = vunpack.c.h.b16 %v709
  %v2529 = vunpack.c.l.b16 %v710
  %v2530 = vunpack.c.h.b16 %v710
  %v2531 = vunpack.c.l.b16 %v711
  %v2532 = vunpack.c.h.b16 %v711
  %v2533 = vunpack.c.l.b16 %v712
  %v2534 = vunpack.c.h.b16 %v712
  %v2535 = vunpack.c.l.b16 %v713
  %v2536 = vunpack.c.h.b16 %v713
  %v2537 = vunpack.c.l.b16 %v714
  %v2538 = vunpack.c.h.b16 %v714
  %v2539 = vunpack.c.l.b16 %v715
  %v2540 = vunpack.c.h.b16 %v715
  %v2541 = vunpack.c.l.b16 %v716
  %v2542 = vunpack.c.h.b16 %v716
  %v2543 = vunpack.c.l.b16 %v717
  %v2544 = vunpack.c.h.b16 %v717
  %v2545 = vunpack.c.l.b16 %v718
  %v2546 = vunpack.c.h.b16 %v718
  %v2547 = vunpack.c.l.b16 %v719
  %v2548 = vunpack.c.h.b16 %v719
  %v2549 = vunpack.c.l.b16 %v720
  %v2550 = vunpack.c.h.b16 %v720
  %v2551 = vunpack.c.l.b16 %v721
  %v2552 = vunpack.c.h.b16 %v721
  %v2553 = vunpack.c.l.b16 %v722
  %v2554 = vunpack.c.h.b16 %v722
  %v2555 = vunpack.c.l.b16 %v723
  %v2556 = vunpack.c.h.b16 %v723
  %v2557 = vunpack.c.l.b16 %v724
  %v2558 = vunpack.c.h.b16 %v724
  %v2559 = vunpack.c.l.b16 %v725
  %v2560 = vunpack.c.h.b16 %v725
  %v2561 = vunpack.c.l.b16 %v726
  %v2562 = vunpack.c.h.b16 %v726
  %v2563 = vunpack.c.l.b16 %v727
  %v2564 = vunpack.c.h.b16 %v727
  %v2565 = vunpack.c.l.b16 %v728
  %v2566 = vunpack.c.h.b16 %v728
  %v2567 = vunpack.c.l.b16 %v729
  %v2568 = vunpack.c.h.b16 %v729
  %v2569 = vunpack.c.l.b16 %v730
  %v2570 = vunpack.c.h.b16 %v730
  %v2571 = vunpack.c.l.b16 %v731
  %v2572 = vunpack.c.h.b16 %v731
  %v2573 = vunpack.c.l.b16 %v732
  %v2574 = vunpack.c.h.b16 %v732
  %v2575 = vunpack.c.l.b16 %v733
  %v2576 = vunpack.c.h.b16 %v733
  %v2577 = vunpack.c.l.b16 %v734
  %v2578 = vunpack.c.h.b16 %v734
  %v2579 = vunpack.c.l.b16 %v735
  %v2580 = vunpack.c.h.b16 %v735
  %v2581 = vunpack.c.l.b16 %v736
  %v2582 = vunpack.c.h.b16 %v736
  %v2583 = vunpack.c.l.b16 %v737
  %v2584 = vunpack.c.h.b16 %v737
  %v2585 = vunpack.c.l.b16 %v738
  %v2586 = vunpack.c.h.b16 %v738
  %v2587 = vunpack.c.l.b16 %v739
  %v2588 = vunpack.c.h.b16 %v739
  %v2589 = vunpack.c.l.b16 %v740
  %v2590 = vunpack.c.h.b16 %v740
  %v2591 = vunpack.c.l.b16 %v741
  %v2592 = vunpack.c.h.b16 %v741
  %v2593 = vunpack.c.l.b16 %v742
  %v2594 = vunpack.c.h.b16 %v742
  %v2595 = vunpack.c.l.b16 %v743
  %v2596 = vunpack.c.h.b16 %v743
  %v2597 = vunpack.c.l.b16 %v744
  %v2598 = vunpack.c.h.b16 %v744
  %v2599 = vunpack.c.l.b16 %v745
  %v2600 = vunpack.c.h.b16 %v745
  %v2601 = vunpack.c.l.b16 %v746
  %v2602 = vunpack.c.h.b16 %v746
  %v2603 = vunpack.c.l.b16 %v747
  %v2604 = vunpack.c.h.b16 %v747
  %v2605 = vunpack.c.l.b16 %v748
  %v2606 = vunpack.c.h.b16 %v748
  %v2607 = vunpack.c.l.b16 %v749
  %v2608 = vunpack.c.h.b16 %v749
  %v2609 = vunpack.c.l.b16 %v750
  %v2610 = vunpack.c.h.b16 %v750
  %v2611 = vunpack.c.l.b16 %v751
  %v2612 = vunpack.c.h.b16 %v751
  %v2613 = vunpack.c.l.b16 %v752
  %v2614 = vunpack.c.h.b16 %v752
  %v2615 = vunpack.c.l.b16 %v753
  %v2616 = vunpack.c.h.b16 %v753
  %v2617 = vunpack.c.l.b16 %v754
  %v2618 = vunpack.c.h.b16 %v754
  %v2619 = vunpack.c.l.b16 %v755
  %v2620 = vunpack.c.h.b16 %v755
  %v2621 = vunpack.c.l.b16 %v756
  %v2622 = vunpack.c.h.b16 %v756
  %v2623 = vunpack.c.l.b16 %v757
  %v2624 = vunpack.c.h.b16 %v757
  %v2625 = vunpack.c.l.b16 %v758
  %v2626 = vunpack.c.h.b16 %v758
  %v2627 = vunpack.c.l.b16 %v759
  %v2628 = vunpack.c.h.b16 %v759
  %v2629 = vunpack.c.l.b16 %v760
  %v2630 = vunpack.c.h.b16 %v760
  %v2631 = vunpack.c.l.b16 %v761
  %v2632 = vunpack.c.h.b16 %v761
  %v2633 = vunpack.c.l.b16 %v762
  %v2634 = vunpack.c.h.b16 %v762
  %v2635 = vunpack.c.l.b16 %v763
  %v2636 = vunpack.c.h.b16 %v763
  %v2637 = vunpack.c.l.b16 %v764
  %v2638 = vunpack.c.h.b16 %v764
  %v2639 = vunpack.c.l.b16 %v765
  %v2640 = vunpack.c.h.b16 %v765
  %v2641 = vunpack.c.l.b16 %v766
  %v2642 = vunpack.c.h.b16 %v766
  %v2643 = vunpack.c.l.b16 %v767
  %v2644 = vunpack.c.h.b16 %v767
  %v2645 = vunpack.c.l.b16 %v768
  %v2646 = vunpack.c.h.b16 %v768
  %v2647 = vunpack.c.l.b16 %v769
  %v2648 = vunpack.c.h.b16 %v769
  %v2649 = vunpack.c.l.b16 %v770
  %v2650 = vunpack.c.h.b16 %v770
  %v2651 = vunpack.c.l.b16 %v771
  %v2652 = vunpack.c.h.b16 %v771
  %v2653 = vunpack.c.l.b16 %v772
  %v2654 = vunpack.c.h.b16 %v772
  %v2655 = vunpack.c.l.b16 %v773
  %v2656 = vunpack.c.h.b16 %v773
  %v2657 = vunpack.c.l.b16 %v774
  %v2658 = vunpack.c.h.b16 %v774
  %v2659 = vunpack.c.l.b16 %v775
  %v2660 = vunpack.c.h.b16 %v775
  %v2661 = vunpack.c.l.b16 %v776
  %v2662 = vunpack.c.h.b16 %v776
  %v2663 = vunpack.c.l.b16 %v777
  %v2664 = vunpack.c.h.b16 %v777
  %v2665 = vpack.c.b16 %v1417, %v1415
  %v2666 = vpack.c.b16 %v1418, %v1416
  %v2667 = vpack.c.b16 %v1421, %v1419
  %v2668 = vpack.c.b16 %v1422, %v1420
  %v2669 = vpack.c.b16 %v1425, %v1423
  %v2670 = vpack.c.b16 %v1426, %v1424
  %v2671 = vpack.c.b16 %v1429, %v1427
  %v2672 = vpack.c.b16 %v1430, %v1428
  %v2673 = vpack.c.b16 %v1433, %v1431
  %v2674 = vpack.c.b16 %v1434, %v1432
  %v2675 = vpack.c.b16 %v1437, %v1435
  %v2676 = vpack.c.b16 %v1438, %v1436
  %v2677 = vpack.c.b16 %v1441, %v1439
  %v2678 = vpack.c.b16 %v1442, %v1440
  %v2679 = vpack.c.b16 %v1445, %v1443
  %v2680 = vpack.c.b16 %v1446, %v1444
  %v2681 = vpack.c.b16 %v1449, %v1447
  %v2682 = vpack.c.b16 %v1450, %v1448
  %v2683 = vpack.c.b16 %v1453, %v1451
  %v2684 = vpack.c.b16 %v1454, %v1452
  %v2685 = vpack.c.b16 %v1457, %v1455
  %v2686 = vpack.c.b16 %v1458, %v1456
  %v2687 = vpack.c.b16 %v1461, %v1459
  %v2688 = vpack.c.b16 %v1462, %v1460
  %v2689 = vpack.c.b16 %v1465, %v1463
  %v2690 = vpack.c.b16 %v1466, %v1464
  %v2691 = vpack.c.b16 %v1469, %v1467
  %v2692 = vpack.c.b16 %v1470, %v1468
  %v2693 = vpack.c.b16 %v1473, %v1471
  %v2694 = vpack.c.b16 %v1474, %v1472
  %v2695 = vpack.c.b16 %v1477, %v1475
  %v2696 = vpack.c.b16 %v1478, %v1476
  %v2697 = vpack.c.b16 %v1481, %v1479
  %v2698 = vpack.c.b16 %v1482, %v1480
  %v2699 = vpack.c.b16 %v1485, %v1483
  %v2700 = vpack.c.b16 %v1486, %v1484
  %v2701 = vpack.c.b16 %v1489, %v1487
  %v2702 = vpack.c.b16 %v1490, %v1488
  %v2703 = vpack.c.b16 %v1493, %v1491
  %v2704 = vpack.c.b16 %v1494, %v1492
  %v2705 = vpack.c.b16 %v1497, %v1495
  %v2706 = vpack.c.b16 %v1498, %v1496
  %v2707 = vpack.c.b16 %v1501, %v1499
  %v2708 = vpack.c.b16 %v1502, %v1500
  %v2709 = vpack.c.b16 %v1505, %v1503
  %v2710 = vpack.c.b16 %v1506, %v1504
  %v2711 = vpack.c.b16 %v1509, %v1507
  %v2712 = vpack.c.b16 %v1510, %v1508
  %v2713 = vpack.c.b16 %v1513, %v1511
  %v2714 = vpack.c.b16 %v1514, %v1512
  %v2715 = vpack.c.b16 %v1517, %v1515
  %v2716 = vpack.c.b16 %v1518, %v1516
  %v2717 = vpack.c.b16 %v1521, %v1519
  %v2718 = vpack.c.b16 %v1522, %v1520
  %v2719 = vpack.c.b16 %v1525, %v1523
  %v2720 = vpack.c.b16 %v1526, %v1524
  %v2721 = vpack.c.b16 %v1529, %v1527
  %v2722 = vpack.c.b16 %v1530, %v1528
  %v2723 = vpack.c.b16 %v1533, %v1531
  %v2724 = vpack.c.b16 %v1534, %v1532
  %v2725 = vpack.c.b16 %v1537, %v1535
  %v2726 = vpack.c.b16 %v1538, %v1536
  %v2727 = vpack.c.b16 %v1541, %v1539
  %v2728 = vpack.c.b16 %v1542, %v1540
  %v2729 = vpack.c.b16 %v1545, %v1543
  %v2730 = vpack.c.b16 %v1546, %v1544
  %v2731 = vpack.c.b16 %v1549, %v1547
  %v2732 = vpack.c.b16 %v1550, %v1548
  %v2733 = vpack.c.b16 %v1553, %v1551
  %v2734 = vpack.c.b16 %v1554, %v1552
  %v2735 = vpack.c.b16 %v1557, %v1555
  %v2736 = vpack.c.b16 %v1558, %v1556
  %v2737 = vpack.c.b16 %v1561, %v1559
  %v2738 = vpack.c.b16 %v1562, %v1560
  %v2739 = vpack.c.b16 %v1565, %v1563
  %v2740 = vpack.c.b16 %v1566, %v1564
  %v2741 = vpack.c.b16 %v1569, %v1567
  %v2742 = vpack.c.b16 %v1570, %v1568
  %v2743 = vpack.c.b16 %v1573, %v1571
  %v2744 = vpack.c.b16 %v1574, %v1572
  %v2745 = vpack.c.b16 %v1577, %v1575
  %v2746 = vpack.c.b16 %v1578, %v1576
  %v2747 = vpack.c.b16 %v1581, %v1579
  %v2748 = vpack.c.b16 %v1582, %v1580
  %v2749 = vpack.c.b16 %v1585, %v1583
  %v2750 = vpack.c.b16 %v1586, %v1584
  %v2751 = vpack.c.b16 %v1589, %v1587
  %v2752 = vpack.c.b16 %v1590, %v1588
  %v2753 = vpack.c.b16 %v1593, %v1591
  %v2754 = vpack.c.b16 %v1594, %v1592
  %v2755 = vpack.c.b16 %v1597, %v1595
  %v2756 = vpack.c.b16 %v1598, %v1596
  %v2757 = vpack.c.b16 %v1601, %v1599
  %v2758 = vpack.c.b16 %v1602, %v1600
  %v2759 = vpack.c.b16 %v1605, %v1603
  %v2760 = vpack.c.b16 %v1606, %v1604
  %v2761 = vpack.c.b16 %v1609, %v1607
  %v2762 = vpack.c.b16 %v1610, %v1608
  %v2763 = vpack.c.b16 %v1613, %v1611
  %v2764 = vpack.c.b16 %v1614, %v1612
  %v2765 = vpack.c.b16 %v1617, %v1615
  %v2766 = vpack.c.b16 %v1618, %v1616
  %v2767 = vpack.c.b16 %v1621, %v1619
  %v2768 = vpack.c.b16 %v1622, %v1620
  %v2769 = vpack.c.b16 %v1625, %v1623
  %v2770 = vpack.c.b16 %v1626, %v1624
  %v2771 = vpack.c.b16 %v1629, %v1627
  %v2772 = vpack.c.b16 %v1630, %v1628
  %v2773 = vpack.c.b16 %v1633, %v1631
  %v2774 = vpack.c.b16 %v1634, %v1632
  %v2775 = vpack.c.b16 %v1637, %v1635
  %v2776 = vpack.c.b16 %v1638, %v1636
  %v2777 = vpack.c.b16 %v1641, %v1639
  %v2778 = vpack.c.b16 %v1642, %v1640
  %v2779 = vpack.c.b16 %v1645, %v1643
  %v2780 = vpack.c.b16 %v1646, %v1644
  %v2781 = vpack.c.b16 %v1649, %v1647
  %v2782 = vpack.c.b16 %v1650, %v1648
  %v2783 = vpack.c.b16 %v1653, %v1651
  %v2784 = vpack.c.b16 %v1654, %v1652
  %v2785 = vpack.c.b16 %v1657, %v1655
  %v2786 = vpack.c.b16 %v1658, %v1656
  %v2787 = vpack.c.b16 %v1661, %v1659
  %v2788 = vpack.c.b16 %v1662, %v1660
  %v2789 = vpack.c.b16 %v1665, %v1663
  %v2790 = vpack.c.b16 %v1666, %v1664
  %v2791 = vpack.c.b16 %v1669, %v1667
  %v2792 = vpack.c.b16 %v1670, %v1668
  %v2793 = vpack.c.b16 %v1673, %v1671
  %v2794 = vpack.c.b16 %v1674, %v1672
  %v2795 = vpack.c.b16 %v1677, %v1675
  %v2796 = vpack.c.b16 %v1678, %v1676
  %v2797 = vpack.c.b16 %v1681, %v1679
  %v2798 = vpack.c.b16 %v1682, %v1680
  %v2799 = vpack.c.b16 %v1685, %v1683
  %v2800 = vpack.c.b16 %v1686, %v1684
  %v2801 = vpack.c.b16 %v1689, %v1687
  %v2802 = vpack.c.b16 %v1690, %v1688
  %v2803 = vpack.c.b16 %v1693, %v1691
  %v2804 = vpack.c.b16 %v1694, %v1692
  %v2805 = vpack.c.b16 %v1697, %v1695
  %v2806 = vpack.c.b16 %v1698, %v1696
  %v2807 = vpack.c.b16 %v1701, %v1699
  %v2808 = vpack.c.b16 %v1702, %v1700
  %v2809 = vpack.c.b16 %v1705, %v1703
  %v2810 = vpack.c.b16 %v1706, %v1704
  %v2811 = vpack.c.b16 %v1709, %v1707
  %v2812 = vpack.c.b16 %v1710, %v1708
  %v2813 = vpack.c.b16 %v1713, %v1711
  %v2814 = vpack.c.b16 %v1714, %v1712
  %v2815 = vpack.c.b16 %v1717, %v1715
  %v2816 = vpack.c.b16 %v1718, %v1716
  %v2817 = vpack.c.b16 %v1721, %v1719
  %v2818 = vpack.c.b16 %v1722, %v1720
  %v2819 = vpack.c.b16 %v1725, %v1723
  %v2820 = vpack.c.b16 %v1726, %v1724
  %v2821 = vpack.c.b16 %v1729, %v1727
  %v2822 = vpack.c.b16 %v1730, %v1728
  %v2823 = vpack.c.b16 %v1733, %v1731
  %v2824 = vpack.c.b16 %v1734, %v1732
  %v2825 = vpack.c.b16 %v1737, %v1735
  %v2826 = vpack.c.b16 %v1738, %v1736
  %v2827 = vpack.c.b16 %v1741, %v1739
  %v2828 = vpack.c.b16 %v1742, %v1740
  %v2829 = vpack.c.b16 %v1745, %v1743
  %v2830 = vpack.c.b16 %v1746, %v1744
  %v2831 = vpack.c.b16 %v1749, %v1747
  %v2832 = vpack.c.b16 %v1750, %v1748
  %v2833 = vpack.c.b16 %v1753, %v1751
  %v2834 = vpack.c.b16 %v1754, %v1752
  %v2835 = vpack.c.b16 %v1757, %v1755
  %v2836 = vpack.c.b16 %v1758, %v1756
  %v2837 = vpack.c.b16 %v1761, %v1759
  %v2838 = vpack.c.b16 %v1762, %v1760
  %v2839 = vpack.c.b16 %v1765, %v1763
  %v2840 = vpack.c.b16 %v1766, %v1764
  %v2841 = vpack.c.b16 %v1769, %v1767
  %v2842 = vpack.c.b16 %v1770, %v1768
  %v2843 = vpack.c.b16 %v1773, %v1771
  %v2844 = vpack.c.b16 %v1774, %v1772
  %v2845 = vpack.c.b16 %v1777, %v1775
  %v2846 = vpack.c.b16 %v1778, %v1776
  %v2847 = vpack.c.b16 %v1781, %v1779
  %v2848 = vpack.c.b16 %v1782, %v1780
  %v2849 = vpack.c.b16 %v1785, %v1783
  %v2850 = vpack.c.b16 %v1786, %v1784
  %v2851 = vpack.c.b16 %v1789, %v1787
  %v2852 = vpack.c.b16 %v1790, %v1788
  %v2853 = vpack.c.b16 %v1793, %v1791
  %v2854 = vpack.c.b16 %v1794, %v1792
  %v2855 = vpack.c.b16 %v1797, %v1795
  %v2856 = vpack.c.b16 %v1798, %v1796
  %v2857 = vpack.c.b16 %v1801, %v1799
  %v2858 = vpack.c.b16 %v1802, %v1800
  %v2859 = vpack.c.b16 %v1805, %v1803
  %v2860 = vpack.c.b16 %v1806, %v1804
  %v2861 = vpack.c.b16 %v1809, %v1807
  %v2862 = vpack.c.b16 %v1810, %v1808
  %v2863 = vpack.c.b16 %v1813, %v1811
  %v2864 = vpack.c.b16 %v1814, %v1812
  %v2865 = vpack.c.b16 %v1817, %v1815
  %v2866 = vpack.c.b16 %v1818, %v1816
  %v2867 = vpack.c.b16 %v1821, %v1819
  %v2868 = vpack.c.b16 %v1822, %v1820
  %v2869 = vpack.c.b16 %v1825, %v1823
  %v2870 = vpack.c.b16 %v1826, %v1824
  %v2871 = vpack.c.b16 %v1829, %v1827
  %v2872 = vpack.c.b16 %v1830, %v1828
  %v2873 = vpack.c.b16 %v1833, %v1831
  %v2874 = vpack.c.b16 %v1834, %v1832
  %v2875 = vpack.c.b16 %v1837, %v1835
  %v2876 = vpack.c.b16 %v1838, %v1836
  %v2877 = vpack.c.b16 %v1841, %v1839
  %v2878 = vpack.c.b16 %v1842, %v1840
  %v2879 = vpack.c.b16 %v1845, %v1843
  %v2880 = vpack.c.b16 %v1846, %v1844
  %v2881 = vpack.c.b16 %v1849, %v1847
  %v2882 = vpack.c.b16 %v1850, %v1848
  %v2883 = vpack.c.b16 %v1853, %v1851
  %v2884 = vpack.c.b16 %v1854, %v1852
  %v2885 = vpack.c.b16 %v1857, %v1855
  %v2886 = vpack.c.b16 %v1858, %v1856
  %v2887 = vpack.c.b16 %v1861, %v1859
  %v2888 = vpack.c.b16 %v1862, %v1860
  %v2889 = vpack.c.b16 %v1865, %v1863
  %v2890 = vpack.c.b16 %v1866, %v1864
  %v2891 = vpack.c.b16 %v1869, %v1867
  %v2892 = vpack.c.b16 %v1870, %v1868
  %v2893 = vpack.c.b16 %v1873, %v1871
  %v2894 = vpack.c.b16 %v1874, %v1872
  %v2895 = vpack.c.b16 %v1877, %v1875
  %v2896 = vpack.c.b16 %v1878, %v1876
  %v2897 = vpack.c.b16 %v1881, %v1879
  %v2898 = vpack.c.b16 %v1882, %v1880
  %v2899 = vpack.c.b16 %v1885, %v1883
  %v2900 = vpack.c.b16 %v1886, %v1884
  %v2901 = vpack.c.b16 %v1889, %v1887
  %v2902 = vpack.c.b16 %v1890, %v1888
  %v2903 = vpack.c.b16 %v1893, %v1891
  %v2904 = vpack.c.b16 %v1894, %v1892
  %v2905 = vpack.c.b16 %v1897, %v1895
  %v2906 = vpack.c.b16 %v1898, %v1896
  %v2907 = vpack.c.b16 %v1901, %v1899
  %v2908 = vpack.c.b16 %v1902, %v1900
  %v2909 = vpack.c.b16 %v1905, %v1903
  %v2910 = vpack.c.b16 %v1906, %v1904
  %v2911 = vpack.c.b16 %v1909, %v1907
  %v2912 = vpack.c.b16 %v1910, %v1908
  %v2913 = vpack.c.b16 %v1913, %v1911
  %v2914 = vpack.c.b16 %v1914, %v1912
  %v2915 = vpack.c.b16 %v1917, %v1915
  %v2916 = vpack.c.b16 %v1918, %v1916
  %v2917 = vpack.c.b16 %v1921, %v1919
  %v2918 = vpack.c.b16 %v1922, %v1920
  %v2919 = vpack.c.b16 %v1925, %v1923
  %v2920 = vpack.c.b16 %v1926, %v1924
  %v2921 = vpack.c.b16 %v1929, %v1927
  %v2922 = vpack.c.b16 %v1930, %v1928
  %v2923 = vpack.c.b16 %v1933, %v1931
  %v2924 = vpack.c.b16 %v1934, %v1932
  %v2925 = vpack.c.b16 %v1937, %v1935
  %v2926 = vpack.c.b16 %v1938, %v1936
  %v2927 = vpack.c.b16 %v1941, %v1939
  %v2928 = vpack.c.b16 %v1942, %v1940
  %v2929 = vpack.c.b16 %v1945, %v1943
  %v2930 = vpack.c.b16 %v1946, %v1944
  %v2931 = vpack.c.b16 %v1949, %v1947
  %v2932 = vpack.c.b16 %v1950, %v1948
  %v2933 = vpack.c.b16 %v1953, %v1951
  %v2934 = vpack.c.b16 %v1954, %v1952
  %v2935 = vpack.c.b16 %v1957, %v1955
  %v2936 = vpack.c.b16 %v1958, %v1956
  %v2937 = vpack.c.b16 %v1961, %v1959
  %v2938 = vpack.c.b16 %v1962, %v1960
  %v2939 = vpack.c.b16 %v1965, %v1963
  %v2940 = vpack.c.b16 %v1966, %v1964
  %v2941 = vpack.c.b16 %v1969, %v1967
  %v2942 = vpack.c.b16 %v1970, %v1968
  %v2943 = vpack.c.b16 %v1973, %v1971
  %v2944 = vpack.c.b16 %v1974, %v1972
  %v2945 = vpack.c.b16 %v1977, %v1975
  %v2946 = vpack.c.b16 %v1978, %v1976
  %v2947 = vpack.c.b16 %v1981, %v1979
  %v2948 = vpack.c.b16 %v1982, %v1980
  %v2949 = vpack.c.b16 %v1985, %v1983
  %v2950 = vpack.c.b16 %v1986, %v1984
  %v2951 = vpack.c.b16 %v1989, %v1987
  %v2952 = vpack.c.b16 %v1990, %v1988
  %v2953 = vpack.c.b16 %v1993, %v1991
  %v2954 = vpack.c.b16 %v1994, %v1992
  %v2955 = vpack.c.b16 %v1997, %v1995
  %v2956 = vpack.c.b16 %v1998, %v1996
  %v2957 = vpack.c.b16 %v2001, %v1999
  %v2958 = vpack.c.b16 %v2002, %v2000
  %v2959 = vpack.c.b16 %v2005, %v2003
  %v2960 = vpack.c.b16 %v2006, %v2004
  %v2961 = vpack.c.b16 %v2009, %v2007
  %v2962 = vpack.c.b16 %v2010, %v2008
  %v2963 = vpack.c.b16 %v2013, %v2011
  %v2964 = vpack.c.b16 %v2014, %v2012
  %v2965 = vpack.c.b16 %v2017, %v2015
  %v2966 = vpack.c.b16 %v2018, %v2016
  %v2967 = vpack.c.b16 %v2021, %v2019
  %v2968 = vpack.c.b16 %v2022, %v2020
  %v2969 = vpack.c.b16 %v2025, %v2023
  %v2970 = vpack.c.b16 %v2026, %v2024
  %v2971 = vpack.c.b16 %v2029, %v2027
  %v2972 = vpack.c.b16 %v2030, %v2028
  %v2973 = vpack.c.b16 %v2033, %v2031
  %v2974 = vpack.c.b16 %v2034, %v2032
  %v2975 = vpack.c.b16 %v2037, %v2035
  %v2976 = vpack.c.b16 %v2038, %v2036
  %v2977 = vpack.c.b16 %v2041, %v2039
  %v2978 = vpack.c.b16 %v2042, %v2040
  %v2979 = vpack.c.b16 %v2045, %v2043
  %v2980 = vpack.c.b16 %v2046, %v2044
  %v2981 = vpack.c.b16 %v2049, %v2047
  %v2982 = vpack.c.b16 %v2050, %v2048
  %v2983 = vpack.c.b16 %v2053, %v2051
  %v2984 = vpack.c.b16 %v2054, %v2052
  %v2985 = vpack.c.b16 %v2057, %v2055
  %v2986 = vpack.c.b16 %v2058, %v2056
  %v2987 = vpack.c.b16 %v2061, %v2059
  %v2988 = vpack.c.b16 %v2062, %v2060
  %v2989 = vpack.c.b16 %v2065, %v2063
  %v2990 = vpack.c.b16 %v2066, %v2064
  %v2991 = vpack.c.b16 %v2069, %v2067
  %v2992 = vpack.c.b16 %v2070, %v2068
  %v2993 = vpack.c.b16 %v2073, %v2071
  %v2994 = vpack.c.b16 %v2074, %v2072
  %v2995 = vpack.c.b16 %v2077, %v2075
  %v2996 = vpack.c.b16 %v2078, %v2076
  %v2997 = vpack.c.b16 %v2081, %v2079
  %v2998 = vpack.c.b16 %v2082, %v2080
  %v2999 = vpack.c.b16 %v2085, %v2083
  %v3000 = vpack.c.b16 %v2086, %v2084
  %v3001 = vpack.c.b16 %v2089, %v2087
  %v3002 = vpack.c.b16 %v2090, %v2088
  %v3003 = vpack.c.b16 %v2093, %v2091
  %v3004 = vpack.c.b16 %v2094, %v2092
  %v3005 = vpack.c.b16 %v2097, %v2095
  %v3006 = vpack.c.b16 %v2098, %v2096
  %v3007 = vpack.c.b16 %v2101, %v2099
  %v3008 = vpack.c.b16 %v2102, %v2100
  %v3009 = vpack.c.b16 %v2105, %v2103
  %v3010 = vpack.c.b16 %v2106, %v2104
  %v3011 = vpack.c.b16 %v2109, %v2107
  %v3012 = vpack.c.b16 %v2110, %v2108
  %v3013 = vpack.c.b16 %v2113, %v2111
  %v3014 = vpack.c.b16 %v2114, %v2112
  %v3015 = vpack.c.b16 %v2117, %v2115
  %v3016 = vpack.c.b16 %v2118, %v2116
  %v3017 = vpack.c.b16 %v2121, %v2119
  %v3018 = vpack.c.b16 %v2122, %v2120
  %v3019 = vpack.c.b16 %v2125, %v2123
  %v3020 = vpack.c.b16 %v2126, %v2124
  %v3021 = vpack.c.b16 %v2129, %v2127
  %v3022 = vpack.c.b16 %v2130, %v2128
  %v3023 = vpack.c.b16 %v2133, %v2131
  %v3024 = vpack.c.b16 %v2134, %v2132
  %v3025 = vpack.c.b16 %v2137, %v2135
  %v3026 = vpack.c.b16 %v2138, %v2136
  %v3027 = vpack.c.b16 %v2141, %v2139
  %v3028 = vpack.c.b16 %v2142, %v2140
  %v3029 = vpack.c.b16 %v2145, %v2143
  %v3030 = vpack.c.b16 %v2146, %v2144
  %v3031 = vpack.c.b16 %v2149, %v2147
  %v3032 = vpack.c.b16 %v2150, %v2148
  %v3033 = vpack.c.b16 %v2153, %v2151
  %v3034 = vpack.c.b16 %v2154, %v2152
  %v3035 = vpack.c.b16 %v2157, %v2155
  %v3036 = vpack.c.b16 %v2158, %v2156
  %v3037 = vpack.c.b16 %v2161, %v2159
  %v3038 = vpack.c.b16 %v2162, %v2160
  %v3039 = vpack.c.b16 %v2165, %v2163
  %v3040 = vpack.c.b16 %v2166, %v2164
  %v3041 = vpack.c.b16 %v2169, %v2167
  %v3042 = vpack.c.b16 %v2170, %v2168
  %v3043 = vpack.c.b16 %v2173, %v2171
  %v3044 = vpack.c.b16 %v2174, %v2172
  %v3045 = vpack.c.b16 %v2177, %v2175
  %v3046 = vpack.c.b16 %v2178, %v2176
  %v3047 = vpack.c.b16 %v2181, %v2179
  %v3048 = vpack.c.b16 %v2182, %v2180
  %v3049 = vpack.c.b16 %v2185, %v2183
  %v3050 = vpack.c.b16 %v2186, %v2184
  %v3051 = vpack.c.b16 %v2189, %v2187
  %v3052 = vpack.c.b16 %v2190, %v2188
  %v3053 = vpack.c.b16 %v2193, %v2191
  %v3054 = vpack.c.b16 %v2194, %v2192
  %v3055 = vpack.c.b16 %v2197, %v2195
  %v3056 = vpack.c.b16 %v2198, %v2196
  %v3057 = vpack.c.b16 %v2201, %v2199
  %v3058 = vpack.c.b16 %v2202, %v2200
  %v3059 = vpack.c.b16 %v2205, %v2203
  %v3060 = vpack.c.b16 %v2206, %v2204
  %v3061 = vpack.c.b16 %v2209, %v2207
  %v3062 = vpack.c.b16 %v2210, %v2208
  %v3063 = vpack.c.b16 %v2213, %v2211
  %v3064 = vpack.c.b16 %v2214, %v2212
  %v3065 = vpack.c.b16 %v2217, %v2215
  %v3066 = vpack.c.b16 %v2218, %v2216
  %v3067 = vpack.c.b16 %v2221, %v2219
  %v3068 = vpack.c.b16 %v2222, %v2220
  %v3069 = vpack.c.b16 %v2225, %v2223
  %v3070 = vpack.c.b16 %v2226, %v2224
  %v3071 = vpack.c.b16 %v2229, %v2227
  %v3072 = vpack.c.b16 %v2230, %v2228
  %v3073 = vpack.c.b16 %v2233, %v2231
  %v3074 = vpack.c.b16 %v2234, %v2232
  %v3075 = vpack.c.b16 %v2237, %v2235
  %v3076 = vpack.c.b16 %v2238, %v2236
  %v3077 = vpack.c.b16 %v2241, %v2239
  %v3078 = vpack.c.b16 %v2242, %v2240
  %v3079 = vpack.c.b16 %v2245, %v2243
  %v3080 = vpack.c.b16 %v2246, %v2244
  %v3081 = vpack.c.b16 %v2249, %v2247
  %v3082 = vpack.c.b16 %v2250, %v2248
  %v3083 = vpack.c.b16 %v2253, %v2251
  %v3084 = vpack.c.b16 %v2254, %v2252
  %v3085 = vpack.c.b16 %v2257, %v2255
  %v3086 = vpack.c.b16 %v2258, %v2256
  %v3087 = vpack.c.b16 %v2261, %v2259
  %v3088 = vpack.c.b16 %v2262, %v2260
  %v3089 = vpack.c.b16 %v2265, %v2263
  %v3090 = vpack.c.b16 %v2266, %v2264
  %v3091 = vpack.c.b16 %v2269, %v2267
  %v3092 = vpack.c.b16 %v2270, %v2268
  %v3093 = vpack.c.b16 %v2273, %v2271
  %v3094 = vpack.c.b16 %v2274, %v2272
  %v3095 = vpack.c.b16 %v2277, %v2275
  %v3096 = vpack.c.b16 %v2278, %v2276
  %v3097 = vpack.c.b16 %v2281, %v2279
  %v3098 = vpack.c.b16 %v2282, %v2280
  %v3099 = vpack.c.b16 %v2285, %v2283
  %v3100 = vpack.c.b16 %v2286, %v2284
  %v3101 = vpack.c.b16 %v2289, %v2287
  %v3102 = vpack.c.b16 %v2290, %v2288
  %v3103 = vpack.c.b16 %v2293, %v2291
  %v3104 = vpack.c.b16 %v2294, %v2292
  %v3105 = vpack.c.b16 %v2297, %v2295
  %v3106 = vpack.c.b16 %v2298, %v2296
  %v3107 = vpack.c.b16 %v2301, %v2299
  %v3108 = vpack.c.b16 %v2302, %v2300
  %v3109 = vpack.c.b16 %v2305, %v2303
  %v3110 = vpack.c.b16 %v2306, %v2304
  %v3111 = vpack.c.b16 %v2309, %v2307
  %v3112 = vpack.c.b16 %v2310, %v2308
  %v3113 = vpack.c.b16 %v2313, %v2311
  %v3114 = vpack.c.b16 %v2314, %v2312
  %v3115 = vpack.c.b16 %v2317, %v2315
  %v3116 = vpack.c.b16 %v2318, %v2316
  %v3117 = vpack.c.b16 %v2321, %v2319
  %v3118 = vpack.c.b16 %v2322, %v2320
  %v3119 = vpack.c.b16 %v2325, %v2323
  %v3120 = vpack.c.b16 %v2326, %v2324
  %v3121 = vpack.c.b16 %v2329, %v2327
  %v3122 = vpack.c.b16 %v2330, %v2328
  %v3123 = vpack.c.b16 %v2333, %v2331
  %v3124 = vpack.c.b16 %v2334, %v2332
  %v3125 = vpack.c.b16 %v2337, %v2335
  %v3126 = vpack.c.b16 %v2338, %v2336
  %v3127 = vpack.c.b16 %v2341, %v2339
  %v3128 = vpack.c.b16 %v2342, %v2340
  %v3129 = vpack.c.b16 %v2345, %v2343
  %v3130 = vpack.c.b16 %v2346, %v2344
  %v3131 = vpack.c.b16 %v2349, %v2347
  %v3132 = vpack.c.b16 %v2350, %v2348
  %v3133 = vpack.c.b16 %v2353, %v2351
  %v3134 = vpack.c.b16 %v2354, %v2352
  %v3135 = vpack.c.b16 %v2357, %v2355
  %v3136 = vpack.c.b16 %v2358, %v2356
  %v3137 = vpack.c.b16 %v2361, %v2359
  %v3138 = vpack.c.b16 %v2362, %v2360
  %v3139 = vpack.c.b16 %v2365, %v2363
  %v3140 = vpack.c.b16 %v2366, %v2364
  %v3141 = vpack.c.b16 %v2369, %v2367
  %v3142 = vpack.c.b16 %v2370, %v2368
  %v3143 = vpack.c.b16 %v2373, %v2371
  %v3144 = vpack.c.b16 %v2374, %v2372
  %v3145 = vpack.c.b16 %v2377, %v2375
  %v3146 = vpack.c.b16 %v2378, %v2376
  %v3147 = vpack.c.b16 %v2381, %v2379
  %v3148 = vpack.c.b16 %v2382, %v2380
  %v3149 = vpack.c.b16 %v2385, %v2383
  %v3150 = vpack.c.b16 %v2386, %v2384
  %v3151 = vpack.c.b16 %v2389, %v2387
  %v3152 = vpack.c.b16 %v2390, %v2388
  %v3153 = vpack.c.b16 %v2393, %v2391
  %v3154 = vpack.c.b16 %v2394, %v2392
  %v3155 = vpack.c.b16 %v2397, %v2395
  %v3156 = vpack.c.b16 %v2398, %v2396
  %v3157 = vpack.c.b16 %v2401, %v2399
  %v3158 = vpack.c.b16 %v2402, %v2400
  %v3159 = vpack.c.b16 %v2405, %v2403
  %v3160 = vpack.c.b16 %v2406, %v2404
  %v3161 = vpack.c.b16 %v2409, %v2407
  %v3162 = vpack.c.b16 %v2410, %v2408
  %v3163 = vpack.c.b16 %v2413, %v2411
  %v3164 = vpack.c.b16 %v2414, %v2412
  %v3165 = vpack.c.b16 %v2417, %v2415
  %v3166 = vpack.c.b16 %v2418, %v2416
  %v3167 = vpack.c.b16 %v2421, %v2419
  %v3168 = vpack.c.b16 %v2422, %v2420
  %v3169 = vpack.c.b16 %v2425, %v2423
  %v3170 = vpack.c.b16 %v2426, %v2424
  %v3171 = vpack.c.b16 %v2429, %v2427
  %v3172 = vpack.c.b16 %v2430, %v2428
  %v3173 = vpack.c.b16 %v2433, %v2431
  %v3174 = vpack.c.b16 %v2434, %v2432
  %v3175 = vpack.c.b16 %v2437, %v2435
  %v3176 = vpack.c.b16 %v2438, %v2436
  %v3177 = vpack.c.b16 %v2441, %v2439
  %v3178 = vpack.c.b16 %v2442, %v2440
  %v3179 = vpack.c.b16 %v2445, %v2443
  %v3180 = vpack.c.b16 %v2446, %v2444
  %v3181 = vpack.c.b16 %v2449, %v2447
  %v3182 = vpack.c.b16 %v2450, %v2448
  %v3183 = vpack.c.b16 %v2453, %v2451
  %v3184 = vpack.c.b16 %v2454, %v2452
  %v3185 = vpack.c.b16 %v2457, %v2455
  %v3186 = vpack.c.b16 %v2458, %v2456
  %v3187 = vpack.c.b16 %v2461, %v2459
  %v3188 = vpack.c.b16 %v2462, %v2460
  %v3189 = vpack.c.b16 %v2465, %v2463
  %v3190 = vpack.c.b16 %v2466, %v2464
  %v3191 = vpack.c.b16 %v2469, %v2467
  %v3192 = vpack.c.b16 %v2470, %v2468
  %v3193 = vpack.c.b16 %v2473, %v2471
  %v3194 = vpack.c.b16 %v2474, %v2472
  %v3195 = vpack.c.b16 %v2477, %v2475
  %v3196 = vpack.c.b16 %v2478, %v2476
  %v3197 = vpack.c.b16 %v2481, %v2479
  %v3198 = vpack.c.b16 %v2482, %v2480
  %v3199 = vpack.c.b16 %v2485, %v2483
  %v3200 = vpack.c.b16 %v2486, %v2484
  %v3201 = vpack.c.b16 %v2489, %v2487
  %v3202 = vpack.c.b16 %v2490, %v2488
  %v3203 = vpack.c.b16 %v2493, %v2491
  %v3204 = vpack.c.b16 %v2494, %v2492
  %v3205 = vpack.c.b16 %v2497, %v2495
  %v3206 = vpack.c.b16 %v2498, %v2496
  %v3207 = vpack.c.b16 %v2501, %v2499
  %v3208 = vpack.c.b16 %v2502, %v2500
  %v3209 = vpack.c.b16 %v2505, %v2503
  %v3210 = vpack.c.b16 %v2506, %v2504
  %v3211 = vpack.c.b16 %v2509, %v2507
  %v3212 = vpack.c.b16 %v2510, %v2508
  %v3213 = vpack.c.b16 %v2513, %v2511
  %v3214 = vpack.c.b16 %v2514, %v2512
  %v3215 = vpack.c.b16 %v2517, %v2515
  %v3216 = vpack.c.b16 %v2518, %v2516
  %v3217 = vpack.c.b16 %v2521, %v2519
  %v3218 = vpack.c.b16 %v2522, %v2520
  %v3219 = vpack.c.b16 %v2525, %v2523
  %v3220 = vpack.c.b16 %v2526, %v2524
  %v3221 = vpack.c.b16 %v2529, %v2527
  %v3222 = vpack.c.b16 %v2530, %v2528
  %v3223 = vpack.c.b16 %v2533, %v2531
  %v3224 = vpack.c.b16 %v2534, %v2532
  %v3225 = vpack.c.b16 %v2537, %v2535
  %v3226 = vpack.c.b16 %v2538, %v2536
  %v3227 = vpack.c.b16 %v2541, %v2539
  %v3228 = vpack.c.b16 %v2542, %v2540
  %v3229 = vpack.c.b16 %v2545, %v2543
  %v3230 = vpack.c.b16 %v2546, %v2544
  %v3231 = vpack.c.b16 %v2549, %v2547
  %v3232 = vpack.c.b16 %v2550, %v2548
  %v3233 = vpack.c.b16 %v2553, %v2551
  %v3234 = vpack.c.b16 %v2554, %v2552
  %v3235 = vpack.c.b16 %v2557, %v2555
  %v3236 = vpack.c.b16 %v2558, %v2556
  %v3237 = vpack.c.b16 %v2561, %v2559
  %v3238 = vpack.c.b16 %v2562, %v2560
  %v3239 = vpack.c.b16 %v2565, %v2563
  %v3240 = vpack.c.b16 %v2566, %v2564
  %v3241 = vpack.c.b16 %v2569, %v2567
  %v3242 = vpack.c.b16 %v2570, %v2568
  %v3243 = vpack.c.b16 %v2573, %v2571
  %v3244 = vpack.c.b16 %v2574, %v2572
  %v3245 = vpack.c.b16 %v2577, %v2575
  %v3246 = vpack.c.b16 %v2578, %v2576
  %v3247 = vpack.c.b16 %v2581, %v2579
  %v3248 = vpack.c.b16 %v2582, %v2580
  %v3249 = vpack.c.b16 %v2585, %v2583
  %v3250 = vpack.c.b16 %v2586, %v2584
  %v3251 = vpack.c.b16 %v2589, %v2587
  %v3252 = vpack.c.b16 %v2590, %v2588
  %v3253 = vpack.c.b16 %v2593, %v2591
  %v3254 = vpack.c.b16 %v2594, %v2592
  %v3255 = vpack.c.b16 %v2597, %v2595
  %v3256 = vpack.c.b16 %v2598, %v2596
  %v3257 = vpack.c.b16 %v2601, %v2599
  %v3258 = vpack.c.b16 %v2602, %v2600
  %v3259 = vpack.c.b16 %v2605, %v2603
  %v3260 = vpack.c.b16 %v2606, %v2604
  %v3261 = vpack.c.b16 %v2609, %v2607
  %v3262 = vpack.c.b16 %v2610, %v2608
  %v3263 = vpack.c.b16 %v2613, %v2611
  %v3264 = vpack.c.b16 %v2614, %v2612
  %v3265 = vpack.c.b16 %v2617, %v2615
  %v3266 = vpack.c.b16 %v2618, %v2616
  %v3267 = vpack.c.b16 %v2621, %v2619
  %v3268 = vpack.c.b16 %v2622, %v2620
  %v3269 = vpack.c.b16 %v2625, %v2623
  %v3270 = vpack.c.b16 %v2626, %v2624
  %v3271 = vpack.c.b16 %v2629, %v2627
  %v3272 = vpack.c.b16 %v2630, %v2628
  %v3273 = vpack.c.b16 %v2633, %v2631
  %v3274 = vpack.c.b16 %v2634, %v2632
  %v3275 = vpack.c.b16 %v2637, %v2635
  %v3276 = vpack.c.b16 %v2638, %v2636
  %v3277 = vpack.c.b16 %v2641, %v2639
  %v3278 = vpack.c.b16 %v2642, %v2640
  %v3279 = vpack.c.b16 %v2645, %v2643
  %v3280 = vpack.c.b16 %v2646, %v2644
  %v3281 = vpack.c.b16 %v2649, %v2647
  %v3282 = vpack.c.b16 %v2650, %v2648
  %v3283 = vpack.c.b16 %v2653, %v2651
  %v3284 = vpack.c.b16 %v2654, %v2652
  %v3285 = vpack.c.b16 %v2657, %v2655
  %v3286 = vpack.c.b16 %v2658, %v2656
  %v3287 = vpack.c.b16 %v2661, %v2659
  %v3288 = vpack.c.b16 %v2662, %v2660
  %v3289 = vpack.c.b16 %v2663, %v2663
  %v3290 = vpack.c.b16 %v2664, %v2664
  %vm3915 = vcmask 64512
  %v3917 = vsel %vm3915, %v152, 0
  %vm3919 = vcmask 1043456
  %v3921 = vsel %vm3919, %v3289, 0
  %v3924 = vsel %vm3919, %v3290, 0
  %3926 = vmatprep.subr.bf16.mxu0 %v2666
  %3927 = vmatpush1.bf16.msra.mxu0 %v2665
  %3928 = vmatprep.subr.bf16.mxu0 %v2668
  %3929 = vmatpush1.bf16.msra.mxu0 %v2667
  %3930 = vmatprep.subr.bf16.mxu0 %v2670
  %3931 = vmatpush1.bf16.msra.mxu0 %v2669
  %3932 = vmatprep.subr.bf16.mxu0 %v2672
  %3933 = vmatpush1.bf16.msra.mxu0 %v2671
  %3934 = vmatprep.subr.bf16.mxu0 %v2674
  %3935 = vmatpush1.bf16.msra.mxu0 %v2673
  %3936 = vmatprep.subr.bf16.mxu0 %v2676
  %3937 = vmatpush1.bf16.msra.mxu0 %v2675
  %3938 = vmatprep.subr.bf16.mxu0 %v2678
  %3939 = vmatpush1.bf16.msra.mxu0 %v2677
  %3940 = vmatprep.subr.bf16.mxu0 %v2680
  %3941 = vmatpush1.bf16.msra.mxu0 %v2679
  %3942 = vmatprep.subr.bf16.mxu0 %v2682
  %3943 = vmatpush1.bf16.msra.mxu0 %v2681
  %3944 = vmatprep.subr.bf16.mxu0 %v2684
  %3945 = vmatpush1.bf16.msra.mxu0 %v2683
  %3946 = vmatprep.subr.bf16.mxu0 %v2686
  %3947 = vmatpush1.bf16.msra.mxu0 %v2685
  %3948 = vmatprep.subr.bf16.mxu0 %v2688
  %3949 = vmatpush1.bf16.msra.mxu0 %v2687
  %3950 = vmatprep.subr.bf16.mxu0 %v2690
  %3951 = vmatpush1.bf16.msra.mxu0 %v2689
  %3952 = vmatprep.subr.bf16.mxu0 %v2692
  %3953 = vmatpush1.bf16.msra.mxu0 %v2691
  %3954 = vmatprep.subr.bf16.mxu0 %v2694
  %3955 = vmatpush1.bf16.msra.mxu0 %v2693
  %3956 = vmatprep.subr.bf16.mxu0 %v2696
  %3957 = vmatpush1.bf16.msra.mxu0 %v2695
  %3958 = vmatprep.mubr.bf16.mxu0 %v114
  %3959 = vmatmul.mubr.bf16.gmra.mrb[0].mxu0 %v113
  %v3960 = vpop.f32.mrb[0].mxu0
  %v3961 = vadd.f32 %v783, %v3960
  %v3962 = vpop.f32.mrb[0].mxu0
  %v3963 = vadd.f32 %v787, %v3962
  %v3964 = vpop.f32.mrb[0].mxu0
  %v3965 = vadd.f32 %v783, %v3964
  %v3966 = vpop.f32.mrb[0].mxu0
  %v3967 = vadd.f32 %v787, %v3966
  %3968 = vdwg.mxu0
  %3969 = vmatprep.subr.bf16.mxu0 %v2698
  %3970 = vmatpush1.bf16.msra.mxu0 %v2697
  %3971 = vmatprep.subr.bf16.mxu0 %v2700
  %3972 = vmatpush1.bf16.msra.mxu0 %v2699
  %3973 = vmatprep.subr.bf16.mxu0 %v2702
  %3974 = vmatpush1.bf16.msra.mxu0 %v2701
  %3975 = vmatprep.subr.bf16.mxu0 %v2704
  %3976 = vmatpush1.bf16.msra.mxu0 %v2703
  %3977 = vmatprep.subr.bf16.mxu0 %v2706
  %3978 = vmatpush1.bf16.msra.mxu0 %v2705
  %3979 = vmatprep.subr.bf16.mxu0 %v2708
  %3980 = vmatpush1.bf16.msra.mxu0 %v2707
  %3981 = vmatprep.subr.bf16.mxu0 %v2710
  %3982 = vmatpush1.bf16.msra.mxu0 %v2709
  %3983 = vmatprep.subr.bf16.mxu0 %v2712
  %3984 = vmatpush1.bf16.msra.mxu0 %v2711
  %3985 = vmatprep.subr.bf16.mxu0 %v2714
  %3986 = vmatpush1.bf16.msra.mxu0 %v2713
  %3987 = vmatprep.subr.bf16.mxu0 %v2716
  %3988 = vmatpush1.bf16.msra.mxu0 %v2715
  %3989 = vmatprep.subr.bf16.mxu0 %v2718
  %3990 = vmatpush1.bf16.msra.mxu0 %v2717
  %3991 = vmatprep.subr.bf16.mxu0 %v2720
  %3992 = vmatpush1.bf16.msra.mxu0 %v2719
  %3993 = vmatprep.subr.bf16.mxu0 %v2722
  %3994 = vmatpush1.bf16.msra.mxu0 %v2721
  %3995 = vmatprep.subr.bf16.mxu0 %v2724
  %3996 = vmatpush1.bf16.msra.mxu0 %v2723
  %3997 = vmatprep.subr.bf16.mxu0 %v2726
  %3998 = vmatpush1.bf16.msra.mxu0 %v2725
  %3999 = vmatprep.subr.bf16.mxu0 %v2728
  %4000 = vmatpush1.bf16.msra.mxu0 %v2727
  %4001 = vmatprep.mubr.bf16.mxu0 %v116
  %4002 = vmatmul.mubr.bf16.gmra.mrb[0].mxu0 %v115
  %v4003 = vpop.f32.mrb[0].mxu0
  %v4004 = vadd.f32 %v3961, %v4003
  %v4005 = vpop.f32.mrb[0].mxu0
  %v4006 = vadd.f32 %v3963, %v4005
  %v4007 = vpop.f32.mrb[0].mxu0
  %v4008 = vadd.f32 %v3965, %v4007
  %v4009 = vpop.f32.mrb[0].mxu0
  %v4010 = vadd.f32 %v3967, %v4009
  %4011 = vdwg.mxu0
  %4012 = vmatprep.subr.bf16.mxu0 %v2730
  %4013 = vmatpush1.bf16.msra.mxu0 %v2729
  %4014 = vmatprep.subr.bf16.mxu0 %v2732
  %4015 = vmatpush1.bf16.msra.mxu0 %v2731
  %4016 = vmatprep.subr.bf16.mxu0 %v2734
  %4017 = vmatpush1.bf16.msra.mxu0 %v2733
  %4018 = vmatprep.subr.bf16.mxu0 %v2736
  %4019 = vmatpush1.bf16.msra.mxu0 %v2735
  %4020 = vmatprep.subr.bf16.mxu0 %v2738
  %4021 = vmatpush1.bf16.msra.mxu0 %v2737
  %4022 = vmatprep.subr.bf16.mxu0 %v2740
  %4023 = vmatpush1.bf16.msra.mxu0 %v2739
  %4024 = vmatprep.subr.bf16.mxu0 %v2742
  %4025 = vmatpush1.bf16.msra.mxu0 %v2741
  %4026 = vmatprep.subr.bf16.mxu0 %v2744
  %4027 = vmatpush1.bf16.msra.mxu0 %v2743
  %4028 = vmatprep.subr.bf16.mxu0 %v2746
  %4029 = vmatpush1.bf16.msra.mxu0 %v2745
  %4030 = vmatprep.subr.bf16.mxu0 %v2748
  %4031 = vmatpush1.bf16.msra.mxu0 %v2747
  %4032 = vmatprep.subr.bf16.mxu0 %v2750
  %4033 = vmatpush1.bf16.msra.mxu0 %v2749
  %4034 = vmatprep.subr.bf16.mxu0 %v2752
  %4035 = vmatpush1.bf16.msra.mxu0 %v2751
  %4036 = vmatprep.subr.bf16.mxu0 %v2754
  %4037 = vmatpush1.bf16.msra.mxu0 %v2753
  %4038 = vmatprep.subr.bf16.mxu0 %v2756
  %4039 = vmatpush1.bf16.msra.mxu0 %v2755
  %4040 = vmatprep.subr.bf16.mxu0 %v2758
  %4041 = vmatpush1.bf16.msra.mxu0 %v2757
  %4042 = vmatprep.subr.bf16.mxu0 %v2760
  %4043 = vmatpush1.bf16.msra.mxu0 %v2759
  %4044 = vmatprep.mubr.bf16.mxu0 %v118
  %4045 = vmatmul.mubr.bf16.gmra.mrb[0].mxu0 %v117
  %v4046 = vpop.f32.mrb[0].mxu0
  %v4047 = vadd.f32 %v4004, %v4046
  %v4048 = vpop.f32.mrb[0].mxu0
  %v4049 = vadd.f32 %v4006, %v4048
  %v4050 = vpop.f32.mrb[0].mxu0
  %v4051 = vadd.f32 %v4008, %v4050
  %v4052 = vpop.f32.mrb[0].mxu0
  %v4053 = vadd.f32 %v4010, %v4052
  %4054 = vdwg.mxu0
  %4055 = vmatprep.subr.bf16.mxu0 %v2762
  %4056 = vmatpush1.bf16.msra.mxu0 %v2761
  %4057 = vmatprep.subr.bf16.mxu0 %v2764
  %4058 = vmatpush1.bf16.msra.mxu0 %v2763
  %4059 = vmatprep.subr.bf16.mxu0 %v2766
  %4060 = vmatpush1.bf16.msra.mxu0 %v2765
  %4061 = vmatprep.subr.bf16.mxu0 %v2768
  %4062 = vmatpush1.bf16.msra.mxu0 %v2767
  %4063 = vmatprep.subr.bf16.mxu0 %v2770
  %4064 = vmatpush1.bf16.msra.mxu0 %v2769
  %4065 = vmatprep.subr.bf16.mxu0 %v2772
  %4066 = vmatpush1.bf16.msra.mxu0 %v2771
  %4067 = vmatprep.subr.bf16.mxu0 %v2774
  %4068 = vmatpush1.bf16.msra.mxu0 %v2773
  %4069 = vmatprep.subr.bf16.mxu0 %v2776
  %4070 = vmatpush1.bf16.msra.mxu0 %v2775
  %4071 = vmatprep.subr.bf16.mxu0 %v2778
  %4072 = vmatpush1.bf16.msra.mxu0 %v2777
  %4073 = vmatprep.subr.bf16.mxu0 %v2780
  %4074 = vmatpush1.bf16.msra.mxu0 %v2779
  %4075 = vmatprep.subr.bf16.mxu0 %v2782
  %4076 = vmatpush1.bf16.msra.mxu0 %v2781
  %4077 = vmatprep.subr.bf16.mxu0 %v2784
  %4078 = vmatpush1.bf16.msra.mxu0 %v2783
  %4079 = vmatprep.subr.bf16.mxu0 %v2786
  %4080 = vmatpush1.bf16.msra.mxu0 %v2785
  %4081 = vmatprep.subr.bf16.mxu0 %v2788
  %4082 = vmatpush1.bf16.msra.mxu0 %v2787
  %4083 = vmatprep.subr.bf16.mxu0 %v2790
  %4084 = vmatpush1.bf16.msra.mxu0 %v2789
  %4085 = vmatprep.subr.bf16.mxu0 %v2792
  %4086 = vmatpush1.bf16.msra.mxu0 %v2791
  %4087 = vmatprep.mubr.bf16.mxu0 %v120
  %4088 = vmatmul.mubr.bf16.gmra.mrb[0].mxu0 %v119
  %v4089 = vpop.f32.mrb[0].mxu0
  %v4090 = vadd.f32 %v4047, %v4089
  %v4091 = vpop.f32.mrb[0].mxu0
  %v4092 = vadd.f32 %v4049, %v4091
  %v4093 = vpop.f32.mrb[0].mxu0
  %v4094 = vadd.f32 %v4051, %v4093
  %v4095 = vpop.f32.mrb[0].mxu0
  %v4096 = vadd.f32 %v4053, %v4095
  %4097 = vdwg.mxu0
  %4098 = vmatprep.subr.bf16.mxu0 %v2794
  %4099 = vmatpush1.bf16.msra.mxu0 %v2793
  %4100 = vmatprep.subr.bf16.mxu0 %v2796
  %4101 = vmatpush1.bf16.msra.mxu0 %v2795
  %4102 = vmatprep.subr.bf16.mxu0 %v2798
  %4103 = vmatpush1.bf16.msra.mxu0 %v2797
  %4104 = vmatprep.subr.bf16.mxu0 %v2800
  %4105 = vmatpush1.bf16.msra.mxu0 %v2799
  %4106 = vmatprep.subr.bf16.mxu0 %v2802
  %4107 = vmatpush1.bf16.msra.mxu0 %v2801
  %4108 = vmatprep.subr.bf16.mxu0 %v2804
  %4109 = vmatpush1.bf16.msra.mxu0 %v2803
  %4110 = vmatprep.subr.bf16.mxu0 %v2806
  %4111 = vmatpush1.bf16.msra.mxu0 %v2805
  %4112 = vmatprep.subr.bf16.mxu0 %v2808
  %4113 = vmatpush1.bf16.msra.mxu0 %v2807
  %4114 = vmatprep.subr.bf16.mxu0 %v2810
  %4115 = vmatpush1.bf16.msra.mxu0 %v2809
  %4116 = vmatprep.subr.bf16.mxu0 %v2812
  %4117 = vmatpush1.bf16.msra.mxu0 %v2811
  %4118 = vmatprep.subr.bf16.mxu0 %v2814
  %4119 = vmatpush1.bf16.msra.mxu0 %v2813
  %4120 = vmatprep.subr.bf16.mxu0 %v2816
  %4121 = vmatpush1.bf16.msra.mxu0 %v2815
  %4122 = vmatprep.subr.bf16.mxu0 %v2818
  %4123 = vmatpush1.bf16.msra.mxu0 %v2817
  %4124 = vmatprep.subr.bf16.mxu0 %v2820
  %4125 = vmatpush1.bf16.msra.mxu0 %v2819
  %4126 = vmatprep.subr.bf16.mxu0 %v2822
  %4127 = vmatpush1.bf16.msra.mxu0 %v2821
  %4128 = vmatprep.subr.bf16.mxu0 %v2824
  %4129 = vmatpush1.bf16.msra.mxu0 %v2823
  %4130 = vmatprep.mubr.bf16.mxu0 %v122
  %4131 = vmatmul.mubr.bf16.gmra.mrb[0].mxu0 %v121
  %v4132 = vpop.f32.mrb[0].mxu0
  %v4133 = vadd.f32 %v4090, %v4132
  %v4134 = vpop.f32.mrb[0].mxu0
  %v4135 = vadd.f32 %v4092, %v4134
  %v4136 = vpop.f32.mrb[0].mxu0
  %v4137 = vadd.f32 %v4094, %v4136
  %v4138 = vpop.f32.mrb[0].mxu0
  %v4139 = vadd.f32 %v4096, %v4138
  %4140 = vdwg.mxu0
  %4141 = vmatprep.subr.bf16.mxu0 %v2826
  %4142 = vmatpush1.bf16.msra.mxu0 %v2825
  %4143 = vmatprep.subr.bf16.mxu0 %v2828
  %4144 = vmatpush1.bf16.msra.mxu0 %v2827
  %4145 = vmatprep.subr.bf16.mxu0 %v2830
  %4146 = vmatpush1.bf16.msra.mxu0 %v2829
  %4147 = vmatprep.subr.bf16.mxu0 %v2832
  %4148 = vmatpush1.bf16.msra.mxu0 %v2831
  %4149 = vmatprep.subr.bf16.mxu0 %v2834
  %4150 = vmatpush1.bf16.msra.mxu0 %v2833
  %4151 = vmatprep.subr.bf16.mxu0 %v2836
  %4152 = vmatpush1.bf16.msra.mxu0 %v2835
  %4153 = vmatprep.subr.bf16.mxu0 %v2838
  %4154 = vmatpush1.bf16.msra.mxu0 %v2837
  %4155 = vmatprep.subr.bf16.mxu0 %v2840
  %4156 = vmatpush1.bf16.msra.mxu0 %v2839
  %4157 = vmatprep.subr.bf16.mxu0 %v2842
  %4158 = vmatpush1.bf16.msra.mxu0 %v2841
  %4159 = vmatprep.subr.bf16.mxu0 %v2844
  %4160 = vmatpush1.bf16.msra.mxu0 %v2843
  %4161 = vmatprep.subr.bf16.mxu0 %v2846
  %4162 = vmatpush1.bf16.msra.mxu0 %v2845
  %4163 = vmatprep.subr.bf16.mxu0 %v2848
  %4164 = vmatpush1.bf16.msra.mxu0 %v2847
  %4165 = vmatprep.subr.bf16.mxu0 %v2850
  %4166 = vmatpush1.bf16.msra.mxu0 %v2849
  %4167 = vmatprep.subr.bf16.mxu0 %v2852
  %4168 = vmatpush1.bf16.msra.mxu0 %v2851
  %4169 = vmatprep.subr.bf16.mxu0 %v2854
  %4170 = vmatpush1.bf16.msra.mxu0 %v2853
  %4171 = vmatprep.subr.bf16.mxu0 %v2856
  %4172 = vmatpush1.bf16.msra.mxu0 %v2855
  %4173 = vmatprep.mubr.bf16.mxu0 %v124
  %4174 = vmatmul.mubr.bf16.gmra.mrb[0].mxu0 %v123
  %v4175 = vpop.f32.mrb[0].mxu0
  %v4176 = vadd.f32 %v4133, %v4175
  %v4177 = vpop.f32.mrb[0].mxu0
  %v4178 = vadd.f32 %v4135, %v4177
  %v4179 = vpop.f32.mrb[0].mxu0
  %v4180 = vadd.f32 %v4137, %v4179
  %v4181 = vpop.f32.mrb[0].mxu0
  %v4182 = vadd.f32 %v4139, %v4181
  %4183 = vdwg.mxu0
  %4184 = vmatprep.subr.bf16.mxu0 %v2858
  %4185 = vmatpush1.bf16.msra.mxu0 %v2857
  %4186 = vmatprep.subr.bf16.mxu0 %v2860
  %4187 = vmatpush1.bf16.msra.mxu0 %v2859
  %4188 = vmatprep.subr.bf16.mxu0 %v2862
  %4189 = vmatpush1.bf16.msra.mxu0 %v2861
  %4190 = vmatprep.subr.bf16.mxu0 %v2864
  %4191 = vmatpush1.bf16.msra.mxu0 %v2863
  %4192 = vmatprep.subr.bf16.mxu0 %v2866
  %4193 = vmatpush1.bf16.msra.mxu0 %v2865
  %4194 = vmatprep.subr.bf16.mxu0 %v2868
  %4195 = vmatpush1.bf16.msra.mxu0 %v2867
  %4196 = vmatprep.subr.bf16.mxu0 %v2870
  %4197 = vmatpush1.bf16.msra.mxu0 %v2869
  %4198 = vmatprep.subr.bf16.mxu0 %v2872
  %4199 = vmatpush1.bf16.msra.mxu0 %v2871
  %4200 = vmatprep.subr.bf16.mxu0 %v2874
  %4201 = vmatpush1.bf16.msra.mxu0 %v2873
  %4202 = vmatprep.subr.bf16.mxu0 %v2876
  %4203 = vmatpush1.bf16.msra.mxu0 %v2875
  %4204 = vmatprep.subr.bf16.mxu0 %v2878
  %4205 = vmatpush1.bf16.msra.mxu0 %v2877
  %4206 = vmatprep.subr.bf16.mxu0 %v2880
  %4207 = vmatpush1.bf16.msra.mxu0 %v2879
  %4208 = vmatprep.subr.bf16.mxu0 %v2882
  %4209 = vmatpush1.bf16.msra.mxu0 %v2881
  %4210 = vmatprep.subr.bf16.mxu0 %v2884
  %4211 = vmatpush1.bf16.msra.mxu0 %v2883
  %4212 = vmatprep.subr.bf16.mxu0 %v2886
  %4213 = vmatpush1.bf16.msra.mxu0 %v2885
  %4214 = vmatprep.subr.bf16.mxu0 %v2888
  %4215 = vmatpush1.bf16.msra.mxu0 %v2887
  %4216 = vmatprep.mubr.bf16.mxu0 %v126
  %4217 = vmatmul.mubr.bf16.gmra.mrb[0].mxu0 %v125
  %v4218 = vpop.f32.mrb[0].mxu0
  %v4219 = vadd.f32 %v4176, %v4218
  %v4220 = vpop.f32.mrb[0].mxu0
  %v4221 = vadd.f32 %v4178, %v4220
  %v4222 = vpop.f32.mrb[0].mxu0
  %v4223 = vadd.f32 %v4180, %v4222
  %v4224 = vpop.f32.mrb[0].mxu0
  %v4225 = vadd.f32 %v4182, %v4224
  %4226 = vdwg.mxu0
  %4227 = vmatprep.subr.bf16.mxu0 %v2890
  %4228 = vmatpush1.bf16.msra.mxu0 %v2889
  %4229 = vmatprep.subr.bf16.mxu0 %v2892
  %4230 = vmatpush1.bf16.msra.mxu0 %v2891
  %4231 = vmatprep.subr.bf16.mxu0 %v2894
  %4232 = vmatpush1.bf16.msra.mxu0 %v2893
  %4233 = vmatprep.subr.bf16.mxu0 %v2896
  %4234 = vmatpush1.bf16.msra.mxu0 %v2895
  %4235 = vmatprep.subr.bf16.mxu0 %v2898
  %4236 = vmatpush1.bf16.msra.mxu0 %v2897
  %4237 = vmatprep.subr.bf16.mxu0 %v2900
  %4238 = vmatpush1.bf16.msra.mxu0 %v2899
  %4239 = vmatprep.subr.bf16.mxu0 %v2902
  %4240 = vmatpush1.bf16.msra.mxu0 %v2901
  %4241 = vmatprep.subr.bf16.mxu0 %v2904
  %4242 = vmatpush1.bf16.msra.mxu0 %v2903
  %4243 = vmatprep.subr.bf16.mxu0 %v2906
  %4244 = vmatpush1.bf16.msra.mxu0 %v2905
  %4245 = vmatprep.subr.bf16.mxu0 %v2908
  %4246 = vmatpush1.bf16.msra.mxu0 %v2907
  %4247 = vmatprep.subr.bf16.mxu0 %v2910
  %4248 = vmatpush1.bf16.msra.mxu0 %v2909
  %4249 = vmatprep.subr.bf16.mxu0 %v2912
  %4250 = vmatpush1.bf16.msra.mxu0 %v2911
  %4251 = vmatprep.subr.bf16.mxu0 %v2914
  %4252 = vmatpush1.bf16.msra.mxu0 %v2913
  %4253 = vmatprep.subr.bf16.mxu0 %v2916
  %4254 = vmatpush1.bf16.msra.mxu0 %v2915
  %4255 = vmatprep.subr.bf16.mxu0 %v2918
  %4256 = vmatpush1.bf16.msra.mxu0 %v2917
  %4257 = vmatprep.subr.bf16.mxu0 %v2920
  %4258 = vmatpush1.bf16.msra.mxu0 %v2919
  %4259 = vmatprep.mubr.bf16.mxu0 %v128
  %4260 = vmatmul.mubr.bf16.gmra.mrb[0].mxu0 %v127
  %v4261 = vpop.f32.mrb[0].mxu0
  %v4262 = vadd.f32 %v4219, %v4261
  %v4263 = vpop.f32.mrb[0].mxu0
  %v4264 = vadd.f32 %v4221, %v4263
  %v4265 = vpop.f32.mrb[0].mxu0
  %v4266 = vadd.f32 %v4223, %v4265
  %v4267 = vpop.f32.mrb[0].mxu0
  %v4268 = vadd.f32 %v4225, %v4267
  %4269 = vdwg.mxu0
  %4270 = vmatprep.subr.bf16.mxu0 %v2922
  %4271 = vmatpush1.bf16.msra.mxu0 %v2921
  %4272 = vmatprep.subr.bf16.mxu0 %v2924
  %4273 = vmatpush1.bf16.msra.mxu0 %v2923
  %4274 = vmatprep.subr.bf16.mxu0 %v2926
  %4275 = vmatpush1.bf16.msra.mxu0 %v2925
  %4276 = vmatprep.subr.bf16.mxu0 %v2928
  %4277 = vmatpush1.bf16.msra.mxu0 %v2927
  %4278 = vmatprep.subr.bf16.mxu0 %v2930
  %4279 = vmatpush1.bf16.msra.mxu0 %v2929
  %4280 = vmatprep.subr.bf16.mxu0 %v2932
  %4281 = vmatpush1.bf16.msra.mxu0 %v2931
  %4282 = vmatprep.subr.bf16.mxu0 %v2934
  %4283 = vmatpush1.bf16.msra.mxu0 %v2933
  %4284 = vmatprep.subr.bf16.mxu0 %v2936
  %4285 = vmatpush1.bf16.msra.mxu0 %v2935
  %4286 = vmatprep.subr.bf16.mxu0 %v2938
  %4287 = vmatpush1.bf16.msra.mxu0 %v2937
  %4288 = vmatprep.subr.bf16.mxu0 %v2940
  %4289 = vmatpush1.bf16.msra.mxu0 %v2939
  %4290 = vmatprep.subr.bf16.mxu0 %v2942
  %4291 = vmatpush1.bf16.msra.mxu0 %v2941
  %4292 = vmatprep.subr.bf16.mxu0 %v2944
  %4293 = vmatpush1.bf16.msra.mxu0 %v2943
  %4294 = vmatprep.subr.bf16.mxu0 %v2946
  %4295 = vmatpush1.bf16.msra.mxu0 %v2945
  %4296 = vmatprep.subr.bf16.mxu0 %v2948
  %4297 = vmatpush1.bf16.msra.mxu0 %v2947
  %4298 = vmatprep.subr.bf16.mxu0 %v2950
  %4299 = vmatpush1.bf16.msra.mxu0 %v2949
  %4300 = vmatprep.subr.bf16.mxu0 %v2952
  %4301 = vmatpush1.bf16.msra.mxu0 %v2951
  %4302 = vmatprep.mubr.bf16.mxu0 %v130
  %4303 = vmatmul.mubr.bf16.gmra.mrb[0].mxu0 %v129
  %v4304 = vpop.f32.mrb[0].mxu0
  %v4305 = vadd.f32 %v4262, %v4304
  %v4306 = vpop.f32.mrb[0].mxu0
  %v4307 = vadd.f32 %v4264, %v4306
  %v4308 = vpop.f32.mrb[0].mxu0
  %v4309 = vadd.f32 %v4266, %v4308
  %v4310 = vpop.f32.mrb[0].mxu0
  %v4311 = vadd.f32 %v4268, %v4310
  %4312 = vdwg.mxu0
  %4313 = vmatprep.subr.bf16.mxu0 %v2954
  %4314 = vmatpush1.bf16.msra.mxu0 %v2953
  %4315 = vmatprep.subr.bf16.mxu0 %v2956
  %4316 = vmatpush1.bf16.msra.mxu0 %v2955
  %4317 = vmatprep.subr.bf16.mxu0 %v2958
  %4318 = vmatpush1.bf16.msra.mxu0 %v2957
  %4319 = vmatprep.subr.bf16.mxu0 %v2960
  %4320 = vmatpush1.bf16.msra.mxu0 %v2959
  %4321 = vmatprep.subr.bf16.mxu0 %v2962
  %4322 = vmatpush1.bf16.msra.mxu0 %v2961
  %4323 = vmatprep.subr.bf16.mxu0 %v2964
  %4324 = vmatpush1.bf16.msra.mxu0 %v2963
  %4325 = vmatprep.subr.bf16.mxu0 %v2966
  %4326 = vmatpush1.bf16.msra.mxu0 %v2965
  %4327 = vmatprep.subr.bf16.mxu0 %v2968
  %4328 = vmatpush1.bf16.msra.mxu0 %v2967
  %4329 = vmatprep.subr.bf16.mxu0 %v2970
  %4330 = vmatpush1.bf16.msra.mxu0 %v2969
  %4331 = vmatprep.subr.bf16.mxu0 %v2972
  %4332 = vmatpush1.bf16.msra.mxu0 %v2971
  %4333 = vmatprep.subr.bf16.mxu0 %v2974
  %4334 = vmatpush1.bf16.msra.mxu0 %v2973
  %4335 = vmatprep.subr.bf16.mxu0 %v2976
  %4336 = vmatpush1.bf16.msra.mxu0 %v2975
  %4337 = vmatprep.subr.bf16.mxu0 %v2978
  %4338 = vmatpush1.bf16.msra.mxu0 %v2977
  %4339 = vmatprep.subr.bf16.mxu0 %v2980
  %4340 = vmatpush1.bf16.msra.mxu0 %v2979
  %4341 = vmatprep.subr.bf16.mxu0 %v2982
  %4342 = vmatpush1.bf16.msra.mxu0 %v2981
  %4343 = vmatprep.subr.bf16.mxu0 %v2984
  %4344 = vmatpush1.bf16.msra.mxu0 %v2983
  %4345 = vmatprep.mubr.bf16.mxu0 %v132
  %4346 = vmatmul.mubr.bf16.gmra.mrb[0].mxu0 %v131
  %v4347 = vpop.f32.mrb[0].mxu0
  %v4348 = vadd.f32 %v4305, %v4347
  %v4349 = vpop.f32.mrb[0].mxu0
  %v4350 = vadd.f32 %v4307, %v4349
  %v4351 = vpop.f32.mrb[0].mxu0
  %v4352 = vadd.f32 %v4309, %v4351
  %v4353 = vpop.f32.mrb[0].mxu0
  %v4354 = vadd.f32 %v4311, %v4353
  %4355 = vdwg.mxu0
  %4356 = vmatprep.subr.bf16.mxu0 %v2986
  %4357 = vmatpush1.bf16.msra.mxu0 %v2985
  %4358 = vmatprep.subr.bf16.mxu0 %v2988
  %4359 = vmatpush1.bf16.msra.mxu0 %v2987
  %4360 = vmatprep.subr.bf16.mxu0 %v2990
  %4361 = vmatpush1.bf16.msra.mxu0 %v2989
  %4362 = vmatprep.subr.bf16.mxu0 %v2992
  %4363 = vmatpush1.bf16.msra.mxu0 %v2991
  %4364 = vmatprep.subr.bf16.mxu0 %v2994
  %4365 = vmatpush1.bf16.msra.mxu0 %v2993
  %4366 = vmatprep.subr.bf16.mxu0 %v2996
  %4367 = vmatpush1.bf16.msra.mxu0 %v2995
  %4368 = vmatprep.subr.bf16.mxu0 %v2998
  %4369 = vmatpush1.bf16.msra.mxu0 %v2997
  %4370 = vmatprep.subr.bf16.mxu0 %v3000
  %4371 = vmatpush1.bf16.msra.mxu0 %v2999
  %4372 = vmatprep.subr.bf16.mxu0 %v3002
  %4373 = vmatpush1.bf16.msra.mxu0 %v3001
  %4374 = vmatprep.subr.bf16.mxu0 %v3004
  %4375 = vmatpush1.bf16.msra.mxu0 %v3003
  %4376 = vmatprep.subr.bf16.mxu0 %v3006
  %4377 = vmatpush1.bf16.msra.mxu0 %v3005
  %4378 = vmatprep.subr.bf16.mxu0 %v3008
  %4379 = vmatpush1.bf16.msra.mxu0 %v3007
  %4380 = vmatprep.subr.bf16.mxu0 %v3010
  %4381 = vmatpush1.bf16.msra.mxu0 %v3009
  %4382 = vmatprep.subr.bf16.mxu0 %v3012
  %4383 = vmatpush1.bf16.msra.mxu0 %v3011
  %4384 = vmatprep.subr.bf16.mxu0 %v3014
  %4385 = vmatpush1.bf16.msra.mxu0 %v3013
  %4386 = vmatprep.subr.bf16.mxu0 %v3016
  %4387 = vmatpush1.bf16.msra.mxu0 %v3015
  %4388 = vmatprep.mubr.bf16.mxu0 %v134
  %4389 = vmatmul.mubr.bf16.gmra.mrb[0].mxu0 %v133
  %v4390 = vpop.f32.mrb[0].mxu0
  %v4391 = vadd.f32 %v4348, %v4390
  %v4392 = vpop.f32.mrb[0].mxu0
  %v4393 = vadd.f32 %v4350, %v4392
  %v4394 = vpop.f32.mrb[0].mxu0
  %v4395 = vadd.f32 %v4352, %v4394
  %v4396 = vpop.f32.mrb[0].mxu0
  %v4397 = vadd.f32 %v4354, %v4396
  %4398 = vdwg.mxu0
  %4399 = vmatprep.subr.bf16.mxu0 %v3018
  %4400 = vmatpush1.bf16.msra.mxu0 %v3017
  %4401 = vmatprep.subr.bf16.mxu0 %v3020
  %4402 = vmatpush1.bf16.msra.mxu0 %v3019
  %4403 = vmatprep.subr.bf16.mxu0 %v3022
  %4404 = vmatpush1.bf16.msra.mxu0 %v3021
  %4405 = vmatprep.subr.bf16.mxu0 %v3024
  %4406 = vmatpush1.bf16.msra.mxu0 %v3023
  %4407 = vmatprep.subr.bf16.mxu0 %v3026
  %4408 = vmatpush1.bf16.msra.mxu0 %v3025
  %4409 = vmatprep.subr.bf16.mxu0 %v3028
  %4410 = vmatpush1.bf16.msra.mxu0 %v3027
  %4411 = vmatprep.subr.bf16.mxu0 %v3030
  %4412 = vmatpush1.bf16.msra.mxu0 %v3029
  %4413 = vmatprep.subr.bf16.mxu0 %v3032
  %4414 = vmatpush1.bf16.msra.mxu0 %v3031
  %4415 = vmatprep.subr.bf16.mxu0 %v3034
  %4416 = vmatpush1.bf16.msra.mxu0 %v3033
  %4417 = vmatprep.subr.bf16.mxu0 %v3036
  %4418 = vmatpush1.bf16.msra.mxu0 %v3035
  %4419 = vmatprep.subr.bf16.mxu0 %v3038
  %4420 = vmatpush1.bf16.msra.mxu0 %v3037
  %4421 = vmatprep.subr.bf16.mxu0 %v3040
  %4422 = vmatpush1.bf16.msra.mxu0 %v3039
  %4423 = vmatprep.subr.bf16.mxu0 %v3042
  %4424 = vmatpush1.bf16.msra.mxu0 %v3041
  %4425 = vmatprep.subr.bf16.mxu0 %v3044
  %4426 = vmatpush1.bf16.msra.mxu0 %v3043
  %4427 = vmatprep.subr.bf16.mxu0 %v3046
  %4428 = vmatpush1.bf16.msra.mxu0 %v3045
  %4429 = vmatprep.subr.bf16.mxu0 %v3048
  %4430 = vmatpush1.bf16.msra.mxu0 %v3047
  %4431 = vmatprep.mubr.bf16.mxu0 %v136
  %4432 = vmatmul.mubr.bf16.gmra.mrb[0].mxu0 %v135
  %v4433 = vpop.f32.mrb[0].mxu0
  %v4434 = vadd.f32 %v4391, %v4433
  %v4435 = vpop.f32.mrb[0].mxu0
  %v4436 = vadd.f32 %v4393, %v4435
  %v4437 = vpop.f32.mrb[0].mxu0
  %v4438 = vadd.f32 %v4395, %v4437
  %v4439 = vpop.f32.mrb[0].mxu0
  %v4440 = vadd.f32 %v4397, %v4439
  %4441 = vdwg.mxu0
  %4442 = vmatprep.subr.bf16.mxu0 %v3050
  %4443 = vmatpush1.bf16.msra.mxu0 %v3049
  %4444 = vmatprep.subr.bf16.mxu0 %v3052
  %4445 = vmatpush1.bf16.msra.mxu0 %v3051
  %4446 = vmatprep.subr.bf16.mxu0 %v3054
  %4447 = vmatpush1.bf16.msra.mxu0 %v3053
  %4448 = vmatprep.subr.bf16.mxu0 %v3056
  %4449 = vmatpush1.bf16.msra.mxu0 %v3055
  %4450 = vmatprep.subr.bf16.mxu0 %v3058
  %4451 = vmatpush1.bf16.msra.mxu0 %v3057
  %4452 = vmatprep.subr.bf16.mxu0 %v3060
  %4453 = vmatpush1.bf16.msra.mxu0 %v3059
  %4454 = vmatprep.subr.bf16.mxu0 %v3062
  %4455 = vmatpush1.bf16.msra.mxu0 %v3061
  %4456 = vmatprep.subr.bf16.mxu0 %v3064
  %4457 = vmatpush1.bf16.msra.mxu0 %v3063
  %4458 = vmatprep.subr.bf16.mxu0 %v3066
  %4459 = vmatpush1.bf16.msra.mxu0 %v3065
  %4460 = vmatprep.subr.bf16.mxu0 %v3068
  %4461 = vmatpush1.bf16.msra.mxu0 %v3067
  %4462 = vmatprep.subr.bf16.mxu0 %v3070
  %4463 = vmatpush1.bf16.msra.mxu0 %v3069
  %4464 = vmatprep.subr.bf16.mxu0 %v3072
  %4465 = vmatpush1.bf16.msra.mxu0 %v3071
  %4466 = vmatprep.subr.bf16.mxu0 %v3074
  %4467 = vmatpush1.bf16.msra.mxu0 %v3073
  %4468 = vmatprep.subr.bf16.mxu0 %v3076
  %4469 = vmatpush1.bf16.msra.mxu0 %v3075
  %4470 = vmatprep.subr.bf16.mxu0 %v3078
  %4471 = vmatpush1.bf16.msra.mxu0 %v3077
  %4472 = vmatprep.subr.bf16.mxu0 %v3080
  %4473 = vmatpush1.bf16.msra.mxu0 %v3079
  %4474 = vmatprep.mubr.bf16.mxu0 %v138
  %4475 = vmatmul.mubr.bf16.gmra.mrb[0].mxu0 %v137
  %v4476 = vpop.f32.mrb[0].mxu0
  %v4477 = vadd.f32 %v4434, %v4476
  %v4478 = vpop.f32.mrb[0].mxu0
  %v4479 = vadd.f32 %v4436, %v4478
  %v4480 = vpop.f32.mrb[0].mxu0
  %v4481 = vadd.f32 %v4438, %v4480
  %v4482 = vpop.f32.mrb[0].mxu0
  %v4483 = vadd.f32 %v4440, %v4482
  %4484 = vdwg.mxu0
  %4485 = vmatprep.subr.bf16.mxu0 %v3082
  %4486 = vmatpush1.bf16.msra.mxu0 %v3081
  %4487 = vmatprep.subr.bf16.mxu0 %v3084
  %4488 = vmatpush1.bf16.msra.mxu0 %v3083
  %4489 = vmatprep.subr.bf16.mxu0 %v3086
  %4490 = vmatpush1.bf16.msra.mxu0 %v3085
  %4491 = vmatprep.subr.bf16.mxu0 %v3088
  %4492 = vmatpush1.bf16.msra.mxu0 %v3087
  %4493 = vmatprep.subr.bf16.mxu0 %v3090
  %4494 = vmatpush1.bf16.msra.mxu0 %v3089
  %4495 = vmatprep.subr.bf16.mxu0 %v3092
  %4496 = vmatpush1.bf16.msra.mxu0 %v3091
  %4497 = vmatprep.subr.bf16.mxu0 %v3094
  %4498 = vmatpush1.bf16.msra.mxu0 %v3093
  %4499 = vmatprep.subr.bf16.mxu0 %v3096
  %4500 = vmatpush1.bf16.msra.mxu0 %v3095
  %4501 = vmatprep.subr.bf16.mxu0 %v3098
  %4502 = vmatpush1.bf16.msra.mxu0 %v3097
  %4503 = vmatprep.subr.bf16.mxu0 %v3100
  %4504 = vmatpush1.bf16.msra.mxu0 %v3099
  %4505 = vmatprep.subr.bf16.mxu0 %v3102
  %4506 = vmatpush1.bf16.msra.mxu0 %v3101
  %4507 = vmatprep.subr.bf16.mxu0 %v3104
  %4508 = vmatpush1.bf16.msra.mxu0 %v3103
  %4509 = vmatprep.subr.bf16.mxu0 %v3106
  %4510 = vmatpush1.bf16.msra.mxu0 %v3105
  %4511 = vmatprep.subr.bf16.mxu0 %v3108
  %4512 = vmatpush1.bf16.msra.mxu0 %v3107
  %4513 = vmatprep.subr.bf16.mxu0 %v3110
  %4514 = vmatpush1.bf16.msra.mxu0 %v3109
  %4515 = vmatprep.subr.bf16.mxu0 %v3112
  %4516 = vmatpush1.bf16.msra.mxu0 %v3111
  %4517 = vmatprep.mubr.bf16.mxu0 %v140
  %4518 = vmatmul.mubr.bf16.gmra.mrb[0].mxu0 %v139
  %v4519 = vpop.f32.mrb[0].mxu0
  %v4520 = vadd.f32 %v4477, %v4519
  %v4521 = vpop.f32.mrb[0].mxu0
  %v4522 = vadd.f32 %v4479, %v4521
  %v4523 = vpop.f32.mrb[0].mxu0
  %v4524 = vadd.f32 %v4481, %v4523
  %v4525 = vpop.f32.mrb[0].mxu0
  %v4526 = vadd.f32 %v4483, %v4525
  %4527 = vdwg.mxu0
  %4528 = vmatprep.subr.bf16.mxu0 %v3114
  %4529 = vmatpush1.bf16.msra.mxu0 %v3113
  %4530 = vmatprep.subr.bf16.mxu0 %v3116
  %4531 = vmatpush1.bf16.msra.mxu0 %v3115
  %4532 = vmatprep.subr.bf16.mxu0 %v3118
  %4533 = vmatpush1.bf16.msra.mxu0 %v3117
  %4534 = vmatprep.subr.bf16.mxu0 %v3120
  %4535 = vmatpush1.bf16.msra.mxu0 %v3119
  %4536 = vmatprep.subr.bf16.mxu0 %v3122
  %4537 = vmatpush1.bf16.msra.mxu0 %v3121
  %4538 = vmatprep.subr.bf16.mxu0 %v3124
  %4539 = vmatpush1.bf16.msra.mxu0 %v3123
  %4540 = vmatprep.subr.bf16.mxu0 %v3126
  %4541 = vmatpush1.bf16.msra.mxu0 %v3125
  %4542 = vmatprep.subr.bf16.mxu0 %v3128
  %4543 = vmatpush1.bf16.msra.mxu0 %v3127
  %4544 = vmatprep.subr.bf16.mxu0 %v3130
  %4545 = vmatpush1.bf16.msra.mxu0 %v3129
  %4546 = vmatprep.subr.bf16.mxu0 %v3132
  %4547 = vmatpush1.bf16.msra.mxu0 %v3131
  %4548 = vmatprep.subr.bf16.mxu0 %v3134
  %4549 = vmatpush1.bf16.msra.mxu0 %v3133
  %4550 = vmatprep.subr.bf16.mxu0 %v3136
  %4551 = vmatpush1.bf16.msra.mxu0 %v3135
  %4552 = vmatprep.subr.bf16.mxu0 %v3138
  %4553 = vmatpush1.bf16.msra.mxu0 %v3137
  %4554 = vmatprep.subr.bf16.mxu0 %v3140
  %4555 = vmatpush1.bf16.msra.mxu0 %v3139
  %4556 = vmatprep.subr.bf16.mxu0 %v3142
  %4557 = vmatpush1.bf16.msra.mxu0 %v3141
  %4558 = vmatprep.subr.bf16.mxu0 %v3144
  %4559 = vmatpush1.bf16.msra.mxu0 %v3143
  %4560 = vmatprep.mubr.bf16.mxu0 %v142
  %4561 = vmatmul.mubr.bf16.gmra.mrb[0].mxu0 %v141
  %v4562 = vpop.f32.mrb[0].mxu0
  %v4563 = vadd.f32 %v4520, %v4562
  %v4564 = vpop.f32.mrb[0].mxu0
  %v4565 = vadd.f32 %v4522, %v4564
  %v4566 = vpop.f32.mrb[0].mxu0
  %v4567 = vadd.f32 %v4524, %v4566
  %v4568 = vpop.f32.mrb[0].mxu0
  %v4569 = vadd.f32 %v4526, %v4568
  %4570 = vdwg.mxu0
  %4571 = vmatprep.subr.bf16.mxu0 %v3146
  %4572 = vmatpush1.bf16.msra.mxu0 %v3145
  %4573 = vmatprep.subr.bf16.mxu0 %v3148
  %4574 = vmatpush1.bf16.msra.mxu0 %v3147
  %4575 = vmatprep.subr.bf16.mxu0 %v3150
  %4576 = vmatpush1.bf16.msra.mxu0 %v3149
  %4577 = vmatprep.subr.bf16.mxu0 %v3152
  %4578 = vmatpush1.bf16.msra.mxu0 %v3151
  %4579 = vmatprep.subr.bf16.mxu0 %v3154
  %4580 = vmatpush1.bf16.msra.mxu0 %v3153
  %4581 = vmatprep.subr.bf16.mxu0 %v3156
  %4582 = vmatpush1.bf16.msra.mxu0 %v3155
  %4583 = vmatprep.subr.bf16.mxu0 %v3158
  %4584 = vmatpush1.bf16.msra.mxu0 %v3157
  %4585 = vmatprep.subr.bf16.mxu0 %v3160
  %4586 = vmatpush1.bf16.msra.mxu0 %v3159
  %4587 = vmatprep.subr.bf16.mxu0 %v3162
  %4588 = vmatpush1.bf16.msra.mxu0 %v3161
  %4589 = vmatprep.subr.bf16.mxu0 %v3164
  %4590 = vmatpush1.bf16.msra.mxu0 %v3163
  %4591 = vmatprep.subr.bf16.mxu0 %v3166
  %4592 = vmatpush1.bf16.msra.mxu0 %v3165
  %4593 = vmatprep.subr.bf16.mxu0 %v3168
  %4594 = vmatpush1.bf16.msra.mxu0 %v3167
  %4595 = vmatprep.subr.bf16.mxu0 %v3170
  %4596 = vmatpush1.bf16.msra.mxu0 %v3169
  %4597 = vmatprep.subr.bf16.mxu0 %v3172
  %4598 = vmatpush1.bf16.msra.mxu0 %v3171
  %4599 = vmatprep.subr.bf16.mxu0 %v3174
  %4600 = vmatpush1.bf16.msra.mxu0 %v3173
  %4601 = vmatprep.subr.bf16.mxu0 %v3176
  %4602 = vmatpush1.bf16.msra.mxu0 %v3175
  %4603 = vmatprep.mubr.bf16.mxu0 %v144
  %4604 = vmatmul.mubr.bf16.gmra.mrb[0].mxu0 %v143
  %v4605 = vpop.f32.mrb[0].mxu0
  %v4606 = vadd.f32 %v4563, %v4605
  %v4607 = vpop.f32.mrb[0].mxu0
  %v4608 = vadd.f32 %v4565, %v4607
  %v4609 = vpop.f32.mrb[0].mxu0
  %v4610 = vadd.f32 %v4567, %v4609
  %v4611 = vpop.f32.mrb[0].mxu0
  %v4612 = vadd.f32 %v4569, %v4611
  %4613 = vdwg.mxu0
  %4614 = vmatprep.subr.bf16.mxu0 %v3178
  %4615 = vmatpush1.bf16.msra.mxu0 %v3177
  %4616 = vmatprep.subr.bf16.mxu0 %v3180
  %4617 = vmatpush1.bf16.msra.mxu0 %v3179
  %4618 = vmatprep.subr.bf16.mxu0 %v3182
  %4619 = vmatpush1.bf16.msra.mxu0 %v3181
  %4620 = vmatprep.subr.bf16.mxu0 %v3184
  %4621 = vmatpush1.bf16.msra.mxu0 %v3183
  %4622 = vmatprep.subr.bf16.mxu0 %v3186
  %4623 = vmatpush1.bf16.msra.mxu0 %v3185
  %4624 = vmatprep.subr.bf16.mxu0 %v3188
  %4625 = vmatpush1.bf16.msra.mxu0 %v3187
  %4626 = vmatprep.subr.bf16.mxu0 %v3190
  %4627 = vmatpush1.bf16.msra.mxu0 %v3189
  %4628 = vmatprep.subr.bf16.mxu0 %v3192
  %4629 = vmatpush1.bf16.msra.mxu0 %v3191
  %4630 = vmatprep.subr.bf16.mxu0 %v3194
  %4631 = vmatpush1.bf16.msra.mxu0 %v3193
  %4632 = vmatprep.subr.bf16.mxu0 %v3196
  %4633 = vmatpush1.bf16.msra.mxu0 %v3195
  %4634 = vmatprep.subr.bf16.mxu0 %v3198
  %4635 = vmatpush1.bf16.msra.mxu0 %v3197
  %4636 = vmatprep.subr.bf16.mxu0 %v3200
  %4637 = vmatpush1.bf16.msra.mxu0 %v3199
  %4638 = vmatprep.subr.bf16.mxu0 %v3202
  %4639 = vmatpush1.bf16.msra.mxu0 %v3201
  %4640 = vmatprep.subr.bf16.mxu0 %v3204
  %4641 = vmatpush1.bf16.msra.mxu0 %v3203
  %4642 = vmatprep.subr.bf16.mxu0 %v3206
  %4643 = vmatpush1.bf16.msra.mxu0 %v3205
  %4644 = vmatprep.subr.bf16.mxu0 %v3208
  %4645 = vmatpush1.bf16.msra.mxu0 %v3207
  %4646 = vmatprep.mubr.bf16.mxu0 %v146
  %4647 = vmatmul.mubr.bf16.gmra.mrb[0].mxu0 %v145
  %v4648 = vpop.f32.mrb[0].mxu0
  %v4649 = vadd.f32 %v4606, %v4648
  %v4650 = vpop.f32.mrb[0].mxu0
  %v4651 = vadd.f32 %v4608, %v4650
  %v4652 = vpop.f32.mrb[0].mxu0
  %v4653 = vadd.f32 %v4610, %v4652
  %v4654 = vpop.f32.mrb[0].mxu0
  %v4655 = vadd.f32 %v4612, %v4654
  %4656 = vdwg.mxu0
  %4657 = vmatprep.subr.bf16.mxu0 %v3210
  %4658 = vmatpush1.bf16.msra.mxu0 %v3209
  %4659 = vmatprep.subr.bf16.mxu0 %v3212
  %4660 = vmatpush1.bf16.msra.mxu0 %v3211
  %4661 = vmatprep.subr.bf16.mxu0 %v3214
  %4662 = vmatpush1.bf16.msra.mxu0 %v3213
  %4663 = vmatprep.subr.bf16.mxu0 %v3216
  %4664 = vmatpush1.bf16.msra.mxu0 %v3215
  %4665 = vmatprep.subr.bf16.mxu0 %v3218
  %4666 = vmatpush1.bf16.msra.mxu0 %v3217
  %4667 = vmatprep.subr.bf16.mxu0 %v3220
  %4668 = vmatpush1.bf16.msra.mxu0 %v3219
  %4669 = vmatprep.subr.bf16.mxu0 %v3222
  %4670 = vmatpush1.bf16.msra.mxu0 %v3221
  %4671 = vmatprep.subr.bf16.mxu0 %v3224
  %4672 = vmatpush1.bf16.msra.mxu0 %v3223
  %4673 = vmatprep.subr.bf16.mxu0 %v3226
  %4674 = vmatpush1.bf16.msra.mxu0 %v3225
  %4675 = vmatprep.subr.bf16.mxu0 %v3228
  %4676 = vmatpush1.bf16.msra.mxu0 %v3227
  %4677 = vmatprep.subr.bf16.mxu0 %v3230
  %4678 = vmatpush1.bf16.msra.mxu0 %v3229
  %4679 = vmatprep.subr.bf16.mxu0 %v3232
  %4680 = vmatpush1.bf16.msra.mxu0 %v3231
  %4681 = vmatprep.subr.bf16.mxu0 %v3234
  %4682 = vmatpush1.bf16.msra.mxu0 %v3233
  %4683 = vmatprep.subr.bf16.mxu0 %v3236
  %4684 = vmatpush1.bf16.msra.mxu0 %v3235
  %4685 = vmatprep.subr.bf16.mxu0 %v3238
  %4686 = vmatpush1.bf16.msra.mxu0 %v3237
  %4687 = vmatprep.subr.bf16.mxu0 %v3240
  %4688 = vmatpush1.bf16.msra.mxu0 %v3239
  %4689 = vmatprep.mubr.bf16.mxu0 %v148
  %4690 = vmatmul.mubr.bf16.gmra.mrb[0].mxu0 %v147
  %v4691 = vpop.f32.mrb[0].mxu0
  %v4692 = vadd.f32 %v4649, %v4691
  %v4693 = vpop.f32.mrb[0].mxu0
  %v4694 = vadd.f32 %v4651, %v4693
  %v4695 = vpop.f32.mrb[0].mxu0
  %v4696 = vadd.f32 %v4653, %v4695
  %v4697 = vpop.f32.mrb[0].mxu0
  %v4698 = vadd.f32 %v4655, %v4697
  %4699 = vdwg.mxu0
  %4700 = vmatprep.subr.bf16.mxu0 %v3242
  %4701 = vmatpush1.bf16.msra.mxu0 %v3241
  %4702 = vmatprep.subr.bf16.mxu0 %v3244
  %4703 = vmatpush1.bf16.msra.mxu0 %v3243
  %4704 = vmatprep.subr.bf16.mxu0 %v3246
  %4705 = vmatpush1.bf16.msra.mxu0 %v3245
  %4706 = vmatprep.subr.bf16.mxu0 %v3248
  %4707 = vmatpush1.bf16.msra.mxu0 %v3247
  %4708 = vmatprep.subr.bf16.mxu0 %v3250
  %4709 = vmatpush1.bf16.msra.mxu0 %v3249
  %4710 = vmatprep.subr.bf16.mxu0 %v3252
  %4711 = vmatpush1.bf16.msra.mxu0 %v3251
  %4712 = vmatprep.subr.bf16.mxu0 %v3254
  %4713 = vmatpush1.bf16.msra.mxu0 %v3253
  %4714 = vmatprep.subr.bf16.mxu0 %v3256
  %4715 = vmatpush1.bf16.msra.mxu0 %v3255
  %4716 = vmatprep.subr.bf16.mxu0 %v3258
  %4717 = vmatpush1.bf16.msra.mxu0 %v3257
  %4718 = vmatprep.subr.bf16.mxu0 %v3260
  %4719 = vmatpush1.bf16.msra.mxu0 %v3259
  %4720 = vmatprep.subr.bf16.mxu0 %v3262
  %4721 = vmatpush1.bf16.msra.mxu0 %v3261
  %4722 = vmatprep.subr.bf16.mxu0 %v3264
  %4723 = vmatpush1.bf16.msra.mxu0 %v3263
  %4724 = vmatprep.subr.bf16.mxu0 %v3266
  %4725 = vmatpush1.bf16.msra.mxu0 %v3265
  %4726 = vmatprep.subr.bf16.mxu0 %v3268
  %4727 = vmatpush1.bf16.msra.mxu0 %v3267
  %4728 = vmatprep.subr.bf16.mxu0 %v3270
  %4729 = vmatpush1.bf16.msra.mxu0 %v3269
  %4730 = vmatprep.subr.bf16.mxu0 %v3272
  %4731 = vmatpush1.bf16.msra.mxu0 %v3271
  %4732 = vmatprep.mubr.bf16.mxu0 %v150
  %4733 = vmatmul.mubr.bf16.gmra.mrb[0].mxu0 %v149
  %v4734 = vpop.f32.mrb[0].mxu0
  %v4735 = vadd.f32 %v4692, %v4734
  %v4736 = vpop.f32.mrb[0].mxu0
  %v4737 = vadd.f32 %v4694, %v4736
  %v4738 = vpop.f32.mrb[0].mxu0
  %v4739 = vadd.f32 %v4696, %v4738
  %v4740 = vpop.f32.mrb[0].mxu0
  %v4741 = vadd.f32 %v4698, %v4740
  %4742 = vdwg.mxu0
  %4743 = vmatprep.subr.bf16.mxu0 %v3274
  %4744 = vmatpush1.bf16.msra.mxu0 %v3273
  %4745 = vmatprep.subr.bf16.mxu0 %v3276
  %4746 = vmatpush1.bf16.msra.mxu0 %v3275
  %4747 = vmatprep.subr.bf16.mxu0 %v3278
  %4748 = vmatpush1.bf16.msra.mxu0 %v3277
  %4749 = vmatprep.subr.bf16.mxu0 %v3280
  %4750 = vmatpush1.bf16.msra.mxu0 %v3279
  %4751 = vmatprep.subr.bf16.mxu0 %v3282
  %4752 = vmatpush1.bf16.msra.mxu0 %v3281
  %4753 = vmatprep.subr.bf16.mxu0 %v3284
  %4754 = vmatpush1.bf16.msra.mxu0 %v3283
  %4755 = vmatprep.subr.bf16.mxu0 %v3286
  %4756 = vmatpush1.bf16.msra.mxu0 %v3285
  %4757 = vmatprep.subr.bf16.mxu0 %v3288
  %4758 = vmatpush1.bf16.msra.mxu0 %v3287
  %4759 = vmatprep.subr.bf16.mxu0 %v3924
  %4760 = vmatpush1.bf16.msra.mxu0 %v3921
  %4761 = vmatprep.subr.bf16.mxu0 0
  %4762 = vmatpush1.bf16.msra.mxu0 0
  %4763 = vmatprep.subr.bf16.mxu0 0
  %4764 = vmatpush1.bf16.msra.mxu0 0
  %4765 = vmatprep.subr.bf16.mxu0 0
  %4766 = vmatpush1.bf16.msra.mxu0 0
  %4767 = vmatprep.subr.bf16.mxu0 0
  %4768 = vmatpush1.bf16.msra.mxu0 0
  %4769 = vmatprep.subr.bf16.mxu0 0
  %4770 = vmatpush1.bf16.msra.mxu0 0
  %4771 = vmatprep.subr.bf16.mxu0 0
  %4772 = vmatpush1.bf16.msra.mxu0 0
  %4773 = vmatprep.subr.bf16.mxu0 0
  %4774 = vmatpush1.bf16.msra.mxu0 0
  %4775 = vmatprep.mubr.bf16.mxu0 %v3917
  %4776 = vmatmul.mubr.bf16.gmra.mrb[0].mxu0 %v151
  %v4777 = vpop.f32.mrb[0].mxu0
  %v4778 = vadd.f32 %v4735, %v4777
  %v4779 = vpop.f32.mrb[0].mxu0
  %v4780 = vadd.f32 %v4737, %v4779
  %v4781 = vpop.f32.mrb[0].mxu0
  %v4782 = vadd.f32 %v4739, %v4781
  %v4783 = vpop.f32.mrb[0].mxu0
  %v4784 = vadd.f32 %v4741, %v4783
  %4785 = vdwg.mxu0
  %v4786 = vmax.f32 %v4778, 0.0
  %v4787 = vmax.f32 %v4780, 0.0
  %v4788 = vmax.f32 %v4782, 0.0
  %v4789 = vmax.f32 %v4784, 0.0
  %v4790 = vpack.c.bf16 %v4788, %v4786
  %v4791 = vpack.c.bf16 %v4789, %v4787
  %v4792 = vld [vmem:[%s3] sm:$0xf]
  %v4793 = vld [vmem:[%s3 + $0x4] sm:$0xf]
  %v4794 = vld [vmem:[%s3 + $0x8] sm:$0xf]
  %v4795 = vld [vmem:[%s3 + $0xc] sm:$0xf]
  %v4796 = vld [vmem:[%s3 + $0x10] sm:$0xf]
  %v4797 = vld [vmem:[%s3 + $0x14] sm:$0xf]
  %v4798 = vld [vmem:[%s3 + $0x18] sm:$0xf]
  %v4799 = vld [vmem:[%s3 + $0x1c] sm:$0xf]
  %v4800 = vld [vmem:[%s3 + $0x20] sm:$0xf]
  %v4801 = vld [vmem:[%s3 + $0x24] sm:$0xf]
  %v4802 = vld [vmem:[%s3 + $0x28] sm:$0xf]
  %v4803 = vld [vmem:[%s3 + $0x2c] sm:$0xf]
  %v4804 = vld [vmem:[%s3 + $0x30] sm:$0xf]
  %v4805 = vld [vmem:[%s3 + $0x34] sm:$0xf]
  %v4806 = vld [vmem:[%s3 + $0x38] sm:$0xf]
  %v4807 = vld [vmem:[%s3 + $0x3c] sm:$0xf]
  %v4808 = vld [vmem:[%s3 + $0x40] sm:$0xf]
  %v4809 = vld [vmem:[%s3 + $0x44] sm:$0xf]
  %v4810 = vld [vmem:[%s3 + $0x48] sm:$0xf]
  %v4811 = vld [vmem:[%s3 + $0x4c] sm:$0xf]
  %v4812 = vld [vmem:[%s3 + $0x50] sm:$0xf]
  %v4813 = vld [vmem:[%s3 + $0x54] sm:$0xf]
  %v4814 = vld [vmem:[%s3 + $0x58] sm:$0xf]
  %v4815 = vld [vmem:[%s3 + $0x5c] sm:$0xf]
  %v4816 = vld [vmem:[%s3 + $0x60] sm:$0xf]
  %v4817 = vld [vmem:[%s3 + $0x64] sm:$0xf]
  %v4818 = vld [vmem:[%s3 + $0x68] sm:$0xf]
  %v4819 = vld [vmem:[%s3 + $0x6c] sm:$0xf]
  %v4820 = vld [vmem:[%s3 + $0x70] sm:$0xf]
  %v4821 = vld [vmem:[%s3 + $0x74] sm:$0xf]
  %v4822 = vld [vmem:[%s3 + $0x78] sm:$0xf]
  %v4823 = vld [vmem:[%s3 + $0x7c] sm:$0xf]
  %v4824 = vld [vmem:[%s4] sm:$0x1]
  %v4826 = vlaneseq
  %v4827 = vshrl.u32 %v4826, 7
  %v4828 = vsub.s32 0, %v4827
  %v4829 = vrot.slane %v4824, %v4828
  %v4863 = vunpack.c.l.b16 %v4792
  %v4864 = vunpack.c.l.b16 %v4793
  %v4865 = vunpack.c.l.b16 %v4794
  %v4866 = vunpack.c.l.b16 %v4795
  %v4867 = vunpack.c.l.b16 %v4796
  %v4868 = vunpack.c.l.b16 %v4797
  %v4869 = vunpack.c.l.b16 %v4798
  %v4870 = vunpack.c.l.b16 %v4799
  %v4871 = vunpack.c.l.b16 %v4800
  %v4872 = vunpack.c.l.b16 %v4801
  %v4873 = vunpack.c.l.b16 %v4802
  %v4874 = vunpack.c.l.b16 %v4803
  %v4875 = vunpack.c.l.b16 %v4804
  %v4876 = vunpack.c.l.b16 %v4805
  %v4877 = vunpack.c.l.b16 %v4806
  %v4878 = vunpack.c.l.b16 %v4807
  %v4879 = vunpack.c.l.b16 %v4808
  %v4880 = vunpack.c.l.b16 %v4809
  %v4881 = vunpack.c.l.b16 %v4810
  %v4882 = vunpack.c.l.b16 %v4811
  %v4883 = vunpack.c.l.b16 %v4812
  %v4884 = vunpack.c.l.b16 %v4813
  %v4885 = vunpack.c.l.b16 %v4814
  %v4886 = vunpack.c.l.b16 %v4815
  %v4887 = vunpack.c.l.b16 %v4816
  %v4888 = vunpack.c.l.b16 %v4817
  %v4889 = vunpack.c.l.b16 %v4818
  %v4890 = vunpack.c.l.b16 %v4819
  %v4891 = vunpack.c.l.b16 %v4820
  %v4892 = vunpack.c.l.b16 %v4821
  %v4893 = vunpack.c.l.b16 %v4822
  %v4894 = vunpack.c.l.b16 %v4823
  %v4895 = vpack.c.b16 %v4864, %v4863
  %v4896 = vpack.c.b16 %v4866, %v4865
  %v4897 = vpack.c.b16 %v4868, %v4867
  %v4898 = vpack.c.b16 %v4870, %v4869
  %v4899 = vpack.c.b16 %v4872, %v4871
  %v4900 = vpack.c.b16 %v4874, %v4873
  %v4901 = vpack.c.b16 %v4876, %v4875
  %v4902 = vpack.c.b16 %v4878, %v4877
  %v4903 = vpack.c.b16 %v4880, %v4879
  %v4904 = vpack.c.b16 %v4882, %v4881
  %v4905 = vpack.c.b16 %v4884, %v4883
  %v4906 = vpack.c.b16 %v4886, %v4885
  %v4907 = vpack.c.b16 %v4888, %v4887
  %v4908 = vpack.c.b16 %v4890, %v4889
  %v4909 = vpack.c.b16 %v4892, %v4891
  %v4910 = vpack.c.b16 %v4894, %v4893
  %4927 = vmatprep.subr.bf16.mxu0 0
  %4928 = vmatpush1.bf16.msra.mxu0 %v4895
  %4929 = vmatprep.subr.bf16.mxu0 0
  %4930 = vmatpush1.bf16.msra.mxu0 %v4896
  %4931 = vmatprep.subr.bf16.mxu0 0
  %4932 = vmatpush1.bf16.msra.mxu0 %v4897
  %4933 = vmatprep.subr.bf16.mxu0 0
  %4934 = vmatpush1.bf16.msra.mxu0 %v4898
  %4935 = vmatprep.subr.bf16.mxu0 0
  %4936 = vmatpush1.bf16.msra.mxu0 %v4899
  %4937 = vmatprep.subr.bf16.mxu0 0
  %4938 = vmatpush1.bf16.msra.mxu0 %v4900
  %4939 = vmatprep.subr.bf16.mxu0 0
  %4940 = vmatpush1.bf16.msra.mxu0 %v4901
  %4941 = vmatprep.subr.bf16.mxu0 0
  %4942 = vmatpush1.bf16.msra.mxu0 %v4902
  %4943 = vmatprep.subr.bf16.mxu0 0
  %4944 = vmatpush1.bf16.msra.mxu0 %v4903
  %4945 = vmatprep.subr.bf16.mxu0 0
  %4946 = vmatpush1.bf16.msra.mxu0 %v4904
  %4947 = vmatprep.subr.bf16.mxu0 0
  %4948 = vmatpush1.bf16.msra.mxu0 %v4905
  %4949 = vmatprep.subr.bf16.mxu0 0
  %4950 = vmatpush1.bf16.msra.mxu0 %v4906
  %4951 = vmatprep.subr.bf16.mxu0 0
  %4952 = vmatpush1.bf16.msra.mxu0 %v4907
  %4953 = vmatprep.subr.bf16.mxu0 0
  %4954 = vmatpush1.bf16.msra.mxu0 %v4908
  %4955 = vmatprep.subr.bf16.mxu0 0
  %4956 = vmatpush1.bf16.msra.mxu0 %v4909
  %4957 = vmatprep.subr.bf16.mxu0 0
  %4958 = vmatpush1.bf16.msra.mxu0 %v4910
  %4959 = vmatprep.mubr.bf16.mxu0 %v4791
  %4960 = vmatmul.mubr.bf16.gmra.mrb[0].mxu0 %v4790
  %v4961 = vpop.f32.mrb[0].mxu0
  %v4962 = vadd.f32 %v4829, %v4961
  %v4963 = vpop.f32.mrb[0].mxu0
  %v4964 = vpop.f32.mrb[0].mxu0
  %v4965 = vadd.f32 %v4829, %v4964
  %v4966 = vpop.f32.mrb[0].mxu0
  %4967 = vdwg.mxu0
  %v4968 = vmax.f32 %v4962, 0.0
  %v4969 = vmax.f32 %v4965, 0.0
  %v4970 = vpack.c.bf16 %v4969, %v4968
  %v4971 = vld [vmem:[%s5] sm:$0xff]
  %v4972 = vld [vmem:[%s5 + $0x8] sm:$0xff]
  %v4973 = vld [vmem:[%s5 + $0x10] sm:$0xff]
  %v4974 = vld [vmem:[%s5 + $0x18] sm:$0xff]
  %v4975 = vld [vmem:[%s5 + $0x20] sm:$0xff]
  %v4976 = vld [vmem:[%s5 + $0x28] sm:$0xff]
  %v4977 = vld [vmem:[%s5 + $0x30] sm:$0xff]
  %v4978 = vld [vmem:[%s5 + $0x38] sm:$0xff]
  %v4979 = vld [vmem:[%s6] sm:$0x3]
  %v4981 = vlaneseq
  %v4982 = vshrl.u32 %v4981, 7
  %v4983 = vsub.s32 0, %v4982
  %v4984 = vrot.slane %v4979, %v4983
  %v4985 = vlaneseq
  %v4986 = vshrl.u32 %v4985, 7
  %v4987 = vsub.s32 1, %v4986
  %v4988 = vrot.slane %v4979, %v4987
  %v4999 = vunpack.c.l.b16 %v4971
  %v5000 = vunpack.c.h.b16 %v4971
  %v5001 = vunpack.c.l.b16 %v4972
  %v5002 = vunpack.c.h.b16 %v4972
  %v5003 = vunpack.c.l.b16 %v4973
  %v5004 = vunpack.c.h.b16 %v4973
  %v5005 = vunpack.c.l.b16 %v4974
  %v5006 = vunpack.c.h.b16 %v4974
  %v5007 = vunpack.c.l.b16 %v4975
  %v5008 = vunpack.c.h.b16 %v4975
  %v5009 = vunpack.c.l.b16 %v4976
  %v5010 = vunpack.c.h.b16 %v4976
  %v5011 = vunpack.c.l.b16 %v4977
  %v5012 = vunpack.c.h.b16 %v4977
  %v5013 = vunpack.c.l.b16 %v4978
  %v5014 = vunpack.c.h.b16 %v4978
  %v5015 = vpack.c.b16 %v5001, %v4999
  %v5016 = vpack.c.b16 %v5002, %v5000
  %v5017 = vpack.c.b16 %v5005, %v5003
  %v5018 = vpack.c.b16 %v5006, %v5004
  %v5019 = vpack.c.b16 %v5009, %v5007
  %v5020 = vpack.c.b16 %v5010, %v5008
  %v5021 = vpack.c.b16 %v5013, %v5011
  %v5022 = vpack.c.b16 %v5014, %v5012
  %vm5031 = vcmask 523264
  %v5033 = vsel %vm5031, %v4970, 0
  %5035 = vmatprep.subr.bf16.mxu0 %v5016
  %5036 = vmatpush1.bf16.msra.mxu0 %v5015
  %5037 = vmatprep.subr.bf16.mxu0 %v5018
  %5038 = vmatpush1.bf16.msra.mxu0 %v5017
  %5039 = vmatprep.subr.bf16.mxu0 %v5020
  %5040 = vmatpush1.bf16.msra.mxu0 %v5019
  %5041 = vmatprep.subr.bf16.mxu0 %v5022
  %5042 = vmatpush1.bf16.msra.mxu0 %v5021
  %5043 = vmatprep.subr.bf16.mxu0 0
  %5044 = vmatpush1.bf16.msra.mxu0 0
  %5045 = vmatprep.subr.bf16.mxu0 0
  %5046 = vmatpush1.bf16.msra.mxu0 0
  %5047 = vmatprep.subr.bf16.mxu0 0
  %5048 = vmatpush1.bf16.msra.mxu0 0
  %5049 = vmatprep.subr.bf16.mxu0 0
  %5050 = vmatpush1.bf16.msra.mxu0 0
  %5051 = vmatprep.subr.bf16.mxu0 0
  %5052 = vmatpush1.bf16.msra.mxu0 0
  %5053 = vmatprep.subr.bf16.mxu0 0
  %5054 = vmatpush1.bf16.msra.mxu0 0
  %5055 = vmatprep.subr.bf16.mxu0 0
  %5056 = vmatpush1.bf16.msra.mxu0 0
  %5057 = vmatprep.subr.bf16.mxu0 0
  %5058 = vmatpush1.bf16.msra.mxu0 0
  %5059 = vmatprep.subr.bf16.mxu0 0
  %5060 = vmatpush1.bf16.msra.mxu0 0
  %5061 = vmatprep.subr.bf16.mxu0 0
  %5062 = vmatpush1.bf16.msra.mxu0 0
  %5063 = vmatprep.subr.bf16.mxu0 0
  %5064 = vmatpush1.bf16.msra.mxu0 0
  %5065 = vmatprep.subr.bf16.mxu0 0
  %5066 = vmatpush1.bf16.msra.mxu0 0
  %5067 = vmatprep.mubr.bf16.mxu0 0
  %5068 = vmatmul.mubr.bf16.gmra.mrb[0].mxu0 %v5033
  %v5069 = vpop.f32.mrb[0].mxu0
  %v5070 = vadd.f32 %v4984, %v5069
  %v5071 = vpop.f32.mrb[0].mxu0
  %v5072 = vadd.f32 %v4988, %v5071
  %v5073 = vpop.f32.mrb[0].mxu0
  %v5074 = vadd.f32 %v4984, %v5073
  %v5075 = vpop.f32.mrb[0].mxu0
  %v5076 = vadd.f32 %v4988, %v5075
  %5077 = vdwg.mxu0
  %v5078 = vmax.f32 %v5070, 0.0
  %v5079 = vmax.f32 %v5072, 0.0
  %v5080 = vmax.f32 %v5074, 0.0
  %v5081 = vmax.f32 %v5076, 0.0
  %v5082 = vpack.c.bf16 %v5080, %v5078
  %v5083 = vpack.c.bf16 %v5081, %v5079
  %v5084 = vld [vmem:[%s7] sm:$0xff]
  %v5085 = vld [vmem:[%s7 + $0x8] sm:$0xff]
  %v5086 = vld [vmem:[%s7 + $0x10] sm:$0xff]
  %v5087 = vld [vmem:[%s7 + $0x18] sm:$0xff]
  %v5088 = vld [vmem:[%s7 + $0x20] sm:$0xff]
  %v5089 = vld [vmem:[%s7 + $0x28] sm:$0xff]
  %v5090 = vld [vmem:[%s7 + $0x30] sm:$0xff]
  %v5091 = vld [vmem:[%s7 + $0x38] sm:$0xff]
  %v5092 = vld [vmem:[%s7 + $0x40] sm:$0xff]
  %v5093 = vld [vmem:[%s7 + $0x48] sm:$0xff]
  %v5094 = vld [vmem:[%s7 + $0x50] sm:$0xff]
  %v5095 = vld [vmem:[%s7 + $0x58] sm:$0xff]
  %v5096 = vld [vmem:[%s7 + $0x60] sm:$0xff]
  %v5097 = vld [vmem:[%s7 + $0x68] sm:$0xff]
  %v5098 = vld [vmem:[%s7 + $0x70] sm:$0xff]
  %v5099 = vld [vmem:[%s7 + $0x78] sm:$0xff]
  %v5100 = vld [vmem:[%s7 + $0x80] sm:$0xff]
  %v5101 = vld [vmem:[%s7 + $0x88] sm:$0xff]
  %v5102 = vld [vmem:[%s7 + $0x90] sm:$0xff]
  %v5103 = vld [vmem:[%s7 + $0x98] sm:$0xff]
  %v5104 = vld [vmem:[%s7 + $0xa0] sm:$0xff]
  %v5105 = vld [vmem:[%s7 + $0xa8] sm:$0xff]
  %v5106 = vld [vmem:[%s7 + $0xb0] sm:$0xff]
  %v5107 = vld [vmem:[%s7 + $0xb8] sm:$0xff]
  %v5108 = vld [vmem:[%s7 + $0xc0] sm:$0xff]
  %v5109 = vld [vmem:[%s7 + $0xc8] sm:$0xff]
  %v5110 = vld [vmem:[%s7 + $0xd0] sm:$0xff]
  %v5111 = vld [vmem:[%s7 + $0xd8] sm:$0xff]
  %v5112 = vld [vmem:[%s7 + $0xe0] sm:$0xff]
  %v5113 = vld [vmem:[%s7 + $0xe8] sm:$0xff]
  %v5114 = vld [vmem:[%s7 + $0xf0] sm:$0xff]
  %v5115 = vld [vmem:[%s7 + $0xf8] sm:$0xff]
  %v5116 = vld [vmem:[%s7 + $0x100] sm:$0xff]
  %v5117 = vld [vmem:[%s7 + $0x108] sm:$0xff]
  %v5118 = vld [vmem:[%s7 + $0x110] sm:$0xff]
  %v5119 = vld [vmem:[%s7 + $0x118] sm:$0xff]
  %v5120 = vld [vmem:[%s7 + $0x120] sm:$0xff]
  %v5121 = vld [vmem:[%s7 + $0x128] sm:$0xff]
  %v5122 = vld [vmem:[%s7 + $0x130] sm:$0xff]
  %v5123 = vld [vmem:[%s7 + $0x138] sm:$0xff]
  %v5124 = vld [vmem:[%s7 + $0x140] sm:$0xff]
  %v5125 = vld [vmem:[%s7 + $0x148] sm:$0xff]
  %v5126 = vld [vmem:[%s7 + $0x150] sm:$0xff]
  %v5127 = vld [vmem:[%s7 + $0x158] sm:$0xff]
  %v5128 = vld [vmem:[%s7 + $0x160] sm:$0xff]
  %v5129 = vld [vmem:[%s7 + $0x168] sm:$0xff]
  %v5130 = vld [vmem:[%s7 + $0x170] sm:$0xff]
  %v5131 = vld [vmem:[%s7 + $0x178] sm:$0xff]
  %v5132 = vld [vmem:[%s7 + $0x180] sm:$0xff]
  %v5133 = vld [vmem:[%s7 + $0x188] sm:$0xff]
  %v5134 = vld [vmem:[%s7 + $0x190] sm:$0xff]
  %v5135 = vld [vmem:[%s7 + $0x198] sm:$0xff]
  %v5136 = vld [vmem:[%s7 + $0x1a0] sm:$0xff]
  %v5137 = vld [vmem:[%s7 + $0x1a8] sm:$0xff]
  %v5138 = vld [vmem:[%s7 + $0x1b0] sm:$0xff]
  %v5139 = vld [vmem:[%s7 + $0x1b8] sm:$0xff]
  %v5140 = vld [vmem:[%s7 + $0x1c0] sm:$0xff]
  %v5141 = vld [vmem:[%s7 + $0x1c8] sm:$0xff]
  %v5142 = vld [vmem:[%s7 + $0x1d0] sm:$0xff]
  %v5143 = vld [vmem:[%s7 + $0x1d8] sm:$0xff]
  %v5144 = vld [vmem:[%s7 + $0x1e0] sm:$0xff]
  %v5145 = vld [vmem:[%s7 + $0x1e8] sm:$0xff]
  %v5146 = vld [vmem:[%s7 + $0x1f0] sm:$0xff]
  %v5147 = vld [vmem:[%s7 + $0x1f8] sm:$0xff]
  %v5148 = vld [vmem:[%s7 + $0x200] sm:$0xff]
  %v5149 = vld [vmem:[%s7 + $0x208] sm:$0xff]
  %v5150 = vld [vmem:[%s7 + $0x210] sm:$0xff]
  %v5151 = vld [vmem:[%s7 + $0x218] sm:$0xff]
  %v5152 = vld [vmem:[%s7 + $0x220] sm:$0xff]
  %v5153 = vld [vmem:[%s7 + $0x228] sm:$0xff]
  %v5154 = vld [vmem:[%s7 + $0x230] sm:$0xff]
  %v5155 = vld [vmem:[%s7 + $0x238] sm:$0xff]
  %v5156 = vld [vmem:[%s7 + $0x240] sm:$0xff]
  %v5157 = vld [vmem:[%s7 + $0x248] sm:$0xff]
  %v5158 = vld [vmem:[%s7 + $0x250] sm:$0xff]
  %v5159 = vld [vmem:[%s7 + $0x258] sm:$0xff]
  %v5160 = vld [vmem:[%s7 + $0x260] sm:$0xff]
  %v5161 = vld [vmem:[%s7 + $0x268] sm:$0xff]
  %v5162 = vld [vmem:[%s7 + $0x270] sm:$0xff]
  %v5163 = vld [vmem:[%s7 + $0x278] sm:$0xff]
  %v5164 = vld [vmem:[%s7 + $0x280] sm:$0xff]
  %v5165 = vld [vmem:[%s7 + $0x288] sm:$0xff]
  %v5166 = vld [vmem:[%s7 + $0x290] sm:$0xff]
  %v5167 = vld [vmem:[%s7 + $0x298] sm:$0xff]
  %v5168 = vld [vmem:[%s7 + $0x2a0] sm:$0xff]
  %v5169 = vld [vmem:[%s7 + $0x2a8] sm:$0xff]
  %v5170 = vld [vmem:[%s7 + $0x2b0] sm:$0xff]
  %v5171 = vld [vmem:[%s7 + $0x2b8] sm:$0xff]
  %v5172 = vld [vmem:[%s7 + $0x2c0] sm:$0xff]
  %v5173 = vld [vmem:[%s7 + $0x2c8] sm:$0xff]
  %v5174 = vld [vmem:[%s7 + $0x2d0] sm:$0xff]
  %v5175 = vld [vmem:[%s7 + $0x2d8] sm:$0xff]
  %v5176 = vld [vmem:[%s7 + $0x2e0] sm:$0xff]
  %v5177 = vld [vmem:[%s7 + $0x2e8] sm:$0xff]
  %v5178 = vld [vmem:[%s7 + $0x2f0] sm:$0xff]
  %v5179 = vld [vmem:[%s7 + $0x2f8] sm:$0xff]
  %v5180 = vld [vmem:[%s7 + $0x300] sm:$0xff]
  %v5181 = vld [vmem:[%s7 + $0x308] sm:$0xff]
  %v5182 = vld [vmem:[%s7 + $0x310] sm:$0xff]
  %v5183 = vld [vmem:[%s7 + $0x318] sm:$0xff]
  %v5184 = vld [vmem:[%s7 + $0x320] sm:$0xff]
  %v5185 = vld [vmem:[%s7 + $0x328] sm:$0xff]
  %v5186 = vld [vmem:[%s7 + $0x330] sm:$0xff]
  %v5187 = vld [vmem:[%s7 + $0x338] sm:$0xff]
  %v5188 = vld [vmem:[%s7 + $0x340] sm:$0xff]
  %v5189 = vld [vmem:[%s7 + $0x348] sm:$0xff]
  %v5190 = vld [vmem:[%s7 + $0x350] sm:$0xff]
  %v5191 = vld [vmem:[%s7 + $0x358] sm:$0xff]
  %v5192 = vld [vmem:[%s7 + $0x360] sm:$0xff]
  %v5193 = vld [vmem:[%s7 + $0x368] sm:$0xff]
  %v5194 = vld [vmem:[%s7 + $0x370] sm:$0xff]
  %v5195 = vld [vmem:[%s7 + $0x378] sm:$0xff]
  %v5196 = vld [vmem:[%s7 + $0x380] sm:$0xff]
  %v5197 = vld [vmem:[%s7 + $0x388] sm:$0xff]
  %v5198 = vld [vmem:[%s7 + $0x390] sm:$0xff]
  %v5199 = vld [vmem:[%s7 + $0x398] sm:$0xff]
  %v5200 = vld [vmem:[%s7 + $0x3a0] sm:$0xff]
  %v5201 = vld [vmem:[%s7 + $0x3a8] sm:$0xff]
  %v5202 = vld [vmem:[%s7 + $0x3b0] sm:$0xff]
  %v5203 = vld [vmem:[%s7 + $0x3b8] sm:$0xff]
  %v5204 = vld [vmem:[%s7 + $0x3c0] sm:$0xff]
  %v5205 = vld [vmem:[%s7 + $0x3c8] sm:$0xff]
  %v5206 = vld [vmem:[%s7 + $0x3d0] sm:$0xff]
  %v5207 = vld [vmem:[%s7 + $0x3d8] sm:$0xff]
  %v5208 = vld [vmem:[%s7 + $0x3e0] sm:$0xff]
  %v5209 = vld [vmem:[%s7 + $0x3e8] sm:$0xff]
  %v5210 = vld [vmem:[%s7 + $0x3f0] sm:$0xff]
  %v5211 = vld [vmem:[%s7 + $0x3f8] sm:$0xff]
  %v5212 = vld [vmem:[%s7 + $0x400] sm:$0xff]
  %v5213 = vld [vmem:[%s7 + $0x408] sm:$0xff]
  %v5214 = vld [vmem:[%s7 + $0x410] sm:$0xff]
  %v5215 = vld [vmem:[%s7 + $0x418] sm:$0xff]
  %v5216 = vld [vmem:[%s7 + $0x420] sm:$0xff]
  %v5217 = vld [vmem:[%s7 + $0x428] sm:$0xff]
  %v5218 = vld [vmem:[%s7 + $0x430] sm:$0xff]
  %v5219 = vld [vmem:[%s7 + $0x438] sm:$0xff]
  %v5220 = vld [vmem:[%s7 + $0x440] sm:$0xff]
  %v5221 = vld [vmem:[%s7 + $0x448] sm:$0xff]
  %v5222 = vld [vmem:[%s7 + $0x450] sm:$0xff]
  %v5223 = vld [vmem:[%s7 + $0x458] sm:$0xff]
  %v5224 = vld [vmem:[%s7 + $0x460] sm:$0xff]
  %v5225 = vld [vmem:[%s7 + $0x468] sm:$0xff]
  %v5226 = vld [vmem:[%s7 + $0x470] sm:$0xff]
  %v5227 = vld [vmem:[%s7 + $0x478] sm:$0xff]
  %v5228 = vld [vmem:[%s7 + $0x480] sm:$0xff]
  %v5229 = vld [vmem:[%s7 + $0x488] sm:$0xff]
  %v5230 = vld [vmem:[%s7 + $0x490] sm:$0xff]
  %v5231 = vld [vmem:[%s7 + $0x498] sm:$0xff]
  %v5232 = vld [vmem:[%s7 + $0x4a0] sm:$0xff]
  %v5233 = vld [vmem:[%s7 + $0x4a8] sm:$0xff]
  %v5234 = vld [vmem:[%s7 + $0x4b0] sm:$0xff]
  %v5235 = vld [vmem:[%s7 + $0x4b8] sm:$0xff]
  %v5236 = vld [vmem:[%s7 + $0x4c0] sm:$0xff]
  %v5237 = vld [vmem:[%s7 + $0x4c8] sm:$0xff]
  %v5238 = vld [vmem:[%s7 + $0x4d0] sm:$0xff]
  %v5239 = vld [vmem:[%s7 + $0x4d8] sm:$0xff]
  %v5240 = vld [vmem:[%s7 + $0x4e0] sm:$0xff]
  %v5241 = vld [vmem:[%s7 + $0x4e8] sm:$0xff]
  %v5242 = vld [vmem:[%s7 + $0x4f0] sm:$0xff]
  %v5243 = vld [vmem:[%s7 + $0x4f8] sm:$0xff]
  %v5244 = vld [vmem:[%s7 + $0x500] sm:$0xff]
  %v5245 = vld [vmem:[%s7 + $0x508] sm:$0xff]
  %v5246 = vld [vmem:[%s7 + $0x510] sm:$0xff]
  %v5247 = vld [vmem:[%s7 + $0x518] sm:$0xff]
  %v5248 = vld [vmem:[%s7 + $0x520] sm:$0xff]
  %v5249 = vld [vmem:[%s7 + $0x528] sm:$0xff]
  %v5250 = vld [vmem:[%s7 + $0x530] sm:$0xff]
  %v5251 = vld [vmem:[%s7 + $0x538] sm:$0xff]
  %v5252 = vld [vmem:[%s7 + $0x540] sm:$0xff]
  %v5253 = vld [vmem:[%s7 + $0x548] sm:$0xff]
  %v5254 = vld [vmem:[%s7 + $0x550] sm:$0xff]
  %v5255 = vld [vmem:[%s7 + $0x558] sm:$0xff]
  %v5256 = vld [vmem:[%s7 + $0x560] sm:$0xff]
  %v5257 = vld [vmem:[%s7 + $0x568] sm:$0xff]
  %v5258 = vld [vmem:[%s7 + $0x570] sm:$0xff]
  %v5259 = vld [vmem:[%s7 + $0x578] sm:$0xff]
  %v5260 = vld [vmem:[%s7 + $0x580] sm:$0xff]
  %v5261 = vld [vmem:[%s7 + $0x588] sm:$0xff]
  %v5262 = vld [vmem:[%s7 + $0x590] sm:$0xff]
  %v5263 = vld [vmem:[%s7 + $0x598] sm:$0xff]
  %v5264 = vld [vmem:[%s7 + $0x5a0] sm:$0xff]
  %v5265 = vld [vmem:[%s7 + $0x5a8] sm:$0xff]
  %v5266 = vld [vmem:[%s7 + $0x5b0] sm:$0xff]
  %v5267 = vld [vmem:[%s7 + $0x5b8] sm:$0xff]
  %v5268 = vld [vmem:[%s7 + $0x5c0] sm:$0xff]
  %v5269 = vld [vmem:[%s7 + $0x5c8] sm:$0xff]
  %v5270 = vld [vmem:[%s7 + $0x5d0] sm:$0xff]
  %v5271 = vld [vmem:[%s7 + $0x5d8] sm:$0xff]
  %v5272 = vld [vmem:[%s7 + $0x5e0] sm:$0xff]
  %v5273 = vld [vmem:[%s7 + $0x5e8] sm:$0xff]
  %v5274 = vld [vmem:[%s7 + $0x5f0] sm:$0xff]
  %v5275 = vld [vmem:[%s7 + $0x5f8] sm:$0xff]
  %v5276 = vld [vmem:[%s7 + $0x600] sm:$0xff]
  %v5277 = vld [vmem:[%s7 + $0x608] sm:$0xff]
  %v5278 = vld [vmem:[%s7 + $0x610] sm:$0xff]
  %v5279 = vld [vmem:[%s7 + $0x618] sm:$0xff]
  %v5280 = vld [vmem:[%s7 + $0x620] sm:$0xff]
  %v5281 = vld [vmem:[%s7 + $0x628] sm:$0xff]
  %v5282 = vld [vmem:[%s7 + $0x630] sm:$0xff]
  %v5283 = vld [vmem:[%s7 + $0x638] sm:$0xff]
  %v5284 = vld [vmem:[%s7 + $0x640] sm:$0xff]
  %v5285 = vld [vmem:[%s7 + $0x648] sm:$0xff]
  %v5286 = vld [vmem:[%s7 + $0x650] sm:$0xff]
  %v5287 = vld [vmem:[%s7 + $0x658] sm:$0xff]
  %v5288 = vld [vmem:[%s7 + $0x660] sm:$0xff]
  %v5289 = vld [vmem:[%s7 + $0x668] sm:$0xff]
  %v5290 = vld [vmem:[%s7 + $0x670] sm:$0xff]
  %v5291 = vld [vmem:[%s7 + $0x678] sm:$0xff]
  %v5292 = vld [vmem:[%s7 + $0x680] sm:$0xff]
  %v5293 = vld [vmem:[%s7 + $0x688] sm:$0xff]
  %v5294 = vld [vmem:[%s7 + $0x690] sm:$0xff]
  %v5295 = vld [vmem:[%s7 + $0x698] sm:$0xff]
  %v5296 = vld [vmem:[%s7 + $0x6a0] sm:$0xff]
  %v5297 = vld [vmem:[%s7 + $0x6a8] sm:$0xff]
  %v5298 = vld [vmem:[%s7 + $0x6b0] sm:$0xff]
  %v5299 = vld [vmem:[%s7 + $0x6b8] sm:$0xff]
  %v5300 = vld [vmem:[%s7 + $0x6c0] sm:$0xff]
  %v5301 = vld [vmem:[%s7 + $0x6c8] sm:$0xff]
  %v5302 = vld [vmem:[%s7 + $0x6d0] sm:$0xff]
  %v5303 = vld [vmem:[%s7 + $0x6d8] sm:$0xff]
  %v5304 = vld [vmem:[%s7 + $0x6e0] sm:$0xff]
  %v5305 = vld [vmem:[%s7 + $0x6e8] sm:$0xff]
  %v5306 = vld [vmem:[%s7 + $0x6f0] sm:$0xff]
  %v5307 = vld [vmem:[%s7 + $0x6f8] sm:$0xff]
  %v5308 = vld [vmem:[%s7 + $0x700] sm:$0xff]
  %v5309 = vld [vmem:[%s7 + $0x708] sm:$0xff]
  %v5310 = vld [vmem:[%s7 + $0x710] sm:$0xff]
  %v5311 = vld [vmem:[%s7 + $0x718] sm:$0xff]
  %v5312 = vld [vmem:[%s7 + $0x720] sm:$0xff]
  %v5313 = vld [vmem:[%s7 + $0x728] sm:$0xff]
  %v5314 = vld [vmem:[%s7 + $0x730] sm:$0xff]
  %v5315 = vld [vmem:[%s7 + $0x738] sm:$0xff]
  %v5316 = vld [vmem:[%s7 + $0x740] sm:$0xff]
  %v5317 = vld [vmem:[%s7 + $0x748] sm:$0xff]
  %v5318 = vld [vmem:[%s7 + $0x750] sm:$0xff]
  %v5319 = vld [vmem:[%s7 + $0x758] sm:$0xff]
  %v5320 = vld [vmem:[%s7 + $0x760] sm:$0xff]
  %v5321 = vld [vmem:[%s7 + $0x768] sm:$0xff]
  %v5322 = vld [vmem:[%s7 + $0x770] sm:$0xff]
  %v5323 = vld [vmem:[%s7 + $0x778] sm:$0xff]
  %v5324 = vld [vmem:[%s7 + $0x780] sm:$0xff]
  %v5325 = vld [vmem:[%s7 + $0x788] sm:$0xff]
  %v5326 = vld [vmem:[%s7 + $0x790] sm:$0xff]
  %v5327 = vld [vmem:[%s7 + $0x798] sm:$0xff]
  %v5328 = vld [vmem:[%s7 + $0x7a0] sm:$0xff]
  %v5329 = vld [vmem:[%s7 + $0x7a8] sm:$0xff]
  %v5330 = vld [vmem:[%s7 + $0x7b0] sm:$0xff]
  %v5331 = vld [vmem:[%s7 + $0x7b8] sm:$0xff]
  %v5332 = vld [vmem:[%s7 + $0x7c0] sm:$0xff]
  %v5333 = vld [vmem:[%s7 + $0x7c8] sm:$0xff]
  %v5334 = vld [vmem:[%s7 + $0x7d0] sm:$0xff]
  %v5335 = vld [vmem:[%s7 + $0x7d8] sm:$0xff]
  %v5336 = vld [vmem:[%s7 + $0x7e0] sm:$0xff]
  %v5337 = vld [vmem:[%s7 + $0x7e8] sm:$0xff]
  %v5338 = vld [vmem:[%s7 + $0x7f0] sm:$0xff]
  %v5339 = vld [vmem:[%s7 + $0x7f8] sm:$0xff]
  %v5340 = vld [vmem:[%s7 + $0x800] sm:$0xff]
  %v5341 = vld [vmem:[%s7 + $0x808] sm:$0xff]
  %v5342 = vld [vmem:[%s7 + $0x810] sm:$0xff]
  %v5343 = vld [vmem:[%s7 + $0x818] sm:$0xff]
  %v5344 = vld [vmem:[%s7 + $0x820] sm:$0xff]
  %v5345 = vld [vmem:[%s7 + $0x828] sm:$0xff]
  %v5346 = vld [vmem:[%s7 + $0x830] sm:$0xff]
  %v5347 = vld [vmem:[%s7 + $0x838] sm:$0xff]
  %v5348 = vld [vmem:[%s7 + $0x840] sm:$0xff]
  %v5349 = vld [vmem:[%s7 + $0x848] sm:$0xff]
  %v5350 = vld [vmem:[%s7 + $0x850] sm:$0xff]
  %v5351 = vld [vmem:[%s7 + $0x858] sm:$0xff]
  %v5352 = vld [vmem:[%s7 + $0x860] sm:$0xff]
  %v5353 = vld [vmem:[%s7 + $0x868] sm:$0xff]
  %v5354 = vld [vmem:[%s7 + $0x870] sm:$0xff]
  %v5355 = vld [vmem:[%s7 + $0x878] sm:$0xff]
  %v5356 = vld [vmem:[%s7 + $0x880] sm:$0xff]
  %v5357 = vld [vmem:[%s7 + $0x888] sm:$0xff]
  %v5358 = vld [vmem:[%s7 + $0x890] sm:$0xff]
  %v5359 = vld [vmem:[%s7 + $0x898] sm:$0xff]
  %v5360 = vld [vmem:[%s7 + $0x8a0] sm:$0xff]
  %v5361 = vld [vmem:[%s7 + $0x8a8] sm:$0xff]
  %v5362 = vld [vmem:[%s7 + $0x8b0] sm:$0xff]
  %v5363 = vld [vmem:[%s7 + $0x8b8] sm:$0xff]
  %v5364 = vld [vmem:[%s7 + $0x8c0] sm:$0xff]
  %v5365 = vld [vmem:[%s7 + $0x8c8] sm:$0xff]
  %v5366 = vld [vmem:[%s7 + $0x8d0] sm:$0xff]
  %v5367 = vld [vmem:[%s7 + $0x8d8] sm:$0xff]
  %v5368 = vld [vmem:[%s7 + $0x8e0] sm:$0xff]
  %v5369 = vld [vmem:[%s7 + $0x8e8] sm:$0xff]
  %v5370 = vld [vmem:[%s7 + $0x8f0] sm:$0xff]
  %v5371 = vld [vmem:[%s7 + $0x8f8] sm:$0xff]
  %v5372 = vld [vmem:[%s7 + $0x900] sm:$0xff]
  %v5373 = vld [vmem:[%s7 + $0x908] sm:$0xff]
  %v5374 = vld [vmem:[%s7 + $0x910] sm:$0xff]
  %v5375 = vld [vmem:[%s7 + $0x918] sm:$0xff]
  %v5376 = vld [vmem:[%s7 + $0x920] sm:$0xff]
  %v5377 = vld [vmem:[%s7 + $0x928] sm:$0xff]
  %v5378 = vld [vmem:[%s7 + $0x930] sm:$0xff]
  %v5379 = vld [vmem:[%s7 + $0x938] sm:$0xff]
  %v5380 = vld [vmem:[%s7 + $0x940] sm:$0xff]
  %v5381 = vld [vmem:[%s7 + $0x948] sm:$0xff]
  %v5382 = vld [vmem:[%s7 + $0x950] sm:$0xff]
  %v5383 = vld [vmem:[%s7 + $0x958] sm:$0xff]
  %v5384 = vld [vmem:[%s7 + $0x960] sm:$0xff]
  %v5385 = vld [vmem:[%s7 + $0x968] sm:$0xff]
  %v5386 = vld [vmem:[%s7 + $0x970] sm:$0xff]
  %v5387 = vld [vmem:[%s7 + $0x978] sm:$0xff]
  %v5388 = vld [vmem:[%s7 + $0x980] sm:$0xff]
  %v5389 = vld [vmem:[%s7 + $0x988] sm:$0xff]
  %v5390 = vld [vmem:[%s7 + $0x990] sm:$0xff]
  %v5391 = vld [vmem:[%s7 + $0x998] sm:$0xff]
  %v5392 = vld [vmem:[%s7 + $0x9a0] sm:$0xff]
  %v5393 = vld [vmem:[%s7 + $0x9a8] sm:$0xff]
  %v5394 = vld [vmem:[%s7 + $0x9b0] sm:$0xff]
  %v5395 = vld [vmem:[%s7 + $0x9b8] sm:$0xff]
  %v5396 = vld [vmem:[%s7 + $0x9c0] sm:$0xff]
  %v5397 = vld [vmem:[%s7 + $0x9c8] sm:$0xff]
  %v5398 = vld [vmem:[%s7 + $0x9d0] sm:$0xff]
  %v5399 = vld [vmem:[%s7 + $0x9d8] sm:$0xff]
  %v5400 = vld [vmem:[%s7 + $0x9e0] sm:$0xff]
  %v5401 = vld [vmem:[%s7 + $0x9e8] sm:$0xff]
  %v5402 = vld [vmem:[%s7 + $0x9f0] sm:$0xff]
  %v5403 = vld [vmem:[%s7 + $0x9f8] sm:$0xff]
  %v5404 = vld [vmem:[%s7 + $0xa00] sm:$0xff]
  %v5405 = vld [vmem:[%s7 + $0xa08] sm:$0xff]
  %v5406 = vld [vmem:[%s7 + $0xa10] sm:$0xff]
  %v5407 = vld [vmem:[%s7 + $0xa18] sm:$0xff]
  %v5408 = vld [vmem:[%s7 + $0xa20] sm:$0xff]
  %v5409 = vld [vmem:[%s7 + $0xa28] sm:$0xff]
  %v5410 = vld [vmem:[%s7 + $0xa30] sm:$0xff]
  %v5411 = vld [vmem:[%s7 + $0xa38] sm:$0xff]
  %v5412 = vld [vmem:[%s7 + $0xa40] sm:$0xff]
  %v5413 = vld [vmem:[%s7 + $0xa48] sm:$0xff]
  %v5414 = vld [vmem:[%s7 + $0xa50] sm:$0xff]
  %v5415 = vld [vmem:[%s7 + $0xa58] sm:$0xff]
  %v5416 = vld [vmem:[%s7 + $0xa60] sm:$0xff]
  %v5417 = vld [vmem:[%s7 + $0xa68] sm:$0xff]
  %v5418 = vld [vmem:[%s7 + $0xa70] sm:$0xff]
  %v5419 = vld [vmem:[%s7 + $0xa78] sm:$0xff]
  %v5420 = vld [vmem:[%s7 + $0xa80] sm:$0xff]
  %v5421 = vld [vmem:[%s7 + $0xa88] sm:$0xff]
  %v5422 = vld [vmem:[%s7 + $0xa90] sm:$0xff]
  %v5423 = vld [vmem:[%s7 + $0xa98] sm:$0xff]
  %v5424 = vld [vmem:[%s7 + $0xaa0] sm:$0xff]
  %v5425 = vld [vmem:[%s7 + $0xaa8] sm:$0xff]
  %v5426 = vld [vmem:[%s7 + $0xab0] sm:$0xff]
  %v5427 = vld [vmem:[%s7 + $0xab8] sm:$0xff]
  %v5428 = vld [vmem:[%s7 + $0xac0] sm:$0xff]
  %v5429 = vld [vmem:[%s7 + $0xac8] sm:$0xff]
  %v5430 = vld [vmem:[%s7 + $0xad0] sm:$0xff]
  %v5431 = vld [vmem:[%s7 + $0xad8] sm:$0xff]
  %v5432 = vld [vmem:[%s7 + $0xae0] sm:$0xff]
  %v5433 = vld [vmem:[%s7 + $0xae8] sm:$0xff]
  %v5434 = vld [vmem:[%s7 + $0xaf0] sm:$0xff]
  %v5435 = vld [vmem:[%s7 + $0xaf8] sm:$0xff]
  %v5436 = vld [vmem:[%s7 + $0xb00] sm:$0xff]
  %v5437 = vld [vmem:[%s7 + $0xb08] sm:$0xff]
  %v5438 = vld [vmem:[%s7 + $0xb10] sm:$0xff]
  %v5439 = vld [vmem:[%s7 + $0xb18] sm:$0xff]
  %v5440 = vld [vmem:[%s7 + $0xb20] sm:$0xff]
  %v5441 = vld [vmem:[%s7 + $0xb28] sm:$0xff]
  %v5442 = vld [vmem:[%s7 + $0xb30] sm:$0xff]
  %v5443 = vld [vmem:[%s7 + $0xb38] sm:$0xff]
  %v5444 = vld [vmem:[%s7 + $0xb40] sm:$0xff]
  %v5445 = vld [vmem:[%s7 + $0xb48] sm:$0xff]
  %v5446 = vld [vmem:[%s7 + $0xb50] sm:$0xff]
  %v5447 = vld [vmem:[%s7 + $0xb58] sm:$0xff]
  %v5448 = vld [vmem:[%s7 + $0xb60] sm:$0xff]
  %v5449 = vld [vmem:[%s7 + $0xb68] sm:$0xff]
  %v5450 = vld [vmem:[%s7 + $0xb70] sm:$0xff]
  %v5451 = vld [vmem:[%s7 + $0xb78] sm:$0xff]
  %v5452 = vld [vmem:[%s7 + $0xb80] sm:$0xff]
  %v5453 = vld [vmem:[%s7 + $0xb88] sm:$0xff]
  %v5454 = vld [vmem:[%s7 + $0xb90] sm:$0xff]
  %v5455 = vld [vmem:[%s7 + $0xb98] sm:$0xff]
  %v5456 = vld [vmem:[%s7 + $0xba0] sm:$0xff]
  %v5457 = vld [vmem:[%s7 + $0xba8] sm:$0xff]
  %v5458 = vld [vmem:[%s7 + $0xbb0] sm:$0xff]
  %v5459 = vld [vmem:[%s7 + $0xbb8] sm:$0xff]
  %v5460 = vld [vmem:[%s7 + $0xbc0] sm:$0xff]
  %v5461 = vld [vmem:[%s7 + $0xbc8] sm:$0xff]
  %v5462 = vld [vmem:[%s7 + $0xbd0] sm:$0xff]
  %v5463 = vld [vmem:[%s7 + $0xbd8] sm:$0xff]
  %v5464 = vld [vmem:[%s7 + $0xbe0] sm:$0xff]
  %v5465 = vld [vmem:[%s7 + $0xbe8] sm:$0xff]
  %v5466 = vld [vmem:[%s7 + $0xbf0] sm:$0xff]
  %v5467 = vld [vmem:[%s7 + $0xbf8] sm:$0xff]
  %v5468 = vld [vmem:[%s7 + $0xc00] sm:$0xff]
  %v5469 = vld [vmem:[%s7 + $0xc08] sm:$0xff]
  %v5470 = vld [vmem:[%s7 + $0xc10] sm:$0xff]
  %v5471 = vld [vmem:[%s7 + $0xc18] sm:$0xff]
  %v5472 = vld [vmem:[%s7 + $0xc20] sm:$0xff]
  %v5473 = vld [vmem:[%s7 + $0xc28] sm:$0xff]
  %v5474 = vld [vmem:[%s7 + $0xc30] sm:$0xff]
  %v5475 = vld [vmem:[%s7 + $0xc38] sm:$0xff]
  %v5476 = vld [vmem:[%s7 + $0xc40] sm:$0xff]
  %v5477 = vld [vmem:[%s7 + $0xc48] sm:$0xff]
  %v5478 = vld [vmem:[%s7 + $0xc50] sm:$0xff]
  %v5479 = vld [vmem:[%s7 + $0xc58] sm:$0xff]
  %v5480 = vld [vmem:[%s7 + $0xc60] sm:$0xff]
  %v5481 = vld [vmem:[%s7 + $0xc68] sm:$0xff]
  %v5482 = vld [vmem:[%s7 + $0xc70] sm:$0xff]
  %v5483 = vld [vmem:[%s7 + $0xc78] sm:$0xff]
  %v5484 = vld [vmem:[%s7 + $0xc80] sm:$0xff]
  %v5485 = vld [vmem:[%s7 + $0xc88] sm:$0xff]
  %v5486 = vld [vmem:[%s7 + $0xc90] sm:$0xff]
  %v5487 = vld [vmem:[%s7 + $0xc98] sm:$0xff]
  %v5488 = vld [vmem:[%s7 + $0xca0] sm:$0xff]
  %v5489 = vld [vmem:[%s7 + $0xca8] sm:$0xff]
  %v5490 = vld [vmem:[%s7 + $0xcb0] sm:$0xff]
  %v5491 = vld [vmem:[%s7 + $0xcb8] sm:$0xff]
  %v5492 = vld [vmem:[%s7 + $0xcc0] sm:$0xff]
  %v5493 = vld [vmem:[%s7 + $0xcc8] sm:$0xff]
  %v5494 = vld [vmem:[%s7 + $0xcd0] sm:$0xff]
  %v5495 = vld [vmem:[%s7 + $0xcd8] sm:$0xff]
  %v5496 = vld [vmem:[%s7 + $0xce0] sm:$0xff]
  %v5497 = vld [vmem:[%s7 + $0xce8] sm:$0xff]
  %v5498 = vld [vmem:[%s7 + $0xcf0] sm:$0xff]
  %v5499 = vld [vmem:[%s7 + $0xcf8] sm:$0xff]
  %v5500 = vld [vmem:[%s7 + $0xd00] sm:$0xff]
  %v5501 = vld [vmem:[%s7 + $0xd08] sm:$0xff]
  %v5502 = vld [vmem:[%s7 + $0xd10] sm:$0xff]
  %v5503 = vld [vmem:[%s7 + $0xd18] sm:$0xff]
  %v5504 = vld [vmem:[%s7 + $0xd20] sm:$0xff]
  %v5505 = vld [vmem:[%s7 + $0xd28] sm:$0xff]
  %v5506 = vld [vmem:[%s7 + $0xd30] sm:$0xff]
  %v5507 = vld [vmem:[%s7 + $0xd38] sm:$0xff]
  %v5508 = vld [vmem:[%s7 + $0xd40] sm:$0xff]
  %v5509 = vld [vmem:[%s7 + $0xd48] sm:$0xff]
  %v5510 = vld [vmem:[%s7 + $0xd50] sm:$0xff]
  %v5511 = vld [vmem:[%s7 + $0xd58] sm:$0xff]
  %v5512 = vld [vmem:[%s7 + $0xd60] sm:$0xff]
  %v5513 = vld [vmem:[%s7 + $0xd68] sm:$0xff]
  %v5514 = vld [vmem:[%s7 + $0xd70] sm:$0xff]
  %v5515 = vld [vmem:[%s7 + $0xd78] sm:$0xff]
  %v5516 = vld [vmem:[%s7 + $0xd80] sm:$0xff]
  %v5517 = vld [vmem:[%s7 + $0xd88] sm:$0xff]
  %v5518 = vld [vmem:[%s7 + $0xd90] sm:$0xff]
  %v5519 = vld [vmem:[%s7 + $0xd98] sm:$0xff]
  %v5520 = vld [vmem:[%s7 + $0xda0] sm:$0xff]
  %v5521 = vld [vmem:[%s7 + $0xda8] sm:$0xff]
  %v5522 = vld [vmem:[%s7 + $0xdb0] sm:$0xff]
  %v5523 = vld [vmem:[%s7 + $0xdb8] sm:$0xff]
  %v5524 = vld [vmem:[%s7 + $0xdc0] sm:$0xff]
  %v5525 = vld [vmem:[%s7 + $0xdc8] sm:$0xff]
  %v5526 = vld [vmem:[%s7 + $0xdd0] sm:$0xff]
  %v5527 = vld [vmem:[%s7 + $0xdd8] sm:$0xff]
  %v5528 = vld [vmem:[%s7 + $0xde0] sm:$0xff]
  %v5529 = vld [vmem:[%s7 + $0xde8] sm:$0xff]
  %v5530 = vld [vmem:[%s7 + $0xdf0] sm:$0xff]
  %v5531 = vld [vmem:[%s7 + $0xdf8] sm:$0xff]
  %v5532 = vld [vmem:[%s7 + $0xe00] sm:$0xff]
  %v5533 = vld [vmem:[%s7 + $0xe08] sm:$0xff]
  %v5534 = vld [vmem:[%s7 + $0xe10] sm:$0xff]
  %v5535 = vld [vmem:[%s7 + $0xe18] sm:$0xff]
  %v5536 = vld [vmem:[%s7 + $0xe20] sm:$0xff]
  %v5537 = vld [vmem:[%s7 + $0xe28] sm:$0xff]
  %v5538 = vld [vmem:[%s7 + $0xe30] sm:$0xff]
  %v5539 = vld [vmem:[%s7 + $0xe38] sm:$0xff]
  %v5540 = vld [vmem:[%s7 + $0xe40] sm:$0xff]
  %v5541 = vld [vmem:[%s7 + $0xe48] sm:$0xff]
  %v5542 = vld [vmem:[%s7 + $0xe50] sm:$0xff]
  %v5543 = vld [vmem:[%s7 + $0xe58] sm:$0xff]
  %v5544 = vld [vmem:[%s7 + $0xe60] sm:$0xff]
  %v5545 = vld [vmem:[%s7 + $0xe68] sm:$0xff]
  %v5546 = vld [vmem:[%s7 + $0xe70] sm:$0xff]
  %v5547 = vld [vmem:[%s7 + $0xe78] sm:$0xff]
  %v5548 = vld [vmem:[%s7 + $0xe80] sm:$0xff]
  %v5549 = vld [vmem:[%s7 + $0xe88] sm:$0xff]
  %v5550 = vld [vmem:[%s7 + $0xe90] sm:$0xff]
  %v5551 = vld [vmem:[%s7 + $0xe98] sm:$0xff]
  %v5552 = vld [vmem:[%s7 + $0xea0] sm:$0xff]
  %v5553 = vld [vmem:[%s7 + $0xea8] sm:$0xff]
  %v5554 = vld [vmem:[%s7 + $0xeb0] sm:$0xff]
  %v5555 = vld [vmem:[%s7 + $0xeb8] sm:$0xff]
  %v5556 = vld [vmem:[%s7 + $0xec0] sm:$0xff]
  %v5557 = vld [vmem:[%s7 + $0xec8] sm:$0xff]
  %v5558 = vld [vmem:[%s7 + $0xed0] sm:$0xff]
  %v5559 = vld [vmem:[%s7 + $0xed8] sm:$0xff]
  %v5560 = vld [vmem:[%s7 + $0xee0] sm:$0xff]
  %v5561 = vld [vmem:[%s7 + $0xee8] sm:$0xff]
  %v5562 = vld [vmem:[%s7 + $0xef0] sm:$0xff]
  %v5563 = vld [vmem:[%s7 + $0xef8] sm:$0xff]
  %v5564 = vld [vmem:[%s7 + $0xf00] sm:$0xff]
  %v5565 = vld [vmem:[%s7 + $0xf08] sm:$0xff]
  %v5566 = vld [vmem:[%s7 + $0xf10] sm:$0xff]
  %v5567 = vld [vmem:[%s7 + $0xf18] sm:$0xff]
  %v5568 = vld [vmem:[%s7 + $0xf20] sm:$0xff]
  %v5569 = vld [vmem:[%s7 + $0xf28] sm:$0xff]
  %v5570 = vld [vmem:[%s7 + $0xf30] sm:$0xff]
  %v5571 = vld [vmem:[%s7 + $0xf38] sm:$0xff]
  %v5572 = vld [vmem:[%s7 + $0xf40] sm:$0xff]
  %v5573 = vld [vmem:[%s7 + $0xf48] sm:$0xff]
  %v5574 = vld [vmem:[%s7 + $0xf50] sm:$0xff]
  %v5575 = vld [vmem:[%s7 + $0xf58] sm:$0xff]
  %v5576 = vld [vmem:[%s7 + $0xf60] sm:$0xff]
  %v5577 = vld [vmem:[%s7 + $0xf68] sm:$0xff]
  %v5578 = vld [vmem:[%s7 + $0xf70] sm:$0xff]
  %v5579 = vld [vmem:[%s7 + $0xf78] sm:$0xff]
  %v5580 = vld [vmem:[%s7 + $0xf80] sm:$0xff]
  %v5581 = vld [vmem:[%s7 + $0xf88] sm:$0xff]
  %v5582 = vld [vmem:[%s7 + $0xf90] sm:$0xff]
  %v5583 = vld [vmem:[%s7 + $0xf98] sm:$0xff]
  %v5584 = vld [vmem:[%s7 + $0xfa0] sm:$0xff]
  %v5585 = vld [vmem:[%s7 + $0xfa8] sm:$0xff]
  %v5586 = vld [vmem:[%s7 + $0xfb0] sm:$0xff]
  %v5587 = vld [vmem:[%s7 + $0xfb8] sm:$0xff]
  %v5588 = vld [vmem:[%s7 + $0xfc0] sm:$0xff]
  %v5589 = vld [vmem:[%s7 + $0xfc8] sm:$0xff]
  %v5590 = vld [vmem:[%s7 + $0xfd0] sm:$0xff]
  %v5591 = vld [vmem:[%s7 + $0xfd8] sm:$0xff]
  %v5592 = vld [vmem:[%s7 + $0xfe0] sm:$0xff]
  %v5593 = vld [vmem:[%s7 + $0xfe8] sm:$0xff]
  %v5594 = vld [vmem:[%s7 + $0xff0] sm:$0xff]
  %v5595 = vld [vmem:[%s7 + $0xff8] sm:$0xff]
  %v5596 = vld [vmem:[%s7 + $0x1000] sm:$0xff]
  %v5597 = vld [vmem:[%s7 + $0x1008] sm:$0xff]
  %v5598 = vld [vmem:[%s7 + $0x1010] sm:$0xff]
  %v5599 = vld [vmem:[%s7 + $0x1018] sm:$0xff]
  %v5600 = vld [vmem:[%s7 + $0x1020] sm:$0xff]
  %v5601 = vld [vmem:[%s7 + $0x1028] sm:$0xff]
  %v5602 = vld [vmem:[%s7 + $0x1030] sm:$0xff]
  %v5603 = vld [vmem:[%s7 + $0x1038] sm:$0xff]
  %v5604 = vld [vmem:[%s7 + $0x1040] sm:$0xff]
  %v5605 = vld [vmem:[%s7 + $0x1048] sm:$0xff]
  %v5606 = vld [vmem:[%s7 + $0x1050] sm:$0xff]
  %v5607 = vld [vmem:[%s7 + $0x1058] sm:$0xff]
  %v5608 = vld [vmem:[%s7 + $0x1060] sm:$0xff]
  %v5609 = vld [vmem:[%s7 + $0x1068] sm:$0xff]
  %v5610 = vld [vmem:[%s7 + $0x1070] sm:$0xff]
  %v5611 = vld [vmem:[%s7 + $0x1078] sm:$0xff]
  %v5612 = vld [vmem:[%s7 + $0x1080] sm:$0xff]
  %v5613 = vld [vmem:[%s7 + $0x1088] sm:$0xff]
  %v5614 = vld [vmem:[%s7 + $0x1090] sm:$0xff]
  %v5615 = vld [vmem:[%s7 + $0x1098] sm:$0xff]
  %v5616 = vld [vmem:[%s7 + $0x10a0] sm:$0xff]
  %v5617 = vld [vmem:[%s7 + $0x10a8] sm:$0xff]
  %v5618 = vld [vmem:[%s7 + $0x10b0] sm:$0xff]
  %v5619 = vld [vmem:[%s7 + $0x10b8] sm:$0xff]
  %v5620 = vld [vmem:[%s7 + $0x10c0] sm:$0xff]
  %v5621 = vld [vmem:[%s7 + $0x10c8] sm:$0xff]
  %v5622 = vld [vmem:[%s7 + $0x10d0] sm:$0xff]
  %v5623 = vld [vmem:[%s7 + $0x10d8] sm:$0xff]
  %v5624 = vld [vmem:[%s7 + $0x10e0] sm:$0xff]
  %v5625 = vld [vmem:[%s7 + $0x10e8] sm:$0xff]
  %v5626 = vld [vmem:[%s7 + $0x10f0] sm:$0xff]
  %v5627 = vld [vmem:[%s7 + $0x10f8] sm:$0xff]
  %v5628 = vld [vmem:[%s7 + $0x1100] sm:$0xff]
  %v5629 = vld [vmem:[%s7 + $0x1108] sm:$0xff]
  %v5630 = vld [vmem:[%s7 + $0x1110] sm:$0xff]
  %v5631 = vld [vmem:[%s7 + $0x1118] sm:$0xff]
  %v5632 = vld [vmem:[%s7 + $0x1120] sm:$0xff]
  %v5633 = vld [vmem:[%s7 + $0x1128] sm:$0xff]
  %v5634 = vld [vmem:[%s7 + $0x1130] sm:$0xff]
  %v5635 = vld [vmem:[%s7 + $0x1138] sm:$0xff]
  %v5636 = vld [vmem:[%s7 + $0x1140] sm:$0xff]
  %v5637 = vld [vmem:[%s7 + $0x1148] sm:$0xff]
  %v5638 = vld [vmem:[%s7 + $0x1150] sm:$0xff]
  %v5639 = vld [vmem:[%s7 + $0x1158] sm:$0xff]
  %v5640 = vld [vmem:[%s7 + $0x1160] sm:$0xff]
  %v5641 = vld [vmem:[%s7 + $0x1168] sm:$0xff]
  %v5642 = vld [vmem:[%s7 + $0x1170] sm:$0xff]
  %v5643 = vld [vmem:[%s7 + $0x1178] sm:$0xff]
  %v5644 = vld [vmem:[%s7 + $0x1180] sm:$0xff]
  %v5645 = vld [vmem:[%s7 + $0x1188] sm:$0xff]
  %v5646 = vld [vmem:[%s7 + $0x1190] sm:$0xff]
  %v5647 = vld [vmem:[%s7 + $0x1198] sm:$0xff]
  %v5648 = vld [vmem:[%s7 + $0x11a0] sm:$0xff]
  %v5649 = vld [vmem:[%s7 + $0x11a8] sm:$0xff]
  %v5650 = vld [vmem:[%s7 + $0x11b0] sm:$0xff]
  %v5651 = vld [vmem:[%s7 + $0x11b8] sm:$0xff]
  %v5652 = vld [vmem:[%s7 + $0x11c0] sm:$0xff]
  %v5653 = vld [vmem:[%s7 + $0x11c8] sm:$0xff]
  %v5654 = vld [vmem:[%s7 + $0x11d0] sm:$0xff]
  %v5655 = vld [vmem:[%s7 + $0x11d8] sm:$0xff]
  %v5656 = vld [vmem:[%s7 + $0x11e0] sm:$0xff]
  %v5657 = vld [vmem:[%s7 + $0x11e8] sm:$0xff]
  %v5658 = vld [vmem:[%s7 + $0x11f0] sm:$0xff]
  %v5659 = vld [vmem:[%s7 + $0x11f8] sm:$0xff]
  %v5660 = vld [vmem:[%s7 + $0x1200] sm:$0xff]
  %v5661 = vld [vmem:[%s7 + $0x1208] sm:$0xff]
  %v5662 = vld [vmem:[%s7 + $0x1210] sm:$0xff]
  %v5663 = vld [vmem:[%s7 + $0x1218] sm:$0xff]
  %v5664 = vld [vmem:[%s7 + $0x1220] sm:$0xff]
  %v5665 = vld [vmem:[%s7 + $0x1228] sm:$0xff]
  %v5666 = vld [vmem:[%s7 + $0x1230] sm:$0xff]
  %v5667 = vld [vmem:[%s7 + $0x1238] sm:$0xff]
  %v5668 = vld [vmem:[%s7 + $0x1240] sm:$0xff]
  %v5669 = vld [vmem:[%s7 + $0x1248] sm:$0xff]
  %v5670 = vld [vmem:[%s7 + $0x1250] sm:$0xff]
  %v5671 = vld [vmem:[%s7 + $0x1258] sm:$0xff]
  %v5672 = vld [vmem:[%s7 + $0x1260] sm:$0xff]
  %v5673 = vld [vmem:[%s7 + $0x1268] sm:$0xff]
  %v5674 = vld [vmem:[%s7 + $0x1270] sm:$0xff]
  %v5675 = vld [vmem:[%s7 + $0x1278] sm:$0xff]
  %v5676 = vld [vmem:[%s7 + $0x1280] sm:$0xff]
  %v5677 = vld [vmem:[%s7 + $0x1288] sm:$0xff]
  %v5678 = vld [vmem:[%s7 + $0x1290] sm:$0xff]
  %v5679 = vld [vmem:[%s7 + $0x1298] sm:$0xff]
  %v5680 = vld [vmem:[%s7 + $0x12a0] sm:$0xff]
  %v5681 = vld [vmem:[%s7 + $0x12a8] sm:$0xff]
  %v5682 = vld [vmem:[%s7 + $0x12b0] sm:$0xff]
  %v5683 = vld [vmem:[%s7 + $0x12b8] sm:$0xff]
  %v5684 = vld [vmem:[%s7 + $0x12c0] sm:$0xff]
  %v5685 = vld [vmem:[%s7 + $0x12c8] sm:$0xff]
  %v5686 = vld [vmem:[%s7 + $0x12d0] sm:$0xff]
  %v5687 = vld [vmem:[%s7 + $0x12d8] sm:$0xff]
  %v5688 = vld [vmem:[%s7 + $0x12e0] sm:$0xff]
  %v5689 = vld [vmem:[%s7 + $0x12e8] sm:$0xff]
  %v5690 = vld [vmem:[%s7 + $0x12f0] sm:$0xff]
  %v5691 = vld [vmem:[%s7 + $0x12f8] sm:$0xff]
  %v5692 = vld [vmem:[%s7 + $0x1300] sm:$0xff]
  %v5693 = vld [vmem:[%s7 + $0x1308] sm:$0xff]
  %v5694 = vld [vmem:[%s7 + $0x1310] sm:$0xff]
  %v5695 = vld [vmem:[%s7 + $0x1318] sm:$0xff]
  %v5696 = vld [vmem:[%s7 + $0x1320] sm:$0xff]
  %v5697 = vld [vmem:[%s7 + $0x1328] sm:$0xff]
  %v5698 = vld [vmem:[%s7 + $0x1330] sm:$0xff]
  %v5699 = vld [vmem:[%s7 + $0x1338] sm:$0xff]
  %v5700 = vld [vmem:[%s7 + $0x1340] sm:$0xff]
  %v5701 = vld [vmem:[%s7 + $0x1348] sm:$0xff]
  %v5702 = vld [vmem:[%s7 + $0x1350] sm:$0xff]
  %v5703 = vld [vmem:[%s7 + $0x1358] sm:$0xff]
  %v5704 = vld [vmem:[%s7 + $0x1360] sm:$0xff]
  %v5705 = vld [vmem:[%s7 + $0x1368] sm:$0xff]
  %v5706 = vld [vmem:[%s7 + $0x1370] sm:$0xff]
  %v5707 = vld [vmem:[%s7 + $0x1378] sm:$0xff]
  %v5708 = vld [vmem:[%s7 + $0x1380] sm:$0xff]
  %v5709 = vld [vmem:[%s7 + $0x1388] sm:$0xff]
  %v5710 = vld [vmem:[%s7 + $0x1390] sm:$0xff]
  %v5711 = vld [vmem:[%s7 + $0x1398] sm:$0xff]
  %v5712 = vld [vmem:[%s7 + $0x13a0] sm:$0xff]
  %v5713 = vld [vmem:[%s7 + $0x13a8] sm:$0xff]
  %v5714 = vld [vmem:[%s7 + $0x13b0] sm:$0xff]
  %v5715 = vld [vmem:[%s7 + $0x13b8] sm:$0xff]
  %v5716 = vld [vmem:[%s7 + $0x13c0] sm:$0xff]
  %v5717 = vld [vmem:[%s7 + $0x13c8] sm:$0xff]
  %v5718 = vld [vmem:[%s7 + $0x13d0] sm:$0xff]
  %v5719 = vld [vmem:[%s7 + $0x13d8] sm:$0xff]
  %v5720 = vld [vmem:[%s7 + $0x13e0] sm:$0xff]
  %v5721 = vld [vmem:[%s7 + $0x13e8] sm:$0xff]
  %v5722 = vld [vmem:[%s7 + $0x13f0] sm:$0xff]
  %v5723 = vld [vmem:[%s7 + $0x13f8] sm:$0xff]
  %v5724 = vld [vmem:[%s8] sm:$0xff]
  %v5725 = vld [vmem:[%s8 + $0x8] sm:$0xff]
  %v5726 = vld [vmem:[%s8 + $0x10] sm:$0xff]
  %v5727 = vld [vmem:[%s8 + $0x18] sm:$0xff]
  %v5728 = vld [vmem:[%s8 + $0x20] sm:$0xff]
  %v5734 = vlaneseq
  %v5735 = vshrl.u32 %v5734, 7
  %v5736 = vsub.s32 0, %v5735
  %v5737 = vrot.slane %v5724, %v5736
  %v5738 = vlaneseq
  %v5739 = vshrl.u32 %v5738, 7
  %v5740 = vsub.s32 1, %v5739
  %v5741 = vrot.slane %v5724, %v5740
  %v5742 = vlaneseq
  %v5743 = vshrl.u32 %v5742, 7
  %v5744 = vsub.s32 2, %v5743
  %v5745 = vrot.slane %v5724, %v5744
  %v5746 = vlaneseq
  %v5747 = vshrl.u32 %v5746, 7
  %v5748 = vsub.s32 3, %v5747
  %v5749 = vrot.slane %v5724, %v5748
  %v5750 = vlaneseq
  %v5751 = vshrl.u32 %v5750, 7
  %v5752 = vsub.s32 4, %v5751
  %v5753 = vrot.slane %v5724, %v5752
  %v5754 = vlaneseq
  %v5755 = vshrl.u32 %v5754, 7
  %v5756 = vsub.s32 5, %v5755
  %v5757 = vrot.slane %v5724, %v5756
  %v5758 = vlaneseq
  %v5759 = vshrl.u32 %v5758, 7
  %v5760 = vsub.s32 6, %v5759
  %v5761 = vrot.slane %v5724, %v5760
  %v5762 = vlaneseq
  %v5763 = vshrl.u32 %v5762, 7
  %v5764 = vsub.s32 7, %v5763
  %v5765 = vrot.slane %v5724, %v5764
  %v5766 = vlaneseq
  %v5767 = vshrl.u32 %v5766, 7
  %v5768 = vsub.s32 0, %v5767
  %v5769 = vrot.slane %v5725, %v5768
  %v5770 = vlaneseq
  %v5771 = vshrl.u32 %v5770, 7
  %v5772 = vsub.s32 1, %v5771
  %v5773 = vrot.slane %v5725, %v5772
  %v5774 = vlaneseq
  %v5775 = vshrl.u32 %v5774, 7
  %v5776 = vsub.s32 2, %v5775
  %v5777 = vrot.slane %v5725, %v5776
  %v5778 = vlaneseq
  %v5779 = vshrl.u32 %v5778, 7
  %v5780 = vsub.s32 3, %v5779
  %v5781 = vrot.slane %v5725, %v5780
  %v5782 = vlaneseq
  %v5783 = vshrl.u32 %v5782, 7
  %v5784 = vsub.s32 4, %v5783
  %v5785 = vrot.slane %v5725, %v5784
  %v5786 = vlaneseq
  %v5787 = vshrl.u32 %v5786, 7
  %v5788 = vsub.s32 5, %v5787
  %v5789 = vrot.slane %v5725, %v5788
  %v5790 = vlaneseq
  %v5791 = vshrl.u32 %v5790, 7
  %v5792 = vsub.s32 6, %v5791
  %v5793 = vrot.slane %v5725, %v5792
  %v5794 = vlaneseq
  %v5795 = vshrl.u32 %v5794, 7
  %v5796 = vsub.s32 7, %v5795
  %v5797 = vrot.slane %v5725, %v5796
  %v5798 = vlaneseq
  %v5799 = vshrl.u32 %v5798, 7
  %v5800 = vsub.s32 0, %v5799
  %v5801 = vrot.slane %v5726, %v5800
  %v5802 = vlaneseq
  %v5803 = vshrl.u32 %v5802, 7
  %v5804 = vsub.s32 1, %v5803
  %v5805 = vrot.slane %v5726, %v5804
  %v5806 = vlaneseq
  %v5807 = vshrl.u32 %v5806, 7
  %v5808 = vsub.s32 2, %v5807
  %v5809 = vrot.slane %v5726, %v5808
  %v5810 = vlaneseq
  %v5811 = vshrl.u32 %v5810, 7
  %v5812 = vsub.s32 3, %v5811
  %v5813 = vrot.slane %v5726, %v5812
  %v5814 = vlaneseq
  %v5815 = vshrl.u32 %v5814, 7
  %v5816 = vsub.s32 4, %v5815
  %v5817 = vrot.slane %v5726, %v5816
  %v5818 = vlaneseq
  %v5819 = vshrl.u32 %v5818, 7
  %v5820 = vsub.s32 5, %v5819
  %v5821 = vrot.slane %v5726, %v5820
  %v5822 = vlaneseq
  %v5823 = vshrl.u32 %v5822, 7
  %v5824 = vsub.s32 6, %v5823
  %v5825 = vrot.slane %v5726, %v5824
  %v5826 = vlaneseq
  %v5827 = vshrl.u32 %v5826, 7
  %v5828 = vsub.s32 7, %v5827
  %v5829 = vrot.slane %v5726, %v5828
  %v5830 = vlaneseq
  %v5831 = vshrl.u32 %v5830, 7
  %v5832 = vsub.s32 0, %v5831
  %v5833 = vrot.slane %v5727, %v5832
  %v5834 = vlaneseq
  %v5835 = vshrl.u32 %v5834, 7
  %v5836 = vsub.s32 1, %v5835
  %v5837 = vrot.slane %v5727, %v5836
  %v5838 = vlaneseq
  %v5839 = vshrl.u32 %v5838, 7
  %v5840 = vsub.s32 2, %v5839
  %v5841 = vrot.slane %v5727, %v5840
  %v5842 = vlaneseq
  %v5843 = vshrl.u32 %v5842, 7
  %v5844 = vsub.s32 3, %v5843
  %v5845 = vrot.slane %v5727, %v5844
  %v5846 = vlaneseq
  %v5847 = vshrl.u32 %v5846, 7
  %v5848 = vsub.s32 4, %v5847
  %v5849 = vrot.slane %v5727, %v5848
  %v5850 = vlaneseq
  %v5851 = vshrl.u32 %v5850, 7
  %v5852 = vsub.s32 5, %v5851
  %v5853 = vrot.slane %v5727, %v5852
  %v5854 = vlaneseq
  %v5855 = vshrl.u32 %v5854, 7
  %v5856 = vsub.s32 6, %v5855
  %v5857 = vrot.slane %v5727, %v5856
  %v5858 = vlaneseq
  %v5859 = vshrl.u32 %v5858, 7
  %v5860 = vsub.s32 7, %v5859
  %v5861 = vrot.slane %v5727, %v5860
  %v5862 = vlaneseq
  %v5863 = vshrl.u32 %v5862, 7
  %v5864 = vsub.s32 0, %v5863
  %v5865 = vrot.slane %v5728, %v5864
  %v5866 = vlaneseq
  %v5867 = vshrl.u32 %v5866, 7
  %v5868 = vsub.s32 1, %v5867
  %v5869 = vrot.slane %v5728, %v5868
  %v5870 = vlaneseq
  %v5871 = vshrl.u32 %v5870, 7
  %v5872 = vsub.s32 2, %v5871
  %v5873 = vrot.slane %v5728, %v5872
  %v5874 = vlaneseq
  %v5875 = vshrl.u32 %v5874, 7
  %v5876 = vsub.s32 3, %v5875
  %v5877 = vrot.slane %v5728, %v5876
  %v5878 = vlaneseq
  %v5879 = vshrl.u32 %v5878, 7
  %v5880 = vsub.s32 4, %v5879
  %v5881 = vrot.slane %v5728, %v5880
  %v5882 = vlaneseq
  %v5883 = vshrl.u32 %v5882, 7
  %v5884 = vsub.s32 5, %v5883
  %v5885 = vrot.slane %v5728, %v5884
  %v5886 = vlaneseq
  %v5887 = vshrl.u32 %v5886, 7
  %v5888 = vsub.s32 6, %v5887
  %v5889 = vrot.slane %v5728, %v5888
  %v5890 = vlaneseq
  %v5891 = vshrl.u32 %v5890, 7
  %v5892 = vsub.s32 7, %v5891
  %v5893 = vrot.slane %v5728, %v5892
  %v6574 = vunpack.c.l.b16 %v5084
  %v6575 = vunpack.c.h.b16 %v5084
  %v6576 = vunpack.c.l.b16 %v5085
  %v6577 = vunpack.c.h.b16 %v5085
  %v6578 = vunpack.c.l.b16 %v5086
  %v6579 = vunpack.c.h.b16 %v5086
  %v6580 = vunpack.c.l.b16 %v5087
  %v6581 = vunpack.c.h.b16 %v5087
  %v6582 = vunpack.c.l.b16 %v5088
  %v6583 = vunpack.c.h.b16 %v5088
  %v6584 = vunpack.c.l.b16 %v5089
  %v6585 = vunpack.c.h.b16 %v5089
  %v6586 = vunpack.c.l.b16 %v5090
  %v6587 = vunpack.c.h.b16 %v5090
  %v6588 = vunpack.c.l.b16 %v5091
  %v6589 = vunpack.c.h.b16 %v5091
  %v6590 = vunpack.c.l.b16 %v5092
  %v6591 = vunpack.c.h.b16 %v5092
  %v6592 = vunpack.c.l.b16 %v5093
  %v6593 = vunpack.c.h.b16 %v5093
  %v6594 = vunpack.c.l.b16 %v5094
  %v6595 = vunpack.c.h.b16 %v5094
  %v6596 = vunpack.c.l.b16 %v5095
  %v6597 = vunpack.c.h.b16 %v5095
  %v6598 = vunpack.c.l.b16 %v5096
  %v6599 = vunpack.c.h.b16 %v5096
  %v6600 = vunpack.c.l.b16 %v5097
  %v6601 = vunpack.c.h.b16 %v5097
  %v6602 = vunpack.c.l.b16 %v5098
  %v6603 = vunpack.c.h.b16 %v5098
  %v6604 = vunpack.c.l.b16 %v5099
  %v6605 = vunpack.c.h.b16 %v5099
  %v6606 = vunpack.c.l.b16 %v5100
  %v6607 = vunpack.c.h.b16 %v5100
  %v6608 = vunpack.c.l.b16 %v5101
  %v6609 = vunpack.c.h.b16 %v5101
  %v6610 = vunpack.c.l.b16 %v5102
  %v6611 = vunpack.c.h.b16 %v5102
  %v6612 = vunpack.c.l.b16 %v5103
  %v6613 = vunpack.c.h.b16 %v5103
  %v6614 = vunpack.c.l.b16 %v5104
  %v6615 = vunpack.c.h.b16 %v5104
  %v6616 = vunpack.c.l.b16 %v5105
  %v6617 = vunpack.c.h.b16 %v5105
  %v6618 = vunpack.c.l.b16 %v5106
  %v6619 = vunpack.c.h.b16 %v5106
  %v6620 = vunpack.c.l.b16 %v5107
  %v6621 = vunpack.c.h.b16 %v5107
  %v6622 = vunpack.c.l.b16 %v5108
  %v6623 = vunpack.c.h.b16 %v5108
  %v6624 = vunpack.c.l.b16 %v5109
  %v6625 = vunpack.c.h.b16 %v5109
  %v6626 = vunpack.c.l.b16 %v5110
  %v6627 = vunpack.c.h.b16 %v5110
  %v6628 = vunpack.c.l.b16 %v5111
  %v6629 = vunpack.c.h.b16 %v5111
  %v6630 = vunpack.c.l.b16 %v5112
  %v6631 = vunpack.c.h.b16 %v5112
  %v6632 = vunpack.c.l.b16 %v5113
  %v6633 = vunpack.c.h.b16 %v5113
  %v6634 = vunpack.c.l.b16 %v5114
  %v6635 = vunpack.c.h.b16 %v5114
  %v6636 = vunpack.c.l.b16 %v5115
  %v6637 = vunpack.c.h.b16 %v5115
  %v6638 = vunpack.c.l.b16 %v5116
  %v6639 = vunpack.c.h.b16 %v5116
  %v6640 = vunpack.c.l.b16 %v5117
  %v6641 = vunpack.c.h.b16 %v5117
  %v6642 = vunpack.c.l.b16 %v5118
  %v6643 = vunpack.c.h.b16 %v5118
  %v6644 = vunpack.c.l.b16 %v5119
  %v6645 = vunpack.c.h.b16 %v5119
  %v6646 = vunpack.c.l.b16 %v5120
  %v6647 = vunpack.c.h.b16 %v5120
  %v6648 = vunpack.c.l.b16 %v5121
  %v6649 = vunpack.c.h.b16 %v5121
  %v6650 = vunpack.c.l.b16 %v5122
  %v6651 = vunpack.c.h.b16 %v5122
  %v6652 = vunpack.c.l.b16 %v5123
  %v6653 = vunpack.c.h.b16 %v5123
  %v6654 = vunpack.c.l.b16 %v5124
  %v6655 = vunpack.c.h.b16 %v5124
  %v6656 = vunpack.c.l.b16 %v5125
  %v6657 = vunpack.c.h.b16 %v5125
  %v6658 = vunpack.c.l.b16 %v5126
  %v6659 = vunpack.c.h.b16 %v5126
  %v6660 = vunpack.c.l.b16 %v5127
  %v6661 = vunpack.c.h.b16 %v5127
  %v6662 = vunpack.c.l.b16 %v5128
  %v6663 = vunpack.c.h.b16 %v5128
  %v6664 = vunpack.c.l.b16 %v5129
  %v6665 = vunpack.c.h.b16 %v5129
  %v6666 = vunpack.c.l.b16 %v5130
  %v6667 = vunpack.c.h.b16 %v5130
  %v6668 = vunpack.c.l.b16 %v5131
  %v6669 = vunpack.c.h.b16 %v5131
  %v6670 = vunpack.c.l.b16 %v5132
  %v6671 = vunpack.c.h.b16 %v5132
  %v6672 = vunpack.c.l.b16 %v5133
  %v6673 = vunpack.c.h.b16 %v5133
  %v6674 = vunpack.c.l.b16 %v5134
  %v6675 = vunpack.c.h.b16 %v5134
  %v6676 = vunpack.c.l.b16 %v5135
  %v6677 = vunpack.c.h.b16 %v5135
  %v6678 = vunpack.c.l.b16 %v5136
  %v6679 = vunpack.c.h.b16 %v5136
  %v6680 = vunpack.c.l.b16 %v5137
  %v6681 = vunpack.c.h.b16 %v5137
  %v6682 = vunpack.c.l.b16 %v5138
  %v6683 = vunpack.c.h.b16 %v5138
  %v6684 = vunpack.c.l.b16 %v5139
  %v6685 = vunpack.c.h.b16 %v5139
  %v6686 = vunpack.c.l.b16 %v5140
  %v6687 = vunpack.c.h.b16 %v5140
  %v6688 = vunpack.c.l.b16 %v5141
  %v6689 = vunpack.c.h.b16 %v5141
  %v6690 = vunpack.c.l.b16 %v5142
  %v6691 = vunpack.c.h.b16 %v5142
  %v6692 = vunpack.c.l.b16 %v5143
  %v6693 = vunpack.c.h.b16 %v5143
  %v6694 = vunpack.c.l.b16 %v5144
  %v6695 = vunpack.c.h.b16 %v5144
  %v6696 = vunpack.c.l.b16 %v5145
  %v6697 = vunpack.c.h.b16 %v5145
  %v6698 = vunpack.c.l.b16 %v5146
  %v6699 = vunpack.c.h.b16 %v5146
  %v6700 = vunpack.c.l.b16 %v5147
  %v6701 = vunpack.c.h.b16 %v5147
  %v6702 = vunpack.c.l.b16 %v5148
  %v6703 = vunpack.c.h.b16 %v5148
  %v6704 = vunpack.c.l.b16 %v5149
  %v6705 = vunpack.c.h.b16 %v5149
  %v6706 = vunpack.c.l.b16 %v5150
  %v6707 = vunpack.c.h.b16 %v5150
  %v6708 = vunpack.c.l.b16 %v5151
  %v6709 = vunpack.c.h.b16 %v5151
  %v6710 = vunpack.c.l.b16 %v5152
  %v6711 = vunpack.c.h.b16 %v5152
  %v6712 = vunpack.c.l.b16 %v5153
  %v6713 = vunpack.c.h.b16 %v5153
  %v6714 = vunpack.c.l.b16 %v5154
  %v6715 = vunpack.c.h.b16 %v5154
  %v6716 = vunpack.c.l.b16 %v5155
  %v6717 = vunpack.c.h.b16 %v5155
  %v6718 = vunpack.c.l.b16 %v5156
  %v6719 = vunpack.c.h.b16 %v5156
  %v6720 = vunpack.c.l.b16 %v5157
  %v6721 = vunpack.c.h.b16 %v5157
  %v6722 = vunpack.c.l.b16 %v5158
  %v6723 = vunpack.c.h.b16 %v5158
  %v6724 = vunpack.c.l.b16 %v5159
  %v6725 = vunpack.c.h.b16 %v5159
  %v6726 = vunpack.c.l.b16 %v5160
  %v6727 = vunpack.c.h.b16 %v5160
  %v6728 = vunpack.c.l.b16 %v5161
  %v6729 = vunpack.c.h.b16 %v5161
  %v6730 = vunpack.c.l.b16 %v5162
  %v6731 = vunpack.c.h.b16 %v5162
  %v6732 = vunpack.c.l.b16 %v5163
  %v6733 = vunpack.c.h.b16 %v5163
  %v6734 = vunpack.c.l.b16 %v5164
  %v6735 = vunpack.c.h.b16 %v5164
  %v6736 = vunpack.c.l.b16 %v5165
  %v6737 = vunpack.c.h.b16 %v5165
  %v6738 = vunpack.c.l.b16 %v5166
  %v6739 = vunpack.c.h.b16 %v5166
  %v6740 = vunpack.c.l.b16 %v5167
  %v6741 = vunpack.c.h.b16 %v5167
  %v6742 = vunpack.c.l.b16 %v5168
  %v6743 = vunpack.c.h.b16 %v5168
  %v6744 = vunpack.c.l.b16 %v5169
  %v6745 = vunpack.c.h.b16 %v5169
  %v6746 = vunpack.c.l.b16 %v5170
  %v6747 = vunpack.c.h.b16 %v5170
  %v6748 = vunpack.c.l.b16 %v5171
  %v6749 = vunpack.c.h.b16 %v5171
  %v6750 = vunpack.c.l.b16 %v5172
  %v6751 = vunpack.c.h.b16 %v5172
  %v6752 = vunpack.c.l.b16 %v5173
  %v6753 = vunpack.c.h.b16 %v5173
  %v6754 = vunpack.c.l.b16 %v5174
  %v6755 = vunpack.c.h.b16 %v5174
  %v6756 = vunpack.c.l.b16 %v5175
  %v6757 = vunpack.c.h.b16 %v5175
  %v6758 = vunpack.c.l.b16 %v5176
  %v6759 = vunpack.c.h.b16 %v5176
  %v6760 = vunpack.c.l.b16 %v5177
  %v6761 = vunpack.c.h.b16 %v5177
  %v6762 = vunpack.c.l.b16 %v5178
  %v6763 = vunpack.c.h.b16 %v5178
  %v6764 = vunpack.c.l.b16 %v5179
  %v6765 = vunpack.c.h.b16 %v5179
  %v6766 = vunpack.c.l.b16 %v5180
  %v6767 = vunpack.c.h.b16 %v5180
  %v6768 = vunpack.c.l.b16 %v5181
  %v6769 = vunpack.c.h.b16 %v5181
  %v6770 = vunpack.c.l.b16 %v5182
  %v6771 = vunpack.c.h.b16 %v5182
  %v6772 = vunpack.c.l.b16 %v5183
  %v6773 = vunpack.c.h.b16 %v5183
  %v6774 = vunpack.c.l.b16 %v5184
  %v6775 = vunpack.c.h.b16 %v5184
  %v6776 = vunpack.c.l.b16 %v5185
  %v6777 = vunpack.c.h.b16 %v5185
  %v6778 = vunpack.c.l.b16 %v5186
  %v6779 = vunpack.c.h.b16 %v5186
  %v6780 = vunpack.c.l.b16 %v5187
  %v6781 = vunpack.c.h.b16 %v5187
  %v6782 = vunpack.c.l.b16 %v5188
  %v6783 = vunpack.c.h.b16 %v5188
  %v6784 = vunpack.c.l.b16 %v5189
  %v6785 = vunpack.c.h.b16 %v5189
  %v6786 = vunpack.c.l.b16 %v5190
  %v6787 = vunpack.c.h.b16 %v5190
  %v6788 = vunpack.c.l.b16 %v5191
  %v6789 = vunpack.c.h.b16 %v5191
  %v6790 = vunpack.c.l.b16 %v5192
  %v6791 = vunpack.c.h.b16 %v5192
  %v6792 = vunpack.c.l.b16 %v5193
  %v6793 = vunpack.c.h.b16 %v5193
  %v6794 = vunpack.c.l.b16 %v5194
  %v6795 = vunpack.c.h.b16 %v5194
  %v6796 = vunpack.c.l.b16 %v5195
  %v6797 = vunpack.c.h.b16 %v5195
  %v6798 = vunpack.c.l.b16 %v5196
  %v6799 = vunpack.c.h.b16 %v5196
  %v6800 = vunpack.c.l.b16 %v5197
  %v6801 = vunpack.c.h.b16 %v5197
  %v6802 = vunpack.c.l.b16 %v5198
  %v6803 = vunpack.c.h.b16 %v5198
  %v6804 = vunpack.c.l.b16 %v5199
  %v6805 = vunpack.c.h.b16 %v5199
  %v6806 = vunpack.c.l.b16 %v5200
  %v6807 = vunpack.c.h.b16 %v5200
  %v6808 = vunpack.c.l.b16 %v5201
  %v6809 = vunpack.c.h.b16 %v5201
  %v6810 = vunpack.c.l.b16 %v5202
  %v6811 = vunpack.c.h.b16 %v5202
  %v6812 = vunpack.c.l.b16 %v5203
  %v6813 = vunpack.c.h.b16 %v5203
  %v6814 = vunpack.c.l.b16 %v5204
  %v6815 = vunpack.c.h.b16 %v5204
  %v6816 = vunpack.c.l.b16 %v5205
  %v6817 = vunpack.c.h.b16 %v5205
  %v6818 = vunpack.c.l.b16 %v5206
  %v6819 = vunpack.c.h.b16 %v5206
  %v6820 = vunpack.c.l.b16 %v5207
  %v6821 = vunpack.c.h.b16 %v5207
  %v6822 = vunpack.c.l.b16 %v5208
  %v6823 = vunpack.c.h.b16 %v5208
  %v6824 = vunpack.c.l.b16 %v5209
  %v6825 = vunpack.c.h.b16 %v5209
  %v6826 = vunpack.c.l.b16 %v5210
  %v6827 = vunpack.c.h.b16 %v5210
  %v6828 = vunpack.c.l.b16 %v5211
  %v6829 = vunpack.c.h.b16 %v5211
  %v6830 = vunpack.c.l.b16 %v5212
  %v6831 = vunpack.c.h.b16 %v5212
  %v6832 = vunpack.c.l.b16 %v5213
  %v6833 = vunpack.c.h.b16 %v5213
  %v6834 = vunpack.c.l.b16 %v5214
  %v6835 = vunpack.c.h.b16 %v5214
  %v6836 = vunpack.c.l.b16 %v5215
  %v6837 = vunpack.c.h.b16 %v5215
  %v6838 = vunpack.c.l.b16 %v5216
  %v6839 = vunpack.c.h.b16 %v5216
  %v6840 = vunpack.c.l.b16 %v5217
  %v6841 = vunpack.c.h.b16 %v5217
  %v6842 = vunpack.c.l.b16 %v5218
  %v6843 = vunpack.c.h.b16 %v5218
  %v6844 = vunpack.c.l.b16 %v5219
  %v6845 = vunpack.c.h.b16 %v5219
  %v6846 = vunpack.c.l.b16 %v5220
  %v6847 = vunpack.c.h.b16 %v5220
  %v6848 = vunpack.c.l.b16 %v5221
  %v6849 = vunpack.c.h.b16 %v5221
  %v6850 = vunpack.c.l.b16 %v5222
  %v6851 = vunpack.c.h.b16 %v5222
  %v6852 = vunpack.c.l.b16 %v5223
  %v6853 = vunpack.c.h.b16 %v5223
  %v6854 = vunpack.c.l.b16 %v5224
  %v6855 = vunpack.c.h.b16 %v5224
  %v6856 = vunpack.c.l.b16 %v5225
  %v6857 = vunpack.c.h.b16 %v5225
  %v6858 = vunpack.c.l.b16 %v5226
  %v6859 = vunpack.c.h.b16 %v5226
  %v6860 = vunpack.c.l.b16 %v5227
  %v6861 = vunpack.c.h.b16 %v5227
  %v6862 = vunpack.c.l.b16 %v5228
  %v6863 = vunpack.c.h.b16 %v5228
  %v6864 = vunpack.c.l.b16 %v5229
  %v6865 = vunpack.c.h.b16 %v5229
  %v6866 = vunpack.c.l.b16 %v5230
  %v6867 = vunpack.c.h.b16 %v5230
  %v6868 = vunpack.c.l.b16 %v5231
  %v6869 = vunpack.c.h.b16 %v5231
  %v6870 = vunpack.c.l.b16 %v5232
  %v6871 = vunpack.c.h.b16 %v5232
  %v6872 = vunpack.c.l.b16 %v5233
  %v6873 = vunpack.c.h.b16 %v5233
  %v6874 = vunpack.c.l.b16 %v5234
  %v6875 = vunpack.c.h.b16 %v5234
  %v6876 = vunpack.c.l.b16 %v5235
  %v6877 = vunpack.c.h.b16 %v5235
  %v6878 = vunpack.c.l.b16 %v5236
  %v6879 = vunpack.c.h.b16 %v5236
  %v6880 = vunpack.c.l.b16 %v5237
  %v6881 = vunpack.c.h.b16 %v5237
  %v6882 = vunpack.c.l.b16 %v5238
  %v6883 = vunpack.c.h.b16 %v5238
  %v6884 = vunpack.c.l.b16 %v5239
  %v6885 = vunpack.c.h.b16 %v5239
  %v6886 = vunpack.c.l.b16 %v5240
  %v6887 = vunpack.c.h.b16 %v5240
  %v6888 = vunpack.c.l.b16 %v5241
  %v6889 = vunpack.c.h.b16 %v5241
  %v6890 = vunpack.c.l.b16 %v5242
  %v6891 = vunpack.c.h.b16 %v5242
  %v6892 = vunpack.c.l.b16 %v5243
  %v6893 = vunpack.c.h.b16 %v5243
  %v6894 = vunpack.c.l.b16 %v5244
  %v6895 = vunpack.c.h.b16 %v5244
  %v6896 = vunpack.c.l.b16 %v5245
  %v6897 = vunpack.c.h.b16 %v5245
  %v6898 = vunpack.c.l.b16 %v5246
  %v6899 = vunpack.c.h.b16 %v5246
  %v6900 = vunpack.c.l.b16 %v5247
  %v6901 = vunpack.c.h.b16 %v5247
  %v6902 = vunpack.c.l.b16 %v5248
  %v6903 = vunpack.c.h.b16 %v5248
  %v6904 = vunpack.c.l.b16 %v5249
  %v6905 = vunpack.c.h.b16 %v5249
  %v6906 = vunpack.c.l.b16 %v5250
  %v6907 = vunpack.c.h.b16 %v5250
  %v6908 = vunpack.c.l.b16 %v5251
  %v6909 = vunpack.c.h.b16 %v5251
  %v6910 = vunpack.c.l.b16 %v5252
  %v6911 = vunpack.c.h.b16 %v5252
  %v6912 = vunpack.c.l.b16 %v5253
  %v6913 = vunpack.c.h.b16 %v5253
  %v6914 = vunpack.c.l.b16 %v5254
  %v6915 = vunpack.c.h.b16 %v5254
  %v6916 = vunpack.c.l.b16 %v5255
  %v6917 = vunpack.c.h.b16 %v5255
  %v6918 = vunpack.c.l.b16 %v5256
  %v6919 = vunpack.c.h.b16 %v5256
  %v6920 = vunpack.c.l.b16 %v5257
  %v6921 = vunpack.c.h.b16 %v5257
  %v6922 = vunpack.c.l.b16 %v5258
  %v6923 = vunpack.c.h.b16 %v5258
  %v6924 = vunpack.c.l.b16 %v5259
  %v6925 = vunpack.c.h.b16 %v5259
  %v6926 = vunpack.c.l.b16 %v5260
  %v6927 = vunpack.c.h.b16 %v5260
  %v6928 = vunpack.c.l.b16 %v5261
  %v6929 = vunpack.c.h.b16 %v5261
  %v6930 = vunpack.c.l.b16 %v5262
  %v6931 = vunpack.c.h.b16 %v5262
  %v6932 = vunpack.c.l.b16 %v5263
  %v6933 = vunpack.c.h.b16 %v5263
  %v6934 = vunpack.c.l.b16 %v5264
  %v6935 = vunpack.c.h.b16 %v5264
  %v6936 = vunpack.c.l.b16 %v5265
  %v6937 = vunpack.c.h.b16 %v5265
  %v6938 = vunpack.c.l.b16 %v5266
  %v6939 = vunpack.c.h.b16 %v5266
  %v6940 = vunpack.c.l.b16 %v5267
  %v6941 = vunpack.c.h.b16 %v5267
  %v6942 = vunpack.c.l.b16 %v5268
  %v6943 = vunpack.c.h.b16 %v5268
  %v6944 = vunpack.c.l.b16 %v5269
  %v6945 = vunpack.c.h.b16 %v5269
  %v6946 = vunpack.c.l.b16 %v5270
  %v6947 = vunpack.c.h.b16 %v5270
  %v6948 = vunpack.c.l.b16 %v5271
  %v6949 = vunpack.c.h.b16 %v5271
  %v6950 = vunpack.c.l.b16 %v5272
  %v6951 = vunpack.c.h.b16 %v5272
  %v6952 = vunpack.c.l.b16 %v5273
  %v6953 = vunpack.c.h.b16 %v5273
  %v6954 = vunpack.c.l.b16 %v5274
  %v6955 = vunpack.c.h.b16 %v5274
  %v6956 = vunpack.c.l.b16 %v5275
  %v6957 = vunpack.c.h.b16 %v5275
  %v6958 = vunpack.c.l.b16 %v5276
  %v6959 = vunpack.c.h.b16 %v5276
  %v6960 = vunpack.c.l.b16 %v5277
  %v6961 = vunpack.c.h.b16 %v5277
  %v6962 = vunpack.c.l.b16 %v5278
  %v6963 = vunpack.c.h.b16 %v5278
  %v6964 = vunpack.c.l.b16 %v5279
  %v6965 = vunpack.c.h.b16 %v5279
  %v6966 = vunpack.c.l.b16 %v5280
  %v6967 = vunpack.c.h.b16 %v5280
  %v6968 = vunpack.c.l.b16 %v5281
  %v6969 = vunpack.c.h.b16 %v5281
  %v6970 = vunpack.c.l.b16 %v5282
  %v6971 = vunpack.c.h.b16 %v5282
  %v6972 = vunpack.c.l.b16 %v5283
  %v6973 = vunpack.c.h.b16 %v5283
  %v6974 = vunpack.c.l.b16 %v5284
  %v6975 = vunpack.c.h.b16 %v5284
  %v6976 = vunpack.c.l.b16 %v5285
  %v6977 = vunpack.c.h.b16 %v5285
  %v6978 = vunpack.c.l.b16 %v5286
  %v6979 = vunpack.c.h.b16 %v5286
  %v6980 = vunpack.c.l.b16 %v5287
  %v6981 = vunpack.c.h.b16 %v5287
  %v6982 = vunpack.c.l.b16 %v5288
  %v6983 = vunpack.c.h.b16 %v5288
  %v6984 = vunpack.c.l.b16 %v5289
  %v6985 = vunpack.c.h.b16 %v5289
  %v6986 = vunpack.c.l.b16 %v5290
  %v6987 = vunpack.c.h.b16 %v5290
  %v6988 = vunpack.c.l.b16 %v5291
  %v6989 = vunpack.c.h.b16 %v5291
  %v6990 = vunpack.c.l.b16 %v5292
  %v6991 = vunpack.c.h.b16 %v5292
  %v6992 = vunpack.c.l.b16 %v5293
  %v6993 = vunpack.c.h.b16 %v5293
  %v6994 = vunpack.c.l.b16 %v5294
  %v6995 = vunpack.c.h.b16 %v5294
  %v6996 = vunpack.c.l.b16 %v5295
  %v6997 = vunpack.c.h.b16 %v5295
  %v6998 = vunpack.c.l.b16 %v5296
  %v6999 = vunpack.c.h.b16 %v5296
  %v7000 = vunpack.c.l.b16 %v5297
  %v7001 = vunpack.c.h.b16 %v5297
  %v7002 = vunpack.c.l.b16 %v5298
  %v7003 = vunpack.c.h.b16 %v5298
  %v7004 = vunpack.c.l.b16 %v5299
  %v7005 = vunpack.c.h.b16 %v5299
  %v7006 = vunpack.c.l.b16 %v5300
  %v7007 = vunpack.c.h.b16 %v5300
  %v7008 = vunpack.c.l.b16 %v5301
  %v7009 = vunpack.c.h.b16 %v5301
  %v7010 = vunpack.c.l.b16 %v5302
  %v7011 = vunpack.c.h.b16 %v5302
  %v7012 = vunpack.c.l.b16 %v5303
  %v7013 = vunpack.c.h.b16 %v5303
  %v7014 = vunpack.c.l.b16 %v5304
  %v7015 = vunpack.c.h.b16 %v5304
  %v7016 = vunpack.c.l.b16 %v5305
  %v7017 = vunpack.c.h.b16 %v5305
  %v7018 = vunpack.c.l.b16 %v5306
  %v7019 = vunpack.c.h.b16 %v5306
  %v7020 = vunpack.c.l.b16 %v5307
  %v7021 = vunpack.c.h.b16 %v5307
  %v7022 = vunpack.c.l.b16 %v5308
  %v7023 = vunpack.c.h.b16 %v5308
  %v7024 = vunpack.c.l.b16 %v5309
  %v7025 = vunpack.c.h.b16 %v5309
  %v7026 = vunpack.c.l.b16 %v5310
  %v7027 = vunpack.c.h.b16 %v5310
  %v7028 = vunpack.c.l.b16 %v5311
  %v7029 = vunpack.c.h.b16 %v5311
  %v7030 = vunpack.c.l.b16 %v5312
  %v7031 = vunpack.c.h.b16 %v5312
  %v7032 = vunpack.c.l.b16 %v5313
  %v7033 = vunpack.c.h.b16 %v5313
  %v7034 = vunpack.c.l.b16 %v5314
  %v7035 = vunpack.c.h.b16 %v5314
  %v7036 = vunpack.c.l.b16 %v5315
  %v7037 = vunpack.c.h.b16 %v5315
  %v7038 = vunpack.c.l.b16 %v5316
  %v7039 = vunpack.c.h.b16 %v5316
  %v7040 = vunpack.c.l.b16 %v5317
  %v7041 = vunpack.c.h.b16 %v5317
  %v7042 = vunpack.c.l.b16 %v5318
  %v7043 = vunpack.c.h.b16 %v5318
  %v7044 = vunpack.c.l.b16 %v5319
  %v7045 = vunpack.c.h.b16 %v5319
  %v7046 = vunpack.c.l.b16 %v5320
  %v7047 = vunpack.c.h.b16 %v5320
  %v7048 = vunpack.c.l.b16 %v5321
  %v7049 = vunpack.c.h.b16 %v5321
  %v7050 = vunpack.c.l.b16 %v5322
  %v7051 = vunpack.c.h.b16 %v5322
  %v7052 = vunpack.c.l.b16 %v5323
  %v7053 = vunpack.c.h.b16 %v5323
  %v7054 = vunpack.c.l.b16 %v5324
  %v7055 = vunpack.c.h.b16 %v5324
  %v7056 = vunpack.c.l.b16 %v5325
  %v7057 = vunpack.c.h.b16 %v5325
  %v7058 = vunpack.c.l.b16 %v5326
  %v7059 = vunpack.c.h.b16 %v5326
  %v7060 = vunpack.c.l.b16 %v5327
  %v7061 = vunpack.c.h.b16 %v5327
  %v7062 = vunpack.c.l.b16 %v5328
  %v7063 = vunpack.c.h.b16 %v5328
  %v7064 = vunpack.c.l.b16 %v5329
  %v7065 = vunpack.c.h.b16 %v5329
  %v7066 = vunpack.c.l.b16 %v5330
  %v7067 = vunpack.c.h.b16 %v5330
  %v7068 = vunpack.c.l.b16 %v5331
  %v7069 = vunpack.c.h.b16 %v5331
  %v7070 = vunpack.c.l.b16 %v5332
  %v7071 = vunpack.c.h.b16 %v5332
  %v7072 = vunpack.c.l.b16 %v5333
  %v7073 = vunpack.c.h.b16 %v5333
  %v7074 = vunpack.c.l.b16 %v5334
  %v7075 = vunpack.c.h.b16 %v5334
  %v7076 = vunpack.c.l.b16 %v5335
  %v7077 = vunpack.c.h.b16 %v5335
  %v7078 = vunpack.c.l.b16 %v5336
  %v7079 = vunpack.c.h.b16 %v5336
  %v7080 = vunpack.c.l.b16 %v5337
  %v7081 = vunpack.c.h.b16 %v5337
  %v7082 = vunpack.c.l.b16 %v5338
  %v7083 = vunpack.c.h.b16 %v5338
  %v7084 = vunpack.c.l.b16 %v5339
  %v7085 = vunpack.c.h.b16 %v5339
  %v7086 = vunpack.c.l.b16 %v5340
  %v7087 = vunpack.c.h.b16 %v5340
  %v7088 = vunpack.c.l.b16 %v5341
  %v7089 = vunpack.c.h.b16 %v5341
  %v7090 = vunpack.c.l.b16 %v5342
  %v7091 = vunpack.c.h.b16 %v5342
  %v7092 = vunpack.c.l.b16 %v5343
  %v7093 = vunpack.c.h.b16 %v5343
  %v7094 = vunpack.c.l.b16 %v5344
  %v7095 = vunpack.c.h.b16 %v5344
  %v7096 = vunpack.c.l.b16 %v5345
  %v7097 = vunpack.c.h.b16 %v5345
  %v7098 = vunpack.c.l.b16 %v5346
  %v7099 = vunpack.c.h.b16 %v5346
  %v7100 = vunpack.c.l.b16 %v5347
  %v7101 = vunpack.c.h.b16 %v5347
  %v7102 = vunpack.c.l.b16 %v5348
  %v7103 = vunpack.c.h.b16 %v5348
  %v7104 = vunpack.c.l.b16 %v5349
  %v7105 = vunpack.c.h.b16 %v5349
  %v7106 = vunpack.c.l.b16 %v5350
  %v7107 = vunpack.c.h.b16 %v5350
  %v7108 = vunpack.c.l.b16 %v5351
  %v7109 = vunpack.c.h.b16 %v5351
  %v7110 = vunpack.c.l.b16 %v5352
  %v7111 = vunpack.c.h.b16 %v5352
  %v7112 = vunpack.c.l.b16 %v5353
  %v7113 = vunpack.c.h.b16 %v5353
  %v7114 = vunpack.c.l.b16 %v5354
  %v7115 = vunpack.c.h.b16 %v5354
  %v7116 = vunpack.c.l.b16 %v5355
  %v7117 = vunpack.c.h.b16 %v5355
  %v7118 = vunpack.c.l.b16 %v5356
  %v7119 = vunpack.c.h.b16 %v5356
  %v7120 = vunpack.c.l.b16 %v5357
  %v7121 = vunpack.c.h.b16 %v5357
  %v7122 = vunpack.c.l.b16 %v5358
  %v7123 = vunpack.c.h.b16 %v5358
  %v7124 = vunpack.c.l.b16 %v5359
  %v7125 = vunpack.c.h.b16 %v5359
  %v7126 = vunpack.c.l.b16 %v5360
  %v7127 = vunpack.c.h.b16 %v5360
  %v7128 = vunpack.c.l.b16 %v5361
  %v7129 = vunpack.c.h.b16 %v5361
  %v7130 = vunpack.c.l.b16 %v5362
  %v7131 = vunpack.c.h.b16 %v5362
  %v7132 = vunpack.c.l.b16 %v5363
  %v7133 = vunpack.c.h.b16 %v5363
  %v7134 = vunpack.c.l.b16 %v5364
  %v7135 = vunpack.c.h.b16 %v5364
  %v7136 = vunpack.c.l.b16 %v5365
  %v7137 = vunpack.c.h.b16 %v5365
  %v7138 = vunpack.c.l.b16 %v5366
  %v7139 = vunpack.c.h.b16 %v5366
  %v7140 = vunpack.c.l.b16 %v5367
  %v7141 = vunpack.c.h.b16 %v5367
  %v7142 = vunpack.c.l.b16 %v5368
  %v7143 = vunpack.c.h.b16 %v5368
  %v7144 = vunpack.c.l.b16 %v5369
  %v7145 = vunpack.c.h.b16 %v5369
  %v7146 = vunpack.c.l.b16 %v5370
  %v7147 = vunpack.c.h.b16 %v5370
  %v7148 = vunpack.c.l.b16 %v5371
  %v7149 = vunpack.c.h.b16 %v5371
  %v7150 = vunpack.c.l.b16 %v5372
  %v7151 = vunpack.c.h.b16 %v5372
  %v7152 = vunpack.c.l.b16 %v5373
  %v7153 = vunpack.c.h.b16 %v5373
  %v7154 = vunpack.c.l.b16 %v5374
  %v7155 = vunpack.c.h.b16 %v5374
  %v7156 = vunpack.c.l.b16 %v5375
  %v7157 = vunpack.c.h.b16 %v5375
  %v7158 = vunpack.c.l.b16 %v5376
  %v7159 = vunpack.c.h.b16 %v5376
  %v7160 = vunpack.c.l.b16 %v5377
  %v7161 = vunpack.c.h.b16 %v5377
  %v7162 = vunpack.c.l.b16 %v5378
  %v7163 = vunpack.c.h.b16 %v5378
  %v7164 = vunpack.c.l.b16 %v5379
  %v7165 = vunpack.c.h.b16 %v5379
  %v7166 = vunpack.c.l.b16 %v5380
  %v7167 = vunpack.c.h.b16 %v5380
  %v7168 = vunpack.c.l.b16 %v5381
  %v7169 = vunpack.c.h.b16 %v5381
  %v7170 = vunpack.c.l.b16 %v5382
  %v7171 = vunpack.c.h.b16 %v5382
  %v7172 = vunpack.c.l.b16 %v5383
  %v7173 = vunpack.c.h.b16 %v5383
  %v7174 = vunpack.c.l.b16 %v5384
  %v7175 = vunpack.c.h.b16 %v5384
  %v7176 = vunpack.c.l.b16 %v5385
  %v7177 = vunpack.c.h.b16 %v5385
  %v7178 = vunpack.c.l.b16 %v5386
  %v7179 = vunpack.c.h.b16 %v5386
  %v7180 = vunpack.c.l.b16 %v5387
  %v7181 = vunpack.c.h.b16 %v5387
  %v7182 = vunpack.c.l.b16 %v5388
  %v7183 = vunpack.c.h.b16 %v5388
  %v7184 = vunpack.c.l.b16 %v5389
  %v7185 = vunpack.c.h.b16 %v5389
  %v7186 = vunpack.c.l.b16 %v5390
  %v7187 = vunpack.c.h.b16 %v5390
  %v7188 = vunpack.c.l.b16 %v5391
  %v7189 = vunpack.c.h.b16 %v5391
  %v7190 = vunpack.c.l.b16 %v5392
  %v7191 = vunpack.c.h.b16 %v5392
  %v7192 = vunpack.c.l.b16 %v5393
  %v7193 = vunpack.c.h.b16 %v5393
  %v7194 = vunpack.c.l.b16 %v5394
  %v7195 = vunpack.c.h.b16 %v5394
  %v7196 = vunpack.c.l.b16 %v5395
  %v7197 = vunpack.c.h.b16 %v5395
  %v7198 = vunpack.c.l.b16 %v5396
  %v7199 = vunpack.c.h.b16 %v5396
  %v7200 = vunpack.c.l.b16 %v5397
  %v7201 = vunpack.c.h.b16 %v5397
  %v7202 = vunpack.c.l.b16 %v5398
  %v7203 = vunpack.c.h.b16 %v5398
  %v7204 = vunpack.c.l.b16 %v5399
  %v7205 = vunpack.c.h.b16 %v5399
  %v7206 = vunpack.c.l.b16 %v5400
  %v7207 = vunpack.c.h.b16 %v5400
  %v7208 = vunpack.c.l.b16 %v5401
  %v7209 = vunpack.c.h.b16 %v5401
  %v7210 = vunpack.c.l.b16 %v5402
  %v7211 = vunpack.c.h.b16 %v5402
  %v7212 = vunpack.c.l.b16 %v5403
  %v7213 = vunpack.c.h.b16 %v5403
  %v7214 = vunpack.c.l.b16 %v5404
  %v7215 = vunpack.c.h.b16 %v5404
  %v7216 = vunpack.c.l.b16 %v5405
  %v7217 = vunpack.c.h.b16 %v5405
  %v7218 = vunpack.c.l.b16 %v5406
  %v7219 = vunpack.c.h.b16 %v5406
  %v7220 = vunpack.c.l.b16 %v5407
  %v7221 = vunpack.c.h.b16 %v5407
  %v7222 = vunpack.c.l.b16 %v5408
  %v7223 = vunpack.c.h.b16 %v5408
  %v7224 = vunpack.c.l.b16 %v5409
  %v7225 = vunpack.c.h.b16 %v5409
  %v7226 = vunpack.c.l.b16 %v5410
  %v7227 = vunpack.c.h.b16 %v5410
  %v7228 = vunpack.c.l.b16 %v5411
  %v7229 = vunpack.c.h.b16 %v5411
  %v7230 = vunpack.c.l.b16 %v5412
  %v7231 = vunpack.c.h.b16 %v5412
  %v7232 = vunpack.c.l.b16 %v5413
  %v7233 = vunpack.c.h.b16 %v5413
  %v7234 = vunpack.c.l.b16 %v5414
  %v7235 = vunpack.c.h.b16 %v5414
  %v7236 = vunpack.c.l.b16 %v5415
  %v7237 = vunpack.c.h.b16 %v5415
  %v7238 = vunpack.c.l.b16 %v5416
  %v7239 = vunpack.c.h.b16 %v5416
  %v7240 = vunpack.c.l.b16 %v5417
  %v7241 = vunpack.c.h.b16 %v5417
  %v7242 = vunpack.c.l.b16 %v5418
  %v7243 = vunpack.c.h.b16 %v5418
  %v7244 = vunpack.c.l.b16 %v5419
  %v7245 = vunpack.c.h.b16 %v5419
  %v7246 = vunpack.c.l.b16 %v5420
  %v7247 = vunpack.c.h.b16 %v5420
  %v7248 = vunpack.c.l.b16 %v5421
  %v7249 = vunpack.c.h.b16 %v5421
  %v7250 = vunpack.c.l.b16 %v5422
  %v7251 = vunpack.c.h.b16 %v5422
  %v7252 = vunpack.c.l.b16 %v5423
  %v7253 = vunpack.c.h.b16 %v5423
  %v7254 = vunpack.c.l.b16 %v5424
  %v7255 = vunpack.c.h.b16 %v5424
  %v7256 = vunpack.c.l.b16 %v5425
  %v7257 = vunpack.c.h.b16 %v5425
  %v7258 = vunpack.c.l.b16 %v5426
  %v7259 = vunpack.c.h.b16 %v5426
  %v7260 = vunpack.c.l.b16 %v5427
  %v7261 = vunpack.c.h.b16 %v5427
  %v7262 = vunpack.c.l.b16 %v5428
  %v7263 = vunpack.c.h.b16 %v5428
  %v7264 = vunpack.c.l.b16 %v5429
  %v7265 = vunpack.c.h.b16 %v5429
  %v7266 = vunpack.c.l.b16 %v5430
  %v7267 = vunpack.c.h.b16 %v5430
  %v7268 = vunpack.c.l.b16 %v5431
  %v7269 = vunpack.c.h.b16 %v5431
  %v7270 = vunpack.c.l.b16 %v5432
  %v7271 = vunpack.c.h.b16 %v5432
  %v7272 = vunpack.c.l.b16 %v5433
  %v7273 = vunpack.c.h.b16 %v5433
  %v7274 = vunpack.c.l.b16 %v5434
  %v7275 = vunpack.c.h.b16 %v5434
  %v7276 = vunpack.c.l.b16 %v5435
  %v7277 = vunpack.c.h.b16 %v5435
  %v7278 = vunpack.c.l.b16 %v5436
  %v7279 = vunpack.c.h.b16 %v5436
  %v7280 = vunpack.c.l.b16 %v5437
  %v7281 = vunpack.c.h.b16 %v5437
  %v7282 = vunpack.c.l.b16 %v5438
  %v7283 = vunpack.c.h.b16 %v5438
  %v7284 = vunpack.c.l.b16 %v5439
  %v7285 = vunpack.c.h.b16 %v5439
  %v7286 = vunpack.c.l.b16 %v5440
  %v7287 = vunpack.c.h.b16 %v5440
  %v7288 = vunpack.c.l.b16 %v5441
  %v7289 = vunpack.c.h.b16 %v5441
  %v7290 = vunpack.c.l.b16 %v5442
  %v7291 = vunpack.c.h.b16 %v5442
  %v7292 = vunpack.c.l.b16 %v5443
  %v7293 = vunpack.c.h.b16 %v5443
  %v7294 = vunpack.c.l.b16 %v5444
  %v7295 = vunpack.c.h.b16 %v5444
  %v7296 = vunpack.c.l.b16 %v5445
  %v7297 = vunpack.c.h.b16 %v5445
  %v7298 = vunpack.c.l.b16 %v5446
  %v7299 = vunpack.c.h.b16 %v5446
  %v7300 = vunpack.c.l.b16 %v5447
  %v7301 = vunpack.c.h.b16 %v5447
  %v7302 = vunpack.c.l.b16 %v5448
  %v7303 = vunpack.c.h.b16 %v5448
  %v7304 = vunpack.c.l.b16 %v5449
  %v7305 = vunpack.c.h.b16 %v5449
  %v7306 = vunpack.c.l.b16 %v5450
  %v7307 = vunpack.c.h.b16 %v5450
  %v7308 = vunpack.c.l.b16 %v5451
  %v7309 = vunpack.c.h.b16 %v5451
  %v7310 = vunpack.c.l.b16 %v5452
  %v7311 = vunpack.c.h.b16 %v5452
  %v7312 = vunpack.c.l.b16 %v5453
  %v7313 = vunpack.c.h.b16 %v5453
  %v7314 = vunpack.c.l.b16 %v5454
  %v7315 = vunpack.c.h.b16 %v5454
  %v7316 = vunpack.c.l.b16 %v5455
  %v7317 = vunpack.c.h.b16 %v5455
  %v7318 = vunpack.c.l.b16 %v5456
  %v7319 = vunpack.c.h.b16 %v5456
  %v7320 = vunpack.c.l.b16 %v5457
  %v7321 = vunpack.c.h.b16 %v5457
  %v7322 = vunpack.c.l.b16 %v5458
  %v7323 = vunpack.c.h.b16 %v5458
  %v7324 = vunpack.c.l.b16 %v5459
  %v7325 = vunpack.c.h.b16 %v5459
  %v7326 = vunpack.c.l.b16 %v5460
  %v7327 = vunpack.c.h.b16 %v5460
  %v7328 = vunpack.c.l.b16 %v5461
  %v7329 = vunpack.c.h.b16 %v5461
  %v7330 = vunpack.c.l.b16 %v5462
  %v7331 = vunpack.c.h.b16 %v5462
  %v7332 = vunpack.c.l.b16 %v5463
  %v7333 = vunpack.c.h.b16 %v5463
  %v7334 = vunpack.c.l.b16 %v5464
  %v7335 = vunpack.c.h.b16 %v5464
  %v7336 = vunpack.c.l.b16 %v5465
  %v7337 = vunpack.c.h.b16 %v5465
  %v7338 = vunpack.c.l.b16 %v5466
  %v7339 = vunpack.c.h.b16 %v5466
  %v7340 = vunpack.c.l.b16 %v5467
  %v7341 = vunpack.c.h.b16 %v5467
  %v7342 = vunpack.c.l.b16 %v5468
  %v7343 = vunpack.c.h.b16 %v5468
  %v7344 = vunpack.c.l.b16 %v5469
  %v7345 = vunpack.c.h.b16 %v5469
  %v7346 = vunpack.c.l.b16 %v5470
  %v7347 = vunpack.c.h.b16 %v5470
  %v7348 = vunpack.c.l.b16 %v5471
  %v7349 = vunpack.c.h.b16 %v5471
  %v7350 = vunpack.c.l.b16 %v5472
  %v7351 = vunpack.c.h.b16 %v5472
  %v7352 = vunpack.c.l.b16 %v5473
  %v7353 = vunpack.c.h.b16 %v5473
  %v7354 = vunpack.c.l.b16 %v5474
  %v7355 = vunpack.c.h.b16 %v5474
  %v7356 = vunpack.c.l.b16 %v5475
  %v7357 = vunpack.c.h.b16 %v5475
  %v7358 = vunpack.c.l.b16 %v5476
  %v7359 = vunpack.c.h.b16 %v5476
  %v7360 = vunpack.c.l.b16 %v5477
  %v7361 = vunpack.c.h.b16 %v5477
  %v7362 = vunpack.c.l.b16 %v5478
  %v7363 = vunpack.c.h.b16 %v5478
  %v7364 = vunpack.c.l.b16 %v5479
  %v7365 = vunpack.c.h.b16 %v5479
  %v7366 = vunpack.c.l.b16 %v5480
  %v7367 = vunpack.c.h.b16 %v5480
  %v7368 = vunpack.c.l.b16 %v5481
  %v7369 = vunpack.c.h.b16 %v5481
  %v7370 = vunpack.c.l.b16 %v5482
  %v7371 = vunpack.c.h.b16 %v5482
  %v7372 = vunpack.c.l.b16 %v5483
  %v7373 = vunpack.c.h.b16 %v5483
  %v7374 = vunpack.c.l.b16 %v5484
  %v7375 = vunpack.c.h.b16 %v5484
  %v7376 = vunpack.c.l.b16 %v5485
  %v7377 = vunpack.c.h.b16 %v5485
  %v7378 = vunpack.c.l.b16 %v5486
  %v7379 = vunpack.c.h.b16 %v5486
  %v7380 = vunpack.c.l.b16 %v5487
  %v7381 = vunpack.c.h.b16 %v5487
  %v7382 = vunpack.c.l.b16 %v5488
  %v7383 = vunpack.c.h.b16 %v5488
  %v7384 = vunpack.c.l.b16 %v5489
  %v7385 = vunpack.c.h.b16 %v5489
  %v7386 = vunpack.c.l.b16 %v5490
  %v7387 = vunpack.c.h.b16 %v5490
  %v7388 = vunpack.c.l.b16 %v5491
  %v7389 = vunpack.c.h.b16 %v5491
  %v7390 = vunpack.c.l.b16 %v5492
  %v7391 = vunpack.c.h.b16 %v5492
  %v7392 = vunpack.c.l.b16 %v5493
  %v7393 = vunpack.c.h.b16 %v5493
  %v7394 = vunpack.c.l.b16 %v5494
  %v7395 = vunpack.c.h.b16 %v5494
  %v7396 = vunpack.c.l.b16 %v5495
  %v7397 = vunpack.c.h.b16 %v5495
  %v7398 = vunpack.c.l.b16 %v5496
  %v7399 = vunpack.c.h.b16 %v5496
  %v7400 = vunpack.c.l.b16 %v5497
  %v7401 = vunpack.c.h.b16 %v5497
  %v7402 = vunpack.c.l.b16 %v5498
  %v7403 = vunpack.c.h.b16 %v5498
  %v7404 = vunpack.c.l.b16 %v5499
  %v7405 = vunpack.c.h.b16 %v5499
  %v7406 = vunpack.c.l.b16 %v5500
  %v7407 = vunpack.c.h.b16 %v5500
  %v7408 = vunpack.c.l.b16 %v5501
  %v7409 = vunpack.c.h.b16 %v5501
  %v7410 = vunpack.c.l.b16 %v5502
  %v7411 = vunpack.c.h.b16 %v5502
  %v7412 = vunpack.c.l.b16 %v5503
  %v7413 = vunpack.c.h.b16 %v5503
  %v7414 = vunpack.c.l.b16 %v5504
  %v7415 = vunpack.c.h.b16 %v5504
  %v7416 = vunpack.c.l.b16 %v5505
  %v7417 = vunpack.c.h.b16 %v5505
  %v7418 = vunpack.c.l.b16 %v5506
  %v7419 = vunpack.c.h.b16 %v5506
  %v7420 = vunpack.c.l.b16 %v5507
  %v7421 = vunpack.c.h.b16 %v5507
  %v7422 = vunpack.c.l.b16 %v5508
  %v7423 = vunpack.c.h.b16 %v5508
  %v7424 = vunpack.c.l.b16 %v5509
  %v7425 = vunpack.c.h.b16 %v5509
  %v7426 = vunpack.c.l.b16 %v5510
  %v7427 = vunpack.c.h.b16 %v5510
  %v7428 = vunpack.c.l.b16 %v5511
  %v7429 = vunpack.c.h.b16 %v5511
  %v7430 = vunpack.c.l.b16 %v5512
  %v7431 = vunpack.c.h.b16 %v5512
  %v7432 = vunpack.c.l.b16 %v5513
  %v7433 = vunpack.c.h.b16 %v5513
  %v7434 = vunpack.c.l.b16 %v5514
  %v7435 = vunpack.c.h.b16 %v5514
  %v7436 = vunpack.c.l.b16 %v5515
  %v7437 = vunpack.c.h.b16 %v5515
  %v7438 = vunpack.c.l.b16 %v5516
  %v7439 = vunpack.c.h.b16 %v5516
  %v7440 = vunpack.c.l.b16 %v5517
  %v7441 = vunpack.c.h.b16 %v5517
  %v7442 = vunpack.c.l.b16 %v5518
  %v7443 = vunpack.c.h.b16 %v5518
  %v7444 = vunpack.c.l.b16 %v5519
  %v7445 = vunpack.c.h.b16 %v5519
  %v7446 = vunpack.c.l.b16 %v5520
  %v7447 = vunpack.c.h.b16 %v5520
  %v7448 = vunpack.c.l.b16 %v5521
  %v7449 = vunpack.c.h.b16 %v5521
  %v7450 = vunpack.c.l.b16 %v5522
  %v7451 = vunpack.c.h.b16 %v5522
  %v7452 = vunpack.c.l.b16 %v5523
  %v7453 = vunpack.c.h.b16 %v5523
  %v7454 = vunpack.c.l.b16 %v5524
  %v7455 = vunpack.c.h.b16 %v5524
  %v7456 = vunpack.c.l.b16 %v5525
  %v7457 = vunpack.c.h.b16 %v5525
  %v7458 = vunpack.c.l.b16 %v5526
  %v7459 = vunpack.c.h.b16 %v5526
  %v7460 = vunpack.c.l.b16 %v5527
  %v7461 = vunpack.c.h.b16 %v5527
  %v7462 = vunpack.c.l.b16 %v5528
  %v7463 = vunpack.c.h.b16 %v5528
  %v7464 = vunpack.c.l.b16 %v5529
  %v7465 = vunpack.c.h.b16 %v5529
  %v7466 = vunpack.c.l.b16 %v5530
  %v7467 = vunpack.c.h.b16 %v5530
  %v7468 = vunpack.c.l.b16 %v5531
  %v7469 = vunpack.c.h.b16 %v5531
  %v7470 = vunpack.c.l.b16 %v5532
  %v7471 = vunpack.c.h.b16 %v5532
  %v7472 = vunpack.c.l.b16 %v5533
  %v7473 = vunpack.c.h.b16 %v5533
  %v7474 = vunpack.c.l.b16 %v5534
  %v7475 = vunpack.c.h.b16 %v5534
  %v7476 = vunpack.c.l.b16 %v5535
  %v7477 = vunpack.c.h.b16 %v5535
  %v7478 = vunpack.c.l.b16 %v5536
  %v7479 = vunpack.c.h.b16 %v5536
  %v7480 = vunpack.c.l.b16 %v5537
  %v7481 = vunpack.c.h.b16 %v5537
  %v7482 = vunpack.c.l.b16 %v5538
  %v7483 = vunpack.c.h.b16 %v5538
  %v7484 = vunpack.c.l.b16 %v5539
  %v7485 = vunpack.c.h.b16 %v5539
  %v7486 = vunpack.c.l.b16 %v5540
  %v7487 = vunpack.c.h.b16 %v5540
  %v7488 = vunpack.c.l.b16 %v5541
  %v7489 = vunpack.c.h.b16 %v5541
  %v7490 = vunpack.c.l.b16 %v5542
  %v7491 = vunpack.c.h.b16 %v5542
  %v7492 = vunpack.c.l.b16 %v5543
  %v7493 = vunpack.c.h.b16 %v5543
  %v7494 = vunpack.c.l.b16 %v5544
  %v7495 = vunpack.c.h.b16 %v5544
  %v7496 = vunpack.c.l.b16 %v5545
  %v7497 = vunpack.c.h.b16 %v5545
  %v7498 = vunpack.c.l.b16 %v5546
  %v7499 = vunpack.c.h.b16 %v5546
  %v7500 = vunpack.c.l.b16 %v5547
  %v7501 = vunpack.c.h.b16 %v5547
  %v7502 = vunpack.c.l.b16 %v5548
  %v7503 = vunpack.c.h.b16 %v5548
  %v7504 = vunpack.c.l.b16 %v5549
  %v7505 = vunpack.c.h.b16 %v5549
  %v7506 = vunpack.c.l.b16 %v5550
  %v7507 = vunpack.c.h.b16 %v5550
  %v7508 = vunpack.c.l.b16 %v5551
  %v7509 = vunpack.c.h.b16 %v5551
  %v7510 = vunpack.c.l.b16 %v5552
  %v7511 = vunpack.c.h.b16 %v5552
  %v7512 = vunpack.c.l.b16 %v5553
  %v7513 = vunpack.c.h.b16 %v5553
  %v7514 = vunpack.c.l.b16 %v5554
  %v7515 = vunpack.c.h.b16 %v5554
  %v7516 = vunpack.c.l.b16 %v5555
  %v7517 = vunpack.c.h.b16 %v5555
  %v7518 = vunpack.c.l.b16 %v5556
  %v7519 = vunpack.c.h.b16 %v5556
  %v7520 = vunpack.c.l.b16 %v5557
  %v7521 = vunpack.c.h.b16 %v5557
  %v7522 = vunpack.c.l.b16 %v5558
  %v7523 = vunpack.c.h.b16 %v5558
  %v7524 = vunpack.c.l.b16 %v5559
  %v7525 = vunpack.c.h.b16 %v5559
  %v7526 = vunpack.c.l.b16 %v5560
  %v7527 = vunpack.c.h.b16 %v5560
  %v7528 = vunpack.c.l.b16 %v5561
  %v7529 = vunpack.c.h.b16 %v5561
  %v7530 = vunpack.c.l.b16 %v5562
  %v7531 = vunpack.c.h.b16 %v5562
  %v7532 = vunpack.c.l.b16 %v5563
  %v7533 = vunpack.c.h.b16 %v5563
  %v7534 = vunpack.c.l.b16 %v5564
  %v7535 = vunpack.c.h.b16 %v5564
  %v7536 = vunpack.c.l.b16 %v5565
  %v7537 = vunpack.c.h.b16 %v5565
  %v7538 = vunpack.c.l.b16 %v5566
  %v7539 = vunpack.c.h.b16 %v5566
  %v7540 = vunpack.c.l.b16 %v5567
  %v7541 = vunpack.c.h.b16 %v5567
  %v7542 = vunpack.c.l.b16 %v5568
  %v7543 = vunpack.c.h.b16 %v5568
  %v7544 = vunpack.c.l.b16 %v5569
  %v7545 = vunpack.c.h.b16 %v5569
  %v7546 = vunpack.c.l.b16 %v5570
  %v7547 = vunpack.c.h.b16 %v5570
  %v7548 = vunpack.c.l.b16 %v5571
  %v7549 = vunpack.c.h.b16 %v5571
  %v7550 = vunpack.c.l.b16 %v5572
  %v7551 = vunpack.c.h.b16 %v5572
  %v7552 = vunpack.c.l.b16 %v5573
  %v7553 = vunpack.c.h.b16 %v5573
  %v7554 = vunpack.c.l.b16 %v5574
  %v7555 = vunpack.c.h.b16 %v5574
  %v7556 = vunpack.c.l.b16 %v5575
  %v7557 = vunpack.c.h.b16 %v5575
  %v7558 = vunpack.c.l.b16 %v5576
  %v7559 = vunpack.c.h.b16 %v5576
  %v7560 = vunpack.c.l.b16 %v5577
  %v7561 = vunpack.c.h.b16 %v5577
  %v7562 = vunpack.c.l.b16 %v5578
  %v7563 = vunpack.c.h.b16 %v5578
  %v7564 = vunpack.c.l.b16 %v5579
  %v7565 = vunpack.c.h.b16 %v5579
  %v7566 = vunpack.c.l.b16 %v5580
  %v7567 = vunpack.c.h.b16 %v5580
  %v7568 = vunpack.c.l.b16 %v5581
  %v7569 = vunpack.c.h.b16 %v5581
  %v7570 = vunpack.c.l.b16 %v5582
  %v7571 = vunpack.c.h.b16 %v5582
  %v7572 = vunpack.c.l.b16 %v5583
  %v7573 = vunpack.c.h.b16 %v5583
  %v7574 = vunpack.c.l.b16 %v5584
  %v7575 = vunpack.c.h.b16 %v5584
  %v7576 = vunpack.c.l.b16 %v5585
  %v7577 = vunpack.c.h.b16 %v5585
  %v7578 = vunpack.c.l.b16 %v5586
  %v7579 = vunpack.c.h.b16 %v5586
  %v7580 = vunpack.c.l.b16 %v5587
  %v7581 = vunpack.c.h.b16 %v5587
  %v7582 = vunpack.c.l.b16 %v5588
  %v7583 = vunpack.c.h.b16 %v5588
  %v7584 = vunpack.c.l.b16 %v5589
  %v7585 = vunpack.c.h.b16 %v5589
  %v7586 = vunpack.c.l.b16 %v5590
  %v7587 = vunpack.c.h.b16 %v5590
  %v7588 = vunpack.c.l.b16 %v5591
  %v7589 = vunpack.c.h.b16 %v5591
  %v7590 = vunpack.c.l.b16 %v5592
  %v7591 = vunpack.c.h.b16 %v5592
  %v7592 = vunpack.c.l.b16 %v5593
  %v7593 = vunpack.c.h.b16 %v5593
  %v7594 = vunpack.c.l.b16 %v5594
  %v7595 = vunpack.c.h.b16 %v5594
  %v7596 = vunpack.c.l.b16 %v5595
  %v7597 = vunpack.c.h.b16 %v5595
  %v7598 = vunpack.c.l.b16 %v5596
  %v7599 = vunpack.c.h.b16 %v5596
  %v7600 = vunpack.c.l.b16 %v5597
  %v7601 = vunpack.c.h.b16 %v5597
  %v7602 = vunpack.c.l.b16 %v5598
  %v7603 = vunpack.c.h.b16 %v5598
  %v7604 = vunpack.c.l.b16 %v5599
  %v7605 = vunpack.c.h.b16 %v5599
  %v7606 = vunpack.c.l.b16 %v5600
  %v7607 = vunpack.c.h.b16 %v5600
  %v7608 = vunpack.c.l.b16 %v5601
  %v7609 = vunpack.c.h.b16 %v5601
  %v7610 = vunpack.c.l.b16 %v5602
  %v7611 = vunpack.c.h.b16 %v5602
  %v7612 = vunpack.c.l.b16 %v5603
  %v7613 = vunpack.c.h.b16 %v5603
  %v7614 = vunpack.c.l.b16 %v5604
  %v7615 = vunpack.c.h.b16 %v5604
  %v7616 = vunpack.c.l.b16 %v5605
  %v7617 = vunpack.c.h.b16 %v5605
  %v7618 = vunpack.c.l.b16 %v5606
  %v7619 = vunpack.c.h.b16 %v5606
  %v7620 = vunpack.c.l.b16 %v5607
  %v7621 = vunpack.c.h.b16 %v5607
  %v7622 = vunpack.c.l.b16 %v5608
  %v7623 = vunpack.c.h.b16 %v5608
  %v7624 = vunpack.c.l.b16 %v5609
  %v7625 = vunpack.c.h.b16 %v5609
  %v7626 = vunpack.c.l.b16 %v5610
  %v7627 = vunpack.c.h.b16 %v5610
  %v7628 = vunpack.c.l.b16 %v5611
  %v7629 = vunpack.c.h.b16 %v5611
  %v7630 = vunpack.c.l.b16 %v5612
  %v7631 = vunpack.c.h.b16 %v5612
  %v7632 = vunpack.c.l.b16 %v5613
  %v7633 = vunpack.c.h.b16 %v5613
  %v7634 = vunpack.c.l.b16 %v5614
  %v7635 = vunpack.c.h.b16 %v5614
  %v7636 = vunpack.c.l.b16 %v5615
  %v7637 = vunpack.c.h.b16 %v5615
  %v7638 = vunpack.c.l.b16 %v5616
  %v7639 = vunpack.c.h.b16 %v5616
  %v7640 = vunpack.c.l.b16 %v5617
  %v7641 = vunpack.c.h.b16 %v5617
  %v7642 = vunpack.c.l.b16 %v5618
  %v7643 = vunpack.c.h.b16 %v5618
  %v7644 = vunpack.c.l.b16 %v5619
  %v7645 = vunpack.c.h.b16 %v5619
  %v7646 = vunpack.c.l.b16 %v5620
  %v7647 = vunpack.c.h.b16 %v5620
  %v7648 = vunpack.c.l.b16 %v5621
  %v7649 = vunpack.c.h.b16 %v5621
  %v7650 = vunpack.c.l.b16 %v5622
  %v7651 = vunpack.c.h.b16 %v5622
  %v7652 = vunpack.c.l.b16 %v5623
  %v7653 = vunpack.c.h.b16 %v5623
  %v7654 = vunpack.c.l.b16 %v5624
  %v7655 = vunpack.c.h.b16 %v5624
  %v7656 = vunpack.c.l.b16 %v5625
  %v7657 = vunpack.c.h.b16 %v5625
  %v7658 = vunpack.c.l.b16 %v5626
  %v7659 = vunpack.c.h.b16 %v5626
  %v7660 = vunpack.c.l.b16 %v5627
  %v7661 = vunpack.c.h.b16 %v5627
  %v7662 = vunpack.c.l.b16 %v5628
  %v7663 = vunpack.c.h.b16 %v5628
  %v7664 = vunpack.c.l.b16 %v5629
  %v7665 = vunpack.c.h.b16 %v5629
  %v7666 = vunpack.c.l.b16 %v5630
  %v7667 = vunpack.c.h.b16 %v5630
  %v7668 = vunpack.c.l.b16 %v5631
  %v7669 = vunpack.c.h.b16 %v5631
  %v7670 = vunpack.c.l.b16 %v5632
  %v7671 = vunpack.c.h.b16 %v5632
  %v7672 = vunpack.c.l.b16 %v5633
  %v7673 = vunpack.c.h.b16 %v5633
  %v7674 = vunpack.c.l.b16 %v5634
  %v7675 = vunpack.c.h.b16 %v5634
  %v7676 = vunpack.c.l.b16 %v5635
  %v7677 = vunpack.c.h.b16 %v5635
  %v7678 = vunpack.c.l.b16 %v5636
  %v7679 = vunpack.c.h.b16 %v5636
  %v7680 = vunpack.c.l.b16 %v5637
  %v7681 = vunpack.c.h.b16 %v5637
  %v7682 = vunpack.c.l.b16 %v5638
  %v7683 = vunpack.c.h.b16 %v5638
  %v7684 = vunpack.c.l.b16 %v5639
  %v7685 = vunpack.c.h.b16 %v5639
  %v7686 = vunpack.c.l.b16 %v5640
  %v7687 = vunpack.c.h.b16 %v5640
  %v7688 = vunpack.c.l.b16 %v5641
  %v7689 = vunpack.c.h.b16 %v5641
  %v7690 = vunpack.c.l.b16 %v5642
  %v7691 = vunpack.c.h.b16 %v5642
  %v7692 = vunpack.c.l.b16 %v5643
  %v7693 = vunpack.c.h.b16 %v5643
  %v7694 = vunpack.c.l.b16 %v5644
  %v7695 = vunpack.c.h.b16 %v5644
  %v7696 = vunpack.c.l.b16 %v5645
  %v7697 = vunpack.c.h.b16 %v5645
  %v7698 = vunpack.c.l.b16 %v5646
  %v7699 = vunpack.c.h.b16 %v5646
  %v7700 = vunpack.c.l.b16 %v5647
  %v7701 = vunpack.c.h.b16 %v5647
  %v7702 = vunpack.c.l.b16 %v5648
  %v7703 = vunpack.c.h.b16 %v5648
  %v7704 = vunpack.c.l.b16 %v5649
  %v7705 = vunpack.c.h.b16 %v5649
  %v7706 = vunpack.c.l.b16 %v5650
  %v7707 = vunpack.c.h.b16 %v5650
  %v7708 = vunpack.c.l.b16 %v5651
  %v7709 = vunpack.c.h.b16 %v5651
  %v7710 = vunpack.c.l.b16 %v5652
  %v7711 = vunpack.c.h.b16 %v5652
  %v7712 = vunpack.c.l.b16 %v5653
  %v7713 = vunpack.c.h.b16 %v5653
  %v7714 = vunpack.c.l.b16 %v5654
  %v7715 = vunpack.c.h.b16 %v5654
  %v7716 = vunpack.c.l.b16 %v5655
  %v7717 = vunpack.c.h.b16 %v5655
  %v7718 = vunpack.c.l.b16 %v5656
  %v7719 = vunpack.c.h.b16 %v5656
  %v7720 = vunpack.c.l.b16 %v5657
  %v7721 = vunpack.c.h.b16 %v5657
  %v7722 = vunpack.c.l.b16 %v5658
  %v7723 = vunpack.c.h.b16 %v5658
  %v7724 = vunpack.c.l.b16 %v5659
  %v7725 = vunpack.c.h.b16 %v5659
  %v7726 = vunpack.c.l.b16 %v5660
  %v7727 = vunpack.c.h.b16 %v5660
  %v7728 = vunpack.c.l.b16 %v5661
  %v7729 = vunpack.c.h.b16 %v5661
  %v7730 = vunpack.c.l.b16 %v5662
  %v7731 = vunpack.c.h.b16 %v5662
  %v7732 = vunpack.c.l.b16 %v5663
  %v7733 = vunpack.c.h.b16 %v5663
  %v7734 = vunpack.c.l.b16 %v5664
  %v7735 = vunpack.c.h.b16 %v5664
  %v7736 = vunpack.c.l.b16 %v5665
  %v7737 = vunpack.c.h.b16 %v5665
  %v7738 = vunpack.c.l.b16 %v5666
  %v7739 = vunpack.c.h.b16 %v5666
  %v7740 = vunpack.c.l.b16 %v5667
  %v7741 = vunpack.c.h.b16 %v5667
  %v7742 = vunpack.c.l.b16 %v5668
  %v7743 = vunpack.c.h.b16 %v5668
  %v7744 = vunpack.c.l.b16 %v5669
  %v7745 = vunpack.c.h.b16 %v5669
  %v7746 = vunpack.c.l.b16 %v5670
  %v7747 = vunpack.c.h.b16 %v5670
  %v7748 = vunpack.c.l.b16 %v5671
  %v7749 = vunpack.c.h.b16 %v5671
  %v7750 = vunpack.c.l.b16 %v5672
  %v7751 = vunpack.c.h.b16 %v5672
  %v7752 = vunpack.c.l.b16 %v5673
  %v7753 = vunpack.c.h.b16 %v5673
  %v7754 = vunpack.c.l.b16 %v5674
  %v7755 = vunpack.c.h.b16 %v5674
  %v7756 = vunpack.c.l.b16 %v5675
  %v7757 = vunpack.c.h.b16 %v5675
  %v7758 = vunpack.c.l.b16 %v5676
  %v7759 = vunpack.c.h.b16 %v5676
  %v7760 = vunpack.c.l.b16 %v5677
  %v7761 = vunpack.c.h.b16 %v5677
  %v7762 = vunpack.c.l.b16 %v5678
  %v7763 = vunpack.c.h.b16 %v5678
  %v7764 = vunpack.c.l.b16 %v5679
  %v7765 = vunpack.c.h.b16 %v5679
  %v7766 = vunpack.c.l.b16 %v5680
  %v7767 = vunpack.c.h.b16 %v5680
  %v7768 = vunpack.c.l.b16 %v5681
  %v7769 = vunpack.c.h.b16 %v5681
  %v7770 = vunpack.c.l.b16 %v5682
  %v7771 = vunpack.c.h.b16 %v5682
  %v7772 = vunpack.c.l.b16 %v5683
  %v7773 = vunpack.c.h.b16 %v5683
  %v7774 = vunpack.c.l.b16 %v5684
  %v7775 = vunpack.c.h.b16 %v5684
  %v7776 = vunpack.c.l.b16 %v5685
  %v7777 = vunpack.c.h.b16 %v5685
  %v7778 = vunpack.c.l.b16 %v5686
  %v7779 = vunpack.c.h.b16 %v5686
  %v7780 = vunpack.c.l.b16 %v5687
  %v7781 = vunpack.c.h.b16 %v5687
  %v7782 = vunpack.c.l.b16 %v5688
  %v7783 = vunpack.c.h.b16 %v5688
  %v7784 = vunpack.c.l.b16 %v5689
  %v7785 = vunpack.c.h.b16 %v5689
  %v7786 = vunpack.c.l.b16 %v5690
  %v7787 = vunpack.c.h.b16 %v5690
  %v7788 = vunpack.c.l.b16 %v5691
  %v7789 = vunpack.c.h.b16 %v5691
  %v7790 = vunpack.c.l.b16 %v5692
  %v7791 = vunpack.c.h.b16 %v5692
  %v7792 = vunpack.c.l.b16 %v5693
  %v7793 = vunpack.c.h.b16 %v5693
  %v7794 = vunpack.c.l.b16 %v5694
  %v7795 = vunpack.c.h.b16 %v5694
  %v7796 = vunpack.c.l.b16 %v5695
  %v7797 = vunpack.c.h.b16 %v5695
  %v7798 = vunpack.c.l.b16 %v5696
  %v7799 = vunpack.c.h.b16 %v5696
  %v7800 = vunpack.c.l.b16 %v5697
  %v7801 = vunpack.c.h.b16 %v5697
  %v7802 = vunpack.c.l.b16 %v5698
  %v7803 = vunpack.c.h.b16 %v5698
  %v7804 = vunpack.c.l.b16 %v5699
  %v7805 = vunpack.c.h.b16 %v5699
  %v7806 = vunpack.c.l.b16 %v5700
  %v7807 = vunpack.c.h.b16 %v5700
  %v7808 = vunpack.c.l.b16 %v5701
  %v7809 = vunpack.c.h.b16 %v5701
  %v7810 = vunpack.c.l.b16 %v5702
  %v7811 = vunpack.c.h.b16 %v5702
  %v7812 = vunpack.c.l.b16 %v5703
  %v7813 = vunpack.c.h.b16 %v5703
  %v7814 = vunpack.c.l.b16 %v5704
  %v7815 = vunpack.c.h.b16 %v5704
  %v7816 = vunpack.c.l.b16 %v5705
  %v7817 = vunpack.c.h.b16 %v5705
  %v7818 = vunpack.c.l.b16 %v5706
  %v7819 = vunpack.c.h.b16 %v5706
  %v7820 = vunpack.c.l.b16 %v5707
  %v7821 = vunpack.c.h.b16 %v5707
  %v7822 = vunpack.c.l.b16 %v5708
  %v7823 = vunpack.c.h.b16 %v5708
  %v7824 = vunpack.c.l.b16 %v5709
  %v7825 = vunpack.c.h.b16 %v5709
  %v7826 = vunpack.c.l.b16 %v5710
  %v7827 = vunpack.c.h.b16 %v5710
  %v7828 = vunpack.c.l.b16 %v5711
  %v7829 = vunpack.c.h.b16 %v5711
  %v7830 = vunpack.c.l.b16 %v5712
  %v7831 = vunpack.c.h.b16 %v5712
  %v7832 = vunpack.c.l.b16 %v5713
  %v7833 = vunpack.c.h.b16 %v5713
  %v7834 = vunpack.c.l.b16 %v5714
  %v7835 = vunpack.c.h.b16 %v5714
  %v7836 = vunpack.c.l.b16 %v5715
  %v7837 = vunpack.c.h.b16 %v5715
  %v7838 = vunpack.c.l.b16 %v5716
  %v7839 = vunpack.c.h.b16 %v5716
  %v7840 = vunpack.c.l.b16 %v5717
  %v7841 = vunpack.c.h.b16 %v5717
  %v7842 = vunpack.c.l.b16 %v5718
  %v7843 = vunpack.c.h.b16 %v5718
  %v7844 = vunpack.c.l.b16 %v5719
  %v7845 = vunpack.c.h.b16 %v5719
  %v7846 = vunpack.c.l.b16 %v5720
  %v7847 = vunpack.c.h.b16 %v5720
  %v7848 = vunpack.c.l.b16 %v5721
  %v7849 = vunpack.c.h.b16 %v5721
  %v7850 = vunpack.c.l.b16 %v5722
  %v7851 = vunpack.c.h.b16 %v5722
  %v7852 = vunpack.c.l.b16 %v5723
  %v7853 = vunpack.c.h.b16 %v5723
  %v7854 = vpack.c.b16 %v6614, %v6574
  %v7855 = vpack.c.b16 %v6615, %v6575
  %v7856 = vpack.c.b16 %v6616, %v6576
  %v7857 = vpack.c.b16 %v6617, %v6577
  %v7858 = vpack.c.b16 %v6618, %v6578
  %v7859 = vpack.c.b16 %v6619, %v6579
  %v7860 = vpack.c.b16 %v6620, %v6580
  %v7861 = vpack.c.b16 %v6621, %v6581
  %v7862 = vpack.c.b16 %v6622, %v6582
  %v7863 = vpack.c.b16 %v6623, %v6583
  %v7864 = vpack.c.b16 %v6624, %v6584
  %v7865 = vpack.c.b16 %v6625, %v6585
  %v7866 = vpack.c.b16 %v6626, %v6586
  %v7867 = vpack.c.b16 %v6627, %v6587
  %v7868 = vpack.c.b16 %v6628, %v6588
  %v7869 = vpack.c.b16 %v6629, %v6589
  %v7870 = vpack.c.b16 %v6630, %v6590
  %v7871 = vpack.c.b16 %v6631, %v6591
  %v7872 = vpack.c.b16 %v6632, %v6592
  %v7873 = vpack.c.b16 %v6633, %v6593
  %v7874 = vpack.c.b16 %v6634, %v6594
  %v7875 = vpack.c.b16 %v6635, %v6595
  %v7876 = vpack.c.b16 %v6636, %v6596
  %v7877 = vpack.c.b16 %v6637, %v6597
  %v7878 = vpack.c.b16 %v6638, %v6598
  %v7879 = vpack.c.b16 %v6639, %v6599
  %v7880 = vpack.c.b16 %v6640, %v6600
  %v7881 = vpack.c.b16 %v6641, %v6601
  %v7882 = vpack.c.b16 %v6642, %v6602
  %v7883 = vpack.c.b16 %v6643, %v6603
  %v7884 = vpack.c.b16 %v6644, %v6604
  %v7885 = vpack.c.b16 %v6645, %v6605
  %v7886 = vpack.c.b16 %v6646, %v6606
  %v7887 = vpack.c.b16 %v6647, %v6607
  %v7888 = vpack.c.b16 %v6648, %v6608
  %v7889 = vpack.c.b16 %v6649, %v6609
  %v7890 = vpack.c.b16 %v6650, %v6610
  %v7891 = vpack.c.b16 %v6651, %v6611
  %v7892 = vpack.c.b16 %v6652, %v6612
  %v7893 = vpack.c.b16 %v6653, %v6613
  %v7894 = vpack.c.b16 %v6694, %v6654
  %v7895 = vpack.c.b16 %v6695, %v6655
  %v7896 = vpack.c.b16 %v6696, %v6656
  %v7897 = vpack.c.b16 %v6697, %v6657
  %v7898 = vpack.c.b16 %v6698, %v6658
  %v7899 = vpack.c.b16 %v6699, %v6659
  %v7900 = vpack.c.b16 %v6700, %v6660
  %v7901 = vpack.c.b16 %v6701, %v6661
  %v7902 = vpack.c.b16 %v6702, %v6662
  %v7903 = vpack.c.b16 %v6703, %v6663
  %v7904 = vpack.c.b16 %v6704, %v6664
  %v7905 = vpack.c.b16 %v6705, %v6665
  %v7906 = vpack.c.b16 %v6706, %v6666
  %v7907 = vpack.c.b16 %v6707, %v6667
  %v7908 = vpack.c.b16 %v6708, %v6668
  %v7909 = vpack.c.b16 %v6709, %v6669
  %v7910 = vpack.c.b16 %v6710, %v6670
  %v7911 = vpack.c.b16 %v6711, %v6671
  %v7912 = vpack.c.b16 %v6712, %v6672
  %v7913 = vpack.c.b16 %v6713, %v6673
  %v7914 = vpack.c.b16 %v6714, %v6674
  %v7915 = vpack.c.b16 %v6715, %v6675
  %v7916 = vpack.c.b16 %v6716, %v6676
  %v7917 = vpack.c.b16 %v6717, %v6677
  %v7918 = vpack.c.b16 %v6718, %v6678
  %v7919 = vpack.c.b16 %v6719, %v6679
  %v7920 = vpack.c.b16 %v6720, %v6680
  %v7921 = vpack.c.b16 %v6721, %v6681
  %v7922 = vpack.c.b16 %v6722, %v6682
  %v7923 = vpack.c.b16 %v6723, %v6683
  %v7924 = vpack.c.b16 %v6724, %v6684
  %v7925 = vpack.c.b16 %v6725, %v6685
  %v7926 = vpack.c.b16 %v6726, %v6686
  %v7927 = vpack.c.b16 %v6727, %v6687
  %v7928 = vpack.c.b16 %v6728, %v6688
  %v7929 = vpack.c.b16 %v6729, %v6689
  %v7930 = vpack.c.b16 %v6730, %v6690
  %v7931 = vpack.c.b16 %v6731, %v6691
  %v7932 = vpack.c.b16 %v6732, %v6692
  %v7933 = vpack.c.b16 %v6733, %v6693
  %v7934 = vpack.c.b16 %v6774, %v6734
  %v7935 = vpack.c.b16 %v6775, %v6735
  %v7936 = vpack.c.b16 %v6776, %v6736
  %v7937 = vpack.c.b16 %v6777, %v6737
  %v7938 = vpack.c.b16 %v6778, %v6738
  %v7939 = vpack.c.b16 %v6779, %v6739
  %v7940 = vpack.c.b16 %v6780, %v6740
  %v7941 = vpack.c.b16 %v6781, %v6741
  %v7942 = vpack.c.b16 %v6782, %v6742
  %v7943 = vpack.c.b16 %v6783, %v6743
  %v7944 = vpack.c.b16 %v6784, %v6744
  %v7945 = vpack.c.b16 %v6785, %v6745
  %v7946 = vpack.c.b16 %v6786, %v6746
  %v7947 = vpack.c.b16 %v6787, %v6747
  %v7948 = vpack.c.b16 %v6788, %v6748
  %v7949 = vpack.c.b16 %v6789, %v6749
  %v7950 = vpack.c.b16 %v6790, %v6750
  %v7951 = vpack.c.b16 %v6791, %v6751
  %v7952 = vpack.c.b16 %v6792, %v6752
  %v7953 = vpack.c.b16 %v6793, %v6753
  %v7954 = vpack.c.b16 %v6794, %v6754
  %v7955 = vpack.c.b16 %v6795, %v6755
  %v7956 = vpack.c.b16 %v6796, %v6756
  %v7957 = vpack.c.b16 %v6797, %v6757
  %v7958 = vpack.c.b16 %v6798, %v6758
  %v7959 = vpack.c.b16 %v6799, %v6759
  %v7960 = vpack.c.b16 %v6800, %v6760
  %v7961 = vpack.c.b16 %v6801, %v6761
  %v7962 = vpack.c.b16 %v6802, %v6762
  %v7963 = vpack.c.b16 %v6803, %v6763
  %v7964 = vpack.c.b16 %v6804, %v6764
  %v7965 = vpack.c.b16 %v6805, %v6765
  %v7966 = vpack.c.b16 %v6806, %v6766
  %v7967 = vpack.c.b16 %v6807, %v6767
  %v7968 = vpack.c.b16 %v6808, %v6768
  %v7969 = vpack.c.b16 %v6809, %v6769
  %v7970 = vpack.c.b16 %v6810, %v6770
  %v7971 = vpack.c.b16 %v6811, %v6771
  %v7972 = vpack.c.b16 %v6812, %v6772
  %v7973 = vpack.c.b16 %v6813, %v6773
  %v7974 = vpack.c.b16 %v6854, %v6814
  %v7975 = vpack.c.b16 %v6855, %v6815
  %v7976 = vpack.c.b16 %v6856, %v6816
  %v7977 = vpack.c.b16 %v6857, %v6817
  %v7978 = vpack.c.b16 %v6858, %v6818
  %v7979 = vpack.c.b16 %v6859, %v6819
  %v7980 = vpack.c.b16 %v6860, %v6820
  %v7981 = vpack.c.b16 %v6861, %v6821
  %v7982 = vpack.c.b16 %v6862, %v6822
  %v7983 = vpack.c.b16 %v6863, %v6823
  %v7984 = vpack.c.b16 %v6864, %v6824
  %v7985 = vpack.c.b16 %v6865, %v6825
  %v7986 = vpack.c.b16 %v6866, %v6826
  %v7987 = vpack.c.b16 %v6867, %v6827
  %v7988 = vpack.c.b16 %v6868, %v6828
  %v7989 = vpack.c.b16 %v6869, %v6829
  %v7990 = vpack.c.b16 %v6870, %v6830
  %v7991 = vpack.c.b16 %v6871, %v6831
  %v7992 = vpack.c.b16 %v6872, %v6832
  %v7993 = vpack.c.b16 %v6873, %v6833
  %v7994 = vpack.c.b16 %v6874, %v6834
  %v7995 = vpack.c.b16 %v6875, %v6835
  %v7996 = vpack.c.b16 %v6876, %v6836
  %v7997 = vpack.c.b16 %v6877, %v6837
  %v7998 = vpack.c.b16 %v6878, %v6838
  %v7999 = vpack.c.b16 %v6879, %v6839
  %v8000 = vpack.c.b16 %v6880, %v6840
  %v8001 = vpack.c.b16 %v6881, %v6841
  %v8002 = vpack.c.b16 %v6882, %v6842
  %v8003 = vpack.c.b16 %v6883, %v6843
  %v8004 = vpack.c.b16 %v6884, %v6844
  %v8005 = vpack.c.b16 %v6885, %v6845
  %v8006 = vpack.c.b16 %v6886, %v6846
  %v8007 = vpack.c.b16 %v6887, %v6847
  %v8008 = vpack.c.b16 %v6888, %v6848
  %v8009 = vpack.c.b16 %v6889, %v6849
  %v8010 = vpack.c.b16 %v6890, %v6850
  %v8011 = vpack.c.b16 %v6891, %v6851
  %v8012 = vpack.c.b16 %v6892, %v6852
  %v8013 = vpack.c.b16 %v6893, %v6853
  %v8014 = vpack.c.b16 %v6934, %v6894
  %v8015 = vpack.c.b16 %v6935, %v6895
  %v8016 = vpack.c.b16 %v6936, %v6896
  %v8017 = vpack.c.b16 %v6937, %v6897
  %v8018 = vpack.c.b16 %v6938, %v6898
  %v8019 = vpack.c.b16 %v6939, %v6899
  %v8020 = vpack.c.b16 %v6940, %v6900
  %v8021 = vpack.c.b16 %v6941, %v6901
  %v8022 = vpack.c.b16 %v6942, %v6902
  %v8023 = vpack.c.b16 %v6943, %v6903
  %v8024 = vpack.c.b16 %v6944, %v6904
  %v8025 = vpack.c.b16 %v6945, %v6905
  %v8026 = vpack.c.b16 %v6946, %v6906
  %v8027 = vpack.c.b16 %v6947, %v6907
  %v8028 = vpack.c.b16 %v6948, %v6908
  %v8029 = vpack.c.b16 %v6949, %v6909
  %v8030 = vpack.c.b16 %v6950, %v6910
  %v8031 = vpack.c.b16 %v6951, %v6911
  %v8032 = vpack.c.b16 %v6952, %v6912
  %v8033 = vpack.c.b16 %v6953, %v6913
  %v8034 = vpack.c.b16 %v6954, %v6914
  %v8035 = vpack.c.b16 %v6955, %v6915
  %v8036 = vpack.c.b16 %v6956, %v6916
  %v8037 = vpack.c.b16 %v6957, %v6917
  %v8038 = vpack.c.b16 %v6958, %v6918
  %v8039 = vpack.c.b16 %v6959, %v6919
  %v8040 = vpack.c.b16 %v6960, %v6920
  %v8041 = vpack.c.b16 %v6961, %v6921
  %v8042 = vpack.c.b16 %v6962, %v6922
  %v8043 = vpack.c.b16 %v6963, %v6923
  %v8044 = vpack.c.b16 %v6964, %v6924
  %v8045 = vpack.c.b16 %v6965, %v6925
  %v8046 = vpack.c.b16 %v6966, %v6926
  %v8047 = vpack.c.b16 %v6967, %v6927
  %v8048 = vpack.c.b16 %v6968, %v6928
  %v8049 = vpack.c.b16 %v6969, %v6929
  %v8050 = vpack.c.b16 %v6970, %v6930
  %v8051 = vpack.c.b16 %v6971, %v6931
  %v8052 = vpack.c.b16 %v6972, %v6932
  %v8053 = vpack.c.b16 %v6973, %v6933
  %v8054 = vpack.c.b16 %v7014, %v6974
  %v8055 = vpack.c.b16 %v7015, %v6975
  %v8056 = vpack.c.b16 %v7016, %v6976
  %v8057 = vpack.c.b16 %v7017, %v6977
  %v8058 = vpack.c.b16 %v7018, %v6978
  %v8059 = vpack.c.b16 %v7019, %v6979
  %v8060 = vpack.c.b16 %v7020, %v6980
  %v8061 = vpack.c.b16 %v7021, %v6981
  %v8062 = vpack.c.b16 %v7022, %v6982
  %v8063 = vpack.c.b16 %v7023, %v6983
  %v8064 = vpack.c.b16 %v7024, %v6984
  %v8065 = vpack.c.b16 %v7025, %v6985
  %v8066 = vpack.c.b16 %v7026, %v6986
  %v8067 = vpack.c.b16 %v7027, %v6987
  %v8068 = vpack.c.b16 %v7028, %v6988
  %v8069 = vpack.c.b16 %v7029, %v6989
  %v8070 = vpack.c.b16 %v7030, %v6990
  %v8071 = vpack.c.b16 %v7031, %v6991
  %v8072 = vpack.c.b16 %v7032, %v6992
  %v8073 = vpack.c.b16 %v7033, %v6993
  %v8074 = vpack.c.b16 %v7034, %v6994
  %v8075 = vpack.c.b16 %v7035, %v6995
  %v8076 = vpack.c.b16 %v7036, %v6996
  %v8077 = vpack.c.b16 %v7037, %v6997
  %v8078 = vpack.c.b16 %v7038, %v6998
  %v8079 = vpack.c.b16 %v7039, %v6999
  %v8080 = vpack.c.b16 %v7040, %v7000
  %v8081 = vpack.c.b16 %v7041, %v7001
  %v8082 = vpack.c.b16 %v7042, %v7002
  %v8083 = vpack.c.b16 %v7043, %v7003
  %v8084 = vpack.c.b16 %v7044, %v7004
  %v8085 = vpack.c.b16 %v7045, %v7005
  %v8086 = vpack.c.b16 %v7046, %v7006
  %v8087 = vpack.c.b16 %v7047, %v7007
  %v8088 = vpack.c.b16 %v7048, %v7008
  %v8089 = vpack.c.b16 %v7049, %v7009
  %v8090 = vpack.c.b16 %v7050, %v7010
  %v8091 = vpack.c.b16 %v7051, %v7011
  %v8092 = vpack.c.b16 %v7052, %v7012
  %v8093 = vpack.c.b16 %v7053, %v7013
  %v8094 = vpack.c.b16 %v7094, %v7054
  %v8095 = vpack.c.b16 %v7095, %v7055
  %v8096 = vpack.c.b16 %v7096, %v7056
  %v8097 = vpack.c.b16 %v7097, %v7057
  %v8098 = vpack.c.b16 %v7098, %v7058
  %v8099 = vpack.c.b16 %v7099, %v7059
  %v8100 = vpack.c.b16 %v7100, %v7060
  %v8101 = vpack.c.b16 %v7101, %v7061
  %v8102 = vpack.c.b16 %v7102, %v7062
  %v8103 = vpack.c.b16 %v7103, %v7063
  %v8104 = vpack.c.b16 %v7104, %v7064
  %v8105 = vpack.c.b16 %v7105, %v7065
  %v8106 = vpack.c.b16 %v7106, %v7066
  %v8107 = vpack.c.b16 %v7107, %v7067
  %v8108 = vpack.c.b16 %v7108, %v7068
  %v8109 = vpack.c.b16 %v7109, %v7069
  %v8110 = vpack.c.b16 %v7110, %v7070
  %v8111 = vpack.c.b16 %v7111, %v7071
  %v8112 = vpack.c.b16 %v7112, %v7072
  %v8113 = vpack.c.b16 %v7113, %v7073
  %v8114 = vpack.c.b16 %v7114, %v7074
  %v8115 = vpack.c.b16 %v7115, %v7075
  %v8116 = vpack.c.b16 %v7116, %v7076
  %v8117 = vpack.c.b16 %v7117, %v7077
  %v8118 = vpack.c.b16 %v7118, %v7078
  %v8119 = vpack.c.b16 %v7119, %v7079
  %v8120 = vpack.c.b16 %v7120, %v7080
  %v8121 = vpack.c.b16 %v7121, %v7081
  %v8122 = vpack.c.b16 %v7122, %v7082
  %v8123 = vpack.c.b16 %v7123, %v7083
  %v8124 = vpack.c.b16 %v7124, %v7084
  %v8125 = vpack.c.b16 %v7125, %v7085
  %v8126 = vpack.c.b16 %v7126, %v7086
  %v8127 = vpack.c.b16 %v7127, %v7087
  %v8128 = vpack.c.b16 %v7128, %v7088
  %v8129 = vpack.c.b16 %v7129, %v7089
  %v8130 = vpack.c.b16 %v7130, %v7090
  %v8131 = vpack.c.b16 %v7131, %v7091
  %v8132 = vpack.c.b16 %v7132, %v7092
  %v8133 = vpack.c.b16 %v7133, %v7093
  %v8134 = vpack.c.b16 %v7174, %v7134
  %v8135 = vpack.c.b16 %v7175, %v7135
  %v8136 = vpack.c.b16 %v7176, %v7136
  %v8137 = vpack.c.b16 %v7177, %v7137
  %v8138 = vpack.c.b16 %v7178, %v7138
  %v8139 = vpack.c.b16 %v7179, %v7139
  %v8140 = vpack.c.b16 %v7180, %v7140
  %v8141 = vpack.c.b16 %v7181, %v7141
  %v8142 = vpack.c.b16 %v7182, %v7142
  %v8143 = vpack.c.b16 %v7183, %v7143
  %v8144 = vpack.c.b16 %v7184, %v7144
  %v8145 = vpack.c.b16 %v7185, %v7145
  %v8146 = vpack.c.b16 %v7186, %v7146
  %v8147 = vpack.c.b16 %v7187, %v7147
  %v8148 = vpack.c.b16 %v7188, %v7148
  %v8149 = vpack.c.b16 %v7189, %v7149
  %v8150 = vpack.c.b16 %v7190, %v7150
  %v8151 = vpack.c.b16 %v7191, %v7151
  %v8152 = vpack.c.b16 %v7192, %v7152
  %v8153 = vpack.c.b16 %v7193, %v7153
  %v8154 = vpack.c.b16 %v7194, %v7154
  %v8155 = vpack.c.b16 %v7195, %v7155
  %v8156 = vpack.c.b16 %v7196, %v7156
  %v8157 = vpack.c.b16 %v7197, %v7157
  %v8158 = vpack.c.b16 %v7198, %v7158
  %v8159 = vpack.c.b16 %v7199, %v7159
  %v8160 = vpack.c.b16 %v7200, %v7160
  %v8161 = vpack.c.b16 %v7201, %v7161
  %v8162 = vpack.c.b16 %v7202, %v7162
  %v8163 = vpack.c.b16 %v7203, %v7163
  %v8164 = vpack.c.b16 %v7204, %v7164
  %v8165 = vpack.c.b16 %v7205, %v7165
  %v8166 = vpack.c.b16 %v7206, %v7166
  %v8167 = vpack.c.b16 %v7207, %v7167
  %v8168 = vpack.c.b16 %v7208, %v7168
  %v8169 = vpack.c.b16 %v7209, %v7169
  %v8170 = vpack.c.b16 %v7210, %v7170
  %v8171 = vpack.c.b16 %v7211, %v7171
  %v8172 = vpack.c.b16 %v7212, %v7172
  %v8173 = vpack.c.b16 %v7213, %v7173
  %v8174 = vpack.c.b16 %v7254, %v7214
  %v8175 = vpack.c.b16 %v7255, %v7215
  %v8176 = vpack.c.b16 %v7256, %v7216
  %v8177 = vpack.c.b16 %v7257, %v7217
  %v8178 = vpack.c.b16 %v7258, %v7218
  %v8179 = vpack.c.b16 %v7259, %v7219
  %v8180 = vpack.c.b16 %v7260, %v7220
  %v8181 = vpack.c.b16 %v7261, %v7221
  %v8182 = vpack.c.b16 %v7262, %v7222
  %v8183 = vpack.c.b16 %v7263, %v7223
  %v8184 = vpack.c.b16 %v7264, %v7224
  %v8185 = vpack.c.b16 %v7265, %v7225
  %v8186 = vpack.c.b16 %v7266, %v7226
  %v8187 = vpack.c.b16 %v7267, %v7227
  %v8188 = vpack.c.b16 %v7268, %v7228
  %v8189 = vpack.c.b16 %v7269, %v7229
  %v8190 = vpack.c.b16 %v7270, %v7230
  %v8191 = vpack.c.b16 %v7271, %v7231
  %v8192 = vpack.c.b16 %v7272, %v7232
  %v8193 = vpack.c.b16 %v7273, %v7233
  %v8194 = vpack.c.b16 %v7274, %v7234
  %v8195 = vpack.c.b16 %v7275, %v7235
  %v8196 = vpack.c.b16 %v7276, %v7236
  %v8197 = vpack.c.b16 %v7277, %v7237
  %v8198 = vpack.c.b16 %v7278, %v7238
  %v8199 = vpack.c.b16 %v7279, %v7239
  %v8200 = vpack.c.b16 %v7280, %v7240
  %v8201 = vpack.c.b16 %v7281, %v7241
  %v8202 = vpack.c.b16 %v7282, %v7242
  %v8203 = vpack.c.b16 %v7283, %v7243
  %v8204 = vpack.c.b16 %v7284, %v7244
  %v8205 = vpack.c.b16 %v7285, %v7245
  %v8206 = vpack.c.b16 %v7286, %v7246
  %v8207 = vpack.c.b16 %v7287, %v7247
  %v8208 = vpack.c.b16 %v7288, %v7248
  %v8209 = vpack.c.b16 %v7289, %v7249
  %v8210 = vpack.c.b16 %v7290, %v7250
  %v8211 = vpack.c.b16 %v7291, %v7251
  %v8212 = vpack.c.b16 %v7292, %v7252
  %v8213 = vpack.c.b16 %v7293, %v7253
  %v8214 = vpack.c.b16 %v7334, %v7294
  %v8215 = vpack.c.b16 %v7335, %v7295
  %v8216 = vpack.c.b16 %v7336, %v7296
  %v8217 = vpack.c.b16 %v7337, %v7297
  %v8218 = vpack.c.b16 %v7338, %v7298
  %v8219 = vpack.c.b16 %v7339, %v7299
  %v8220 = vpack.c.b16 %v7340, %v7300
  %v8221 = vpack.c.b16 %v7341, %v7301
  %v8222 = vpack.c.b16 %v7342, %v7302
  %v8223 = vpack.c.b16 %v7343, %v7303
  %v8224 = vpack.c.b16 %v7344, %v7304
  %v8225 = vpack.c.b16 %v7345, %v7305
  %v8226 = vpack.c.b16 %v7346, %v7306
  %v8227 = vpack.c.b16 %v7347, %v7307
  %v8228 = vpack.c.b16 %v7348, %v7308
  %v8229 = vpack.c.b16 %v7349, %v7309
  %v8230 = vpack.c.b16 %v7350, %v7310
  %v8231 = vpack.c.b16 %v7351, %v7311
  %v8232 = vpack.c.b16 %v7352, %v7312
  %v8233 = vpack.c.b16 %v7353, %v7313
  %v8234 = vpack.c.b16 %v7354, %v7314
  %v8235 = vpack.c.b16 %v7355, %v7315
  %v8236 = vpack.c.b16 %v7356, %v7316
  %v8237 = vpack.c.b16 %v7357, %v7317
  %v8238 = vpack.c.b16 %v7358, %v7318
  %v8239 = vpack.c.b16 %v7359, %v7319
  %v8240 = vpack.c.b16 %v7360, %v7320
  %v8241 = vpack.c.b16 %v7361, %v7321
  %v8242 = vpack.c.b16 %v7362, %v7322
  %v8243 = vpack.c.b16 %v7363, %v7323
  %v8244 = vpack.c.b16 %v7364, %v7324
  %v8245 = vpack.c.b16 %v7365, %v7325
  %v8246 = vpack.c.b16 %v7366, %v7326
  %v8247 = vpack.c.b16 %v7367, %v7327
  %v8248 = vpack.c.b16 %v7368, %v7328
  %v8249 = vpack.c.b16 %v7369, %v7329
  %v8250 = vpack.c.b16 %v7370, %v7330
  %v8251 = vpack.c.b16 %v7371, %v7331
  %v8252 = vpack.c.b16 %v7372, %v7332
  %v8253 = vpack.c.b16 %v7373, %v7333
  %v8254 = vpack.c.b16 %v7414, %v7374
  %v8255 = vpack.c.b16 %v7415, %v7375
  %v8256 = vpack.c.b16 %v7416, %v7376
  %v8257 = vpack.c.b16 %v7417, %v7377
  %v8258 = vpack.c.b16 %v7418, %v7378
  %v8259 = vpack.c.b16 %v7419, %v7379
  %v8260 = vpack.c.b16 %v7420, %v7380
  %v8261 = vpack.c.b16 %v7421, %v7381
  %v8262 = vpack.c.b16 %v7422, %v7382
  %v8263 = vpack.c.b16 %v7423, %v7383
  %v8264 = vpack.c.b16 %v7424, %v7384
  %v8265 = vpack.c.b16 %v7425, %v7385
  %v8266 = vpack.c.b16 %v7426, %v7386
  %v8267 = vpack.c.b16 %v7427, %v7387
  %v8268 = vpack.c.b16 %v7428, %v7388
  %v8269 = vpack.c.b16 %v7429, %v7389
  %v8270 = vpack.c.b16 %v7430, %v7390
  %v8271 = vpack.c.b16 %v7431, %v7391
  %v8272 = vpack.c.b16 %v7432, %v7392
  %v8273 = vpack.c.b16 %v7433, %v7393
  %v8274 = vpack.c.b16 %v7434, %v7394
  %v8275 = vpack.c.b16 %v7435, %v7395
  %v8276 = vpack.c.b16 %v7436, %v7396
  %v8277 = vpack.c.b16 %v7437, %v7397
  %v8278 = vpack.c.b16 %v7438, %v7398
  %v8279 = vpack.c.b16 %v7439, %v7399
  %v8280 = vpack.c.b16 %v7440, %v7400
  %v8281 = vpack.c.b16 %v7441, %v7401
  %v8282 = vpack.c.b16 %v7442, %v7402
  %v8283 = vpack.c.b16 %v7443, %v7403
  %v8284 = vpack.c.b16 %v7444, %v7404
  %v8285 = vpack.c.b16 %v7445, %v7405
  %v8286 = vpack.c.b16 %v7446, %v7406
  %v8287 = vpack.c.b16 %v7447, %v7407
  %v8288 = vpack.c.b16 %v7448, %v7408
  %v8289 = vpack.c.b16 %v7449, %v7409
  %v8290 = vpack.c.b16 %v7450, %v7410
  %v8291 = vpack.c.b16 %v7451, %v7411
  %v8292 = vpack.c.b16 %v7452, %v7412
  %v8293 = vpack.c.b16 %v7453, %v7413
  %v8294 = vpack.c.b16 %v7494, %v7454
  %v8295 = vpack.c.b16 %v7495, %v7455
  %v8296 = vpack.c.b16 %v7496, %v7456
  %v8297 = vpack.c.b16 %v7497, %v7457
  %v8298 = vpack.c.b16 %v7498, %v7458
  %v8299 = vpack.c.b16 %v7499, %v7459
  %v8300 = vpack.c.b16 %v7500, %v7460
  %v8301 = vpack.c.b16 %v7501, %v7461
  %v8302 = vpack.c.b16 %v7502, %v7462
  %v8303 = vpack.c.b16 %v7503, %v7463
  %v8304 = vpack.c.b16 %v7504, %v7464
  %v8305 = vpack.c.b16 %v7505, %v7465
  %v8306 = vpack.c.b16 %v7506, %v7466
  %v8307 = vpack.c.b16 %v7507, %v7467
  %v8308 = vpack.c.b16 %v7508, %v7468
  %v8309 = vpack.c.b16 %v7509, %v7469
  %v8310 = vpack.c.b16 %v7510, %v7470
  %v8311 = vpack.c.b16 %v7511, %v7471
  %v8312 = vpack.c.b16 %v7512, %v7472
  %v8313 = vpack.c.b16 %v7513, %v7473
  %v8314 = vpack.c.b16 %v7514, %v7474
  %v8315 = vpack.c.b16 %v7515, %v7475
  %v8316 = vpack.c.b16 %v7516, %v7476
  %v8317 = vpack.c.b16 %v7517, %v7477
  %v8318 = vpack.c.b16 %v7518, %v7478
  %v8319 = vpack.c.b16 %v7519, %v7479
  %v8320 = vpack.c.b16 %v7520, %v7480
  %v8321 = vpack.c.b16 %v7521, %v7481
  %v8322 = vpack.c.b16 %v7522, %v7482
  %v8323 = vpack.c.b16 %v7523, %v7483
  %v8324 = vpack.c.b16 %v7524, %v7484
  %v8325 = vpack.c.b16 %v7525, %v7485
  %v8326 = vpack.c.b16 %v7526, %v7486
  %v8327 = vpack.c.b16 %v7527, %v7487
  %v8328 = vpack.c.b16 %v7528, %v7488
  %v8329 = vpack.c.b16 %v7529, %v7489
  %v8330 = vpack.c.b16 %v7530, %v7490
  %v8331 = vpack.c.b16 %v7531, %v7491
  %v8332 = vpack.c.b16 %v7532, %v7492
  %v8333 = vpack.c.b16 %v7533, %v7493
  %v8334 = vpack.c.b16 %v7574, %v7534
  %v8335 = vpack.c.b16 %v7575, %v7535
  %v8336 = vpack.c.b16 %v7576, %v7536
  %v8337 = vpack.c.b16 %v7577, %v7537
  %v8338 = vpack.c.b16 %v7578, %v7538
  %v8339 = vpack.c.b16 %v7579, %v7539
  %v8340 = vpack.c.b16 %v7580, %v7540
  %v8341 = vpack.c.b16 %v7581, %v7541
  %v8342 = vpack.c.b16 %v7582, %v7542
  %v8343 = vpack.c.b16 %v7583, %v7543
  %v8344 = vpack.c.b16 %v7584, %v7544
  %v8345 = vpack.c.b16 %v7585, %v7545
  %v8346 = vpack.c.b16 %v7586, %v7546
  %v8347 = vpack.c.b16 %v7587, %v7547
  %v8348 = vpack.c.b16 %v7588, %v7548
  %v8349 = vpack.c.b16 %v7589, %v7549
  %v8350 = vpack.c.b16 %v7590, %v7550
  %v8351 = vpack.c.b16 %v7591, %v7551
  %v8352 = vpack.c.b16 %v7592, %v7552
  %v8353 = vpack.c.b16 %v7593, %v7553
  %v8354 = vpack.c.b16 %v7594, %v7554
  %v8355 = vpack.c.b16 %v7595, %v7555
  %v8356 = vpack.c.b16 %v7596, %v7556
  %v8357 = vpack.c.b16 %v7597, %v7557
  %v8358 = vpack.c.b16 %v7598, %v7558
  %v8359 = vpack.c.b16 %v7599, %v7559
  %v8360 = vpack.c.b16 %v7600, %v7560
  %v8361 = vpack.c.b16 %v7601, %v7561
  %v8362 = vpack.c.b16 %v7602, %v7562
  %v8363 = vpack.c.b16 %v7603, %v7563
  %v8364 = vpack.c.b16 %v7604, %v7564
  %v8365 = vpack.c.b16 %v7605, %v7565
  %v8366 = vpack.c.b16 %v7606, %v7566
  %v8367 = vpack.c.b16 %v7607, %v7567
  %v8368 = vpack.c.b16 %v7608, %v7568
  %v8369 = vpack.c.b16 %v7609, %v7569
  %v8370 = vpack.c.b16 %v7610, %v7570
  %v8371 = vpack.c.b16 %v7611, %v7571
  %v8372 = vpack.c.b16 %v7612, %v7572
  %v8373 = vpack.c.b16 %v7613, %v7573
  %v8374 = vpack.c.b16 %v7654, %v7614
  %v8375 = vpack.c.b16 %v7655, %v7615
  %v8376 = vpack.c.b16 %v7656, %v7616
  %v8377 = vpack.c.b16 %v7657, %v7617
  %v8378 = vpack.c.b16 %v7658, %v7618
  %v8379 = vpack.c.b16 %v7659, %v7619
  %v8380 = vpack.c.b16 %v7660, %v7620
  %v8381 = vpack.c.b16 %v7661, %v7621
  %v8382 = vpack.c.b16 %v7662, %v7622
  %v8383 = vpack.c.b16 %v7663, %v7623
  %v8384 = vpack.c.b16 %v7664, %v7624
  %v8385 = vpack.c.b16 %v7665, %v7625
  %v8386 = vpack.c.b16 %v7666, %v7626
  %v8387 = vpack.c.b16 %v7667, %v7627
  %v8388 = vpack.c.b16 %v7668, %v7628
  %v8389 = vpack.c.b16 %v7669, %v7629
  %v8390 = vpack.c.b16 %v7670, %v7630
  %v8391 = vpack.c.b16 %v7671, %v7631
  %v8392 = vpack.c.b16 %v7672, %v7632
  %v8393 = vpack.c.b16 %v7673, %v7633
  %v8394 = vpack.c.b16 %v7674, %v7634
  %v8395 = vpack.c.b16 %v7675, %v7635
  %v8396 = vpack.c.b16 %v7676, %v7636
  %v8397 = vpack.c.b16 %v7677, %v7637
  %v8398 = vpack.c.b16 %v7678, %v7638
  %v8399 = vpack.c.b16 %v7679, %v7639
  %v8400 = vpack.c.b16 %v7680, %v7640
  %v8401 = vpack.c.b16 %v7681, %v7641
  %v8402 = vpack.c.b16 %v7682, %v7642
  %v8403 = vpack.c.b16 %v7683, %v7643
  %v8404 = vpack.c.b16 %v7684, %v7644
  %v8405 = vpack.c.b16 %v7685, %v7645
  %v8406 = vpack.c.b16 %v7686, %v7646
  %v8407 = vpack.c.b16 %v7687, %v7647
  %v8408 = vpack.c.b16 %v7688, %v7648
  %v8409 = vpack.c.b16 %v7689, %v7649
  %v8410 = vpack.c.b16 %v7690, %v7650
  %v8411 = vpack.c.b16 %v7691, %v7651
  %v8412 = vpack.c.b16 %v7692, %v7652
  %v8413 = vpack.c.b16 %v7693, %v7653
  %v8414 = vpack.c.b16 %v7734, %v7694
  %v8415 = vpack.c.b16 %v7735, %v7695
  %v8416 = vpack.c.b16 %v7736, %v7696
  %v8417 = vpack.c.b16 %v7737, %v7697
  %v8418 = vpack.c.b16 %v7738, %v7698
  %v8419 = vpack.c.b16 %v7739, %v7699
  %v8420 = vpack.c.b16 %v7740, %v7700
  %v8421 = vpack.c.b16 %v7741, %v7701
  %v8422 = vpack.c.b16 %v7742, %v7702
  %v8423 = vpack.c.b16 %v7743, %v7703
  %v8424 = vpack.c.b16 %v7744, %v7704
  %v8425 = vpack.c.b16 %v7745, %v7705
  %v8426 = vpack.c.b16 %v7746, %v7706
  %v8427 = vpack.c.b16 %v7747, %v7707
  %v8428 = vpack.c.b16 %v7748, %v7708
  %v8429 = vpack.c.b16 %v7749, %v7709
  %v8430 = vpack.c.b16 %v7750, %v7710
  %v8431 = vpack.c.b16 %v7751, %v7711
  %v8432 = vpack.c.b16 %v7752, %v7712
  %v8433 = vpack.c.b16 %v7753, %v7713
  %v8434 = vpack.c.b16 %v7754, %v7714
  %v8435 = vpack.c.b16 %v7755, %v7715
  %v8436 = vpack.c.b16 %v7756, %v7716
  %v8437 = vpack.c.b16 %v7757, %v7717
  %v8438 = vpack.c.b16 %v7758, %v7718
  %v8439 = vpack.c.b16 %v7759, %v7719
  %v8440 = vpack.c.b16 %v7760, %v7720
  %v8441 = vpack.c.b16 %v7761, %v7721
  %v8442 = vpack.c.b16 %v7762, %v7722
  %v8443 = vpack.c.b16 %v7763, %v7723
  %v8444 = vpack.c.b16 %v7764, %v7724
  %v8445 = vpack.c.b16 %v7765, %v7725
  %v8446 = vpack.c.b16 %v7766, %v7726
  %v8447 = vpack.c.b16 %v7767, %v7727
  %v8448 = vpack.c.b16 %v7768, %v7728
  %v8449 = vpack.c.b16 %v7769, %v7729
  %v8450 = vpack.c.b16 %v7770, %v7730
  %v8451 = vpack.c.b16 %v7771, %v7731
  %v8452 = vpack.c.b16 %v7772, %v7732
  %v8453 = vpack.c.b16 %v7773, %v7733
  %v8454 = vpack.c.b16 %v7814, %v7774
  %v8455 = vpack.c.b16 %v7815, %v7775
  %v8456 = vpack.c.b16 %v7816, %v7776
  %v8457 = vpack.c.b16 %v7817, %v7777
  %v8458 = vpack.c.b16 %v7818, %v7778
  %v8459 = vpack.c.b16 %v7819, %v7779
  %v8460 = vpack.c.b16 %v7820, %v7780
  %v8461 = vpack.c.b16 %v7821, %v7781
  %v8462 = vpack.c.b16 %v7822, %v7782
  %v8463 = vpack.c.b16 %v7823, %v7783
  %v8464 = vpack.c.b16 %v7824, %v7784
  %v8465 = vpack.c.b16 %v7825, %v7785
  %v8466 = vpack.c.b16 %v7826, %v7786
  %v8467 = vpack.c.b16 %v7827, %v7787
  %v8468 = vpack.c.b16 %v7828, %v7788
  %v8469 = vpack.c.b16 %v7829, %v7789
  %v8470 = vpack.c.b16 %v7830, %v7790
  %v8471 = vpack.c.b16 %v7831, %v7791
  %v8472 = vpack.c.b16 %v7832, %v7792
  %v8473 = vpack.c.b16 %v7833, %v7793
  %v8474 = vpack.c.b16 %v7834, %v7794
  %v8475 = vpack.c.b16 %v7835, %v7795
  %v8476 = vpack.c.b16 %v7836, %v7796
  %v8477 = vpack.c.b16 %v7837, %v7797
  %v8478 = vpack.c.b16 %v7838, %v7798
  %v8479 = vpack.c.b16 %v7839, %v7799
  %v8480 = vpack.c.b16 %v7840, %v7800
  %v8481 = vpack.c.b16 %v7841, %v7801
  %v8482 = vpack.c.b16 %v7842, %v7802
  %v8483 = vpack.c.b16 %v7843, %v7803
  %v8484 = vpack.c.b16 %v7844, %v7804
  %v8485 = vpack.c.b16 %v7845, %v7805
  %v8486 = vpack.c.b16 %v7846, %v7806
  %v8487 = vpack.c.b16 %v7847, %v7807
  %v8488 = vpack.c.b16 %v7848, %v7808
  %v8489 = vpack.c.b16 %v7849, %v7809
  %v8490 = vpack.c.b16 %v7850, %v7810
  %v8491 = vpack.c.b16 %v7851, %v7811
  %v8492 = vpack.c.b16 %v7852, %v7812
  %v8493 = vpack.c.b16 %v7853, %v7813
  %9134 = vmatprep.subr.bf16.mxu0 %v7855
  %9135 = vmatpush1.bf16.msra.mxu0 %v7854
  %9136 = vmatprep.subr.bf16.mxu0 %v7895
  %9137 = vmatpush1.bf16.msra.mxu0 %v7894
  %9138 = vmatprep.subr.bf16.mxu0 %v7935
  %9139 = vmatpush1.bf16.msra.mxu0 %v7934
  %9140 = vmatprep.subr.bf16.mxu0 %v7975
  %9141 = vmatpush1.bf16.msra.mxu0 %v7974
  %9142 = vmatprep.subr.bf16.mxu0 %v8015
  %9143 = vmatpush1.bf16.msra.mxu0 %v8014
  %9144 = vmatprep.subr.bf16.mxu0 %v8055
  %9145 = vmatpush1.bf16.msra.mxu0 %v8054
  %9146 = vmatprep.subr.bf16.mxu0 %v8095
  %9147 = vmatpush1.bf16.msra.mxu0 %v8094
  %9148 = vmatprep.subr.bf16.mxu0 %v8135
  %9149 = vmatpush1.bf16.msra.mxu0 %v8134
  %9150 = vmatprep.subr.bf16.mxu0 %v8175
  %9151 = vmatpush1.bf16.msra.mxu0 %v8174
  %9152 = vmatprep.subr.bf16.mxu0 %v8215
  %9153 = vmatpush1.bf16.msra.mxu0 %v8214
  %9154 = vmatprep.subr.bf16.mxu0 %v8255
  %9155 = vmatpush1.bf16.msra.mxu0 %v8254
  %9156 = vmatprep.subr.bf16.mxu0 %v8295
  %9157 = vmatpush1.bf16.msra.mxu0 %v8294
  %9158 = vmatprep.subr.bf16.mxu0 %v8335
  %9159 = vmatpush1.bf16.msra.mxu0 %v8334
  %9160 = vmatprep.subr.bf16.mxu0 %v8375
  %9161 = vmatpush1.bf16.msra.mxu0 %v8374
  %9162 = vmatprep.subr.bf16.mxu0 %v8415
  %9163 = vmatpush1.bf16.msra.mxu0 %v8414
  %9164 = vmatprep.subr.bf16.mxu0 %v8455
  %9165 = vmatpush1.bf16.msra.mxu0 %v8454
  %9166 = vmatprep.mubr.bf16.mxu0 %v5083
  %9167 = vmatmul.mubr.bf16.gmra.mrb[0].mxu0 %v5082
  %v9168 = vpop.f32.mrb[0].mxu0
  %v9169 = vadd.f32 %v5737, %v9168
  %v9170 = vpop.f32.mrb[0].mxu0
  %v9171 = vadd.f32 %v5741, %v9170
  %v9172 = vpop.f32.mrb[0].mxu0
  %v9173 = vadd.f32 %v5737, %v9172
  %v9174 = vpop.f32.mrb[0].mxu0
  %v9175 = vadd.f32 %v5741, %v9174
  %9176 = vdwg.mxu0
  %9177 = vmatprep.subr.bf16.mxu0 %v7857
  %9178 = vmatpush1.bf16.msra.mxu0 %v7856
  %9179 = vmatprep.subr.bf16.mxu0 %v7897
  %9180 = vmatpush1.bf16.msra.mxu0 %v7896
  %9181 = vmatprep.subr.bf16.mxu0 %v7937
  %9182 = vmatpush1.bf16.msra.mxu0 %v7936
  %9183 = vmatprep.subr.bf16.mxu0 %v7977
  %9184 = vmatpush1.bf16.msra.mxu0 %v7976
  %9185 = vmatprep.subr.bf16.mxu0 %v8017
  %9186 = vmatpush1.bf16.msra.mxu0 %v8016
  %9187 = vmatprep.subr.bf16.mxu0 %v8057
  %9188 = vmatpush1.bf16.msra.mxu0 %v8056
  %9189 = vmatprep.subr.bf16.mxu0 %v8097
  %9190 = vmatpush1.bf16.msra.mxu0 %v8096
  %9191 = vmatprep.subr.bf16.mxu0 %v8137
  %9192 = vmatpush1.bf16.msra.mxu0 %v8136
  %9193 = vmatprep.subr.bf16.mxu0 %v8177
  %9194 = vmatpush1.bf16.msra.mxu0 %v8176
  %9195 = vmatprep.subr.bf16.mxu0 %v8217
  %9196 = vmatpush1.bf16.msra.mxu0 %v8216
  %9197 = vmatprep.subr.bf16.mxu0 %v8257
  %9198 = vmatpush1.bf16.msra.mxu0 %v8256
  %9199 = vmatprep.subr.bf16.mxu0 %v8297
  %9200 = vmatpush1.bf16.msra.mxu0 %v8296
  %9201 = vmatprep.subr.bf16.mxu0 %v8337
  %9202 = vmatpush1.bf16.msra.mxu0 %v8336
  %9203 = vmatprep.subr.bf16.mxu0 %v8377
  %9204 = vmatpush1.bf16.msra.mxu0 %v8376
  %9205 = vmatprep.subr.bf16.mxu0 %v8417
  %9206 = vmatpush1.bf16.msra.mxu0 %v8416
  %9207 = vmatprep.subr.bf16.mxu0 %v8457
  %9208 = vmatpush1.bf16.msra.mxu0 %v8456
  %9209 = vmatprep.mubr.bf16.mxu0 %v5083
  %9210 = vmatmul.mubr.bf16.gmra.mrb[0].mxu0 %v5082
  %v9211 = vpop.f32.mrb[0].mxu0
  %v9212 = vadd.f32 %v5745, %v9211
  %v9213 = vpop.f32.mrb[0].mxu0
  %v9214 = vadd.f32 %v5749, %v9213
  %v9215 = vpop.f32.mrb[0].mxu0
  %v9216 = vadd.f32 %v5745, %v9215
  %v9217 = vpop.f32.mrb[0].mxu0
  %v9218 = vadd.f32 %v5749, %v9217
  %9219 = vdwg.mxu0
  %9220 = vmatprep.subr.bf16.mxu0 %v7859
  %9221 = vmatpush1.bf16.msra.mxu0 %v7858
  %9222 = vmatprep.subr.bf16.mxu0 %v7899
  %9223 = vmatpush1.bf16.msra.mxu0 %v7898
  %9224 = vmatprep.subr.bf16.mxu0 %v7939
  %9225 = vmatpush1.bf16.msra.mxu0 %v7938
  %9226 = vmatprep.subr.bf16.mxu0 %v7979
  %9227 = vmatpush1.bf16.msra.mxu0 %v7978
  %9228 = vmatprep.subr.bf16.mxu0 %v8019
  %9229 = vmatpush1.bf16.msra.mxu0 %v8018
  %9230 = vmatprep.subr.bf16.mxu0 %v8059
  %9231 = vmatpush1.bf16.msra.mxu0 %v8058
  %9232 = vmatprep.subr.bf16.mxu0 %v8099
  %9233 = vmatpush1.bf16.msra.mxu0 %v8098
  %9234 = vmatprep.subr.bf16.mxu0 %v8139
  %9235 = vmatpush1.bf16.msra.mxu0 %v8138
  %9236 = vmatprep.subr.bf16.mxu0 %v8179
  %9237 = vmatpush1.bf16.msra.mxu0 %v8178
  %9238 = vmatprep.subr.bf16.mxu0 %v8219
  %9239 = vmatpush1.bf16.msra.mxu0 %v8218
  %9240 = vmatprep.subr.bf16.mxu0 %v8259
  %9241 = vmatpush1.bf16.msra.mxu0 %v8258
  %9242 = vmatprep.subr.bf16.mxu0 %v8299
  %9243 = vmatpush1.bf16.msra.mxu0 %v8298
  %9244 = vmatprep.subr.bf16.mxu0 %v8339
  %9245 = vmatpush1.bf16.msra.mxu0 %v8338
  %9246 = vmatprep.subr.bf16.mxu0 %v8379
  %9247 = vmatpush1.bf16.msra.mxu0 %v8378
  %9248 = vmatprep.subr.bf16.mxu0 %v8419
  %9249 = vmatpush1.bf16.msra.mxu0 %v8418
  %9250 = vmatprep.subr.bf16.mxu0 %v8459
  %9251 = vmatpush1.bf16.msra.mxu0 %v8458
  %9252 = vmatprep.mubr.bf16.mxu0 %v5083
  %9253 = vmatmul.mubr.bf16.gmra.mrb[0].mxu0 %v5082
  %v9254 = vpop.f32.mrb[0].mxu0
  %v9255 = vadd.f32 %v5753, %v9254
  %v9256 = vpop.f32.mrb[0].mxu0
  %v9257 = vadd.f32 %v5757, %v9256
  %v9258 = vpop.f32.mrb[0].mxu0
  %v9259 = vadd.f32 %v5753, %v9258
  %v9260 = vpop.f32.mrb[0].mxu0
  %v9261 = vadd.f32 %v5757, %v9260
  %9262 = vdwg.mxu0
  %9263 = vmatprep.subr.bf16.mxu0 %v7861
  %9264 = vmatpush1.bf16.msra.mxu0 %v7860
  %9265 = vmatprep.subr.bf16.mxu0 %v7901
  %9266 = vmatpush1.bf16.msra.mxu0 %v7900
  %9267 = vmatprep.subr.bf16.mxu0 %v7941
  %9268 = vmatpush1.bf16.msra.mxu0 %v7940
  %9269 = vmatprep.subr.bf16.mxu0 %v7981
  %9270 = vmatpush1.bf16.msra.mxu0 %v7980
  %9271 = vmatprep.subr.bf16.mxu0 %v8021
  %9272 = vmatpush1.bf16.msra.mxu0 %v8020
  %9273 = vmatprep.subr.bf16.mxu0 %v8061
  %9274 = vmatpush1.bf16.msra.mxu0 %v8060
  %9275 = vmatprep.subr.bf16.mxu0 %v8101
  %9276 = vmatpush1.bf16.msra.mxu0 %v8100
  %9277 = vmatprep.subr.bf16.mxu0 %v8141
  %9278 = vmatpush1.bf16.msra.mxu0 %v8140
  %9279 = vmatprep.subr.bf16.mxu0 %v8181
  %9280 = vmatpush1.bf16.msra.mxu0 %v8180
  %9281 = vmatprep.subr.bf16.mxu0 %v8221
  %9282 = vmatpush1.bf16.msra.mxu0 %v8220
  %9283 = vmatprep.subr.bf16.mxu0 %v8261
  %9284 = vmatpush1.bf16.msra.mxu0 %v8260
  %9285 = vmatprep.subr.bf16.mxu0 %v8301
  %9286 = vmatpush1.bf16.msra.mxu0 %v8300
  %9287 = vmatprep.subr.bf16.mxu0 %v8341
  %9288 = vmatpush1.bf16.msra.mxu0 %v8340
  %9289 = vmatprep.subr.bf16.mxu0 %v8381
  %9290 = vmatpush1.bf16.msra.mxu0 %v8380
  %9291 = vmatprep.subr.bf16.mxu0 %v8421
  %9292 = vmatpush1.bf16.msra.mxu0 %v8420
  %9293 = vmatprep.subr.bf16.mxu0 %v8461
  %9294 = vmatpush1.bf16.msra.mxu0 %v8460
  %9295 = vmatprep.mubr.bf16.mxu0 %v5083
  %9296 = vmatmul.mubr.bf16.gmra.mrb[0].mxu0 %v5082
  %v9297 = vpop.f32.mrb[0].mxu0
  %v9298 = vadd.f32 %v5761, %v9297
  %v9299 = vpop.f32.mrb[0].mxu0
  %v9300 = vadd.f32 %v5765, %v9299
  %v9301 = vpop.f32.mrb[0].mxu0
  %v9302 = vadd.f32 %v5761, %v9301
  %v9303 = vpop.f32.mrb[0].mxu0
  %v9304 = vadd.f32 %v5765, %v9303
  %9305 = vdwg.mxu0
  %9306 = vmatprep.subr.bf16.mxu0 %v7863
  %9307 = vmatpush1.bf16.msra.mxu0 %v7862
  %9308 = vmatprep.subr.bf16.mxu0 %v7903
  %9309 = vmatpush1.bf16.msra.mxu0 %v7902
  %9310 = vmatprep.subr.bf16.mxu0 %v7943
  %9311 = vmatpush1.bf16.msra.mxu0 %v7942
  %9312 = vmatprep.subr.bf16.mxu0 %v7983
  %9313 = vmatpush1.bf16.msra.mxu0 %v7982
  %9314 = vmatprep.subr.bf16.mxu0 %v8023
  %9315 = vmatpush1.bf16.msra.mxu0 %v8022
  %9316 = vmatprep.subr.bf16.mxu0 %v8063
  %9317 = vmatpush1.bf16.msra.mxu0 %v8062
  %9318 = vmatprep.subr.bf16.mxu0 %v8103
  %9319 = vmatpush1.bf16.msra.mxu0 %v8102
  %9320 = vmatprep.subr.bf16.mxu0 %v8143
  %9321 = vmatpush1.bf16.msra.mxu0 %v8142
  %9322 = vmatprep.subr.bf16.mxu0 %v8183
  %9323 = vmatpush1.bf16.msra.mxu0 %v8182
  %9324 = vmatprep.subr.bf16.mxu0 %v8223
  %9325 = vmatpush1.bf16.msra.mxu0 %v8222
  %9326 = vmatprep.subr.bf16.mxu0 %v8263
  %9327 = vmatpush1.bf16.msra.mxu0 %v8262
  %9328 = vmatprep.subr.bf16.mxu0 %v8303
  %9329 = vmatpush1.bf16.msra.mxu0 %v8302
  %9330 = vmatprep.subr.bf16.mxu0 %v8343
  %9331 = vmatpush1.bf16.msra.mxu0 %v8342
  %9332 = vmatprep.subr.bf16.mxu0 %v8383
  %9333 = vmatpush1.bf16.msra.mxu0 %v8382
  %9334 = vmatprep.subr.bf16.mxu0 %v8423
  %9335 = vmatpush1.bf16.msra.mxu0 %v8422
  %9336 = vmatprep.subr.bf16.mxu0 %v8463
  %9337 = vmatpush1.bf16.msra.mxu0 %v8462
  %9338 = vmatprep.mubr.bf16.mxu0 %v5083
  %9339 = vmatmul.mubr.bf16.gmra.mrb[0].mxu0 %v5082
  %v9340 = vpop.f32.mrb[0].mxu0
  %v9341 = vadd.f32 %v5769, %v9340
  %v9342 = vpop.f32.mrb[0].mxu0
  %v9343 = vadd.f32 %v5773, %v9342
  %v9344 = vpop.f32.mrb[0].mxu0
  %v9345 = vadd.f32 %v5769, %v9344
  %v9346 = vpop.f32.mrb[0].mxu0
  %v9347 = vadd.f32 %v5773, %v9346
  %9348 = vdwg.mxu0
  %9349 = vmatprep.subr.bf16.mxu0 %v7865
  %9350 = vmatpush1.bf16.msra.mxu0 %v7864
  %9351 = vmatprep.subr.bf16.mxu0 %v7905
  %9352 = vmatpush1.bf16.msra.mxu0 %v7904
  %9353 = vmatprep.subr.bf16.mxu0 %v7945
  %9354 = vmatpush1.bf16.msra.mxu0 %v7944
  %9355 = vmatprep.subr.bf16.mxu0 %v7985
  %9356 = vmatpush1.bf16.msra.mxu0 %v7984
  %9357 = vmatprep.subr.bf16.mxu0 %v8025
  %9358 = vmatpush1.bf16.msra.mxu0 %v8024
  %9359 = vmatprep.subr.bf16.mxu0 %v8065
  %9360 = vmatpush1.bf16.msra.mxu0 %v8064
  %9361 = vmatprep.subr.bf16.mxu0 %v8105
  %9362 = vmatpush1.bf16.msra.mxu0 %v8104
  %9363 = vmatprep.subr.bf16.mxu0 %v8145
  %9364 = vmatpush1.bf16.msra.mxu0 %v8144
  %9365 = vmatprep.subr.bf16.mxu0 %v8185
  %9366 = vmatpush1.bf16.msra.mxu0 %v8184
  %9367 = vmatprep.subr.bf16.mxu0 %v8225
  %9368 = vmatpush1.bf16.msra.mxu0 %v8224
  %9369 = vmatprep.subr.bf16.mxu0 %v8265
  %9370 = vmatpush1.bf16.msra.mxu0 %v8264
  %9371 = vmatprep.subr.bf16.mxu0 %v8305
  %9372 = vmatpush1.bf16.msra.mxu0 %v8304
  %9373 = vmatprep.subr.bf16.mxu0 %v8345
  %9374 = vmatpush1.bf16.msra.mxu0 %v8344
  %9375 = vmatprep.subr.bf16.mxu0 %v8385
  %9376 = vmatpush1.bf16.msra.mxu0 %v8384
  %9377 = vmatprep.subr.bf16.mxu0 %v8425
  %9378 = vmatpush1.bf16.msra.mxu0 %v8424
  %9379 = vmatprep.subr.bf16.mxu0 %v8465
  %9380 = vmatpush1.bf16.msra.mxu0 %v8464
  %9381 = vmatprep.mubr.bf16.mxu0 %v5083
  %9382 = vmatmul.mubr.bf16.gmra.mrb[0].mxu0 %v5082
  %v9383 = vpop.f32.mrb[0].mxu0
  %v9384 = vadd.f32 %v5777, %v9383
  %v9385 = vpop.f32.mrb[0].mxu0
  %v9386 = vadd.f32 %v5781, %v9385
  %v9387 = vpop.f32.mrb[0].mxu0
  %v9388 = vadd.f32 %v5777, %v9387
  %v9389 = vpop.f32.mrb[0].mxu0
  %v9390 = vadd.f32 %v5781, %v9389
  %9391 = vdwg.mxu0
  %9392 = vmatprep.subr.bf16.mxu0 %v7867
  %9393 = vmatpush1.bf16.msra.mxu0 %v7866
  %9394 = vmatprep.subr.bf16.mxu0 %v7907
  %9395 = vmatpush1.bf16.msra.mxu0 %v7906
  %9396 = vmatprep.subr.bf16.mxu0 %v7947
  %9397 = vmatpush1.bf16.msra.mxu0 %v7946
  %9398 = vmatprep.subr.bf16.mxu0 %v7987
  %9399 = vmatpush1.bf16.msra.mxu0 %v7986
  %9400 = vmatprep.subr.bf16.mxu0 %v8027
  %9401 = vmatpush1.bf16.msra.mxu0 %v8026
  %9402 = vmatprep.subr.bf16.mxu0 %v8067
  %9403 = vmatpush1.bf16.msra.mxu0 %v8066
  %9404 = vmatprep.subr.bf16.mxu0 %v8107
  %9405 = vmatpush1.bf16.msra.mxu0 %v8106
  %9406 = vmatprep.subr.bf16.mxu0 %v8147
  %9407 = vmatpush1.bf16.msra.mxu0 %v8146
  %9408 = vmatprep.subr.bf16.mxu0 %v8187
  %9409 = vmatpush1.bf16.msra.mxu0 %v8186
  %9410 = vmatprep.subr.bf16.mxu0 %v8227
  %9411 = vmatpush1.bf16.msra.mxu0 %v8226
  %9412 = vmatprep.subr.bf16.mxu0 %v8267
  %9413 = vmatpush1.bf16.msra.mxu0 %v8266
  %9414 = vmatprep.subr.bf16.mxu0 %v8307
  %9415 = vmatpush1.bf16.msra.mxu0 %v8306
  %9416 = vmatprep.subr.bf16.mxu0 %v8347
  %9417 = vmatpush1.bf16.msra.mxu0 %v8346
  %9418 = vmatprep.subr.bf16.mxu0 %v8387
  %9419 = vmatpush1.bf16.msra.mxu0 %v8386
  %9420 = vmatprep.subr.bf16.mxu0 %v8427
  %9421 = vmatpush1.bf16.msra.mxu0 %v8426
  %9422 = vmatprep.subr.bf16.mxu0 %v8467
  %9423 = vmatpush1.bf16.msra.mxu0 %v8466
  %9424 = vmatprep.mubr.bf16.mxu0 %v5083
  %9425 = vmatmul.mubr.bf16.gmra.mrb[0].mxu0 %v5082
  %v9426 = vpop.f32.mrb[0].mxu0
  %v9427 = vadd.f32 %v5785, %v9426
  %v9428 = vpop.f32.mrb[0].mxu0
  %v9429 = vadd.f32 %v5789, %v9428
  %v9430 = vpop.f32.mrb[0].mxu0
  %v9431 = vadd.f32 %v5785, %v9430
  %v9432 = vpop.f32.mrb[0].mxu0
  %v9433 = vadd.f32 %v5789, %v9432
  %9434 = vdwg.mxu0
  %9435 = vmatprep.subr.bf16.mxu0 %v7869
  %9436 = vmatpush1.bf16.msra.mxu0 %v7868
  %9437 = vmatprep.subr.bf16.mxu0 %v7909
  %9438 = vmatpush1.bf16.msra.mxu0 %v7908
  %9439 = vmatprep.subr.bf16.mxu0 %v7949
  %9440 = vmatpush1.bf16.msra.mxu0 %v7948
  %9441 = vmatprep.subr.bf16.mxu0 %v7989
  %9442 = vmatpush1.bf16.msra.mxu0 %v7988
  %9443 = vmatprep.subr.bf16.mxu0 %v8029
  %9444 = vmatpush1.bf16.msra.mxu0 %v8028
  %9445 = vmatprep.subr.bf16.mxu0 %v8069
  %9446 = vmatpush1.bf16.msra.mxu0 %v8068
  %9447 = vmatprep.subr.bf16.mxu0 %v8109
  %9448 = vmatpush1.bf16.msra.mxu0 %v8108
  %9449 = vmatprep.subr.bf16.mxu0 %v8149
  %9450 = vmatpush1.bf16.msra.mxu0 %v8148
  %9451 = vmatprep.subr.bf16.mxu0 %v8189
  %9452 = vmatpush1.bf16.msra.mxu0 %v8188
  %9453 = vmatprep.subr.bf16.mxu0 %v8229
  %9454 = vmatpush1.bf16.msra.mxu0 %v8228
  %9455 = vmatprep.subr.bf16.mxu0 %v8269
  %9456 = vmatpush1.bf16.msra.mxu0 %v8268
  %9457 = vmatprep.subr.bf16.mxu0 %v8309
  %9458 = vmatpush1.bf16.msra.mxu0 %v8308
  %9459 = vmatprep.subr.bf16.mxu0 %v8349
  %9460 = vmatpush1.bf16.msra.mxu0 %v8348
  %9461 = vmatprep.subr.bf16.mxu0 %v8389
  %9462 = vmatpush1.bf16.msra.mxu0 %v8388
  %9463 = vmatprep.subr.bf16.mxu0 %v8429
  %9464 = vmatpush1.bf16.msra.mxu0 %v8428
  %9465 = vmatprep.subr.bf16.mxu0 %v8469
  %9466 = vmatpush1.bf16.msra.mxu0 %v8468
  %9467 = vmatprep.mubr.bf16.mxu0 %v5083
  %9468 = vmatmul.mubr.bf16.gmra.mrb[0].mxu0 %v5082
  %v9469 = vpop.f32.mrb[0].mxu0
  %v9470 = vadd.f32 %v5793, %v9469
  %v9471 = vpop.f32.mrb[0].mxu0
  %v9472 = vadd.f32 %v5797, %v9471
  %v9473 = vpop.f32.mrb[0].mxu0
  %v9474 = vadd.f32 %v5793, %v9473
  %v9475 = vpop.f32.mrb[0].mxu0
  %v9476 = vadd.f32 %v5797, %v9475
  %9477 = vdwg.mxu0
  %9478 = vmatprep.subr.bf16.mxu0 %v7871
  %9479 = vmatpush1.bf16.msra.mxu0 %v7870
  %9480 = vmatprep.subr.bf16.mxu0 %v7911
  %9481 = vmatpush1.bf16.msra.mxu0 %v7910
  %9482 = vmatprep.subr.bf16.mxu0 %v7951
  %9483 = vmatpush1.bf16.msra.mxu0 %v7950
  %9484 = vmatprep.subr.bf16.mxu0 %v7991
  %9485 = vmatpush1.bf16.msra.mxu0 %v7990
  %9486 = vmatprep.subr.bf16.mxu0 %v8031
  %9487 = vmatpush1.bf16.msra.mxu0 %v8030
  %9488 = vmatprep.subr.bf16.mxu0 %v8071
  %9489 = vmatpush1.bf16.msra.mxu0 %v8070
  %9490 = vmatprep.subr.bf16.mxu0 %v8111
  %9491 = vmatpush1.bf16.msra.mxu0 %v8110
  %9492 = vmatprep.subr.bf16.mxu0 %v8151
  %9493 = vmatpush1.bf16.msra.mxu0 %v8150
  %9494 = vmatprep.subr.bf16.mxu0 %v8191
  %9495 = vmatpush1.bf16.msra.mxu0 %v8190
  %9496 = vmatprep.subr.bf16.mxu0 %v8231
  %9497 = vmatpush1.bf16.msra.mxu0 %v8230
  %9498 = vmatprep.subr.bf16.mxu0 %v8271
  %9499 = vmatpush1.bf16.msra.mxu0 %v8270
  %9500 = vmatprep.subr.bf16.mxu0 %v8311
  %9501 = vmatpush1.bf16.msra.mxu0 %v8310
  %9502 = vmatprep.subr.bf16.mxu0 %v8351
  %9503 = vmatpush1.bf16.msra.mxu0 %v8350
  %9504 = vmatprep.subr.bf16.mxu0 %v8391
  %9505 = vmatpush1.bf16.msra.mxu0 %v8390
  %9506 = vmatprep.subr.bf16.mxu0 %v8431
  %9507 = vmatpush1.bf16.msra.mxu0 %v8430
  %9508 = vmatprep.subr.bf16.mxu0 %v8471
  %9509 = vmatpush1.bf16.msra.mxu0 %v8470
  %9510 = vmatprep.mubr.bf16.mxu0 %v5083
  %9511 = vmatmul.mubr.bf16.gmra.mrb[0].mxu0 %v5082
  %v9512 = vpop.f32.mrb[0].mxu0
  %v9513 = vadd.f32 %v5801, %v9512
  %v9514 = vpop.f32.mrb[0].mxu0
  %v9515 = vadd.f32 %v5805, %v9514
  %v9516 = vpop.f32.mrb[0].mxu0
  %v9517 = vadd.f32 %v5801, %v9516
  %v9518 = vpop.f32.mrb[0].mxu0
  %v9519 = vadd.f32 %v5805, %v9518
  %9520 = vdwg.mxu0
  %9521 = vmatprep.subr.bf16.mxu0 %v7873
  %9522 = vmatpush1.bf16.msra.mxu0 %v7872
  %9523 = vmatprep.subr.bf16.mxu0 %v7913
  %9524 = vmatpush1.bf16.msra.mxu0 %v7912
  %9525 = vmatprep.subr.bf16.mxu0 %v7953
  %9526 = vmatpush1.bf16.msra.mxu0 %v7952
  %9527 = vmatprep.subr.bf16.mxu0 %v7993
  %9528 = vmatpush1.bf16.msra.mxu0 %v7992
  %9529 = vmatprep.subr.bf16.mxu0 %v8033
  %9530 = vmatpush1.bf16.msra.mxu0 %v8032
  %9531 = vmatprep.subr.bf16.mxu0 %v8073
  %9532 = vmatpush1.bf16.msra.mxu0 %v8072
  %9533 = vmatprep.subr.bf16.mxu0 %v8113
  %9534 = vmatpush1.bf16.msra.mxu0 %v8112
  %9535 = vmatprep.subr.bf16.mxu0 %v8153
  %9536 = vmatpush1.bf16.msra.mxu0 %v8152
  %9537 = vmatprep.subr.bf16.mxu0 %v8193
  %9538 = vmatpush1.bf16.msra.mxu0 %v8192
  %9539 = vmatprep.subr.bf16.mxu0 %v8233
  %9540 = vmatpush1.bf16.msra.mxu0 %v8232
  %9541 = vmatprep.subr.bf16.mxu0 %v8273
  %9542 = vmatpush1.bf16.msra.mxu0 %v8272
  %9543 = vmatprep.subr.bf16.mxu0 %v8313
  %9544 = vmatpush1.bf16.msra.mxu0 %v8312
  %9545 = vmatprep.subr.bf16.mxu0 %v8353
  %9546 = vmatpush1.bf16.msra.mxu0 %v8352
  %9547 = vmatprep.subr.bf16.mxu0 %v8393
  %9548 = vmatpush1.bf16.msra.mxu0 %v8392
  %9549 = vmatprep.subr.bf16.mxu0 %v8433
  %9550 = vmatpush1.bf16.msra.mxu0 %v8432
  %9551 = vmatprep.subr.bf16.mxu0 %v8473
  %9552 = vmatpush1.bf16.msra.mxu0 %v8472
  %9553 = vmatprep.mubr.bf16.mxu0 %v5083
  %9554 = vmatmul.mubr.bf16.gmra.mrb[0].mxu0 %v5082
  %v9555 = vpop.f32.mrb[0].mxu0
  %v9556 = vadd.f32 %v5809, %v9555
  %v9557 = vpop.f32.mrb[0].mxu0
  %v9558 = vadd.f32 %v5813, %v9557
  %v9559 = vpop.f32.mrb[0].mxu0
  %v9560 = vadd.f32 %v5809, %v9559
  %v9561 = vpop.f32.mrb[0].mxu0
  %v9562 = vadd.f32 %v5813, %v9561
  %9563 = vdwg.mxu0
  %9564 = vmatprep.subr.bf16.mxu0 %v7875
  %9565 = vmatpush1.bf16.msra.mxu0 %v7874
  %9566 = vmatprep.subr.bf16.mxu0 %v7915
  %9567 = vmatpush1.bf16.msra.mxu0 %v7914
  %9568 = vmatprep.subr.bf16.mxu0 %v7955
  %9569 = vmatpush1.bf16.msra.mxu0 %v7954
  %9570 = vmatprep.subr.bf16.mxu0 %v7995
  %9571 = vmatpush1.bf16.msra.mxu0 %v7994
  %9572 = vmatprep.subr.bf16.mxu0 %v8035
  %9573 = vmatpush1.bf16.msra.mxu0 %v8034
  %9574 = vmatprep.subr.bf16.mxu0 %v8075
  %9575 = vmatpush1.bf16.msra.mxu0 %v8074
  %9576 = vmatprep.subr.bf16.mxu0 %v8115
  %9577 = vmatpush1.bf16.msra.mxu0 %v8114
  %9578 = vmatprep.subr.bf16.mxu0 %v8155
  %9579 = vmatpush1.bf16.msra.mxu0 %v8154
  %9580 = vmatprep.subr.bf16.mxu0 %v8195
  %9581 = vmatpush1.bf16.msra.mxu0 %v8194
  %9582 = vmatprep.subr.bf16.mxu0 %v8235
  %9583 = vmatpush1.bf16.msra.mxu0 %v8234
  %9584 = vmatprep.subr.bf16.mxu0 %v8275
  %9585 = vmatpush1.bf16.msra.mxu0 %v8274
  %9586 = vmatprep.subr.bf16.mxu0 %v8315
  %9587 = vmatpush1.bf16.msra.mxu0 %v8314
  %9588 = vmatprep.subr.bf16.mxu0 %v8355
  %9589 = vmatpush1.bf16.msra.mxu0 %v8354
  %9590 = vmatprep.subr.bf16.mxu0 %v8395
  %9591 = vmatpush1.bf16.msra.mxu0 %v8394
  %9592 = vmatprep.subr.bf16.mxu0 %v8435
  %9593 = vmatpush1.bf16.msra.mxu0 %v8434
  %9594 = vmatprep.subr.bf16.mxu0 %v8475
  %9595 = vmatpush1.bf16.msra.mxu0 %v8474
  %9596 = vmatprep.mubr.bf16.mxu0 %v5083
  %9597 = vmatmul.mubr.bf16.gmra.mrb[0].mxu0 %v5082
  %v9598 = vpop.f32.mrb[0].mxu0
  %v9599 = vadd.f32 %v5817, %v9598
  %v9600 = vpop.f32.mrb[0].mxu0
  %v9601 = vadd.f32 %v5821, %v9600
  %v9602 = vpop.f32.mrb[0].mxu0
  %v9603 = vadd.f32 %v5817, %v9602
  %v9604 = vpop.f32.mrb[0].mxu0
  %v9605 = vadd.f32 %v5821, %v9604
  %9606 = vdwg.mxu0
  %9607 = vmatprep.subr.bf16.mxu0 %v7877
  %9608 = vmatpush1.bf16.msra.mxu0 %v7876
  %9609 = vmatprep.subr.bf16.mxu0 %v7917
  %9610 = vmatpush1.bf16.msra.mxu0 %v7916
  %9611 = vmatprep.subr.bf16.mxu0 %v7957
  %9612 = vmatpush1.bf16.msra.mxu0 %v7956
  %9613 = vmatprep.subr.bf16.mxu0 %v7997
  %9614 = vmatpush1.bf16.msra.mxu0 %v7996
  %9615 = vmatprep.subr.bf16.mxu0 %v8037
  %9616 = vmatpush1.bf16.msra.mxu0 %v8036
  %9617 = vmatprep.subr.bf16.mxu0 %v8077
  %9618 = vmatpush1.bf16.msra.mxu0 %v8076
  %9619 = vmatprep.subr.bf16.mxu0 %v8117
  %9620 = vmatpush1.bf16.msra.mxu0 %v8116
  %9621 = vmatprep.subr.bf16.mxu0 %v8157
  %9622 = vmatpush1.bf16.msra.mxu0 %v8156
  %9623 = vmatprep.subr.bf16.mxu0 %v8197
  %9624 = vmatpush1.bf16.msra.mxu0 %v8196
  %9625 = vmatprep.subr.bf16.mxu0 %v8237
  %9626 = vmatpush1.bf16.msra.mxu0 %v8236
  %9627 = vmatprep.subr.bf16.mxu0 %v8277
  %9628 = vmatpush1.bf16.msra.mxu0 %v8276
  %9629 = vmatprep.subr.bf16.mxu0 %v8317
  %9630 = vmatpush1.bf16.msra.mxu0 %v8316
  %9631 = vmatprep.subr.bf16.mxu0 %v8357
  %9632 = vmatpush1.bf16.msra.mxu0 %v8356
  %9633 = vmatprep.subr.bf16.mxu0 %v8397
  %9634 = vmatpush1.bf16.msra.mxu0 %v8396
  %9635 = vmatprep.subr.bf16.mxu0 %v8437
  %9636 = vmatpush1.bf16.msra.mxu0 %v8436
  %9637 = vmatprep.subr.bf16.mxu0 %v8477
  %9638 = vmatpush1.bf16.msra.mxu0 %v8476
  %9639 = vmatprep.mubr.bf16.mxu0 %v5083
  %9640 = vmatmul.mubr.bf16.gmra.mrb[0].mxu0 %v5082
  %v9641 = vpop.f32.mrb[0].mxu0
  %v9642 = vadd.f32 %v5825, %v9641
  %v9643 = vpop.f32.mrb[0].mxu0
  %v9644 = vadd.f32 %v5829, %v9643
  %v9645 = vpop.f32.mrb[0].mxu0
  %v9646 = vadd.f32 %v5825, %v9645
  %v9647 = vpop.f32.mrb[0].mxu0
  %v9648 = vadd.f32 %v5829, %v9647
  %9649 = vdwg.mxu0
  %9650 = vmatprep.subr.bf16.mxu0 %v7879
  %9651 = vmatpush1.bf16.msra.mxu0 %v7878
  %9652 = vmatprep.subr.bf16.mxu0 %v7919
  %9653 = vmatpush1.bf16.msra.mxu0 %v7918
  %9654 = vmatprep.subr.bf16.mxu0 %v7959
  %9655 = vmatpush1.bf16.msra.mxu0 %v7958
  %9656 = vmatprep.subr.bf16.mxu0 %v7999
  %9657 = vmatpush1.bf16.msra.mxu0 %v7998
  %9658 = vmatprep.subr.bf16.mxu0 %v8039
  %9659 = vmatpush1.bf16.msra.mxu0 %v8038
  %9660 = vmatprep.subr.bf16.mxu0 %v8079
  %9661 = vmatpush1.bf16.msra.mxu0 %v8078
  %9662 = vmatprep.subr.bf16.mxu0 %v8119
  %9663 = vmatpush1.bf16.msra.mxu0 %v8118
  %9664 = vmatprep.subr.bf16.mxu0 %v8159
  %9665 = vmatpush1.bf16.msra.mxu0 %v8158
  %9666 = vmatprep.subr.bf16.mxu0 %v8199
  %9667 = vmatpush1.bf16.msra.mxu0 %v8198
  %9668 = vmatprep.subr.bf16.mxu0 %v8239
  %9669 = vmatpush1.bf16.msra.mxu0 %v8238
  %9670 = vmatprep.subr.bf16.mxu0 %v8279
  %9671 = vmatpush1.bf16.msra.mxu0 %v8278
  %9672 = vmatprep.subr.bf16.mxu0 %v8319
  %9673 = vmatpush1.bf16.msra.mxu0 %v8318
  %9674 = vmatprep.subr.bf16.mxu0 %v8359
  %9675 = vmatpush1.bf16.msra.mxu0 %v8358
  %9676 = vmatprep.subr.bf16.mxu0 %v8399
  %9677 = vmatpush1.bf16.msra.mxu0 %v8398
  %9678 = vmatprep.subr.bf16.mxu0 %v8439
  %9679 = vmatpush1.bf16.msra.mxu0 %v8438
  %9680 = vmatprep.subr.bf16.mxu0 %v8479
  %9681 = vmatpush1.bf16.msra.mxu0 %v8478
  %9682 = vmatprep.mubr.bf16.mxu0 %v5083
  %9683 = vmatmul.mubr.bf16.gmra.mrb[0].mxu0 %v5082
  %v9684 = vpop.f32.mrb[0].mxu0
  %v9685 = vadd.f32 %v5833, %v9684
  %v9686 = vpop.f32.mrb[0].mxu0
  %v9687 = vadd.f32 %v5837, %v9686
  %v9688 = vpop.f32.mrb[0].mxu0
  %v9689 = vadd.f32 %v5833, %v9688
  %v9690 = vpop.f32.mrb[0].mxu0
  %v9691 = vadd.f32 %v5837, %v9690
  %9692 = vdwg.mxu0
  %9693 = vmatprep.subr.bf16.mxu0 %v7881
  %9694 = vmatpush1.bf16.msra.mxu0 %v7880
  %9695 = vmatprep.subr.bf16.mxu0 %v7921
  %9696 = vmatpush1.bf16.msra.mxu0 %v7920
  %9697 = vmatprep.subr.bf16.mxu0 %v7961
  %9698 = vmatpush1.bf16.msra.mxu0 %v7960
  %9699 = vmatprep.subr.bf16.mxu0 %v8001
  %9700 = vmatpush1.bf16.msra.mxu0 %v8000
  %9701 = vmatprep.subr.bf16.mxu0 %v8041
  %9702 = vmatpush1.bf16.msra.mxu0 %v8040
  %9703 = vmatprep.subr.bf16.mxu0 %v8081
  %9704 = vmatpush1.bf16.msra.mxu0 %v8080
  %9705 = vmatprep.subr.bf16.mxu0 %v8121
  %9706 = vmatpush1.bf16.msra.mxu0 %v8120
  %9707 = vmatprep.subr.bf16.mxu0 %v8161
  %9708 = vmatpush1.bf16.msra.mxu0 %v8160
  %9709 = vmatprep.subr.bf16.mxu0 %v8201
  %9710 = vmatpush1.bf16.msra.mxu0 %v8200
  %9711 = vmatprep.subr.bf16.mxu0 %v8241
  %9712 = vmatpush1.bf16.msra.mxu0 %v8240
  %9713 = vmatprep.subr.bf16.mxu0 %v8281
  %9714 = vmatpush1.bf16.msra.mxu0 %v8280
  %9715 = vmatprep.subr.bf16.mxu0 %v8321
  %9716 = vmatpush1.bf16.msra.mxu0 %v8320
  %9717 = vmatprep.subr.bf16.mxu0 %v8361
  %9718 = vmatpush1.bf16.msra.mxu0 %v8360
  %9719 = vmatprep.subr.bf16.mxu0 %v8401
  %9720 = vmatpush1.bf16.msra.mxu0 %v8400
  %9721 = vmatprep.subr.bf16.mxu0 %v8441
  %9722 = vmatpush1.bf16.msra.mxu0 %v8440
  %9723 = vmatprep.subr.bf16.mxu0 %v8481
  %9724 = vmatpush1.bf16.msra.mxu0 %v8480
  %9725 = vmatprep.mubr.bf16.mxu0 %v5083
  %9726 = vmatmul.mubr.bf16.gmra.mrb[0].mxu0 %v5082
  %v9727 = vpop.f32.mrb[0].mxu0
  %v9728 = vadd.f32 %v5841, %v9727
  %v9729 = vpop.f32.mrb[0].mxu0
  %v9730 = vadd.f32 %v5845, %v9729
  %v9731 = vpop.f32.mrb[0].mxu0
  %v9732 = vadd.f32 %v5841, %v9731
  %v9733 = vpop.f32.mrb[0].mxu0
  %v9734 = vadd.f32 %v5845, %v9733
  %9735 = vdwg.mxu0
  %9736 = vmatprep.subr.bf16.mxu0 %v7883
  %9737 = vmatpush1.bf16.msra.mxu0 %v7882
  %9738 = vmatprep.subr.bf16.mxu0 %v7923
  %9739 = vmatpush1.bf16.msra.mxu0 %v7922
  %9740 = vmatprep.subr.bf16.mxu0 %v7963
  %9741 = vmatpush1.bf16.msra.mxu0 %v7962
  %9742 = vmatprep.subr.bf16.mxu0 %v8003
  %9743 = vmatpush1.bf16.msra.mxu0 %v8002
  %9744 = vmatprep.subr.bf16.mxu0 %v8043
  %9745 = vmatpush1.bf16.msra.mxu0 %v8042
  %9746 = vmatprep.subr.bf16.mxu0 %v8083
  %9747 = vmatpush1.bf16.msra.mxu0 %v8082
  %9748 = vmatprep.subr.bf16.mxu0 %v8123
  %9749 = vmatpush1.bf16.msra.mxu0 %v8122
  %9750 = vmatprep.subr.bf16.mxu0 %v8163
  %9751 = vmatpush1.bf16.msra.mxu0 %v8162
  %9752 = vmatprep.subr.bf16.mxu0 %v8203
  %9753 = vmatpush1.bf16.msra.mxu0 %v8202
  %9754 = vmatprep.subr.bf16.mxu0 %v8243
  %9755 = vmatpush1.bf16.msra.mxu0 %v8242
  %9756 = vmatprep.subr.bf16.mxu0 %v8283
  %9757 = vmatpush1.bf16.msra.mxu0 %v8282
  %9758 = vmatprep.subr.bf16.mxu0 %v8323
  %9759 = vmatpush1.bf16.msra.mxu0 %v8322
  %9760 = vmatprep.subr.bf16.mxu0 %v8363
  %9761 = vmatpush1.bf16.msra.mxu0 %v8362
  %9762 = vmatprep.subr.bf16.mxu0 %v8403
  %9763 = vmatpush1.bf16.msra.mxu0 %v8402
  %9764 = vmatprep.subr.bf16.mxu0 %v8443
  %9765 = vmatpush1.bf16.msra.mxu0 %v8442
  %9766 = vmatprep.subr.bf16.mxu0 %v8483
  %9767 = vmatpush1.bf16.msra.mxu0 %v8482
  %9768 = vmatprep.mubr.bf16.mxu0 %v5083
  %9769 = vmatmul.mubr.bf16.gmra.mrb[0].mxu0 %v5082
  %v9770 = vpop.f32.mrb[0].mxu0
  %v9771 = vadd.f32 %v5849, %v9770
  %v9772 = vpop.f32.mrb[0].mxu0
  %v9773 = vadd.f32 %v5853, %v9772
  %v9774 = vpop.f32.mrb[0].mxu0
  %v9775 = vadd.f32 %v5849, %v9774
  %v9776 = vpop.f32.mrb[0].mxu0
  %v9777 = vadd.f32 %v5853, %v9776
  %9778 = vdwg.mxu0
  %9779 = vmatprep.subr.bf16.mxu0 %v7885
  %9780 = vmatpush1.bf16.msra.mxu0 %v7884
  %9781 = vmatprep.subr.bf16.mxu0 %v7925
  %9782 = vmatpush1.bf16.msra.mxu0 %v7924
  %9783 = vmatprep.subr.bf16.mxu0 %v7965
  %9784 = vmatpush1.bf16.msra.mxu0 %v7964
  %9785 = vmatprep.subr.bf16.mxu0 %v8005
  %9786 = vmatpush1.bf16.msra.mxu0 %v8004
  %9787 = vmatprep.subr.bf16.mxu0 %v8045
  %9788 = vmatpush1.bf16.msra.mxu0 %v8044
  %9789 = vmatprep.subr.bf16.mxu0 %v8085
  %9790 = vmatpush1.bf16.msra.mxu0 %v8084
  %9791 = vmatprep.subr.bf16.mxu0 %v8125
  %9792 = vmatpush1.bf16.msra.mxu0 %v8124
  %9793 = vmatprep.subr.bf16.mxu0 %v8165
  %9794 = vmatpush1.bf16.msra.mxu0 %v8164
  %9795 = vmatprep.subr.bf16.mxu0 %v8205
  %9796 = vmatpush1.bf16.msra.mxu0 %v8204
  %9797 = vmatprep.subr.bf16.mxu0 %v8245
  %9798 = vmatpush1.bf16.msra.mxu0 %v8244
  %9799 = vmatprep.subr.bf16.mxu0 %v8285
  %9800 = vmatpush1.bf16.msra.mxu0 %v8284
  %9801 = vmatprep.subr.bf16.mxu0 %v8325
  %9802 = vmatpush1.bf16.msra.mxu0 %v8324
  %9803 = vmatprep.subr.bf16.mxu0 %v8365
  %9804 = vmatpush1.bf16.msra.mxu0 %v8364
  %9805 = vmatprep.subr.bf16.mxu0 %v8405
  %9806 = vmatpush1.bf16.msra.mxu0 %v8404
  %9807 = vmatprep.subr.bf16.mxu0 %v8445
  %9808 = vmatpush1.bf16.msra.mxu0 %v8444
  %9809 = vmatprep.subr.bf16.mxu0 %v8485
  %9810 = vmatpush1.bf16.msra.mxu0 %v8484
  %9811 = vmatprep.mubr.bf16.mxu0 %v5083
  %9812 = vmatmul.mubr.bf16.gmra.mrb[0].mxu0 %v5082
  %v9813 = vpop.f32.mrb[0].mxu0
  %v9814 = vadd.f32 %v5857, %v9813
  %v9815 = vpop.f32.mrb[0].mxu0
  %v9816 = vadd.f32 %v5861, %v9815
  %v9817 = vpop.f32.mrb[0].mxu0
  %v9818 = vadd.f32 %v5857, %v9817
  %v9819 = vpop.f32.mrb[0].mxu0
  %v9820 = vadd.f32 %v5861, %v9819
  %9821 = vdwg.mxu0
  %9822 = vmatprep.subr.bf16.mxu0 %v7887
  %9823 = vmatpush1.bf16.msra.mxu0 %v7886
  %9824 = vmatprep.subr.bf16.mxu0 %v7927
  %9825 = vmatpush1.bf16.msra.mxu0 %v7926
  %9826 = vmatprep.subr.bf16.mxu0 %v7967
  %9827 = vmatpush1.bf16.msra.mxu0 %v7966
  %9828 = vmatprep.subr.bf16.mxu0 %v8007
  %9829 = vmatpush1.bf16.msra.mxu0 %v8006
  %9830 = vmatprep.subr.bf16.mxu0 %v8047
  %9831 = vmatpush1.bf16.msra.mxu0 %v8046
  %9832 = vmatprep.subr.bf16.mxu0 %v8087
  %9833 = vmatpush1.bf16.msra.mxu0 %v8086
  %9834 = vmatprep.subr.bf16.mxu0 %v8127
  %9835 = vmatpush1.bf16.msra.mxu0 %v8126
  %9836 = vmatprep.subr.bf16.mxu0 %v8167
  %9837 = vmatpush1.bf16.msra.mxu0 %v8166
  %9838 = vmatprep.subr.bf16.mxu0 %v8207
  %9839 = vmatpush1.bf16.msra.mxu0 %v8206
  %9840 = vmatprep.subr.bf16.mxu0 %v8247
  %9841 = vmatpush1.bf16.msra.mxu0 %v8246
  %9842 = vmatprep.subr.bf16.mxu0 %v8287
  %9843 = vmatpush1.bf16.msra.mxu0 %v8286
  %9844 = vmatprep.subr.bf16.mxu0 %v8327
  %9845 = vmatpush1.bf16.msra.mxu0 %v8326
  %9846 = vmatprep.subr.bf16.mxu0 %v8367
  %9847 = vmatpush1.bf16.msra.mxu0 %v8366
  %9848 = vmatprep.subr.bf16.mxu0 %v8407
  %9849 = vmatpush1.bf16.msra.mxu0 %v8406
  %9850 = vmatprep.subr.bf16.mxu0 %v8447
  %9851 = vmatpush1.bf16.msra.mxu0 %v8446
  %9852 = vmatprep.subr.bf16.mxu0 %v8487
  %9853 = vmatpush1.bf16.msra.mxu0 %v8486
  %9854 = vmatprep.mubr.bf16.mxu0 %v5083
  %9855 = vmatmul.mubr.bf16.gmra.mrb[0].mxu0 %v5082
  %v9856 = vpop.f32.mrb[0].mxu0
  %v9857 = vadd.f32 %v5865, %v9856
  %v9858 = vpop.f32.mrb[0].mxu0
  %v9859 = vadd.f32 %v5869, %v9858
  %v9860 = vpop.f32.mrb[0].mxu0
  %v9861 = vadd.f32 %v5865, %v9860
  %v9862 = vpop.f32.mrb[0].mxu0
  %v9863 = vadd.f32 %v5869, %v9862
  %9864 = vdwg.mxu0
  %9865 = vmatprep.subr.bf16.mxu0 %v7889
  %9866 = vmatpush1.bf16.msra.mxu0 %v7888
  %9867 = vmatprep.subr.bf16.mxu0 %v7929
  %9868 = vmatpush1.bf16.msra.mxu0 %v7928
  %9869 = vmatprep.subr.bf16.mxu0 %v7969
  %9870 = vmatpush1.bf16.msra.mxu0 %v7968
  %9871 = vmatprep.subr.bf16.mxu0 %v8009
  %9872 = vmatpush1.bf16.msra.mxu0 %v8008
  %9873 = vmatprep.subr.bf16.mxu0 %v8049
  %9874 = vmatpush1.bf16.msra.mxu0 %v8048
  %9875 = vmatprep.subr.bf16.mxu0 %v8089
  %9876 = vmatpush1.bf16.msra.mxu0 %v8088
  %9877 = vmatprep.subr.bf16.mxu0 %v8129
  %9878 = vmatpush1.bf16.msra.mxu0 %v8128
  %9879 = vmatprep.subr.bf16.mxu0 %v8169
  %9880 = vmatpush1.bf16.msra.mxu0 %v8168
  %9881 = vmatprep.subr.bf16.mxu0 %v8209
  %9882 = vmatpush1.bf16.msra.mxu0 %v8208
  %9883 = vmatprep.subr.bf16.mxu0 %v8249
  %9884 = vmatpush1.bf16.msra.mxu0 %v8248
  %9885 = vmatprep.subr.bf16.mxu0 %v8289
  %9886 = vmatpush1.bf16.msra.mxu0 %v8288
  %9887 = vmatprep.subr.bf16.mxu0 %v8329
  %9888 = vmatpush1.bf16.msra.mxu0 %v8328
  %9889 = vmatprep.subr.bf16.mxu0 %v8369
  %9890 = vmatpush1.bf16.msra.mxu0 %v8368
  %9891 = vmatprep.subr.bf16.mxu0 %v8409
  %9892 = vmatpush1.bf16.msra.mxu0 %v8408
  %9893 = vmatprep.subr.bf16.mxu0 %v8449
  %9894 = vmatpush1.bf16.msra.mxu0 %v8448
  %9895 = vmatprep.subr.bf16.mxu0 %v8489
  %9896 = vmatpush1.bf16.msra.mxu0 %v8488
  %9897 = vmatprep.mubr.bf16.mxu0 %v5083
  %9898 = vmatmul.mubr.bf16.gmra.mrb[0].mxu0 %v5082
  %v9899 = vpop.f32.mrb[0].mxu0
  %v9900 = vadd.f32 %v5873, %v9899
  %v9901 = vpop.f32.mrb[0].mxu0
  %v9902 = vadd.f32 %v5877, %v9901
  %v9903 = vpop.f32.mrb[0].mxu0
  %v9904 = vadd.f32 %v5873, %v9903
  %v9905 = vpop.f32.mrb[0].mxu0
  %v9906 = vadd.f32 %v5877, %v9905
  %9907 = vdwg.mxu0
  %9908 = vmatprep.subr.bf16.mxu0 %v7891
  %9909 = vmatpush1.bf16.msra.mxu0 %v7890
  %9910 = vmatprep.subr.bf16.mxu0 %v7931
  %9911 = vmatpush1.bf16.msra.mxu0 %v7930
  %9912 = vmatprep.subr.bf16.mxu0 %v7971
  %9913 = vmatpush1.bf16.msra.mxu0 %v7970
  %9914 = vmatprep.subr.bf16.mxu0 %v8011
  %9915 = vmatpush1.bf16.msra.mxu0 %v8010
  %9916 = vmatprep.subr.bf16.mxu0 %v8051
  %9917 = vmatpush1.bf16.msra.mxu0 %v8050
  %9918 = vmatprep.subr.bf16.mxu0 %v8091
  %9919 = vmatpush1.bf16.msra.mxu0 %v8090
  %9920 = vmatprep.subr.bf16.mxu0 %v8131
  %9921 = vmatpush1.bf16.msra.mxu0 %v8130
  %9922 = vmatprep.subr.bf16.mxu0 %v8171
  %9923 = vmatpush1.bf16.msra.mxu0 %v8170
  %9924 = vmatprep.subr.bf16.mxu0 %v8211
  %9925 = vmatpush1.bf16.msra.mxu0 %v8210
  %9926 = vmatprep.subr.bf16.mxu0 %v8251
  %9927 = vmatpush1.bf16.msra.mxu0 %v8250
  %9928 = vmatprep.subr.bf16.mxu0 %v8291
  %9929 = vmatpush1.bf16.msra.mxu0 %v8290
  %9930 = vmatprep.subr.bf16.mxu0 %v8331
  %9931 = vmatpush1.bf16.msra.mxu0 %v8330
  %9932 = vmatprep.subr.bf16.mxu0 %v8371
  %9933 = vmatpush1.bf16.msra.mxu0 %v8370
  %9934 = vmatprep.subr.bf16.mxu0 %v8411
  %9935 = vmatpush1.bf16.msra.mxu0 %v8410
  %9936 = vmatprep.subr.bf16.mxu0 %v8451
  %9937 = vmatpush1.bf16.msra.mxu0 %v8450
  %9938 = vmatprep.subr.bf16.mxu0 %v8491
  %9939 = vmatpush1.bf16.msra.mxu0 %v8490
  %9940 = vmatprep.mubr.bf16.mxu0 %v5083
  %9941 = vmatmul.mubr.bf16.gmra.mrb[0].mxu0 %v5082
  %v9942 = vpop.f32.mrb[0].mxu0
  %v9943 = vadd.f32 %v5881, %v9942
  %v9944 = vpop.f32.mrb[0].mxu0
  %v9945 = vadd.f32 %v5885, %v9944
  %v9946 = vpop.f32.mrb[0].mxu0
  %v9947 = vadd.f32 %v5881, %v9946
  %v9948 = vpop.f32.mrb[0].mxu0
  %v9949 = vadd.f32 %v5885, %v9948
  %9950 = vdwg.mxu0
  %9951 = vmatprep.subr.bf16.mxu0 %v7893
  %9952 = vmatpush1.bf16.msra.mxu0 %v7892
  %9953 = vmatprep.subr.bf16.mxu0 %v7933
  %9954 = vmatpush1.bf16.msra.mxu0 %v7932
  %9955 = vmatprep.subr.bf16.mxu0 %v7973
  %9956 = vmatpush1.bf16.msra.mxu0 %v7972
  %9957 = vmatprep.subr.bf16.mxu0 %v8013
  %9958 = vmatpush1.bf16.msra.mxu0 %v8012
  %9959 = vmatprep.subr.bf16.mxu0 %v8053
  %9960 = vmatpush1.bf16.msra.mxu0 %v8052
  %9961 = vmatprep.subr.bf16.mxu0 %v8093
  %9962 = vmatpush1.bf16.msra.mxu0 %v8092
  %9963 = vmatprep.subr.bf16.mxu0 %v8133
  %9964 = vmatpush1.bf16.msra.mxu0 %v8132
  %9965 = vmatprep.subr.bf16.mxu0 %v8173
  %9966 = vmatpush1.bf16.msra.mxu0 %v8172
  %9967 = vmatprep.subr.bf16.mxu0 %v8213
  %9968 = vmatpush1.bf16.msra.mxu0 %v8212
  %9969 = vmatprep.subr.bf16.mxu0 %v8253
  %9970 = vmatpush1.bf16.msra.mxu0 %v8252
  %9971 = vmatprep.subr.bf16.mxu0 %v8293
  %9972 = vmatpush1.bf16.msra.mxu0 %v8292
  %9973 = vmatprep.subr.bf16.mxu0 %v8333
  %9974 = vmatpush1.bf16.msra.mxu0 %v8332
  %9975 = vmatprep.subr.bf16.mxu0 %v8373
  %9976 = vmatpush1.bf16.msra.mxu0 %v8372
  %9977 = vmatprep.subr.bf16.mxu0 %v8413
  %9978 = vmatpush1.bf16.msra.mxu0 %v8412
  %9979 = vmatprep.subr.bf16.mxu0 %v8453
  %9980 = vmatpush1.bf16.msra.mxu0 %v8452
  %9981 = vmatprep.subr.bf16.mxu0 %v8493
  %9982 = vmatpush1.bf16.msra.mxu0 %v8492
  %9983 = vmatprep.mubr.bf16.mxu0 %v5083
  %9984 = vmatmul.mubr.bf16.gmra.mrb[0].mxu0 %v5082
  %v9985 = vpop.f32.mrb[0].mxu0
  %v9986 = vadd.f32 %v5889, %v9985
  %v9987 = vpop.f32.mrb[0].mxu0
  %v9988 = vadd.f32 %v5893, %v9987
  %v9989 = vpop.f32.mrb[0].mxu0
  %v9990 = vadd.f32 %v5889, %v9989
  %v9991 = vpop.f32.mrb[0].mxu0
  %v9992 = vadd.f32 %v5893, %v9991
  %9993 = vdwg.mxu0
  %v9994 = vmul.f32 %v9169, 0.5
  %v9995 = vmul.f32 %v9171, 0.5
  %v9996 = vmul.f32 %v9212, 0.5
  %v9997 = vmul.f32 %v9214, 0.5
  %v9998 = vmul.f32 %v9255, 0.5
  %v9999 = vmul.f32 %v9257, 0.5
  %v10000 = vmul.f32 %v9298, 0.5
  %v10001 = vmul.f32 %v9300, 0.5
  %v10002 = vmul.f32 %v9341, 0.5
  %v10003 = vmul.f32 %v9343, 0.5
  %v10004 = vmul.f32 %v9384, 0.5
  %v10005 = vmul.f32 %v9386, 0.5
  %v10006 = vmul.f32 %v9427, 0.5
  %v10007 = vmul.f32 %v9429, 0.5
  %v10008 = vmul.f32 %v9470, 0.5
  %v10009 = vmul.f32 %v9472, 0.5
  %v10010 = vmul.f32 %v9513, 0.5
  %v10011 = vmul.f32 %v9515, 0.5
  %v10012 = vmul.f32 %v9556, 0.5
  %v10013 = vmul.f32 %v9558, 0.5
  %v10014 = vmul.f32 %v9599, 0.5
  %v10015 = vmul.f32 %v9601, 0.5
  %v10016 = vmul.f32 %v9642, 0.5
  %v10017 = vmul.f32 %v9644, 0.5
  %v10018 = vmul.f32 %v9685, 0.5
  %v10019 = vmul.f32 %v9687, 0.5
  %v10020 = vmul.f32 %v9728, 0.5
  %v10021 = vmul.f32 %v9730, 0.5
  %v10022 = vmul.f32 %v9771, 0.5
  %v10023 = vmul.f32 %v9773, 0.5
  %v10024 = vmul.f32 %v9814, 0.5
  %v10025 = vmul.f32 %v9816, 0.5
  %v10026 = vmul.f32 %v9857, 0.5
  %v10027 = vmul.f32 %v9859, 0.5
  %v10028 = vmul.f32 %v9900, 0.5
  %v10029 = vmul.f32 %v9902, 0.5
  %v10030 = vmul.f32 %v9943, 0.5
  %v10031 = vmul.f32 %v9945, 0.5
  %v10032 = vmul.f32 %v9986, 0.5
  %v10033 = vmul.f32 %v9988, 0.5
  %v10034 = vmul.f32 %v9173, 0.5
  %v10035 = vmul.f32 %v9175, 0.5
  %v10036 = vmul.f32 %v9216, 0.5
  %v10037 = vmul.f32 %v9218, 0.5
  %v10038 = vmul.f32 %v9259, 0.5
  %v10039 = vmul.f32 %v9261, 0.5
  %v10040 = vmul.f32 %v9302, 0.5
  %v10041 = vmul.f32 %v9304, 0.5
  %v10042 = vmul.f32 %v9345, 0.5
  %v10043 = vmul.f32 %v9347, 0.5
  %v10044 = vmul.f32 %v9388, 0.5
  %v10045 = vmul.f32 %v9390, 0.5
  %v10046 = vmul.f32 %v9431, 0.5
  %v10047 = vmul.f32 %v9433, 0.5
  %v10048 = vmul.f32 %v9474, 0.5
  %v10049 = vmul.f32 %v9476, 0.5
  %v10050 = vmul.f32 %v9517, 0.5
  %v10051 = vmul.f32 %v9519, 0.5
  %v10052 = vmul.f32 %v9560, 0.5
  %v10053 = vmul.f32 %v9562, 0.5
  %v10054 = vmul.f32 %v9603, 0.5
  %v10055 = vmul.f32 %v9605, 0.5
  %v10056 = vmul.f32 %v9646, 0.5
  %v10057 = vmul.f32 %v9648, 0.5
  %v10058 = vmul.f32 %v9689, 0.5
  %v10059 = vmul.f32 %v9691, 0.5
  %v10060 = vmul.f32 %v9732, 0.5
  %v10061 = vmul.f32 %v9734, 0.5
  %v10062 = vmul.f32 %v9775, 0.5
  %v10063 = vmul.f32 %v9777, 0.5
  %v10064 = vmul.f32 %v9818, 0.5
  %v10065 = vmul.f32 %v9820, 0.5
  %v10066 = vmul.f32 %v9861, 0.5
  %v10067 = vmul.f32 %v9863, 0.5
  %v10068 = vmul.f32 %v9904, 0.5
  %v10069 = vmul.f32 %v9906, 0.5
  %v10070 = vmul.f32 %v9947, 0.5
  %v10071 = vmul.f32 %v9949, 0.5
  %v10072 = vmul.f32 %v9990, 0.5
  %v10073 = vmul.f32 %v9992, 0.5
  %v10074 = vtanh.pop %v9994
  %v10075 = vtanh.pop %v9995
  %v10076 = vtanh.pop %v9996
  %v10077 = vtanh.pop %v9997
  %v10078 = vtanh.pop %v9998
  %v10079 = vtanh.pop %v9999
  %v10080 = vtanh.pop %v10000
  %v10081 = vtanh.pop %v10001
  %v10082 = vtanh.pop %v10002
  %v10083 = vtanh.pop %v10003
  %v10084 = vtanh.pop %v10004
  %v10085 = vtanh.pop %v10005
  %v10086 = vtanh.pop %v10006
  %v10087 = vtanh.pop %v10007
  %v10088 = vtanh.pop %v10008
  %v10089 = vtanh.pop %v10009
  %v10090 = vtanh.pop %v10010
  %v10091 = vtanh.pop %v10011
  %v10092 = vtanh.pop %v10012
  %v10093 = vtanh.pop %v10013
  %v10094 = vtanh.pop %v10014
  %v10095 = vtanh.pop %v10015
  %v10096 = vtanh.pop %v10016
  %v10097 = vtanh.pop %v10017
  %v10098 = vtanh.pop %v10018
  %v10099 = vtanh.pop %v10019
  %v10100 = vtanh.pop %v10020
  %v10101 = vtanh.pop %v10021
  %v10102 = vtanh.pop %v10022
  %v10103 = vtanh.pop %v10023
  %v10104 = vtanh.pop %v10024
  %v10105 = vtanh.pop %v10025
  %v10106 = vtanh.pop %v10026
  %v10107 = vtanh.pop %v10027
  %v10108 = vtanh.pop %v10028
  %v10109 = vtanh.pop %v10029
  %v10110 = vtanh.pop %v10030
  %v10111 = vtanh.pop %v10031
  %v10112 = vtanh.pop %v10032
  %v10113 = vtanh.pop %v10033
  %v10114 = vtanh.pop %v10034
  %v10115 = vtanh.pop %v10035
  %v10116 = vtanh.pop %v10036
  %v10117 = vtanh.pop %v10037
  %v10118 = vtanh.pop %v10038
  %v10119 = vtanh.pop %v10039
  %v10120 = vtanh.pop %v10040
  %v10121 = vtanh.pop %v10041
  %v10122 = vtanh.pop %v10042
  %v10123 = vtanh.pop %v10043
  %v10124 = vtanh.pop %v10044
  %v10125 = vtanh.pop %v10045
  %v10126 = vtanh.pop %v10046
  %v10127 = vtanh.pop %v10047
  %v10128 = vtanh.pop %v10048
  %v10129 = vtanh.pop %v10049
  %v10130 = vtanh.pop %v10050
  %v10131 = vtanh.pop %v10051
  %v10132 = vtanh.pop %v10052
  %v10133 = vtanh.pop %v10053
  %v10134 = vtanh.pop %v10054
  %v10135 = vtanh.pop %v10055
  %v10136 = vtanh.pop %v10056
  %v10137 = vtanh.pop %v10057
  %v10138 = vtanh.pop %v10058
  %v10139 = vtanh.pop %v10059
  %v10140 = vtanh.pop %v10060
  %v10141 = vtanh.pop %v10061
  %v10142 = vtanh.pop %v10062
  %v10143 = vtanh.pop %v10063
  %v10144 = vtanh.pop %v10064
  %v10145 = vtanh.pop %v10065
  %v10146 = vtanh.pop %v10066
  %v10147 = vtanh.pop %v10067
  %v10148 = vtanh.pop %v10068
  %v10149 = vtanh.pop %v10069
  %v10150 = vtanh.pop %v10070
  %v10151 = vtanh.pop %v10071
  %v10152 = vtanh.pop %v10072
  %v10153 = vtanh.pop %v10073
  %v10154 = vmul.f32 %v10074, 0.5
  %v10155 = vmul.f32 %v10075, 0.5
  %v10156 = vmul.f32 %v10076, 0.5
  %v10157 = vmul.f32 %v10077, 0.5
  %v10158 = vmul.f32 %v10078, 0.5
  %v10159 = vmul.f32 %v10079, 0.5
  %v10160 = vmul.f32 %v10080, 0.5
  %v10161 = vmul.f32 %v10081, 0.5
  %v10162 = vmul.f32 %v10082, 0.5
  %v10163 = vmul.f32 %v10083, 0.5
  %v10164 = vmul.f32 %v10084, 0.5
  %v10165 = vmul.f32 %v10085, 0.5
  %v10166 = vmul.f32 %v10086, 0.5
  %v10167 = vmul.f32 %v10087, 0.5
  %v10168 = vmul.f32 %v10088, 0.5
  %v10169 = vmul.f32 %v10089, 0.5
  %v10170 = vmul.f32 %v10090, 0.5
  %v10171 = vmul.f32 %v10091, 0.5
  %v10172 = vmul.f32 %v10092, 0.5
  %v10173 = vmul.f32 %v10093, 0.5
  %v10174 = vmul.f32 %v10094, 0.5
  %v10175 = vmul.f32 %v10095, 0.5
  %v10176 = vmul.f32 %v10096, 0.5
  %v10177 = vmul.f32 %v10097, 0.5
  %v10178 = vmul.f32 %v10098, 0.5
  %v10179 = vmul.f32 %v10099, 0.5
  %v10180 = vmul.f32 %v10100, 0.5
  %v10181 = vmul.f32 %v10101, 0.5
  %v10182 = vmul.f32 %v10102, 0.5
  %v10183 = vmul.f32 %v10103, 0.5
  %v10184 = vmul.f32 %v10104, 0.5
  %v10185 = vmul.f32 %v10105, 0.5
  %v10186 = vmul.f32 %v10106, 0.5
  %v10187 = vmul.f32 %v10107, 0.5
  %v10188 = vmul.f32 %v10108, 0.5
  %v10189 = vmul.f32 %v10109, 0.5
  %v10190 = vmul.f32 %v10110, 0.5
  %v10191 = vmul.f32 %v10111, 0.5
  %v10192 = vmul.f32 %v10112, 0.5
  %v10193 = vmul.f32 %v10113, 0.5
  %v10194 = vmul.f32 %v10114, 0.5
  %v10195 = vmul.f32 %v10115, 0.5
  %v10196 = vmul.f32 %v10116, 0.5
  %v10197 = vmul.f32 %v10117, 0.5
  %v10198 = vmul.f32 %v10118, 0.5
  %v10199 = vmul.f32 %v10119, 0.5
  %v10200 = vmul.f32 %v10120, 0.5
  %v10201 = vmul.f32 %v10121, 0.5
  %v10202 = vmul.f32 %v10122, 0.5
  %v10203 = vmul.f32 %v10123, 0.5
  %v10204 = vmul.f32 %v10124, 0.5
  %v10205 = vmul.f32 %v10125, 0.5
  %v10206 = vmul.f32 %v10126, 0.5
  %v10207 = vmul.f32 %v10127, 0.5
  %v10208 = vmul.f32 %v10128, 0.5
  %v10209 = vmul.f32 %v10129, 0.5
  %v10210 = vmul.f32 %v10130, 0.5
  %v10211 = vmul.f32 %v10131, 0.5
  %v10212 = vmul.f32 %v10132, 0.5
  %v10213 = vmul.f32 %v10133, 0.5
  %v10214 = vmul.f32 %v10134, 0.5
  %v10215 = vmul.f32 %v10135, 0.5
  %v10216 = vmul.f32 %v10136, 0.5
  %v10217 = vmul.f32 %v10137, 0.5
  %v10218 = vmul.f32 %v10138, 0.5
  %v10219 = vmul.f32 %v10139, 0.5
  %v10220 = vmul.f32 %v10140, 0.5
  %v10221 = vmul.f32 %v10141, 0.5
  %v10222 = vmul.f32 %v10142, 0.5
  %v10223 = vmul.f32 %v10143, 0.5
  %v10224 = vmul.f32 %v10144, 0.5
  %v10225 = vmul.f32 %v10145, 0.5
  %v10226 = vmul.f32 %v10146, 0.5
  %v10227 = vmul.f32 %v10147, 0.5
  %v10228 = vmul.f32 %v10148, 0.5
  %v10229 = vmul.f32 %v10149, 0.5
  %v10230 = vmul.f32 %v10150, 0.5
  %v10231 = vmul.f32 %v10151, 0.5
  %v10232 = vmul.f32 %v10152, 0.5
  %v10233 = vmul.f32 %v10153, 0.5
  %v10234 = vadd.f32 %v10154, 0.5
  %v10235 = vadd.f32 %v10155, 0.5
  %v10236 = vadd.f32 %v10156, 0.5
  %v10237 = vadd.f32 %v10157, 0.5
  %v10238 = vadd.f32 %v10158, 0.5
  %v10239 = vadd.f32 %v10159, 0.5
  %v10240 = vadd.f32 %v10160, 0.5
  %v10241 = vadd.f32 %v10161, 0.5
  %v10242 = vadd.f32 %v10162, 0.5
  %v10243 = vadd.f32 %v10163, 0.5
  %v10244 = vadd.f32 %v10164, 0.5
  %v10245 = vadd.f32 %v10165, 0.5
  %v10246 = vadd.f32 %v10166, 0.5
  %v10247 = vadd.f32 %v10167, 0.5
  %v10248 = vadd.f32 %v10168, 0.5
  %v10249 = vadd.f32 %v10169, 0.5
  %v10250 = vadd.f32 %v10170, 0.5
  %v10251 = vadd.f32 %v10171, 0.5
  %v10252 = vadd.f32 %v10172, 0.5
  %v10253 = vadd.f32 %v10173, 0.5
  %v10254 = vadd.f32 %v10174, 0.5
  %v10255 = vadd.f32 %v10175, 0.5
  %v10256 = vadd.f32 %v10176, 0.5
  %v10257 = vadd.f32 %v10177, 0.5
  %v10258 = vadd.f32 %v10178, 0.5
  %v10259 = vadd.f32 %v10179, 0.5
  %v10260 = vadd.f32 %v10180, 0.5
  %v10261 = vadd.f32 %v10181, 0.5
  %v10262 = vadd.f32 %v10182, 0.5
  %v10263 = vadd.f32 %v10183, 0.5
  %v10264 = vadd.f32 %v10184, 0.5
  %v10265 = vadd.f32 %v10185, 0.5
  %v10266 = vadd.f32 %v10186, 0.5
  %v10267 = vadd.f32 %v10187, 0.5
  %v10268 = vadd.f32 %v10188, 0.5
  %v10269 = vadd.f32 %v10189, 0.5
  %v10270 = vadd.f32 %v10190, 0.5
  %v10271 = vadd.f32 %v10191, 0.5
  %v10272 = vadd.f32 %v10192, 0.5
  %v10273 = vadd.f32 %v10193, 0.5
  %v10274 = vadd.f32 %v10194, 0.5
  %v10275 = vadd.f32 %v10195, 0.5
  %v10276 = vadd.f32 %v10196, 0.5
  %v10277 = vadd.f32 %v10197, 0.5
  %v10278 = vadd.f32 %v10198, 0.5
  %v10279 = vadd.f32 %v10199, 0.5
  %v10280 = vadd.f32 %v10200, 0.5
  %v10281 = vadd.f32 %v10201, 0.5
  %v10282 = vadd.f32 %v10202, 0.5
  %v10283 = vadd.f32 %v10203, 0.5
  %v10284 = vadd.f32 %v10204, 0.5
  %v10285 = vadd.f32 %v10205, 0.5
  %v10286 = vadd.f32 %v10206, 0.5
  %v10287 = vadd.f32 %v10207, 0.5
  %v10288 = vadd.f32 %v10208, 0.5
  %v10289 = vadd.f32 %v10209, 0.5
  %v10290 = vadd.f32 %v10210, 0.5
  %v10291 = vadd.f32 %v10211, 0.5
  %v10292 = vadd.f32 %v10212, 0.5
  %v10293 = vadd.f32 %v10213, 0.5
  %v10294 = vadd.f32 %v10214, 0.5
  %v10295 = vadd.f32 %v10215, 0.5
  %v10296 = vadd.f32 %v10216, 0.5
  %v10297 = vadd.f32 %v10217, 0.5
  %v10298 = vadd.f32 %v10218, 0.5
  %v10299 = vadd.f32 %v10219, 0.5
  %v10300 = vadd.f32 %v10220, 0.5
  %v10301 = vadd.f32 %v10221, 0.5
  %v10302 = vadd.f32 %v10222, 0.5
  %v10303 = vadd.f32 %v10223, 0.5
  %v10304 = vadd.f32 %v10224, 0.5
  %v10305 = vadd.f32 %v10225, 0.5
  %v10306 = vadd.f32 %v10226, 0.5
  %v10307 = vadd.f32 %v10227, 0.5
  %v10308 = vadd.f32 %v10228, 0.5
  %v10309 = vadd.f32 %v10229, 0.5
  %v10310 = vadd.f32 %v10230, 0.5
  %v10311 = vadd.f32 %v10231, 0.5
  %v10312 = vadd.f32 %v10232, 0.5
  %v10313 = vadd.f32 %v10233, 0.5
  %10314 = vst [vmem:[%s9] sm:$0xff] %v10234
  %10315 = vst [vmem:[%s9 + $0x8] sm:$0xff] %v10235
  %10316 = vst [vmem:[%s9 + $0x10] sm:$0xff] %v10236
  %10317 = vst [vmem:[%s9 + $0x18] sm:$0xff] %v10237
  %10318 = vst [vmem:[%s9 + $0x20] sm:$0xff] %v10238
  %10319 = vst [vmem:[%s9 + $0x28] sm:$0xff] %v10239
  %10320 = vst [vmem:[%s9 + $0x30] sm:$0xff] %v10240
  %10321 = vst [vmem:[%s9 + $0x38] sm:$0xff] %v10241
  %10322 = vst [vmem:[%s9 + $0x40] sm:$0xff] %v10242
  %10323 = vst [vmem:[%s9 + $0x48] sm:$0xff] %v10243
  %10324 = vst [vmem:[%s9 + $0x50] sm:$0xff] %v10244
  %10325 = vst [vmem:[%s9 + $0x58] sm:$0xff] %v10245
  %10326 = vst [vmem:[%s9 + $0x60] sm:$0xff] %v10246
  %10327 = vst [vmem:[%s9 + $0x68] sm:$0xff] %v10247
  %10328 = vst [vmem:[%s9 + $0x70] sm:$0xff] %v10248
  %10329 = vst [vmem:[%s9 + $0x78] sm:$0xff] %v10249
  %10330 = vst [vmem:[%s9 + $0x80] sm:$0xff] %v10250
  %10331 = vst [vmem:[%s9 + $0x88] sm:$0xff] %v10251
  %10332 = vst [vmem:[%s9 + $0x90] sm:$0xff] %v10252
  %10333 = vst [vmem:[%s9 + $0x98] sm:$0xff] %v10253
  %10334 = vst [vmem:[%s9 + $0xa0] sm:$0xff] %v10254
  %10335 = vst [vmem:[%s9 + $0xa8] sm:$0xff] %v10255
  %10336 = vst [vmem:[%s9 + $0xb0] sm:$0xff] %v10256
  %10337 = vst [vmem:[%s9 + $0xb8] sm:$0xff] %v10257
  %10338 = vst [vmem:[%s9 + $0xc0] sm:$0xff] %v10258
  %10339 = vst [vmem:[%s9 + $0xc8] sm:$0xff] %v10259
  %10340 = vst [vmem:[%s9 + $0xd0] sm:$0xff] %v10260
  %10341 = vst [vmem:[%s9 + $0xd8] sm:$0xff] %v10261
  %10342 = vst [vmem:[%s9 + $0xe0] sm:$0xff] %v10262
  %10343 = vst [vmem:[%s9 + $0xe8] sm:$0xff] %v10263
  %10344 = vst [vmem:[%s9 + $0xf0] sm:$0xff] %v10264
  %10345 = vst [vmem:[%s9 + $0xf8] sm:$0xff] %v10265
  %10346 = vst [vmem:[%s9 + $0x100] sm:$0xff] %v10266
  %10347 = vst [vmem:[%s9 + $0x108] sm:$0xff] %v10267
  %10348 = vst [vmem:[%s9 + $0x110] sm:$0xff] %v10268
  %10349 = vst [vmem:[%s9 + $0x118] sm:$0xff] %v10269
  %10350 = vst [vmem:[%s9 + $0x120] sm:$0xff] %v10270
  %10351 = vst [vmem:[%s9 + $0x128] sm:$0xff] %v10271
  %10352 = vst [vmem:[%s9 + $0x130] sm:$0xff] %v10272
  %10353 = vst.msk [vmem:[%s9 + $0x138] sm:$0xff] %vm3915, %v10273
  %10354 = vst [vmem:[%s9 + $0x140] sm:$0xff] %v10274
  %10355 = vst [vmem:[%s9 + $0x148] sm:$0xff] %v10275
  %10356 = vst [vmem:[%s9 + $0x150] sm:$0xff] %v10276
  %10357 = vst [vmem:[%s9 + $0x158] sm:$0xff] %v10277
  %10358 = vst [vmem:[%s9 + $0x160] sm:$0xff] %v10278
  %10359 = vst [vmem:[%s9 + $0x168] sm:$0xff] %v10279
  %10360 = vst [vmem:[%s9 + $0x170] sm:$0xff] %v10280
  %10361 = vst [vmem:[%s9 + $0x178] sm:$0xff] %v10281
  %10362 = vst [vmem:[%s9 + $0x180] sm:$0xff] %v10282
  %10363 = vst [vmem:[%s9 + $0x188] sm:$0xff] %v10283
  %10364 = vst [vmem:[%s9 + $0x190] sm:$0xff] %v10284
  %10365 = vst [vmem:[%s9 + $0x198] sm:$0xff] %v10285
  %10366 = vst [vmem:[%s9 + $0x1a0] sm:$0xff] %v10286
  %10367 = vst [vmem:[%s9 + $0x1a8] sm:$0xff] %v10287
  %10368 = vst [vmem:[%s9 + $0x1b0] sm:$0xff] %v10288
  %10369 = vst [vmem:[%s9 + $0x1b8] sm:$0xff] %v10289
  %10370 = vst [vmem:[%s9 + $0x1c0] sm:$0xff] %v10290
  %10371 = vst [vmem:[%s9 + $0x1c8] sm:$0xff] %v10291
  %10372 = vst [vmem:[%s9 + $0x1d0] sm:$0xff] %v10292
  %10373 = vst [vmem:[%s9 + $0x1d8] sm:$0xff] %v10293
  %10374 = vst [vmem:[%s9 + $0x1e0] sm:$0xff] %v10294
  %10375 = vst [vmem:[%s9 + $0x1e8] sm:$0xff] %v10295
  %10376 = vst [vmem:[%s9 + $0x1f0] sm:$0xff] %v10296
  %10377 = vst [vmem:[%s9 + $0x1f8] sm:$0xff] %v10297
  %10378 = vst [vmem:[%s9 + $0x200] sm:$0xff] %v10298
  %10379 = vst [vmem:[%s9 + $0x208] sm:$0xff] %v10299
  %10380 = vst [vmem:[%s9 + $0x210] sm:$0xff] %v10300
  %10381 = vst [vmem:[%s9 + $0x218] sm:$0xff] %v10301
  %10382 = vst [vmem:[%s9 + $0x220] sm:$0xff] %v10302
  %10383 = vst [vmem:[%s9 + $0x228] sm:$0xff] %v10303
  %10384 = vst [vmem:[%s9 + $0x230] sm:$0xff] %v10304
  %10385 = vst [vmem:[%s9 + $0x238] sm:$0xff] %v10305
  %10386 = vst [vmem:[%s9 + $0x240] sm:$0xff] %v10306
  %10387 = vst [vmem:[%s9 + $0x248] sm:$0xff] %v10307
  %10388 = vst [vmem:[%s9 + $0x250] sm:$0xff] %v10308
  %10389 = vst [vmem:[%s9 + $0x258] sm:$0xff] %v10309
  %10390 = vst [vmem:[%s9 + $0x260] sm:$0xff] %v10310
  %10391 = vst [vmem:[%s9 + $0x268] sm:$0xff] %v10311
  %10392 = vst [vmem:[%s9 + $0x270] sm:$0xff] %v10312
  %10393 = vst.msk [vmem:[%s9 + $0x278] sm:$0xff] %vm3915, %v10313
  // Predicated region
  $region38: #{autoencoder_forward.1} parent=0 // pred_check
    _
  $region39: #{autoencoder_forward.1} parent=0 // pred_check_branch
    %10395 = sbr.rel (0) target = $region41
  $region40: #{autoencoder_forward.1} parent=0 // pred_region
    _
  $region41: #{autoencoder_forward.1} parent=0 // pred_fallthru
    _
  // Predicated region
  $region42: #{autoencoder_forward.1} parent=0 // pred_check
    _
  $region43: #{autoencoder_forward.1} parent=0 // pred_check_branch
    %10397 = sbr.rel (0) target = $region45
  $region44: #{autoencoder_forward.1} parent=0 // pred_region
    _
  $region45: #{autoencoder_forward.1} parent=0 // pred_fallthru
    _

</llo_original>
